<compile_context>
chip_gen: v5e
topology: v5e:2x2
jax: 0.10.0
libtpu: 0.0.40
codegen_flags: <defaults>
</compile_context>

<pallas_src>
import functools
import math

import jax
import jax.numpy as jnp
from jax.experimental import pallas as pl
from jax.experimental.pallas import tpu as pltpu

NEG_INF = -1e30        # large-negative stand-in for float('-inf') mask entries
LN_EPS = 1e-5          # PyTorch LayerNorm default eps

_VMEM_SPEC = pl.BlockSpec(memory_space=pltpu.MemorySpace.VMEM)


# --------------------- traced helpers (used inside kernels) -----------------

def _add_layernorm(x, r, g, b):
    """LayerNorm(x + r) with weight g, bias b (post-norm residual block)."""
    y = x + r
    mu = jnp.mean(y, axis=-1, keepdims=True)
    d = y - mu
    var = jnp.mean(d * d, axis=-1, keepdims=True)
    return d * jax.lax.rsqrt(var + LN_EPS) * g + b


def _mha(q, k, v, key_bias, causal, *, nhead, B, Tq, Tk, D, scale):
    """Multi-head attention on batch-major 2-D slabs.

    q: (B*Tq, D), k/v: (B*Tk, D), key_bias: (B, Tk) additive (0 / NEG_INF),
    causal: (Tq, Tk) additive or None.  Static Python loops over batch/head
    keep everything a 2-D matmul (B and nhead are tiny and compile-time).
    Returns (B*Tq, D).
    """
    dh = D // nhead
    out_rows = []
    for b in range(B):
        qb = q[b * Tq:(b + 1) * Tq, :]
        kb = k[b * Tk:(b + 1) * Tk, :]
        vb = v[b * Tk:(b + 1) * Tk, :]
        kbias = key_bias[b:b + 1, :]                      # (1, Tk), keep 2-D
        heads = []
        for h in range(nhead):
            lo, hi = h * dh, (h + 1) * dh
            s = jax.lax.dot_general(
                qb[:, lo:hi], kb[:, lo:hi],
                (((1,), (1,)), ((), ())),                 # q @ k^T
                preferred_element_type=jnp.float32) * scale
            s = s + kbias
            if causal is not None:
                s = s + causal
            m = jnp.max(s, axis=-1, keepdims=True)
            p = jnp.exp(s - m)
            p = p * pl.reciprocal(jnp.sum(p, axis=-1, keepdims=True),
                                  approx=True)
            heads.append(jnp.dot(p, vb[:, lo:hi],
                                 preferred_element_type=jnp.float32))
        out_rows.append(jnp.concatenate(heads, axis=-1))
    return jnp.concatenate(out_rows, axis=0)


# ----------------------------- Pallas kernel ---------------------------------

_ENC_ORDER = ("wqkv", "bqkv", "wo", "bo", "ln1g", "ln1b",
              "w1", "b1", "w2", "b2", "ln2g", "ln2b")
_DEC_ORDER = ("sa_wqkv", "sa_bqkv", "sa_wo", "sa_bo", "ln1g", "ln1b",
              "ca_wq", "ca_bq", "ca_wkv", "ca_bkv", "ca_wo", "ca_bo",
              "ln2g", "ln2b",
              "w1", "b1", "w2", "b2", "ln3g", "ln3b")


def _transformer_kernel(*refs, nlayers_enc, nlayers_dec, nhead, B, S, T, D):
    n_enc, n_dec = len(_ENC_ORDER), len(_DEC_ORDER)
    x_src_ref, x_tgt_ref, src_ids_ref, tgt_ids_ref = refs[:4]
    enc = dict(zip(_ENC_ORDER, refs[4:4 + n_enc]))
    dec = dict(zip(_DEC_ORDER, refs[4 + n_enc:4 + n_enc + n_dec]))
    out_w_ref = refs[4 + n_enc + n_dec]
    out_b_ref = refs[5 + n_enc + n_dec]
    o_ref = refs[6 + n_enc + n_dec]

    scale = 1.0 / math.sqrt(D // nhead)

    # --- masks built in-kernel (no HBM mask arrays) ---
    src_kpm = jnp.where(src_ids_ref[...] == 0, NEG_INF, 0.0)        # (B, S)
    tgt_kpm = jnp.where(tgt_ids_ref[...] == 0, NEG_INF, 0.0)        # (B, T)
    rows = jax.lax.broadcasted_iota(jnp.int32, (T, T), 0)
    cols = jax.lax.broadcasted_iota(jnp.int32, (T, T), 1)
    causal = jnp.where(cols > rows, NEG_INF, 0.0)                   # (T, T)

    # ------------------------- encoder stack --------------------------------
    x = x_src_ref[...]                                              # (B*S, D)
    for l in range(nlayers_enc):        # static unroll; weights VMEM-resident
        qkv = jnp.dot(x, enc["wqkv"][l],
                      preferred_element_type=jnp.float32) + enc["bqkv"][l]
        q, k, v = qkv[:, :D], qkv[:, D:2 * D], qkv[:, 2 * D:]
        attn = _mha(q, k, v, src_kpm, None,
                    nhead=nhead, B=B, Tq=S, Tk=S, D=D, scale=scale)
        sa = jnp.dot(attn, enc["wo"][l],
                     preferred_element_type=jnp.float32) + enc["bo"][l]
        x = _add_layernorm(x, sa, enc["ln1g"][l], enc["ln1b"][l])
        h1 = jnp.maximum(
            jnp.dot(x, enc["w1"][l], preferred_element_type=jnp.float32)
            + enc["b1"][l], 0.0)
        ff = jnp.dot(h1, enc["w2"][l],
                     preferred_element_type=jnp.float32) + enc["b2"][l]
        x = _add_layernorm(x, ff, enc["ln2g"][l], enc["ln2b"][l])
    mem = x                                                         # (B*S, D)

    # ------------------------- decoder stack --------------------------------
    x = x_tgt_ref[...]                                              # (B*T, D)
    for l in range(nlayers_dec):
        # masked self-attention (fused QKV)
        qkv = jnp.dot(x, dec["sa_wqkv"][l],
                      preferred_element_type=jnp.float32) + dec["sa_bqkv"][l]
        q, k, v = qkv[:, :D], qkv[:, D:2 * D], qkv[:, 2 * D:]
        attn = _mha(q, k, v, tgt_kpm, causal,
                    nhead=nhead, B=B, Tq=T, Tk=T, D=D, scale=scale)
        sa = jnp.dot(attn, dec["sa_wo"][l],
                     preferred_element_type=jnp.float32) + dec["sa_bo"][l]
        x = _add_layernorm(x, sa, dec["ln1g"][l], dec["ln1b"][l])

        # cross-attention (fused KV over encoder memory)
        qc = jnp.dot(x, dec["ca_wq"][l],
                     preferred_element_type=jnp.float32) + dec["ca_bq"][l]
        kv = jnp.dot(mem, dec["ca_wkv"][l],
                     preferred_element_type=jnp.float32) + dec["ca_bkv"][l]
        kc, vc = kv[:, :D], kv[:, D:]
        attn = _mha(qc, kc, vc, src_kpm, None,
                    nhead=nhead, B=B, Tq=T, Tk=S, D=D, scale=scale)
        ca = jnp.dot(attn, dec["ca_wo"][l],
                     preferred_element_type=jnp.float32) + dec["ca_bo"][l]
        x = _add_layernorm(x, ca, dec["ln2g"][l], dec["ln2b"][l])

        # feed-forward
        h1 = jnp.maximum(
            jnp.dot(x, dec["w1"][l], preferred_element_type=jnp.float32)
            + dec["b1"][l], 0.0)
        ff = jnp.dot(h1, dec["w2"][l],
                     preferred_element_type=jnp.float32) + dec["b2"][l]
        x = _add_layernorm(x, ff, dec["ln3g"][l], dec["ln3b"][l])

    # fused final vocab projection (MyTransformer.linear) -> lane-dense store
    o_ref[...] = jnp.dot(x, out_w_ref[...],
                         preferred_element_type=jnp.float32) + out_b_ref[...]


# ------------------------------ kernel wrapper --------------------------------

def transformer_fused(x_src, x_tgt, src_ids, tgt_ids, enc_p, dec_p,
                      out_w, out_b, *, nlayers_enc, nlayers_dec, nhead,
                      B, S, T, D):
    V = out_w.shape[1]
    inputs = ([x_src, x_tgt, src_ids, tgt_ids]
              + [enc_p[k] for k in _ENC_ORDER]
              + [dec_p[k] for k in _DEC_ORDER]
              + [out_w, out_b])
    return pl.pallas_call(
        functools.partial(_transformer_kernel,
                          nlayers_enc=nlayers_enc, nlayers_dec=nlayers_dec,
                          nhead=nhead, B=B, S=S, T=T, D=D),
        out_shape=jax.ShapeDtypeStruct((B * T, V), jnp.float32),
        in_specs=[_VMEM_SPEC] * len(inputs),
        out_specs=_VMEM_SPEC,
    )(*inputs)


# ------------------------------ model forward --------------------------------

def my_transformer_forward(src, tgt, params, *, d_model, nhead,
                           nlayers_enc, nlayers_dec):
    """MyTransformer.forward(src, tgt, eval=False) — eval-mode (no dropout)."""
    B, S = src.shape
    _, T = tgt.shape
    D = d_model

    # TODO(synk): embedding gather + positional-encoding add kept in plain JAX
    # (tiny glue; a data-dependent row gather has no clean BlockSpec form).
    emb_src = jnp.take(params["embed_src"], src, axis=0)          # (B, S, D)
    emb_tgt = jnp.take(params["embed_tgt"], tgt, axis=0)          # (B, T, D)
    pe = params["pe"]
    x_src = (emb_src + pe[None, :S, :]).reshape(B * S, D)
    x_tgt = (emb_tgt + pe[None, :T, :]).reshape(B * T, D)

    logits = transformer_fused(
        x_src, x_tgt, src.astype(jnp.int32), tgt.astype(jnp.int32),
        params["enc"], params["dec"], params["out_w"], params["out_b"],
        nlayers_enc=nlayers_enc, nlayers_dec=nlayers_dec, nhead=nhead,
        B=B, S=S, T=T, D=D)
    V = params["out_w"].shape[1]
    # PyTorch returns (T, B, ntoken_tgt)
    return logits.reshape(B, T, V).transpose(1, 0, 2)


# ------------------------------ parameter init -------------------------------

def make_positional_encoding(max_len, d_model):
    position = jnp.arange(max_len, dtype=jnp.float32)[:, None]
    div_term = jnp.exp(jnp.arange(0, d_model, 2, dtype=jnp.float32)
                       * (-math.log(10000.0) / d_model))
    pe = jnp.zeros((max_len, d_model), jnp.float32)
    pe = pe.at[:, 0::2].set(jnp.sin(position * div_term))
    pe = pe.at[:, 1::2].set(jnp.cos(position * div_term))
    return pe


def init_params(key, *, d_model, nhead, dim_ff, nlayers_enc, nlayers_dec,
                ntoken_src, ntoken_tgt, max_len=64):
    D, F = d_model, dim_ff

    def w(k, shape, scale=0.05):
        return (scale * jax.random.normal(k, shape)).astype(jnp.float32)

    # All weights are stored PRE-TRANSPOSED ((Din, Dout)) so kernels never
    # transpose at runtime.
    def enc_layer(k):
        ks = jax.random.split(k, 8)
        return {
            "wqkv": w(ks[0], (D, 3 * D)), "bqkv": w(ks[1], (1, 3 * D)),
            "wo": w(ks[2], (D, D)), "bo": w(ks[3], (1, D)),
            "ln1g": jnp.ones((1, D), jnp.float32),
            "ln1b": jnp.zeros((1, D), jnp.float32),
            "w1": w(ks[4], (D, F)), "b1": w(ks[5], (1, F)),
            "w2": w(ks[6], (F, D)), "b2": w(ks[7], (1, D)),
            "ln2g": jnp.ones((1, D), jnp.float32),
            "ln2b": jnp.zeros((1, D), jnp.float32),
        }

    def dec_layer(k):
        ks = jax.random.split(k, 14)
        return {
            "sa_wqkv": w(ks[0], (D, 3 * D)), "sa_bqkv": w(ks[1], (1, 3 * D)),
            "sa_wo": w(ks[2], (D, D)), "sa_bo": w(ks[3], (1, D)),
            "ln1g": jnp.ones((1, D), jnp.float32),
            "ln1b": jnp.zeros((1, D), jnp.float32),
            "ca_wq": w(ks[4], (D, D)), "ca_bq": w(ks[5], (1, D)),
            "ca_wkv": w(ks[6], (D, 2 * D)), "ca_bkv": w(ks[7], (1, 2 * D)),
            "ca_wo": w(ks[8], (D, D)), "ca_bo": w(ks[9], (1, D)),
            "ln2g": jnp.ones((1, D), jnp.float32),
            "ln2b": jnp.zeros((1, D), jnp.float32),
            "w1": w(ks[10], (D, F)), "b1": w(ks[11], (1, F)),
            "w2": w(ks[12], (F, D)), "b2": w(ks[13], (1, D)),
            "ln3g": jnp.ones((1, D), jnp.float32),
            "ln3b": jnp.zeros((1, D), jnp.float32),
        }

    kk = jax.random.split(key, 4)
    enc_layers = [enc_layer(jax.random.fold_in(kk[0], l))
                  for l in range(nlayers_enc)]
    dec_layers = [dec_layer(jax.random.fold_in(kk[1], l))
                  for l in range(nlayers_dec)]
    # stack per-layer params along a leading layer axis (kernel indexes ref[l])
    enc_p = jax.tree_util.tree_map(lambda *xs: jnp.stack(xs, 0), *enc_layers)
    dec_p = jax.tree_util.tree_map(lambda *xs: jnp.stack(xs, 0), *dec_layers)

    return {
        "embed_src": w(jax.random.fold_in(kk[2], 0), (ntoken_src, D), 0.1),
        "embed_tgt": w(jax.random.fold_in(kk[2], 1), (ntoken_tgt, D), 0.1),
        "pe": make_positional_encoding(max_len, D),
        "enc": enc_p,
        "dec": dec_p,
        "out_w": w(jax.random.fold_in(kk[3], 0), (D, ntoken_tgt)),
        "out_b": w(jax.random.fold_in(kk[3], 1), (1, ntoken_tgt)),
    }


# ----------------------------------- main ------------------------------------

if __name__ == "__main__":
    d_model, nhead, dim_ff = 32, 4, 64
    nlayers_enc, nlayers_dec, dropout = 2, 2, 0.0   # dropout identity (eval)
    ntoken_src, ntoken_tgt = 100, 128               # vocab 128 -> lane-dense logits
    B, S, T = 2, 8, 8                               # batch, src len, tgt len

    key = jax.random.PRNGKey(0)
    k_src, k_tgt, k_par = jax.random.split(key, 3)
    src = jax.random.randint(k_src, (B, S), 1, ntoken_src, dtype=jnp.int32)
    tgt = jax.random.randint(k_tgt, (B, T), 1, ntoken_tgt, dtype=jnp.int32)
    # introduce some pad tokens (pad_idx=0) to exercise the key-padding masks
    src = src.at[0, -1].set(0)
    tgt = tgt.at[1, -2:].set(0)

    params = init_params(k_par, d_model=d_model, nhead=nhead, dim_ff=dim_ff,
                         nlayers_enc=nlayers_enc, nlayers_dec=nlayers_dec,
                         ntoken_src=ntoken_src, ntoken_tgt=ntoken_tgt)

    fwd = jax.jit(functools.partial(
        my_transformer_forward, d_model=d_model, nhead=nhead,
        nlayers_enc=nlayers_enc, nlayers_dec=nlayers_dec))
    out = fwd(src, tgt, params)
    jax.block_until_ready(out)
    assert out.shape == (T, B, ntoken_tgt) and out.dtype == jnp.float32
    assert bool(jnp.isfinite(out).all())
    print("KERNEL_OK")
</pallas_src>

<mosaic_0001>
module attributes {stable_mosaic.version = 11 : i64} {
  func.func @_transformer_kernel(%arg0: memref<16x32xf32, #tpu.memory_space<vmem>>, %arg1: memref<16x32xf32, #tpu.memory_space<vmem>>, %arg2: memref<2x8xi32, #tpu.memory_space<vmem>>, %arg3: memref<2x8xi32, #tpu.memory_space<vmem>>, %arg4: memref<2x32x96xf32, #tpu.memory_space<vmem>>, %arg5: memref<2x1x96xf32, #tpu.memory_space<vmem>>, %arg6: memref<2x32x32xf32, #tpu.memory_space<vmem>>, %arg7: memref<2x1x32xf32, #tpu.memory_space<vmem>>, %arg8: memref<2x1x32xf32, #tpu.memory_space<vmem>>, %arg9: memref<2x1x32xf32, #tpu.memory_space<vmem>>, %arg10: memref<2x32x64xf32, #tpu.memory_space<vmem>>, %arg11: memref<2x1x64xf32, #tpu.memory_space<vmem>>, %arg12: memref<2x64x32xf32, #tpu.memory_space<vmem>>, %arg13: memref<2x1x32xf32, #tpu.memory_space<vmem>>, %arg14: memref<2x1x32xf32, #tpu.memory_space<vmem>>, %arg15: memref<2x1x32xf32, #tpu.memory_space<vmem>>, %arg16: memref<2x32x96xf32, #tpu.memory_space<vmem>>, %arg17: memref<2x1x96xf32, #tpu.memory_space<vmem>>, %arg18: memref<2x32x32xf32, #tpu.memory_space<vmem>>, %arg19: memref<2x1x32xf32, #tpu.memory_space<vmem>>, %arg20: memref<2x1x32xf32, #tpu.memory_space<vmem>>, %arg21: memref<2x1x32xf32, #tpu.memory_space<vmem>>, %arg22: memref<2x32x32xf32, #tpu.memory_space<vmem>>, %arg23: memref<2x1x32xf32, #tpu.memory_space<vmem>>, %arg24: memref<2x32x64xf32, #tpu.memory_space<vmem>>, %arg25: memref<2x1x64xf32, #tpu.memory_space<vmem>>, %arg26: memref<2x32x32xf32, #tpu.memory_space<vmem>>, %arg27: memref<2x1x32xf32, #tpu.memory_space<vmem>>, %arg28: memref<2x1x32xf32, #tpu.memory_space<vmem>>, %arg29: memref<2x1x32xf32, #tpu.memory_space<vmem>>, %arg30: memref<2x32x64xf32, #tpu.memory_space<vmem>>, %arg31: memref<2x1x64xf32, #tpu.memory_space<vmem>>, %arg32: memref<2x64x32xf32, #tpu.memory_space<vmem>>, %arg33: memref<2x1x32xf32, #tpu.memory_space<vmem>>, %arg34: memref<2x1x32xf32, #tpu.memory_space<vmem>>, %arg35: memref<2x1x32xf32, #tpu.memory_space<vmem>>, %arg36: memref<32x128xf32, #tpu.memory_space<vmem>>, %arg37: memref<1x128xf32, #tpu.memory_space<vmem>>, %arg38: memref<16x128xf32, #tpu.memory_space<vmem>>) attributes {dimension_semantics = [], scalar_prefetch = 0 : i64, scratch_operands = 0 : i64, tpu.core_type = #tpu.core_type<tc>} {
    %c0 = arith.constant 0 : index
    %c0_0 = arith.constant 0 : index
    %0 = vector.load %arg2[%c0, %c0_0] : memref<2x8xi32, #tpu.memory_space<vmem>>, vector<2x8xi32>
    %c0_i32 = arith.constant 0 : i32
    %1 = vector.broadcast %c0_i32 : i32 to vector<2x8xi32>
    %2 = arith.cmpi eq, %0, %1 : vector<2x8xi32>
    %cst = arith.constant -1.000000e+30 : f32
    %cst_1 = arith.constant 0.000000e+00 : f32
    %3 = vector.broadcast %cst : f32 to vector<2x8xf32>
    %4 = vector.broadcast %cst_1 : f32 to vector<2x8xf32>
    %5 = arith.select %2, %3, %4 : vector<2x8xi1>, vector<2x8xf32>
    %c0_2 = arith.constant 0 : index
    %c0_3 = arith.constant 0 : index
    %6 = vector.load %arg3[%c0_2, %c0_3] : memref<2x8xi32, #tpu.memory_space<vmem>>, vector<2x8xi32>
    %c0_i32_4 = arith.constant 0 : i32
    %7 = vector.broadcast %c0_i32_4 : i32 to vector<2x8xi32>
    %8 = arith.cmpi eq, %6, %7 : vector<2x8xi32>
    %cst_5 = arith.constant -1.000000e+30 : f32
    %cst_6 = arith.constant 0.000000e+00 : f32
    %9 = vector.broadcast %cst_5 : f32 to vector<2x8xf32>
    %10 = vector.broadcast %cst_6 : f32 to vector<2x8xf32>
    %11 = arith.select %8, %9, %10 : vector<2x8xi1>, vector<2x8xf32>
    %12 = tpu.iota {dimensions = array<i32: 0>} : vector<8x8xi32>
    %13 = tpu.iota {dimensions = array<i32: 1>} : vector<8x8xi32>
    %14 = arith.cmpi sgt, %13, %12 : vector<8x8xi32>
    %cst_7 = arith.constant -1.000000e+30 : f32
    %cst_8 = arith.constant 0.000000e+00 : f32
    %15 = vector.broadcast %cst_7 : f32 to vector<8x8xf32>
    %16 = vector.broadcast %cst_8 : f32 to vector<8x8xf32>
    %17 = arith.select %14, %15, %16 : vector<8x8xi1>, vector<8x8xf32>
    %c0_9 = arith.constant 0 : index
    %c0_10 = arith.constant 0 : index
    %18 = vector.load %arg0[%c0_9, %c0_10] : memref<16x32xf32, #tpu.memory_space<vmem>>, vector<16x32xf32>
    %c0_11 = arith.constant 0 : index
    %c0_12 = arith.constant 0 : index
    %c0_13 = arith.constant 0 : index
    %19 = vector.load %arg4[%c0_11, %c0_12, %c0_13] : memref<2x32x96xf32, #tpu.memory_space<vmem>>, vector<1x32x96xf32>
    %20 = vector.shape_cast %19 : vector<1x32x96xf32> to vector<32x96xf32>
    %cst_14 = arith.constant dense<0.000000e+00> : vector<16x96xf32>
    %21 = tpu.matmul %18, %20, %cst_14 {dimension_numbers = #tpu.dot_dimension_numbers<[1], [0], [0], [1], [0, 0, 1, 1], [], []>} : vector<16x32xf32>, vector<32x96xf32>, vector<16x96xf32> -> vector<16x96xf32>
    %c0_15 = arith.constant 0 : index
    %c0_16 = arith.constant 0 : index
    %c0_17 = arith.constant 0 : index
    %22 = vector.load %arg5[%c0_15, %c0_16, %c0_17] : memref<2x1x96xf32, #tpu.memory_space<vmem>>, vector<1x1x96xf32>
    %23 = vector.shape_cast %22 : vector<1x1x96xf32> to vector<1x96xf32>
    %24 = vector.broadcast %23 : vector<1x96xf32> to vector<16x96xf32>
    %25 = arith.addf %21, %24 : vector<16x96xf32>
    %26 = vector.extract_strided_slice %25 {offsets = [0, 0], sizes = [16, 32], strides = [1, 1]} : vector<16x96xf32> to vector<16x32xf32>
    %27 = vector.extract_strided_slice %25 {offsets = [0, 32], sizes = [16, 32], strides = [1, 1]} : vector<16x96xf32> to vector<16x32xf32>
    %28 = vector.extract_strided_slice %25 {offsets = [0, 64], sizes = [16, 32], strides = [1, 1]} : vector<16x96xf32> to vector<16x32xf32>
    %29 = vector.extract_strided_slice %26 {offsets = [0, 0], sizes = [8, 32], strides = [1, 1]} : vector<16x32xf32> to vector<8x32xf32>
    %30 = vector.extract_strided_slice %27 {offsets = [0, 0], sizes = [8, 32], strides = [1, 1]} : vector<16x32xf32> to vector<8x32xf32>
    %31 = vector.extract_strided_slice %28 {offsets = [0, 0], sizes = [8, 32], strides = [1, 1]} : vector<16x32xf32> to vector<8x32xf32>
    %32 = vector.extract_strided_slice %5 {offsets = [0, 0], sizes = [1, 8], strides = [1, 1]} : vector<2x8xf32> to vector<1x8xf32>
    %33 = vector.extract_strided_slice %29 {offsets = [0, 0], sizes = [8, 8], strides = [1, 1]} : vector<8x32xf32> to vector<8x8xf32>
    %34 = vector.extract_strided_slice %30 {offsets = [0, 0], sizes = [8, 8], strides = [1, 1]} : vector<8x32xf32> to vector<8x8xf32>
    %cst_18 = arith.constant dense<0.000000e+00> : vector<8x8xf32>
    %35 = tpu.matmul %33, %34, %cst_18 {dimension_numbers = #tpu.dot_dimension_numbers<[1], [1], [0], [0], [0, 0, 1, 0], [], []>} : vector<8x8xf32>, vector<8x8xf32>, vector<8x8xf32> -> vector<8x8xf32>
    %cst_19 = arith.constant 0.353553385 : f32
    %36 = vector.broadcast %cst_19 : f32 to vector<8x8xf32>
    %37 = arith.mulf %35, %36 : vector<8x8xf32>
    %38 = vector.broadcast %32 : vector<1x8xf32> to vector<8x8xf32>
    %39 = arith.addf %37, %38 : vector<8x8xf32>
    %cst_20 = arith.constant dense<0xFF800000> : vector<8xf32>
    %40 = vector.multi_reduction <maximumf>, %39, %cst_20 [1] : vector<8x8xf32> to vector<8xf32>
    %41 = vector.shape_cast %40 : vector<8xf32> to vector<8x1xf32>
    %42 = vector.broadcast %41 : vector<8x1xf32> to vector<8x8xf32>
    %43 = arith.subf %39, %42 : vector<8x8xf32>
    %44 = math.exp %43 : vector<8x8xf32>
    %cst_21 = arith.constant dense<0.000000e+00> : vector<8xf32>
    %45 = vector.multi_reduction <add>, %44, %cst_21 [1] : vector<8x8xf32> to vector<8xf32>
    %46 = vector.shape_cast %45 : vector<8xf32> to vector<8x1xf32>
    %47 = tpu.reciprocal %46 {approx = true} : vector<8x1xf32> -> vector<8x1xf32>
    %48 = vector.broadcast %47 : vector<8x1xf32> to vector<8x8xf32>
    %49 = arith.mulf %44, %48 : vector<8x8xf32>
    %50 = vector.extract_strided_slice %31 {offsets = [0, 0], sizes = [8, 8], strides = [1, 1]} : vector<8x32xf32> to vector<8x8xf32>
    %cst_22 = arith.constant dense<0.000000e+00> : vector<8x8xf32>
    %51 = tpu.matmul %49, %50, %cst_22 {dimension_numbers = #tpu.dot_dimension_numbers<[1], [0], [0], [1], [0, 0, 1, 1], [], []>} : vector<8x8xf32>, vector<8x8xf32>, vector<8x8xf32> -> vector<8x8xf32>
    %52 = vector.extract_strided_slice %29 {offsets = [0, 8], sizes = [8, 8], strides = [1, 1]} : vector<8x32xf32> to vector<8x8xf32>
    %53 = vector.extract_strided_slice %30 {offsets = [0, 8], sizes = [8, 8], strides = [1, 1]} : vector<8x32xf32> to vector<8x8xf32>
    %cst_23 = arith.constant dense<0.000000e+00> : vector<8x8xf32>
    %54 = tpu.matmul %52, %53, %cst_23 {dimension_numbers = #tpu.dot_dimension_numbers<[1], [1], [0], [0], [0, 0, 1, 0], [], []>} : vector<8x8xf32>, vector<8x8xf32>, vector<8x8xf32> -> vector<8x8xf32>
    %cst_24 = arith.constant 0.353553385 : f32
    %55 = vector.broadcast %cst_24 : f32 to vector<8x8xf32>
    %56 = arith.mulf %54, %55 : vector<8x8xf32>
    %57 = vector.broadcast %32 : vector<1x8xf32> to vector<8x8xf32>
    %58 = arith.addf %56, %57 : vector<8x8xf32>
    %cst_25 = arith.constant dense<0xFF800000> : vector<8xf32>
    %59 = vector.multi_reduction <maximumf>, %58, %cst_25 [1] : vector<8x8xf32> to vector<8xf32>
    %60 = vector.shape_cast %59 : vector<8xf32> to vector<8x1xf32>
    %61 = vector.broadcast %60 : vector<8x1xf32> to vector<8x8xf32>
    %62 = arith.subf %58, %61 : vector<8x8xf32>
    %63 = math.exp %62 : vector<8x8xf32>
    %cst_26 = arith.constant dense<0.000000e+00> : vector<8xf32>
    %64 = vector.multi_reduction <add>, %63, %cst_26 [1] : vector<8x8xf32> to vector<8xf32>
    %65 = vector.shape_cast %64 : vector<8xf32> to vector<8x1xf32>
    %66 = tpu.reciprocal %65 {approx = true} : vector<8x1xf32> -> vector<8x1xf32>
    %67 = vector.broadcast %66 : vector<8x1xf32> to vector<8x8xf32>
    %68 = arith.mulf %63, %67 : vector<8x8xf32>
    %69 = vector.extract_strided_slice %31 {offsets = [0, 8], sizes = [8, 8], strides = [1, 1]} : vector<8x32xf32> to vector<8x8xf32>
    %cst_27 = arith.constant dense<0.000000e+00> : vector<8x8xf32>
    %70 = tpu.matmul %68, %69, %cst_27 {dimension_numbers = #tpu.dot_dimension_numbers<[1], [0], [0], [1], [0, 0, 1, 1], [], []>} : vector<8x8xf32>, vector<8x8xf32>, vector<8x8xf32> -> vector<8x8xf32>
    %71 = vector.extract_strided_slice %29 {offsets = [0, 16], sizes = [8, 8], strides = [1, 1]} : vector<8x32xf32> to vector<8x8xf32>
    %72 = vector.extract_strided_slice %30 {offsets = [0, 16], sizes = [8, 8], strides = [1, 1]} : vector<8x32xf32> to vector<8x8xf32>
    %cst_28 = arith.constant dense<0.000000e+00> : vector<8x8xf32>
    %73 = tpu.matmul %71, %72, %cst_28 {dimension_numbers = #tpu.dot_dimension_numbers<[1], [1], [0], [0], [0, 0, 1, 0], [], []>} : vector<8x8xf32>, vector<8x8xf32>, vector<8x8xf32> -> vector<8x8xf32>
    %cst_29 = arith.constant 0.353553385 : f32
    %74 = vector.broadcast %cst_29 : f32 to vector<8x8xf32>
    %75 = arith.mulf %73, %74 : vector<8x8xf32>
    %76 = vector.broadcast %32 : vector<1x8xf32> to vector<8x8xf32>
    %77 = arith.addf %75, %76 : vector<8x8xf32>
    %cst_30 = arith.constant dense<0xFF800000> : vector<8xf32>
    %78 = vector.multi_reduction <maximumf>, %77, %cst_30 [1] : vector<8x8xf32> to vector<8xf32>
    %79 = vector.shape_cast %78 : vector<8xf32> to vector<8x1xf32>
    %80 = vector.broadcast %79 : vector<8x1xf32> to vector<8x8xf32>
    %81 = arith.subf %77, %80 : vector<8x8xf32>
    %82 = math.exp %81 : vector<8x8xf32>
    %cst_31 = arith.constant dense<0.000000e+00> : vector<8xf32>
    %83 = vector.multi_reduction <add>, %82, %cst_31 [1] : vector<8x8xf32> to vector<8xf32>
    %84 = vector.shape_cast %83 : vector<8xf32> to vector<8x1xf32>
    %85 = tpu.reciprocal %84 {approx = true} : vector<8x1xf32> -> vector<8x1xf32>
    %86 = vector.broadcast %85 : vector<8x1xf32> to vector<8x8xf32>
    %87 = arith.mulf %82, %86 : vector<8x8xf32>
    %88 = vector.extract_strided_slice %31 {offsets = [0, 16], sizes = [8, 8], strides = [1, 1]} : vector<8x32xf32> to vector<8x8xf32>
    %cst_32 = arith.constant dense<0.000000e+00> : vector<8x8xf32>
    %89 = tpu.matmul %87, %88, %cst_32 {dimension_numbers = #tpu.dot_dimension_numbers<[1], [0], [0], [1], [0, 0, 1, 1], [], []>} : vector<8x8xf32>, vector<8x8xf32>, vector<8x8xf32> -> vector<8x8xf32>
    %90 = vector.extract_strided_slice %29 {offsets = [0, 24], sizes = [8, 8], strides = [1, 1]} : vector<8x32xf32> to vector<8x8xf32>
    %91 = vector.extract_strided_slice %30 {offsets = [0, 24], sizes = [8, 8], strides = [1, 1]} : vector<8x32xf32> to vector<8x8xf32>
    %cst_33 = arith.constant dense<0.000000e+00> : vector<8x8xf32>
    %92 = tpu.matmul %90, %91, %cst_33 {dimension_numbers = #tpu.dot_dimension_numbers<[1], [1], [0], [0], [0, 0, 1, 0], [], []>} : vector<8x8xf32>, vector<8x8xf32>, vector<8x8xf32> -> vector<8x8xf32>
    %cst_34 = arith.constant 0.353553385 : f32
    %93 = vector.broadcast %cst_34 : f32 to vector<8x8xf32>
    %94 = arith.mulf %92, %93 : vector<8x8xf32>
    %95 = vector.broadcast %32 : vector<1x8xf32> to vector<8x8xf32>
    %96 = arith.addf %94, %95 : vector<8x8xf32>
    %cst_35 = arith.constant dense<0xFF800000> : vector<8xf32>
    %97 = vector.multi_reduction <maximumf>, %96, %cst_35 [1] : vector<8x8xf32> to vector<8xf32>
    %98 = vector.shape_cast %97 : vector<8xf32> to vector<8x1xf32>
    %99 = vector.broadcast %98 : vector<8x1xf32> to vector<8x8xf32>
    %100 = arith.subf %96, %99 : vector<8x8xf32>
    %101 = math.exp %100 : vector<8x8xf32>
    %cst_36 = arith.constant dense<0.000000e+00> : vector<8xf32>
    %102 = vector.multi_reduction <add>, %101, %cst_36 [1] : vector<8x8xf32> to vector<8xf32>
    %103 = vector.shape_cast %102 : vector<8xf32> to vector<8x1xf32>
    %104 = tpu.reciprocal %103 {approx = true} : vector<8x1xf32> -> vector<8x1xf32>
    %105 = vector.broadcast %104 : vector<8x1xf32> to vector<8x8xf32>
    %106 = arith.mulf %101, %105 : vector<8x8xf32>
    %107 = vector.extract_strided_slice %31 {offsets = [0, 24], sizes = [8, 8], strides = [1, 1]} : vector<8x32xf32> to vector<8x8xf32>
    %cst_37 = arith.constant dense<0.000000e+00> : vector<8x8xf32>
    %108 = tpu.matmul %106, %107, %cst_37 {dimension_numbers = #tpu.dot_dimension_numbers<[1], [0], [0], [1], [0, 0, 1, 1], [], []>} : vector<8x8xf32>, vector<8x8xf32>, vector<8x8xf32> -> vector<8x8xf32>
    %109 = tpu.concatenate %51, %70, %89, %108 in 1 : vector<8x8xf32>, vector<8x8xf32>, vector<8x8xf32>, vector<8x8xf32> -> vector<8x32xf32>
    %110 = vector.extract_strided_slice %26 {offsets = [8, 0], sizes = [8, 32], strides = [1, 1]} : vector<16x32xf32> to vector<8x32xf32>
    %111 = vector.extract_strided_slice %27 {offsets = [8, 0], sizes = [8, 32], strides = [1, 1]} : vector<16x32xf32> to vector<8x32xf32>
    %112 = vector.extract_strided_slice %28 {offsets = [8, 0], sizes = [8, 32], strides = [1, 1]} : vector<16x32xf32> to vector<8x32xf32>
    %113 = vector.extract_strided_slice %5 {offsets = [1, 0], sizes = [1, 8], strides = [1, 1]} : vector<2x8xf32> to vector<1x8xf32>
    %114 = vector.extract_strided_slice %110 {offsets = [0, 0], sizes = [8, 8], strides = [1, 1]} : vector<8x32xf32> to vector<8x8xf32>
    %115 = vector.extract_strided_slice %111 {offsets = [0, 0], sizes = [8, 8], strides = [1, 1]} : vector<8x32xf32> to vector<8x8xf32>
    %cst_38 = arith.constant dense<0.000000e+00> : vector<8x8xf32>
    %116 = tpu.matmul %114, %115, %cst_38 {dimension_numbers = #tpu.dot_dimension_numbers<[1], [1], [0], [0], [0, 0, 1, 0], [], []>} : vector<8x8xf32>, vector<8x8xf32>, vector<8x8xf32> -> vector<8x8xf32>
    %cst_39 = arith.constant 0.353553385 : f32
    %117 = vector.broadcast %cst_39 : f32 to vector<8x8xf32>
    %118 = arith.mulf %116, %117 : vector<8x8xf32>
    %119 = vector.broadcast %113 : vector<1x8xf32> to vector<8x8xf32>
    %120 = arith.addf %118, %119 : vector<8x8xf32>
    %cst_40 = arith.constant dense<0xFF800000> : vector<8xf32>
    %121 = vector.multi_reduction <maximumf>, %120, %cst_40 [1] : vector<8x8xf32> to vector<8xf32>
    %122 = vector.shape_cast %121 : vector<8xf32> to vector<8x1xf32>
    %123 = vector.broadcast %122 : vector<8x1xf32> to vector<8x8xf32>
    %124 = arith.subf %120, %123 : vector<8x8xf32>
    %125 = math.exp %124 : vector<8x8xf32>
    %cst_41 = arith.constant dense<0.000000e+00> : vector<8xf32>
    %126 = vector.multi_reduction <add>, %125, %cst_41 [1] : vector<8x8xf32> to vector<8xf32>
    %127 = vector.shape_cast %126 : vector<8xf32> to vector<8x1xf32>
    %128 = tpu.reciprocal %127 {approx = true} : vector<8x1xf32> -> vector<8x1xf32>
    %129 = vector.broadcast %128 : vector<8x1xf32> to vector<8x8xf32>
    %130 = arith.mulf %125, %129 : vector<8x8xf32>
    %131 = vector.extract_strided_slice %112 {offsets = [0, 0], sizes = [8, 8], strides = [1, 1]} : vector<8x32xf32> to vector<8x8xf32>
    %cst_42 = arith.constant dense<0.000000e+00> : vector<8x8xf32>
    %132 = tpu.matmul %130, %131, %cst_42 {dimension_numbers = #tpu.dot_dimension_numbers<[1], [0], [0], [1], [0, 0, 1, 1], [], []>} : vector<8x8xf32>, vector<8x8xf32>, vector<8x8xf32> -> vector<8x8xf32>
    %133 = vector.extract_strided_slice %110 {offsets = [0, 8], sizes = [8, 8], strides = [1, 1]} : vector<8x32xf32> to vector<8x8xf32>
    %134 = vector.extract_strided_slice %111 {offsets = [0, 8], sizes = [8, 8], strides = [1, 1]} : vector<8x32xf32> to vector<8x8xf32>
    %cst_43 = arith.constant dense<0.000000e+00> : vector<8x8xf32>
    %135 = tpu.matmul %133, %134, %cst_43 {dimension_numbers = #tpu.dot_dimension_numbers<[1], [1], [0], [0], [0, 0, 1, 0], [], []>} : vector<8x8xf32>, vector<8x8xf32>, vector<8x8xf32> -> vector<8x8xf32>
    %cst_44 = arith.constant 0.353553385 : f32
    %136 = vector.broadcast %cst_44 : f32 to vector<8x8xf32>
    %137 = arith.mulf %135, %136 : vector<8x8xf32>
    %138 = vector.broadcast %113 : vector<1x8xf32> to vector<8x8xf32>
    %139 = arith.addf %137, %138 : vector<8x8xf32>
    %cst_45 = arith.constant dense<0xFF800000> : vector<8xf32>
    %140 = vector.multi_reduction <maximumf>, %139, %cst_45 [1] : vector<8x8xf32> to vector<8xf32>
    %141 = vector.shape_cast %140 : vector<8xf32> to vector<8x1xf32>
    %142 = vector.broadcast %141 : vector<8x1xf32> to vector<8x8xf32>
    %143 = arith.subf %139, %142 : vector<8x8xf32>
    %144 = math.exp %143 : vector<8x8xf32>
    %cst_46 = arith.constant dense<0.000000e+00> : vector<8xf32>
    %145 = vector.multi_reduction <add>, %144, %cst_46 [1] : vector<8x8xf32> to vector<8xf32>
    %146 = vector.shape_cast %145 : vector<8xf32> to vector<8x1xf32>
    %147 = tpu.reciprocal %146 {approx = true} : vector<8x1xf32> -> vector<8x1xf32>
    %148 = vector.broadcast %147 : vector<8x1xf32> to vector<8x8xf32>
    %149 = arith.mulf %144, %148 : vector<8x8xf32>
    %150 = vector.extract_strided_slice %112 {offsets = [0, 8], sizes = [8, 8], strides = [1, 1]} : vector<8x32xf32> to vector<8x8xf32>
    %cst_47 = arith.constant dense<0.000000e+00> : vector<8x8xf32>
    %151 = tpu.matmul %149, %150, %cst_47 {dimension_numbers = #tpu.dot_dimension_numbers<[1], [0], [0], [1], [0, 0, 1, 1], [], []>} : vector<8x8xf32>, vector<8x8xf32>, vector<8x8xf32> -> vector<8x8xf32>
    %152 = vector.extract_strided_slice %110 {offsets = [0, 16], sizes = [8, 8], strides = [1, 1]} : vector<8x32xf32> to vector<8x8xf32>
    %153 = vector.extract_strided_slice %111 {offsets = [0, 16], sizes = [8, 8], strides = [1, 1]} : vector<8x32xf32> to vector<8x8xf32>
    %cst_48 = arith.constant dense<0.000000e+00> : vector<8x8xf32>
    %154 = tpu.matmul %152, %153, %cst_48 {dimension_numbers = #tpu.dot_dimension_numbers<[1], [1], [0], [0], [0, 0, 1, 0], [], []>} : vector<8x8xf32>, vector<8x8xf32>, vector<8x8xf32> -> vector<8x8xf32>
    %cst_49 = arith.constant 0.353553385 : f32
    %155 = vector.broadcast %cst_49 : f32 to vector<8x8xf32>
    %156 = arith.mulf %154, %155 : vector<8x8xf32>
    %157 = vector.broadcast %113 : vector<1x8xf32> to vector<8x8xf32>
    %158 = arith.addf %156, %157 : vector<8x8xf32>
    %cst_50 = arith.constant dense<0xFF800000> : vector<8xf32>
    %159 = vector.multi_reduction <maximumf>, %158, %cst_50 [1] : vector<8x8xf32> to vector<8xf32>
    %160 = vector.shape_cast %159 : vector<8xf32> to vector<8x1xf32>
    %161 = vector.broadcast %160 : vector<8x1xf32> to vector<8x8xf32>
    %162 = arith.subf %158, %161 : vector<8x8xf32>
    %163 = math.exp %162 : vector<8x8xf32>
    %cst_51 = arith.constant dense<0.000000e+00> : vector<8xf32>
    %164 = vector.multi_reduction <add>, %163, %cst_51 [1] : vector<8x8xf32> to vector<8xf32>
    %165 = vector.shape_cast %164 : vector<8xf32> to vector<8x1xf32>
    %166 = tpu.reciprocal %165 {approx = true} : vector<8x1xf32> -> vector<8x1xf32>
    %167 = vector.broadcast %166 : vector<8x1xf32> to vector<8x8xf32>
    %168 = arith.mulf %163, %167 : vector<8x8xf32>
    %169 = vector.extract_strided_slice %112 {offsets = [0, 16], sizes = [8, 8], strides = [1, 1]} : vector<8x32xf32> to vector<8x8xf32>
    %cst_52 = arith.constant dense<0.000000e+00> : vector<8x8xf32>
    %170 = tpu.matmul %168, %169, %cst_52 {dimension_numbers = #tpu.dot_dimension_numbers<[1], [0], [0], [1], [0, 0, 1, 1], [], []>} : vector<8x8xf32>, vector<8x8xf32>, vector<8x8xf32> -> vector<8x8xf32>
    %171 = vector.extract_strided_slice %110 {offsets = [0, 24], sizes = [8, 8], strides = [1, 1]} : vector<8x32xf32> to vector<8x8xf32>
    %172 = vector.extract_strided_slice %111 {offsets = [0, 24], sizes = [8, 8], strides = [1, 1]} : vector<8x32xf32> to vector<8x8xf32>
    %cst_53 = arith.constant dense<0.000000e+00> : vector<8x8xf32>
    %173 = tpu.matmul %171, %172, %cst_53 {dimension_numbers = #tpu.dot_dimension_numbers<[1], [1], [0], [0], [0, 0, 1, 0], [], []>} : vector<8x8xf32>, vector<8x8xf32>, vector<8x8xf32> -> vector<8x8xf32>
    %cst_54 = arith.constant 0.353553385 : f32
    %174 = vector.broadcast %cst_54 : f32 to vector<8x8xf32>
    %175 = arith.mulf %173, %174 : vector<8x8xf32>
    %176 = vector.broadcast %113 : vector<1x8xf32> to vector<8x8xf32>
    %177 = arith.addf %175, %176 : vector<8x8xf32>
    %cst_55 = arith.constant dense<0xFF800000> : vector<8xf32>
    %178 = vector.multi_reduction <maximumf>, %177, %cst_55 [1] : vector<8x8xf32> to vector<8xf32>
    %179 = vector.shape_cast %178 : vector<8xf32> to vector<8x1xf32>
    %180 = vector.broadcast %179 : vector<8x1xf32> to vector<8x8xf32>
    %181 = arith.subf %177, %180 : vector<8x8xf32>
    %182 = math.exp %181 : vector<8x8xf32>
    %cst_56 = arith.constant dense<0.000000e+00> : vector<8xf32>
    %183 = vector.multi_reduction <add>, %182, %cst_56 [1] : vector<8x8xf32> to vector<8xf32>
    %184 = vector.shape_cast %183 : vector<8xf32> to vector<8x1xf32>
    %185 = tpu.reciprocal %184 {approx = true} : vector<8x1xf32> -> vector<8x1xf32>
    %186 = vector.broadcast %185 : vector<8x1xf32> to vector<8x8xf32>
    %187 = arith.mulf %182, %186 : vector<8x8xf32>
    %188 = vector.extract_strided_slice %112 {offsets = [0, 24], sizes = [8, 8], strides = [1, 1]} : vector<8x32xf32> to vector<8x8xf32>
    %cst_57 = arith.constant dense<0.000000e+00> : vector<8x8xf32>
    %189 = tpu.matmul %187, %188, %cst_57 {dimension_numbers = #tpu.dot_dimension_numbers<[1], [0], [0], [1], [0, 0, 1, 1], [], []>} : vector<8x8xf32>, vector<8x8xf32>, vector<8x8xf32> -> vector<8x8xf32>
    %190 = tpu.concatenate %132, %151, %170, %189 in 1 : vector<8x8xf32>, vector<8x8xf32>, vector<8x8xf32>, vector<8x8xf32> -> vector<8x32xf32>
    %191 = tpu.concatenate %109, %190 in 0 : vector<8x32xf32>, vector<8x32xf32> -> vector<16x32xf32>
    %c0_58 = arith.constant 0 : index
    %c0_59 = arith.constant 0 : index
    %c0_60 = arith.constant 0 : index
    %192 = vector.load %arg6[%c0_58, %c0_59, %c0_60] : memref<2x32x32xf32, #tpu.memory_space<vmem>>, vector<1x32x32xf32>
    %193 = vector.shape_cast %192 : vector<1x32x32xf32> to vector<32x32xf32>
    %cst_61 = arith.constant dense<0.000000e+00> : vector<16x32xf32>
    %194 = tpu.matmul %191, %193, %cst_61 {dimension_numbers = #tpu.dot_dimension_numbers<[1], [0], [0], [1], [0, 0, 1, 1], [], []>} : vector<16x32xf32>, vector<32x32xf32>, vector<16x32xf32> -> vector<16x32xf32>
    %c0_62 = arith.constant 0 : index
    %c0_63 = arith.constant 0 : index
    %c0_64 = arith.constant 0 : index
    %195 = vector.load %arg7[%c0_62, %c0_63, %c0_64] : memref<2x1x32xf32, #tpu.memory_space<vmem>>, vector<1x1x32xf32>
    %196 = vector.shape_cast %195 : vector<1x1x32xf32> to vector<1x32xf32>
    %197 = vector.broadcast %196 : vector<1x32xf32> to vector<16x32xf32>
    %198 = arith.addf %194, %197 : vector<16x32xf32>
    %c0_65 = arith.constant 0 : index
    %c0_66 = arith.constant 0 : index
    %c0_67 = arith.constant 0 : index
    %199 = vector.load %arg8[%c0_65, %c0_66, %c0_67] : memref<2x1x32xf32, #tpu.memory_space<vmem>>, vector<1x1x32xf32>
    %200 = vector.shape_cast %199 : vector<1x1x32xf32> to vector<1x32xf32>
    %c0_68 = arith.constant 0 : index
    %c0_69 = arith.constant 0 : index
    %c0_70 = arith.constant 0 : index
    %201 = vector.load %arg9[%c0_68, %c0_69, %c0_70] : memref<2x1x32xf32, #tpu.memory_space<vmem>>, vector<1x1x32xf32>
    %202 = vector.shape_cast %201 : vector<1x1x32xf32> to vector<1x32xf32>
    %203 = arith.addf %18, %198 : vector<16x32xf32>
    %cst_71 = arith.constant dense<0.000000e+00> : vector<16xf32>
    %204 = vector.multi_reduction <add>, %203, %cst_71 [1] : vector<16x32xf32> to vector<16xf32>
    %205 = vector.shape_cast %204 : vector<16xf32> to vector<16x1xf32>
    %cst_72 = arith.constant 3.200000e+01 : f32
    %206 = vector.broadcast %cst_72 : f32 to vector<16x1xf32>
    %207 = arith.divf %205, %206 : vector<16x1xf32>
    %208 = vector.broadcast %207 : vector<16x1xf32> to vector<16x32xf32>
    %209 = arith.subf %203, %208 : vector<16x32xf32>
    %210 = arith.mulf %209, %209 : vector<16x32xf32>
    %cst_73 = arith.constant dense<0.000000e+00> : vector<16xf32>
    %211 = vector.multi_reduction <add>, %210, %cst_73 [1] : vector<16x32xf32> to vector<16xf32>
    %212 = vector.shape_cast %211 : vector<16xf32> to vector<16x1xf32>
    %cst_74 = arith.constant 3.200000e+01 : f32
    %213 = vector.broadcast %cst_74 : f32 to vector<16x1xf32>
    %214 = arith.divf %212, %213 : vector<16x1xf32>
    %cst_75 = arith.constant 9.99999974E-6 : f32
    %215 = vector.broadcast %cst_75 : f32 to vector<16x1xf32>
    %216 = arith.addf %214, %215 : vector<16x1xf32>
    %217 = math.rsqrt %216 : vector<16x1xf32>
    %218 = vector.broadcast %217 : vector<16x1xf32> to vector<16x32xf32>
    %219 = arith.mulf %209, %218 : vector<16x32xf32>
    %220 = vector.broadcast %200 : vector<1x32xf32> to vector<16x32xf32>
    %221 = arith.mulf %219, %220 : vector<16x32xf32>
    %222 = vector.broadcast %202 : vector<1x32xf32> to vector<16x32xf32>
    %223 = arith.addf %221, %222 : vector<16x32xf32>
    %c0_76 = arith.constant 0 : index
    %c0_77 = arith.constant 0 : index
    %c0_78 = arith.constant 0 : index
    %224 = vector.load %arg10[%c0_76, %c0_77, %c0_78] : memref<2x32x64xf32, #tpu.memory_space<vmem>>, vector<1x32x64xf32>
    %225 = vector.shape_cast %224 : vector<1x32x64xf32> to vector<32x64xf32>
    %cst_79 = arith.constant dense<0.000000e+00> : vector<16x64xf32>
    %226 = tpu.matmul %223, %225, %cst_79 {dimension_numbers = #tpu.dot_dimension_numbers<[1], [0], [0], [1], [0, 0, 1, 1], [], []>} : vector<16x32xf32>, vector<32x64xf32>, vector<16x64xf32> -> vector<16x64xf32>
    %c0_80 = arith.constant 0 : index
    %c0_81 = arith.constant 0 : index
    %c0_82 = arith.constant 0 : index
    %227 = vector.load %arg11[%c0_80, %c0_81, %c0_82] : memref<2x1x64xf32, #tpu.memory_space<vmem>>, vector<1x1x64xf32>
    %228 = vector.shape_cast %227 : vector<1x1x64xf32> to vector<1x64xf32>
    %229 = vector.broadcast %228 : vector<1x64xf32> to vector<16x64xf32>
    %230 = arith.addf %226, %229 : vector<16x64xf32>
    %cst_83 = arith.constant 0.000000e+00 : f32
    %231 = vector.broadcast %cst_83 : f32 to vector<16x64xf32>
    %232 = arith.maximumf %230, %231 : vector<16x64xf32>
    %c0_84 = arith.constant 0 : index
    %c0_85 = arith.constant 0 : index
    %c0_86 = arith.constant 0 : index
    %233 = vector.load %arg12[%c0_84, %c0_85, %c0_86] : memref<2x64x32xf32, #tpu.memory_space<vmem>>, vector<1x64x32xf32>
    %234 = vector.shape_cast %233 : vector<1x64x32xf32> to vector<64x32xf32>
    %cst_87 = arith.constant dense<0.000000e+00> : vector<16x32xf32>
    %235 = tpu.matmul %232, %234, %cst_87 {dimension_numbers = #tpu.dot_dimension_numbers<[1], [0], [0], [1], [0, 0, 1, 1], [], []>} : vector<16x64xf32>, vector<64x32xf32>, vector<16x32xf32> -> vector<16x32xf32>
    %c0_88 = arith.constant 0 : index
    %c0_89 = arith.constant 0 : index
    %c0_90 = arith.constant 0 : index
    %236 = vector.load %arg13[%c0_88, %c0_89, %c0_90] : memref<2x1x32xf32, #tpu.memory_space<vmem>>, vector<1x1x32xf32>
    %237 = vector.shape_cast %236 : vector<1x1x32xf32> to vector<1x32xf32>
    %238 = vector.broadcast %237 : vector<1x32xf32> to vector<16x32xf32>
    %239 = arith.addf %235, %238 : vector<16x32xf32>
    %c0_91 = arith.constant 0 : index
    %c0_92 = arith.constant 0 : index
    %c0_93 = arith.constant 0 : index
    %240 = vector.load %arg14[%c0_91, %c0_92, %c0_93] : memref<2x1x32xf32, #tpu.memory_space<vmem>>, vector<1x1x32xf32>
    %241 = vector.shape_cast %240 : vector<1x1x32xf32> to vector<1x32xf32>
    %c0_94 = arith.constant 0 : index
    %c0_95 = arith.constant 0 : index
    %c0_96 = arith.constant 0 : index
    %242 = vector.load %arg15[%c0_94, %c0_95, %c0_96] : memref<2x1x32xf32, #tpu.memory_space<vmem>>, vector<1x1x32xf32>
    %243 = vector.shape_cast %242 : vector<1x1x32xf32> to vector<1x32xf32>
    %244 = arith.addf %223, %239 : vector<16x32xf32>
    %cst_97 = arith.constant dense<0.000000e+00> : vector<16xf32>
    %245 = vector.multi_reduction <add>, %244, %cst_97 [1] : vector<16x32xf32> to vector<16xf32>
    %246 = vector.shape_cast %245 : vector<16xf32> to vector<16x1xf32>
    %cst_98 = arith.constant 3.200000e+01 : f32
    %247 = vector.broadcast %cst_98 : f32 to vector<16x1xf32>
    %248 = arith.divf %246, %247 : vector<16x1xf32>
    %249 = vector.broadcast %248 : vector<16x1xf32> to vector<16x32xf32>
    %250 = arith.subf %244, %249 : vector<16x32xf32>
    %251 = arith.mulf %250, %250 : vector<16x32xf32>
    %cst_99 = arith.constant dense<0.000000e+00> : vector<16xf32>
    %252 = vector.multi_reduction <add>, %251, %cst_99 [1] : vector<16x32xf32> to vector<16xf32>
    %253 = vector.shape_cast %252 : vector<16xf32> to vector<16x1xf32>
    %cst_100 = arith.constant 3.200000e+01 : f32
    %254 = vector.broadcast %cst_100 : f32 to vector<16x1xf32>
    %255 = arith.divf %253, %254 : vector<16x1xf32>
    %cst_101 = arith.constant 9.99999974E-6 : f32
    %256 = vector.broadcast %cst_101 : f32 to vector<16x1xf32>
    %257 = arith.addf %255, %256 : vector<16x1xf32>
    %258 = math.rsqrt %257 : vector<16x1xf32>
    %259 = vector.broadcast %258 : vector<16x1xf32> to vector<16x32xf32>
    %260 = arith.mulf %250, %259 : vector<16x32xf32>
    %261 = vector.broadcast %241 : vector<1x32xf32> to vector<16x32xf32>
    %262 = arith.mulf %260, %261 : vector<16x32xf32>
    %263 = vector.broadcast %243 : vector<1x32xf32> to vector<16x32xf32>
    %264 = arith.addf %262, %263 : vector<16x32xf32>
    %c1 = arith.constant 1 : index
    %c0_102 = arith.constant 0 : index
    %c0_103 = arith.constant 0 : index
    %265 = vector.load %arg4[%c1, %c0_102, %c0_103] : memref<2x32x96xf32, #tpu.memory_space<vmem>>, vector<1x32x96xf32>
    %266 = vector.shape_cast %265 : vector<1x32x96xf32> to vector<32x96xf32>
    %cst_104 = arith.constant dense<0.000000e+00> : vector<16x96xf32>
    %267 = tpu.matmul %264, %266, %cst_104 {dimension_numbers = #tpu.dot_dimension_numbers<[1], [0], [0], [1], [0, 0, 1, 1], [], []>} : vector<16x32xf32>, vector<32x96xf32>, vector<16x96xf32> -> vector<16x96xf32>
    %c1_105 = arith.constant 1 : index
    %c0_106 = arith.constant 0 : index
    %c0_107 = arith.constant 0 : index
    %268 = vector.load %arg5[%c1_105, %c0_106, %c0_107] : memref<2x1x96xf32, #tpu.memory_space<vmem>>, vector<1x1x96xf32>
    %269 = vector.shape_cast %268 : vector<1x1x96xf32> to vector<1x96xf32>
    %270 = vector.broadcast %269 : vector<1x96xf32> to vector<16x96xf32>
    %271 = arith.addf %267, %270 : vector<16x96xf32>
    %272 = vector.extract_strided_slice %271 {offsets = [0, 0], sizes = [16, 32], strides = [1, 1]} : vector<16x96xf32> to vector<16x32xf32>
    %273 = vector.extract_strided_slice %271 {offsets = [0, 32], sizes = [16, 32], strides = [1, 1]} : vector<16x96xf32> to vector<16x32xf32>
    %274 = vector.extract_strided_slice %271 {offsets = [0, 64], sizes = [16, 32], strides = [1, 1]} : vector<16x96xf32> to vector<16x32xf32>
    %275 = vector.extract_strided_slice %272 {offsets = [0, 0], sizes = [8, 32], strides = [1, 1]} : vector<16x32xf32> to vector<8x32xf32>
    %276 = vector.extract_strided_slice %273 {offsets = [0, 0], sizes = [8, 32], strides = [1, 1]} : vector<16x32xf32> to vector<8x32xf32>
    %277 = vector.extract_strided_slice %274 {offsets = [0, 0], sizes = [8, 32], strides = [1, 1]} : vector<16x32xf32> to vector<8x32xf32>
    %278 = vector.extract_strided_slice %5 {offsets = [0, 0], sizes = [1, 8], strides = [1, 1]} : vector<2x8xf32> to vector<1x8xf32>
    %279 = vector.extract_strided_slice %275 {offsets = [0, 0], sizes = [8, 8], strides = [1, 1]} : vector<8x32xf32> to vector<8x8xf32>
    %280 = vector.extract_strided_slice %276 {offsets = [0, 0], sizes = [8, 8], strides = [1, 1]} : vector<8x32xf32> to vector<8x8xf32>
    %cst_108 = arith.constant dense<0.000000e+00> : vector<8x8xf32>
    %281 = tpu.matmul %279, %280, %cst_108 {dimension_numbers = #tpu.dot_dimension_numbers<[1], [1], [0], [0], [0, 0, 1, 0], [], []>} : vector<8x8xf32>, vector<8x8xf32>, vector<8x8xf32> -> vector<8x8xf32>
    %cst_109 = arith.constant 0.353553385 : f32
    %282 = vector.broadcast %cst_109 : f32 to vector<8x8xf32>
    %283 = arith.mulf %281, %282 : vector<8x8xf32>
    %284 = vector.broadcast %278 : vector<1x8xf32> to vector<8x8xf32>
    %285 = arith.addf %283, %284 : vector<8x8xf32>
    %cst_110 = arith.constant dense<0xFF800000> : vector<8xf32>
    %286 = vector.multi_reduction <maximumf>, %285, %cst_110 [1] : vector<8x8xf32> to vector<8xf32>
    %287 = vector.shape_cast %286 : vector<8xf32> to vector<8x1xf32>
    %288 = vector.broadcast %287 : vector<8x1xf32> to vector<8x8xf32>
    %289 = arith.subf %285, %288 : vector<8x8xf32>
    %290 = math.exp %289 : vector<8x8xf32>
    %cst_111 = arith.constant dense<0.000000e+00> : vector<8xf32>
    %291 = vector.multi_reduction <add>, %290, %cst_111 [1] : vector<8x8xf32> to vector<8xf32>
    %292 = vector.shape_cast %291 : vector<8xf32> to vector<8x1xf32>
    %293 = tpu.reciprocal %292 {approx = true} : vector<8x1xf32> -> vector<8x1xf32>
    %294 = vector.broadcast %293 : vector<8x1xf32> to vector<8x8xf32>
    %295 = arith.mulf %290, %294 : vector<8x8xf32>
    %296 = vector.extract_strided_slice %277 {offsets = [0, 0], sizes = [8, 8], strides = [1, 1]} : vector<8x32xf32> to vector<8x8xf32>
    %cst_112 = arith.constant dense<0.000000e+00> : vector<8x8xf32>
    %297 = tpu.matmul %295, %296, %cst_112 {dimension_numbers = #tpu.dot_dimension_numbers<[1], [0], [0], [1], [0, 0, 1, 1], [], []>} : vector<8x8xf32>, vector<8x8xf32>, vector<8x8xf32> -> vector<8x8xf32>
    %298 = vector.extract_strided_slice %275 {offsets = [0, 8], sizes = [8, 8], strides = [1, 1]} : vector<8x32xf32> to vector<8x8xf32>
    %299 = vector.extract_strided_slice %276 {offsets = [0, 8], sizes = [8, 8], strides = [1, 1]} : vector<8x32xf32> to vector<8x8xf32>
    %cst_113 = arith.constant dense<0.000000e+00> : vector<8x8xf32>
    %300 = tpu.matmul %298, %299, %cst_113 {dimension_numbers = #tpu.dot_dimension_numbers<[1], [1], [0], [0], [0, 0, 1, 0], [], []>} : vector<8x8xf32>, vector<8x8xf32>, vector<8x8xf32> -> vector<8x8xf32>
    %cst_114 = arith.constant 0.353553385 : f32
    %301 = vector.broadcast %cst_114 : f32 to vector<8x8xf32>
    %302 = arith.mulf %300, %301 : vector<8x8xf32>
    %303 = vector.broadcast %278 : vector<1x8xf32> to vector<8x8xf32>
    %304 = arith.addf %302, %303 : vector<8x8xf32>
    %cst_115 = arith.constant dense<0xFF800000> : vector<8xf32>
    %305 = vector.multi_reduction <maximumf>, %304, %cst_115 [1] : vector<8x8xf32> to vector<8xf32>
    %306 = vector.shape_cast %305 : vector<8xf32> to vector<8x1xf32>
    %307 = vector.broadcast %306 : vector<8x1xf32> to vector<8x8xf32>
    %308 = arith.subf %304, %307 : vector<8x8xf32>
    %309 = math.exp %308 : vector<8x8xf32>
    %cst_116 = arith.constant dense<0.000000e+00> : vector<8xf32>
    %310 = vector.multi_reduction <add>, %309, %cst_116 [1] : vector<8x8xf32> to vector<8xf32>
    %311 = vector.shape_cast %310 : vector<8xf32> to vector<8x1xf32>
    %312 = tpu.reciprocal %311 {approx = true} : vector<8x1xf32> -> vector<8x1xf32>
    %313 = vector.broadcast %312 : vector<8x1xf32> to vector<8x8xf32>
    %314 = arith.mulf %309, %313 : vector<8x8xf32>
    %315 = vector.extract_strided_slice %277 {offsets = [0, 8], sizes = [8, 8], strides = [1, 1]} : vector<8x32xf32> to vector<8x8xf32>
    %cst_117 = arith.constant dense<0.000000e+00> : vector<8x8xf32>
    %316 = tpu.matmul %314, %315, %cst_117 {dimension_numbers = #tpu.dot_dimension_numbers<[1], [0], [0], [1], [0, 0, 1, 1], [], []>} : vector<8x8xf32>, vector<8x8xf32>, vector<8x8xf32> -> vector<8x8xf32>
    %317 = vector.extract_strided_slice %275 {offsets = [0, 16], sizes = [8, 8], strides = [1, 1]} : vector<8x32xf32> to vector<8x8xf32>
    %318 = vector.extract_strided_slice %276 {offsets = [0, 16], sizes = [8, 8], strides = [1, 1]} : vector<8x32xf32> to vector<8x8xf32>
    %cst_118 = arith.constant dense<0.000000e+00> : vector<8x8xf32>
    %319 = tpu.matmul %317, %318, %cst_118 {dimension_numbers = #tpu.dot_dimension_numbers<[1], [1], [0], [0], [0, 0, 1, 0], [], []>} : vector<8x8xf32>, vector<8x8xf32>, vector<8x8xf32> -> vector<8x8xf32>
    %cst_119 = arith.constant 0.353553385 : f32
    %320 = vector.broadcast %cst_119 : f32 to vector<8x8xf32>
    %321 = arith.mulf %319, %320 : vector<8x8xf32>
    %322 = vector.broadcast %278 : vector<1x8xf32> to vector<8x8xf32>
    %323 = arith.addf %321, %322 : vector<8x8xf32>
    %cst_120 = arith.constant dense<0xFF800000> : vector<8xf32>
    %324 = vector.multi_reduction <maximumf>, %323, %cst_120 [1] : vector<8x8xf32> to vector<8xf32>
    %325 = vector.shape_cast %324 : vector<8xf32> to vector<8x1xf32>
    %326 = vector.broadcast %325 : vector<8x1xf32> to vector<8x8xf32>
    %327 = arith.subf %323, %326 : vector<8x8xf32>
    %328 = math.exp %327 : vector<8x8xf32>
    %cst_121 = arith.constant dense<0.000000e+00> : vector<8xf32>
    %329 = vector.multi_reduction <add>, %328, %cst_121 [1] : vector<8x8xf32> to vector<8xf32>
    %330 = vector.shape_cast %329 : vector<8xf32> to vector<8x1xf32>
    %331 = tpu.reciprocal %330 {approx = true} : vector<8x1xf32> -> vector<8x1xf32>
    %332 = vector.broadcast %331 : vector<8x1xf32> to vector<8x8xf32>
    %333 = arith.mulf %328, %332 : vector<8x8xf32>
    %334 = vector.extract_strided_slice %277 {offsets = [0, 16], sizes = [8, 8], strides = [1, 1]} : vector<8x32xf32> to vector<8x8xf32>
    %cst_122 = arith.constant dense<0.000000e+00> : vector<8x8xf32>
    %335 = tpu.matmul %333, %334, %cst_122 {dimension_numbers = #tpu.dot_dimension_numbers<[1], [0], [0], [1], [0, 0, 1, 1], [], []>} : vector<8x8xf32>, vector<8x8xf32>, vector<8x8xf32> -> vector<8x8xf32>
    %336 = vector.extract_strided_slice %275 {offsets = [0, 24], sizes = [8, 8], strides = [1, 1]} : vector<8x32xf32> to vector<8x8xf32>
    %337 = vector.extract_strided_slice %276 {offsets = [0, 24], sizes = [8, 8], strides = [1, 1]} : vector<8x32xf32> to vector<8x8xf32>
    %cst_123 = arith.constant dense<0.000000e+00> : vector<8x8xf32>
    %338 = tpu.matmul %336, %337, %cst_123 {dimension_numbers = #tpu.dot_dimension_numbers<[1], [1], [0], [0], [0, 0, 1, 0], [], []>} : vector<8x8xf32>, vector<8x8xf32>, vector<8x8xf32> -> vector<8x8xf32>
    %cst_124 = arith.constant 0.353553385 : f32
    %339 = vector.broadcast %cst_124 : f32 to vector<8x8xf32>
    %340 = arith.mulf %338, %339 : vector<8x8xf32>
    %341 = vector.broadcast %278 : vector<1x8xf32> to vector<8x8xf32>
    %342 = arith.addf %340, %341 : vector<8x8xf32>
    %cst_125 = arith.constant dense<0xFF800000> : vector<8xf32>
    %343 = vector.multi_reduction <maximumf>, %342, %cst_125 [1] : vector<8x8xf32> to vector<8xf32>
    %344 = vector.shape_cast %343 : vector<8xf32> to vector<8x1xf32>
    %345 = vector.broadcast %344 : vector<8x1xf32> to vector<8x8xf32>
    %346 = arith.subf %342, %345 : vector<8x8xf32>
    %347 = math.exp %346 : vector<8x8xf32>
    %cst_126 = arith.constant dense<0.000000e+00> : vector<8xf32>
    %348 = vector.multi_reduction <add>, %347, %cst_126 [1] : vector<8x8xf32> to vector<8xf32>
    %349 = vector.shape_cast %348 : vector<8xf32> to vector<8x1xf32>
    %350 = tpu.reciprocal %349 {approx = true} : vector<8x1xf32> -> vector<8x1xf32>
    %351 = vector.broadcast %350 : vector<8x1xf32> to vector<8x8xf32>
    %352 = arith.mulf %347, %351 : vector<8x8xf32>
    %353 = vector.extract_strided_slice %277 {offsets = [0, 24], sizes = [8, 8], strides = [1, 1]} : vector<8x32xf32> to vector<8x8xf32>
    %cst_127 = arith.constant dense<0.000000e+00> : vector<8x8xf32>
    %354 = tpu.matmul %352, %353, %cst_127 {dimension_numbers = #tpu.dot_dimension_numbers<[1], [0], [0], [1], [0, 0, 1, 1], [], []>} : vector<8x8xf32>, vector<8x8xf32>, vector<8x8xf32> -> vector<8x8xf32>
    %355 = tpu.concatenate %297, %316, %335, %354 in 1 : vector<8x8xf32>, vector<8x8xf32>, vector<8x8xf32>, vector<8x8xf32> -> vector<8x32xf32>
    %356 = vector.extract_strided_slice %272 {offsets = [8, 0], sizes = [8, 32], strides = [1, 1]} : vector<16x32xf32> to vector<8x32xf32>
    %357 = vector.extract_strided_slice %273 {offsets = [8, 0], sizes = [8, 32], strides = [1, 1]} : vector<16x32xf32> to vector<8x32xf32>
    %358 = vector.extract_strided_slice %274 {offsets = [8, 0], sizes = [8, 32], strides = [1, 1]} : vector<16x32xf32> to vector<8x32xf32>
    %359 = vector.extract_strided_slice %5 {offsets = [1, 0], sizes = [1, 8], strides = [1, 1]} : vector<2x8xf32> to vector<1x8xf32>
    %360 = vector.extract_strided_slice %356 {offsets = [0, 0], sizes = [8, 8], strides = [1, 1]} : vector<8x32xf32> to vector<8x8xf32>
    %361 = vector.extract_strided_slice %357 {offsets = [0, 0], sizes = [8, 8], strides = [1, 1]} : vector<8x32xf32> to vector<8x8xf32>
    %cst_128 = arith.constant dense<0.000000e+00> : vector<8x8xf32>
    %362 = tpu.matmul %360, %361, %cst_128 {dimension_numbers = #tpu.dot_dimension_numbers<[1], [1], [0], [0], [0, 0, 1, 0], [], []>} : vector<8x8xf32>, vector<8x8xf32>, vector<8x8xf32> -> vector<8x8xf32>
    %cst_129 = arith.constant 0.353553385 : f32
    %363 = vector.broadcast %cst_129 : f32 to vector<8x8xf32>
    %364 = arith.mulf %362, %363 : vector<8x8xf32>
    %365 = vector.broadcast %359 : vector<1x8xf32> to vector<8x8xf32>
    %366 = arith.addf %364, %365 : vector<8x8xf32>
    %cst_130 = arith.constant dense<0xFF800000> : vector<8xf32>
    %367 = vector.multi_reduction <maximumf>, %366, %cst_130 [1] : vector<8x8xf32> to vector<8xf32>
    %368 = vector.shape_cast %367 : vector<8xf32> to vector<8x1xf32>
    %369 = vector.broadcast %368 : vector<8x1xf32> to vector<8x8xf32>
    %370 = arith.subf %366, %369 : vector<8x8xf32>
    %371 = math.exp %370 : vector<8x8xf32>
    %cst_131 = arith.constant dense<0.000000e+00> : vector<8xf32>
    %372 = vector.multi_reduction <add>, %371, %cst_131 [1] : vector<8x8xf32> to vector<8xf32>
    %373 = vector.shape_cast %372 : vector<8xf32> to vector<8x1xf32>
    %374 = tpu.reciprocal %373 {approx = true} : vector<8x1xf32> -> vector<8x1xf32>
    %375 = vector.broadcast %374 : vector<8x1xf32> to vector<8x8xf32>
    %376 = arith.mulf %371, %375 : vector<8x8xf32>
    %377 = vector.extract_strided_slice %358 {offsets = [0, 0], sizes = [8, 8], strides = [1, 1]} : vector<8x32xf32> to vector<8x8xf32>
    %cst_132 = arith.constant dense<0.000000e+00> : vector<8x8xf32>
    %378 = tpu.matmul %376, %377, %cst_132 {dimension_numbers = #tpu.dot_dimension_numbers<[1], [0], [0], [1], [0, 0, 1, 1], [], []>} : vector<8x8xf32>, vector<8x8xf32>, vector<8x8xf32> -> vector<8x8xf32>
    %379 = vector.extract_strided_slice %356 {offsets = [0, 8], sizes = [8, 8], strides = [1, 1]} : vector<8x32xf32> to vector<8x8xf32>
    %380 = vector.extract_strided_slice %357 {offsets = [0, 8], sizes = [8, 8], strides = [1, 1]} : vector<8x32xf32> to vector<8x8xf32>
    %cst_133 = arith.constant dense<0.000000e+00> : vector<8x8xf32>
    %381 = tpu.matmul %379, %380, %cst_133 {dimension_numbers = #tpu.dot_dimension_numbers<[1], [1], [0], [0], [0, 0, 1, 0], [], []>} : vector<8x8xf32>, vector<8x8xf32>, vector<8x8xf32> -> vector<8x8xf32>
    %cst_134 = arith.constant 0.353553385 : f32
    %382 = vector.broadcast %cst_134 : f32 to vector<8x8xf32>
    %383 = arith.mulf %381, %382 : vector<8x8xf32>
    %384 = vector.broadcast %359 : vector<1x8xf32> to vector<8x8xf32>
    %385 = arith.addf %383, %384 : vector<8x8xf32>
    %cst_135 = arith.constant dense<0xFF800000> : vector<8xf32>
    %386 = vector.multi_reduction <maximumf>, %385, %cst_135 [1] : vector<8x8xf32> to vector<8xf32>
    %387 = vector.shape_cast %386 : vector<8xf32> to vector<8x1xf32>
    %388 = vector.broadcast %387 : vector<8x1xf32> to vector<8x8xf32>
    %389 = arith.subf %385, %388 : vector<8x8xf32>
    %390 = math.exp %389 : vector<8x8xf32>
    %cst_136 = arith.constant dense<0.000000e+00> : vector<8xf32>
    %391 = vector.multi_reduction <add>, %390, %cst_136 [1] : vector<8x8xf32> to vector<8xf32>
    %392 = vector.shape_cast %391 : vector<8xf32> to vector<8x1xf32>
    %393 = tpu.reciprocal %392 {approx = true} : vector<8x1xf32> -> vector<8x1xf32>
    %394 = vector.broadcast %393 : vector<8x1xf32> to vector<8x8xf32>
    %395 = arith.mulf %390, %394 : vector<8x8xf32>
    %396 = vector.extract_strided_slice %358 {offsets = [0, 8], sizes = [8, 8], strides = [1, 1]} : vector<8x32xf32> to vector<8x8xf32>
    %cst_137 = arith.constant dense<0.000000e+00> : vector<8x8xf32>
    %397 = tpu.matmul %395, %396, %cst_137 {dimension_numbers = #tpu.dot_dimension_numbers<[1], [0], [0], [1], [0, 0, 1, 1], [], []>} : vector<8x8xf32>, vector<8x8xf32>, vector<8x8xf32> -> vector<8x8xf32>
    %398 = vector.extract_strided_slice %356 {offsets = [0, 16], sizes = [8, 8], strides = [1, 1]} : vector<8x32xf32> to vector<8x8xf32>
    %399 = vector.extract_strided_slice %357 {offsets = [0, 16], sizes = [8, 8], strides = [1, 1]} : vector<8x32xf32> to vector<8x8xf32>
    %cst_138 = arith.constant dense<0.000000e+00> : vector<8x8xf32>
    %400 = tpu.matmul %398, %399, %cst_138 {dimension_numbers = #tpu.dot_dimension_numbers<[1], [1], [0], [0], [0, 0, 1, 0], [], []>} : vector<8x8xf32>, vector<8x8xf32>, vector<8x8xf32> -> vector<8x8xf32>
    %cst_139 = arith.constant 0.353553385 : f32
    %401 = vector.broadcast %cst_139 : f32 to vector<8x8xf32>
    %402 = arith.mulf %400, %401 : vector<8x8xf32>
    %403 = vector.broadcast %359 : vector<1x8xf32> to vector<8x8xf32>
    %404 = arith.addf %402, %403 : vector<8x8xf32>
    %cst_140 = arith.constant dense<0xFF800000> : vector<8xf32>
    %405 = vector.multi_reduction <maximumf>, %404, %cst_140 [1] : vector<8x8xf32> to vector<8xf32>
    %406 = vector.shape_cast %405 : vector<8xf32> to vector<8x1xf32>
    %407 = vector.broadcast %406 : vector<8x1xf32> to vector<8x8xf32>
    %408 = arith.subf %404, %407 : vector<8x8xf32>
    %409 = math.exp %408 : vector<8x8xf32>
    %cst_141 = arith.constant dense<0.000000e+00> : vector<8xf32>
    %410 = vector.multi_reduction <add>, %409, %cst_141 [1] : vector<8x8xf32> to vector<8xf32>
    %411 = vector.shape_cast %410 : vector<8xf32> to vector<8x1xf32>
    %412 = tpu.reciprocal %411 {approx = true} : vector<8x1xf32> -> vector<8x1xf32>
    %413 = vector.broadcast %412 : vector<8x1xf32> to vector<8x8xf32>
    %414 = arith.mulf %409, %413 : vector<8x8xf32>
    %415 = vector.extract_strided_slice %358 {offsets = [0, 16], sizes = [8, 8], strides = [1, 1]} : vector<8x32xf32> to vector<8x8xf32>
    %cst_142 = arith.constant dense<0.000000e+00> : vector<8x8xf32>
    %416 = tpu.matmul %414, %415, %cst_142 {dimension_numbers = #tpu.dot_dimension_numbers<[1], [0], [0], [1], [0, 0, 1, 1], [], []>} : vector<8x8xf32>, vector<8x8xf32>, vector<8x8xf32> -> vector<8x8xf32>
    %417 = vector.extract_strided_slice %356 {offsets = [0, 24], sizes = [8, 8], strides = [1, 1]} : vector<8x32xf32> to vector<8x8xf32>
    %418 = vector.extract_strided_slice %357 {offsets = [0, 24], sizes = [8, 8], strides = [1, 1]} : vector<8x32xf32> to vector<8x8xf32>
    %cst_143 = arith.constant dense<0.000000e+00> : vector<8x8xf32>
    %419 = tpu.matmul %417, %418, %cst_143 {dimension_numbers = #tpu.dot_dimension_numbers<[1], [1], [0], [0], [0, 0, 1, 0], [], []>} : vector<8x8xf32>, vector<8x8xf32>, vector<8x8xf32> -> vector<8x8xf32>
    %cst_144 = arith.constant 0.353553385 : f32
    %420 = vector.broadcast %cst_144 : f32 to vector<8x8xf32>
    %421 = arith.mulf %419, %420 : vector<8x8xf32>
    %422 = vector.broadcast %359 : vector<1x8xf32> to vector<8x8xf32>
    %423 = arith.addf %421, %422 : vector<8x8xf32>
    %cst_145 = arith.constant dense<0xFF800000> : vector<8xf32>
    %424 = vector.multi_reduction <maximumf>, %423, %cst_145 [1] : vector<8x8xf32> to vector<8xf32>
    %425 = vector.shape_cast %424 : vector<8xf32> to vector<8x1xf32>
    %426 = vector.broadcast %425 : vector<8x1xf32> to vector<8x8xf32>
    %427 = arith.subf %423, %426 : vector<8x8xf32>
    %428 = math.exp %427 : vector<8x8xf32>
    %cst_146 = arith.constant dense<0.000000e+00> : vector<8xf32>
    %429 = vector.multi_reduction <add>, %428, %cst_146 [1] : vector<8x8xf32> to vector<8xf32>
    %430 = vector.shape_cast %429 : vector<8xf32> to vector<8x1xf32>
    %431 = tpu.reciprocal %430 {approx = true} : vector<8x1xf32> -> vector<8x1xf32>
    %432 = vector.broadcast %431 : vector<8x1xf32> to vector<8x8xf32>
    %433 = arith.mulf %428, %432 : vector<8x8xf32>
    %434 = vector.extract_strided_slice %358 {offsets = [0, 24], sizes = [8, 8], strides = [1, 1]} : vector<8x32xf32> to vector<8x8xf32>
    %cst_147 = arith.constant dense<0.000000e+00> : vector<8x8xf32>
    %435 = tpu.matmul %433, %434, %cst_147 {dimension_numbers = #tpu.dot_dimension_numbers<[1], [0], [0], [1], [0, 0, 1, 1], [], []>} : vector<8x8xf32>, vector<8x8xf32>, vector<8x8xf32> -> vector<8x8xf32>
    %436 = tpu.concatenate %378, %397, %416, %435 in 1 : vector<8x8xf32>, vector<8x8xf32>, vector<8x8xf32>, vector<8x8xf32> -> vector<8x32xf32>
    %437 = tpu.concatenate %355, %436 in 0 : vector<8x32xf32>, vector<8x32xf32> -> vector<16x32xf32>
    %c1_148 = arith.constant 1 : index
    %c0_149 = arith.constant 0 : index
    %c0_150 = arith.constant 0 : index
    %438 = vector.load %arg6[%c1_148, %c0_149, %c0_150] : memref<2x32x32xf32, #tpu.memory_space<vmem>>, vector<1x32x32xf32>
    %439 = vector.shape_cast %438 : vector<1x32x32xf32> to vector<32x32xf32>
    %cst_151 = arith.constant dense<0.000000e+00> : vector<16x32xf32>
    %440 = tpu.matmul %437, %439, %cst_151 {dimension_numbers = #tpu.dot_dimension_numbers<[1], [0], [0], [1], [0, 0, 1, 1], [], []>} : vector<16x32xf32>, vector<32x32xf32>, vector<16x32xf32> -> vector<16x32xf32>
    %c1_152 = arith.constant 1 : index
    %c0_153 = arith.constant 0 : index
    %c0_154 = arith.constant 0 : index
    %441 = vector.load %arg7[%c1_152, %c0_153, %c0_154] : memref<2x1x32xf32, #tpu.memory_space<vmem>>, vector<1x1x32xf32>
    %442 = vector.shape_cast %441 : vector<1x1x32xf32> to vector<1x32xf32>
    %443 = vector.broadcast %442 : vector<1x32xf32> to vector<16x32xf32>
    %444 = arith.addf %440, %443 : vector<16x32xf32>
    %c1_155 = arith.constant 1 : index
    %c0_156 = arith.constant 0 : index
    %c0_157 = arith.constant 0 : index
    %445 = vector.load %arg8[%c1_155, %c0_156, %c0_157] : memref<2x1x32xf32, #tpu.memory_space<vmem>>, vector<1x1x32xf32>
    %446 = vector.shape_cast %445 : vector<1x1x32xf32> to vector<1x32xf32>
    %c1_158 = arith.constant 1 : index
    %c0_159 = arith.constant 0 : index
    %c0_160 = arith.constant 0 : index
    %447 = vector.load %arg9[%c1_158, %c0_159, %c0_160] : memref<2x1x32xf32, #tpu.memory_space<vmem>>, vector<1x1x32xf32>
    %448 = vector.shape_cast %447 : vector<1x1x32xf32> to vector<1x32xf32>
    %449 = arith.addf %264, %444 : vector<16x32xf32>
    %cst_161 = arith.constant dense<0.000000e+00> : vector<16xf32>
    %450 = vector.multi_reduction <add>, %449, %cst_161 [1] : vector<16x32xf32> to vector<16xf32>
    %451 = vector.shape_cast %450 : vector<16xf32> to vector<16x1xf32>
    %cst_162 = arith.constant 3.200000e+01 : f32
    %452 = vector.broadcast %cst_162 : f32 to vector<16x1xf32>
    %453 = arith.divf %451, %452 : vector<16x1xf32>
    %454 = vector.broadcast %453 : vector<16x1xf32> to vector<16x32xf32>
    %455 = arith.subf %449, %454 : vector<16x32xf32>
    %456 = arith.mulf %455, %455 : vector<16x32xf32>
    %cst_163 = arith.constant dense<0.000000e+00> : vector<16xf32>
    %457 = vector.multi_reduction <add>, %456, %cst_163 [1] : vector<16x32xf32> to vector<16xf32>
    %458 = vector.shape_cast %457 : vector<16xf32> to vector<16x1xf32>
    %cst_164 = arith.constant 3.200000e+01 : f32
    %459 = vector.broadcast %cst_164 : f32 to vector<16x1xf32>
    %460 = arith.divf %458, %459 : vector<16x1xf32>
    %cst_165 = arith.constant 9.99999974E-6 : f32
    %461 = vector.broadcast %cst_165 : f32 to vector<16x1xf32>
    %462 = arith.addf %460, %461 : vector<16x1xf32>
    %463 = math.rsqrt %462 : vector<16x1xf32>
    %464 = vector.broadcast %463 : vector<16x1xf32> to vector<16x32xf32>
    %465 = arith.mulf %455, %464 : vector<16x32xf32>
    %466 = vector.broadcast %446 : vector<1x32xf32> to vector<16x32xf32>
    %467 = arith.mulf %465, %466 : vector<16x32xf32>
    %468 = vector.broadcast %448 : vector<1x32xf32> to vector<16x32xf32>
    %469 = arith.addf %467, %468 : vector<16x32xf32>
    %c1_166 = arith.constant 1 : index
    %c0_167 = arith.constant 0 : index
    %c0_168 = arith.constant 0 : index
    %470 = vector.load %arg10[%c1_166, %c0_167, %c0_168] : memref<2x32x64xf32, #tpu.memory_space<vmem>>, vector<1x32x64xf32>
    %471 = vector.shape_cast %470 : vector<1x32x64xf32> to vector<32x64xf32>
    %cst_169 = arith.constant dense<0.000000e+00> : vector<16x64xf32>
    %472 = tpu.matmul %469, %471, %cst_169 {dimension_numbers = #tpu.dot_dimension_numbers<[1], [0], [0], [1], [0, 0, 1, 1], [], []>} : vector<16x32xf32>, vector<32x64xf32>, vector<16x64xf32> -> vector<16x64xf32>
    %c1_170 = arith.constant 1 : index
    %c0_171 = arith.constant 0 : index
    %c0_172 = arith.constant 0 : index
    %473 = vector.load %arg11[%c1_170, %c0_171, %c0_172] : memref<2x1x64xf32, #tpu.memory_space<vmem>>, vector<1x1x64xf32>
    %474 = vector.shape_cast %473 : vector<1x1x64xf32> to vector<1x64xf32>
    %475 = vector.broadcast %474 : vector<1x64xf32> to vector<16x64xf32>
    %476 = arith.addf %472, %475 : vector<16x64xf32>
    %cst_173 = arith.constant 0.000000e+00 : f32
    %477 = vector.broadcast %cst_173 : f32 to vector<16x64xf32>
    %478 = arith.maximumf %476, %477 : vector<16x64xf32>
    %c1_174 = arith.constant 1 : index
    %c0_175 = arith.constant 0 : index
    %c0_176 = arith.constant 0 : index
    %479 = vector.load %arg12[%c1_174, %c0_175, %c0_176] : memref<2x64x32xf32, #tpu.memory_space<vmem>>, vector<1x64x32xf32>
    %480 = vector.shape_cast %479 : vector<1x64x32xf32> to vector<64x32xf32>
    %cst_177 = arith.constant dense<0.000000e+00> : vector<16x32xf32>
    %481 = tpu.matmul %478, %480, %cst_177 {dimension_numbers = #tpu.dot_dimension_numbers<[1], [0], [0], [1], [0, 0, 1, 1], [], []>} : vector<16x64xf32>, vector<64x32xf32>, vector<16x32xf32> -> vector<16x32xf32>
    %c1_178 = arith.constant 1 : index
    %c0_179 = arith.constant 0 : index
    %c0_180 = arith.constant 0 : index
    %482 = vector.load %arg13[%c1_178, %c0_179, %c0_180] : memref<2x1x32xf32, #tpu.memory_space<vmem>>, vector<1x1x32xf32>
    %483 = vector.shape_cast %482 : vector<1x1x32xf32> to vector<1x32xf32>
    %484 = vector.broadcast %483 : vector<1x32xf32> to vector<16x32xf32>
    %485 = arith.addf %481, %484 : vector<16x32xf32>
    %c1_181 = arith.constant 1 : index
    %c0_182 = arith.constant 0 : index
    %c0_183 = arith.constant 0 : index
    %486 = vector.load %arg14[%c1_181, %c0_182, %c0_183] : memref<2x1x32xf32, #tpu.memory_space<vmem>>, vector<1x1x32xf32>
    %487 = vector.shape_cast %486 : vector<1x1x32xf32> to vector<1x32xf32>
    %c1_184 = arith.constant 1 : index
    %c0_185 = arith.constant 0 : index
    %c0_186 = arith.constant 0 : index
    %488 = vector.load %arg15[%c1_184, %c0_185, %c0_186] : memref<2x1x32xf32, #tpu.memory_space<vmem>>, vector<1x1x32xf32>
    %489 = vector.shape_cast %488 : vector<1x1x32xf32> to vector<1x32xf32>
    %490 = arith.addf %469, %485 : vector<16x32xf32>
    %cst_187 = arith.constant dense<0.000000e+00> : vector<16xf32>
    %491 = vector.multi_reduction <add>, %490, %cst_187 [1] : vector<16x32xf32> to vector<16xf32>
    %492 = vector.shape_cast %491 : vector<16xf32> to vector<16x1xf32>
    %cst_188 = arith.constant 3.200000e+01 : f32
    %493 = vector.broadcast %cst_188 : f32 to vector<16x1xf32>
    %494 = arith.divf %492, %493 : vector<16x1xf32>
    %495 = vector.broadcast %494 : vector<16x1xf32> to vector<16x32xf32>
    %496 = arith.subf %490, %495 : vector<16x32xf32>
    %497 = arith.mulf %496, %496 : vector<16x32xf32>
    %cst_189 = arith.constant dense<0.000000e+00> : vector<16xf32>
    %498 = vector.multi_reduction <add>, %497, %cst_189 [1] : vector<16x32xf32> to vector<16xf32>
    %499 = vector.shape_cast %498 : vector<16xf32> to vector<16x1xf32>
    %cst_190 = arith.constant 3.200000e+01 : f32
    %500 = vector.broadcast %cst_190 : f32 to vector<16x1xf32>
    %501 = arith.divf %499, %500 : vector<16x1xf32>
    %cst_191 = arith.constant 9.99999974E-6 : f32
    %502 = vector.broadcast %cst_191 : f32 to vector<16x1xf32>
    %503 = arith.addf %501, %502 : vector<16x1xf32>
    %504 = math.rsqrt %503 : vector<16x1xf32>
    %505 = vector.broadcast %504 : vector<16x1xf32> to vector<16x32xf32>
    %506 = arith.mulf %496, %505 : vector<16x32xf32>
    %507 = vector.broadcast %487 : vector<1x32xf32> to vector<16x32xf32>
    %508 = arith.mulf %506, %507 : vector<16x32xf32>
    %509 = vector.broadcast %489 : vector<1x32xf32> to vector<16x32xf32>
    %510 = arith.addf %508, %509 : vector<16x32xf32>
    %c0_192 = arith.constant 0 : index
    %c0_193 = arith.constant 0 : index
    %511 = vector.load %arg1[%c0_192, %c0_193] : memref<16x32xf32, #tpu.memory_space<vmem>>, vector<16x32xf32>
    %c0_194 = arith.constant 0 : index
    %c0_195 = arith.constant 0 : index
    %c0_196 = arith.constant 0 : index
    %512 = vector.load %arg16[%c0_194, %c0_195, %c0_196] : memref<2x32x96xf32, #tpu.memory_space<vmem>>, vector<1x32x96xf32>
    %513 = vector.shape_cast %512 : vector<1x32x96xf32> to vector<32x96xf32>
    %cst_197 = arith.constant dense<0.000000e+00> : vector<16x96xf32>
    %514 = tpu.matmul %511, %513, %cst_197 {dimension_numbers = #tpu.dot_dimension_numbers<[1], [0], [0], [1], [0, 0, 1, 1], [], []>} : vector<16x32xf32>, vector<32x96xf32>, vector<16x96xf32> -> vector<16x96xf32>
    %c0_198 = arith.constant 0 : index
    %c0_199 = arith.constant 0 : index
    %c0_200 = arith.constant 0 : index
    %515 = vector.load %arg17[%c0_198, %c0_199, %c0_200] : memref<2x1x96xf32, #tpu.memory_space<vmem>>, vector<1x1x96xf32>
    %516 = vector.shape_cast %515 : vector<1x1x96xf32> to vector<1x96xf32>
    %517 = vector.broadcast %516 : vector<1x96xf32> to vector<16x96xf32>
    %518 = arith.addf %514, %517 : vector<16x96xf32>
    %519 = vector.extract_strided_slice %518 {offsets = [0, 0], sizes = [16, 32], strides = [1, 1]} : vector<16x96xf32> to vector<16x32xf32>
    %520 = vector.extract_strided_slice %518 {offsets = [0, 32], sizes = [16, 32], strides = [1, 1]} : vector<16x96xf32> to vector<16x32xf32>
    %521 = vector.extract_strided_slice %518 {offsets = [0, 64], sizes = [16, 32], strides = [1, 1]} : vector<16x96xf32> to vector<16x32xf32>
    %522 = vector.extract_strided_slice %519 {offsets = [0, 0], sizes = [8, 32], strides = [1, 1]} : vector<16x32xf32> to vector<8x32xf32>
    %523 = vector.extract_strided_slice %520 {offsets = [0, 0], sizes = [8, 32], strides = [1, 1]} : vector<16x32xf32> to vector<8x32xf32>
    %524 = vector.extract_strided_slice %521 {offsets = [0, 0], sizes = [8, 32], strides = [1, 1]} : vector<16x32xf32> to vector<8x32xf32>
    %525 = vector.extract_strided_slice %11 {offsets = [0, 0], sizes = [1, 8], strides = [1, 1]} : vector<2x8xf32> to vector<1x8xf32>
    %526 = vector.extract_strided_slice %522 {offsets = [0, 0], sizes = [8, 8], strides = [1, 1]} : vector<8x32xf32> to vector<8x8xf32>
    %527 = vector.extract_strided_slice %523 {offsets = [0, 0], sizes = [8, 8], strides = [1, 1]} : vector<8x32xf32> to vector<8x8xf32>
    %cst_201 = arith.constant dense<0.000000e+00> : vector<8x8xf32>
    %528 = tpu.matmul %526, %527, %cst_201 {dimension_numbers = #tpu.dot_dimension_numbers<[1], [1], [0], [0], [0, 0, 1, 0], [], []>} : vector<8x8xf32>, vector<8x8xf32>, vector<8x8xf32> -> vector<8x8xf32>
    %cst_202 = arith.constant 0.353553385 : f32
    %529 = vector.broadcast %cst_202 : f32 to vector<8x8xf32>
    %530 = arith.mulf %528, %529 : vector<8x8xf32>
    %531 = vector.broadcast %525 : vector<1x8xf32> to vector<8x8xf32>
    %532 = arith.addf %530, %531 : vector<8x8xf32>
    %533 = arith.addf %532, %17 : vector<8x8xf32>
    %cst_203 = arith.constant dense<0xFF800000> : vector<8xf32>
    %534 = vector.multi_reduction <maximumf>, %533, %cst_203 [1] : vector<8x8xf32> to vector<8xf32>
    %535 = vector.shape_cast %534 : vector<8xf32> to vector<8x1xf32>
    %536 = vector.broadcast %535 : vector<8x1xf32> to vector<8x8xf32>
    %537 = arith.subf %533, %536 : vector<8x8xf32>
    %538 = math.exp %537 : vector<8x8xf32>
    %cst_204 = arith.constant dense<0.000000e+00> : vector<8xf32>
    %539 = vector.multi_reduction <add>, %538, %cst_204 [1] : vector<8x8xf32> to vector<8xf32>
    %540 = vector.shape_cast %539 : vector<8xf32> to vector<8x1xf32>
    %541 = tpu.reciprocal %540 {approx = true} : vector<8x1xf32> -> vector<8x1xf32>
    %542 = vector.broadcast %541 : vector<8x1xf32> to vector<8x8xf32>
    %543 = arith.mulf %538, %542 : vector<8x8xf32>
    %544 = vector.extract_strided_slice %524 {offsets = [0, 0], sizes = [8, 8], strides = [1, 1]} : vector<8x32xf32> to vector<8x8xf32>
    %cst_205 = arith.constant dense<0.000000e+00> : vector<8x8xf32>
    %545 = tpu.matmul %543, %544, %cst_205 {dimension_numbers = #tpu.dot_dimension_numbers<[1], [0], [0], [1], [0, 0, 1, 1], [], []>} : vector<8x8xf32>, vector<8x8xf32>, vector<8x8xf32> -> vector<8x8xf32>
    %546 = vector.extract_strided_slice %522 {offsets = [0, 8], sizes = [8, 8], strides = [1, 1]} : vector<8x32xf32> to vector<8x8xf32>
    %547 = vector.extract_strided_slice %523 {offsets = [0, 8], sizes = [8, 8], strides = [1, 1]} : vector<8x32xf32> to vector<8x8xf32>
    %cst_206 = arith.constant dense<0.000000e+00> : vector<8x8xf32>
    %548 = tpu.matmul %546, %547, %cst_206 {dimension_numbers = #tpu.dot_dimension_numbers<[1], [1], [0], [0], [0, 0, 1, 0], [], []>} : vector<8x8xf32>, vector<8x8xf32>, vector<8x8xf32> -> vector<8x8xf32>
    %cst_207 = arith.constant 0.353553385 : f32
    %549 = vector.broadcast %cst_207 : f32 to vector<8x8xf32>
    %550 = arith.mulf %548, %549 : vector<8x8xf32>
    %551 = vector.broadcast %525 : vector<1x8xf32> to vector<8x8xf32>
    %552 = arith.addf %550, %551 : vector<8x8xf32>
    %553 = arith.addf %552, %17 : vector<8x8xf32>
    %cst_208 = arith.constant dense<0xFF800000> : vector<8xf32>
    %554 = vector.multi_reduction <maximumf>, %553, %cst_208 [1] : vector<8x8xf32> to vector<8xf32>
    %555 = vector.shape_cast %554 : vector<8xf32> to vector<8x1xf32>
    %556 = vector.broadcast %555 : vector<8x1xf32> to vector<8x8xf32>
    %557 = arith.subf %553, %556 : vector<8x8xf32>
    %558 = math.exp %557 : vector<8x8xf32>
    %cst_209 = arith.constant dense<0.000000e+00> : vector<8xf32>
    %559 = vector.multi_reduction <add>, %558, %cst_209 [1] : vector<8x8xf32> to vector<8xf32>
    %560 = vector.shape_cast %559 : vector<8xf32> to vector<8x1xf32>
    %561 = tpu.reciprocal %560 {approx = true} : vector<8x1xf32> -> vector<8x1xf32>
    %562 = vector.broadcast %561 : vector<8x1xf32> to vector<8x8xf32>
    %563 = arith.mulf %558, %562 : vector<8x8xf32>
    %564 = vector.extract_strided_slice %524 {offsets = [0, 8], sizes = [8, 8], strides = [1, 1]} : vector<8x32xf32> to vector<8x8xf32>
    %cst_210 = arith.constant dense<0.000000e+00> : vector<8x8xf32>
    %565 = tpu.matmul %563, %564, %cst_210 {dimension_numbers = #tpu.dot_dimension_numbers<[1], [0], [0], [1], [0, 0, 1, 1], [], []>} : vector<8x8xf32>, vector<8x8xf32>, vector<8x8xf32> -> vector<8x8xf32>
    %566 = vector.extract_strided_slice %522 {offsets = [0, 16], sizes = [8, 8], strides = [1, 1]} : vector<8x32xf32> to vector<8x8xf32>
    %567 = vector.extract_strided_slice %523 {offsets = [0, 16], sizes = [8, 8], strides = [1, 1]} : vector<8x32xf32> to vector<8x8xf32>
    %cst_211 = arith.constant dense<0.000000e+00> : vector<8x8xf32>
    %568 = tpu.matmul %566, %567, %cst_211 {dimension_numbers = #tpu.dot_dimension_numbers<[1], [1], [0], [0], [0, 0, 1, 0], [], []>} : vector<8x8xf32>, vector<8x8xf32>, vector<8x8xf32> -> vector<8x8xf32>
    %cst_212 = arith.constant 0.353553385 : f32
    %569 = vector.broadcast %cst_212 : f32 to vector<8x8xf32>
    %570 = arith.mulf %568, %569 : vector<8x8xf32>
    %571 = vector.broadcast %525 : vector<1x8xf32> to vector<8x8xf32>
    %572 = arith.addf %570, %571 : vector<8x8xf32>
    %573 = arith.addf %572, %17 : vector<8x8xf32>
    %cst_213 = arith.constant dense<0xFF800000> : vector<8xf32>
    %574 = vector.multi_reduction <maximumf>, %573, %cst_213 [1] : vector<8x8xf32> to vector<8xf32>
    %575 = vector.shape_cast %574 : vector<8xf32> to vector<8x1xf32>
    %576 = vector.broadcast %575 : vector<8x1xf32> to vector<8x8xf32>
    %577 = arith.subf %573, %576 : vector<8x8xf32>
    %578 = math.exp %577 : vector<8x8xf32>
    %cst_214 = arith.constant dense<0.000000e+00> : vector<8xf32>
    %579 = vector.multi_reduction <add>, %578, %cst_214 [1] : vector<8x8xf32> to vector<8xf32>
    %580 = vector.shape_cast %579 : vector<8xf32> to vector<8x1xf32>
    %581 = tpu.reciprocal %580 {approx = true} : vector<8x1xf32> -> vector<8x1xf32>
    %582 = vector.broadcast %581 : vector<8x1xf32> to vector<8x8xf32>
    %583 = arith.mulf %578, %582 : vector<8x8xf32>
    %584 = vector.extract_strided_slice %524 {offsets = [0, 16], sizes = [8, 8], strides = [1, 1]} : vector<8x32xf32> to vector<8x8xf32>
    %cst_215 = arith.constant dense<0.000000e+00> : vector<8x8xf32>
    %585 = tpu.matmul %583, %584, %cst_215 {dimension_numbers = #tpu.dot_dimension_numbers<[1], [0], [0], [1], [0, 0, 1, 1], [], []>} : vector<8x8xf32>, vector<8x8xf32>, vector<8x8xf32> -> vector<8x8xf32>
    %586 = vector.extract_strided_slice %522 {offsets = [0, 24], sizes = [8, 8], strides = [1, 1]} : vector<8x32xf32> to vector<8x8xf32>
    %587 = vector.extract_strided_slice %523 {offsets = [0, 24], sizes = [8, 8], strides = [1, 1]} : vector<8x32xf32> to vector<8x8xf32>
    %cst_216 = arith.constant dense<0.000000e+00> : vector<8x8xf32>
    %588 = tpu.matmul %586, %587, %cst_216 {dimension_numbers = #tpu.dot_dimension_numbers<[1], [1], [0], [0], [0, 0, 1, 0], [], []>} : vector<8x8xf32>, vector<8x8xf32>, vector<8x8xf32> -> vector<8x8xf32>
    %cst_217 = arith.constant 0.353553385 : f32
    %589 = vector.broadcast %cst_217 : f32 to vector<8x8xf32>
    %590 = arith.mulf %588, %589 : vector<8x8xf32>
    %591 = vector.broadcast %525 : vector<1x8xf32> to vector<8x8xf32>
    %592 = arith.addf %590, %591 : vector<8x8xf32>
    %593 = arith.addf %592, %17 : vector<8x8xf32>
    %cst_218 = arith.constant dense<0xFF800000> : vector<8xf32>
    %594 = vector.multi_reduction <maximumf>, %593, %cst_218 [1] : vector<8x8xf32> to vector<8xf32>
    %595 = vector.shape_cast %594 : vector<8xf32> to vector<8x1xf32>
    %596 = vector.broadcast %595 : vector<8x1xf32> to vector<8x8xf32>
    %597 = arith.subf %593, %596 : vector<8x8xf32>
    %598 = math.exp %597 : vector<8x8xf32>
    %cst_219 = arith.constant dense<0.000000e+00> : vector<8xf32>
    %599 = vector.multi_reduction <add>, %598, %cst_219 [1] : vector<8x8xf32> to vector<8xf32>
    %600 = vector.shape_cast %599 : vector<8xf32> to vector<8x1xf32>
    %601 = tpu.reciprocal %600 {approx = true} : vector<8x1xf32> -> vector<8x1xf32>
    %602 = vector.broadcast %601 : vector<8x1xf32> to vector<8x8xf32>
    %603 = arith.mulf %598, %602 : vector<8x8xf32>
    %604 = vector.extract_strided_slice %524 {offsets = [0, 24], sizes = [8, 8], strides = [1, 1]} : vector<8x32xf32> to vector<8x8xf32>
    %cst_220 = arith.constant dense<0.000000e+00> : vector<8x8xf32>
    %605 = tpu.matmul %603, %604, %cst_220 {dimension_numbers = #tpu.dot_dimension_numbers<[1], [0], [0], [1], [0, 0, 1, 1], [], []>} : vector<8x8xf32>, vector<8x8xf32>, vector<8x8xf32> -> vector<8x8xf32>
    %606 = tpu.concatenate %545, %565, %585, %605 in 1 : vector<8x8xf32>, vector<8x8xf32>, vector<8x8xf32>, vector<8x8xf32> -> vector<8x32xf32>
    %607 = vector.extract_strided_slice %519 {offsets = [8, 0], sizes = [8, 32], strides = [1, 1]} : vector<16x32xf32> to vector<8x32xf32>
    %608 = vector.extract_strided_slice %520 {offsets = [8, 0], sizes = [8, 32], strides = [1, 1]} : vector<16x32xf32> to vector<8x32xf32>
    %609 = vector.extract_strided_slice %521 {offsets = [8, 0], sizes = [8, 32], strides = [1, 1]} : vector<16x32xf32> to vector<8x32xf32>
    %610 = vector.extract_strided_slice %11 {offsets = [1, 0], sizes = [1, 8], strides = [1, 1]} : vector<2x8xf32> to vector<1x8xf32>
    %611 = vector.extract_strided_slice %607 {offsets = [0, 0], sizes = [8, 8], strides = [1, 1]} : vector<8x32xf32> to vector<8x8xf32>
    %612 = vector.extract_strided_slice %608 {offsets = [0, 0], sizes = [8, 8], strides = [1, 1]} : vector<8x32xf32> to vector<8x8xf32>
    %cst_221 = arith.constant dense<0.000000e+00> : vector<8x8xf32>
    %613 = tpu.matmul %611, %612, %cst_221 {dimension_numbers = #tpu.dot_dimension_numbers<[1], [1], [0], [0], [0, 0, 1, 0], [], []>} : vector<8x8xf32>, vector<8x8xf32>, vector<8x8xf32> -> vector<8x8xf32>
    %cst_222 = arith.constant 0.353553385 : f32
    %614 = vector.broadcast %cst_222 : f32 to vector<8x8xf32>
    %615 = arith.mulf %613, %614 : vector<8x8xf32>
    %616 = vector.broadcast %610 : vector<1x8xf32> to vector<8x8xf32>
    %617 = arith.addf %615, %616 : vector<8x8xf32>
    %618 = arith.addf %617, %17 : vector<8x8xf32>
    %cst_223 = arith.constant dense<0xFF800000> : vector<8xf32>
    %619 = vector.multi_reduction <maximumf>, %618, %cst_223 [1] : vector<8x8xf32> to vector<8xf32>
    %620 = vector.shape_cast %619 : vector<8xf32> to vector<8x1xf32>
    %621 = vector.broadcast %620 : vector<8x1xf32> to vector<8x8xf32>
    %622 = arith.subf %618, %621 : vector<8x8xf32>
    %623 = math.exp %622 : vector<8x8xf32>
    %cst_224 = arith.constant dense<0.000000e+00> : vector<8xf32>
    %624 = vector.multi_reduction <add>, %623, %cst_224 [1] : vector<8x8xf32> to vector<8xf32>
    %625 = vector.shape_cast %624 : vector<8xf32> to vector<8x1xf32>
    %626 = tpu.reciprocal %625 {approx = true} : vector<8x1xf32> -> vector<8x1xf32>
    %627 = vector.broadcast %626 : vector<8x1xf32> to vector<8x8xf32>
    %628 = arith.mulf %623, %627 : vector<8x8xf32>
    %629 = vector.extract_strided_slice %609 {offsets = [0, 0], sizes = [8, 8], strides = [1, 1]} : vector<8x32xf32> to vector<8x8xf32>
    %cst_225 = arith.constant dense<0.000000e+00> : vector<8x8xf32>
    %630 = tpu.matmul %628, %629, %cst_225 {dimension_numbers = #tpu.dot_dimension_numbers<[1], [0], [0], [1], [0, 0, 1, 1], [], []>} : vector<8x8xf32>, vector<8x8xf32>, vector<8x8xf32> -> vector<8x8xf32>
    %631 = vector.extract_strided_slice %607 {offsets = [0, 8], sizes = [8, 8], strides = [1, 1]} : vector<8x32xf32> to vector<8x8xf32>
    %632 = vector.extract_strided_slice %608 {offsets = [0, 8], sizes = [8, 8], strides = [1, 1]} : vector<8x32xf32> to vector<8x8xf32>
    %cst_226 = arith.constant dense<0.000000e+00> : vector<8x8xf32>
    %633 = tpu.matmul %631, %632, %cst_226 {dimension_numbers = #tpu.dot_dimension_numbers<[1], [1], [0], [0], [0, 0, 1, 0], [], []>} : vector<8x8xf32>, vector<8x8xf32>, vector<8x8xf32> -> vector<8x8xf32>
    %cst_227 = arith.constant 0.353553385 : f32
    %634 = vector.broadcast %cst_227 : f32 to vector<8x8xf32>
    %635 = arith.mulf %633, %634 : vector<8x8xf32>
    %636 = vector.broadcast %610 : vector<1x8xf32> to vector<8x8xf32>
    %637 = arith.addf %635, %636 : vector<8x8xf32>
    %638 = arith.addf %637, %17 : vector<8x8xf32>
    %cst_228 = arith.constant dense<0xFF800000> : vector<8xf32>
    %639 = vector.multi_reduction <maximumf>, %638, %cst_228 [1] : vector<8x8xf32> to vector<8xf32>
    %640 = vector.shape_cast %639 : vector<8xf32> to vector<8x1xf32>
    %641 = vector.broadcast %640 : vector<8x1xf32> to vector<8x8xf32>
    %642 = arith.subf %638, %641 : vector<8x8xf32>
    %643 = math.exp %642 : vector<8x8xf32>
    %cst_229 = arith.constant dense<0.000000e+00> : vector<8xf32>
    %644 = vector.multi_reduction <add>, %643, %cst_229 [1] : vector<8x8xf32> to vector<8xf32>
    %645 = vector.shape_cast %644 : vector<8xf32> to vector<8x1xf32>
    %646 = tpu.reciprocal %645 {approx = true} : vector<8x1xf32> -> vector<8x1xf32>
    %647 = vector.broadcast %646 : vector<8x1xf32> to vector<8x8xf32>
    %648 = arith.mulf %643, %647 : vector<8x8xf32>
    %649 = vector.extract_strided_slice %609 {offsets = [0, 8], sizes = [8, 8], strides = [1, 1]} : vector<8x32xf32> to vector<8x8xf32>
    %cst_230 = arith.constant dense<0.000000e+00> : vector<8x8xf32>
    %650 = tpu.matmul %648, %649, %cst_230 {dimension_numbers = #tpu.dot_dimension_numbers<[1], [0], [0], [1], [0, 0, 1, 1], [], []>} : vector<8x8xf32>, vector<8x8xf32>, vector<8x8xf32> -> vector<8x8xf32>
    %651 = vector.extract_strided_slice %607 {offsets = [0, 16], sizes = [8, 8], strides = [1, 1]} : vector<8x32xf32> to vector<8x8xf32>
    %652 = vector.extract_strided_slice %608 {offsets = [0, 16], sizes = [8, 8], strides = [1, 1]} : vector<8x32xf32> to vector<8x8xf32>
    %cst_231 = arith.constant dense<0.000000e+00> : vector<8x8xf32>
    %653 = tpu.matmul %651, %652, %cst_231 {dimension_numbers = #tpu.dot_dimension_numbers<[1], [1], [0], [0], [0, 0, 1, 0], [], []>} : vector<8x8xf32>, vector<8x8xf32>, vector<8x8xf32> -> vector<8x8xf32>
    %cst_232 = arith.constant 0.353553385 : f32
    %654 = vector.broadcast %cst_232 : f32 to vector<8x8xf32>
    %655 = arith.mulf %653, %654 : vector<8x8xf32>
    %656 = vector.broadcast %610 : vector<1x8xf32> to vector<8x8xf32>
    %657 = arith.addf %655, %656 : vector<8x8xf32>
    %658 = arith.addf %657, %17 : vector<8x8xf32>
    %cst_233 = arith.constant dense<0xFF800000> : vector<8xf32>
    %659 = vector.multi_reduction <maximumf>, %658, %cst_233 [1] : vector<8x8xf32> to vector<8xf32>
    %660 = vector.shape_cast %659 : vector<8xf32> to vector<8x1xf32>
    %661 = vector.broadcast %660 : vector<8x1xf32> to vector<8x8xf32>
    %662 = arith.subf %658, %661 : vector<8x8xf32>
    %663 = math.exp %662 : vector<8x8xf32>
    %cst_234 = arith.constant dense<0.000000e+00> : vector<8xf32>
    %664 = vector.multi_reduction <add>, %663, %cst_234 [1] : vector<8x8xf32> to vector<8xf32>
    %665 = vector.shape_cast %664 : vector<8xf32> to vector<8x1xf32>
    %666 = tpu.reciprocal %665 {approx = true} : vector<8x1xf32> -> vector<8x1xf32>
    %667 = vector.broadcast %666 : vector<8x1xf32> to vector<8x8xf32>
    %668 = arith.mulf %663, %667 : vector<8x8xf32>
    %669 = vector.extract_strided_slice %609 {offsets = [0, 16], sizes = [8, 8], strides = [1, 1]} : vector<8x32xf32> to vector<8x8xf32>
    %cst_235 = arith.constant dense<0.000000e+00> : vector<8x8xf32>
    %670 = tpu.matmul %668, %669, %cst_235 {dimension_numbers = #tpu.dot_dimension_numbers<[1], [0], [0], [1], [0, 0, 1, 1], [], []>} : vector<8x8xf32>, vector<8x8xf32>, vector<8x8xf32> -> vector<8x8xf32>
    %671 = vector.extract_strided_slice %607 {offsets = [0, 24], sizes = [8, 8], strides = [1, 1]} : vector<8x32xf32> to vector<8x8xf32>
    %672 = vector.extract_strided_slice %608 {offsets = [0, 24], sizes = [8, 8], strides = [1, 1]} : vector<8x32xf32> to vector<8x8xf32>
    %cst_236 = arith.constant dense<0.000000e+00> : vector<8x8xf32>
    %673 = tpu.matmul %671, %672, %cst_236 {dimension_numbers = #tpu.dot_dimension_numbers<[1], [1], [0], [0], [0, 0, 1, 0], [], []>} : vector<8x8xf32>, vector<8x8xf32>, vector<8x8xf32> -> vector<8x8xf32>
    %cst_237 = arith.constant 0.353553385 : f32
    %674 = vector.broadcast %cst_237 : f32 to vector<8x8xf32>
    %675 = arith.mulf %673, %674 : vector<8x8xf32>
    %676 = vector.broadcast %610 : vector<1x8xf32> to vector<8x8xf32>
    %677 = arith.addf %675, %676 : vector<8x8xf32>
    %678 = arith.addf %677, %17 : vector<8x8xf32>
    %cst_238 = arith.constant dense<0xFF800000> : vector<8xf32>
    %679 = vector.multi_reduction <maximumf>, %678, %cst_238 [1] : vector<8x8xf32> to vector<8xf32>
    %680 = vector.shape_cast %679 : vector<8xf32> to vector<8x1xf32>
    %681 = vector.broadcast %680 : vector<8x1xf32> to vector<8x8xf32>
    %682 = arith.subf %678, %681 : vector<8x8xf32>
    %683 = math.exp %682 : vector<8x8xf32>
    %cst_239 = arith.constant dense<0.000000e+00> : vector<8xf32>
    %684 = vector.multi_reduction <add>, %683, %cst_239 [1] : vector<8x8xf32> to vector<8xf32>
    %685 = vector.shape_cast %684 : vector<8xf32> to vector<8x1xf32>
    %686 = tpu.reciprocal %685 {approx = true} : vector<8x1xf32> -> vector<8x1xf32>
    %687 = vector.broadcast %686 : vector<8x1xf32> to vector<8x8xf32>
    %688 = arith.mulf %683, %687 : vector<8x8xf32>
    %689 = vector.extract_strided_slice %609 {offsets = [0, 24], sizes = [8, 8], strides = [1, 1]} : vector<8x32xf32> to vector<8x8xf32>
    %cst_240 = arith.constant dense<0.000000e+00> : vector<8x8xf32>
    %690 = tpu.matmul %688, %689, %cst_240 {dimension_numbers = #tpu.dot_dimension_numbers<[1], [0], [0], [1], [0, 0, 1, 1], [], []>} : vector<8x8xf32>, vector<8x8xf32>, vector<8x8xf32> -> vector<8x8xf32>
    %691 = tpu.concatenate %630, %650, %670, %690 in 1 : vector<8x8xf32>, vector<8x8xf32>, vector<8x8xf32>, vector<8x8xf32> -> vector<8x32xf32>
    %692 = tpu.concatenate %606, %691 in 0 : vector<8x32xf32>, vector<8x32xf32> -> vector<16x32xf32>
    %c0_241 = arith.constant 0 : index
    %c0_242 = arith.constant 0 : index
    %c0_243 = arith.constant 0 : index
    %693 = vector.load %arg18[%c0_241, %c0_242, %c0_243] : memref<2x32x32xf32, #tpu.memory_space<vmem>>, vector<1x32x32xf32>
    %694 = vector.shape_cast %693 : vector<1x32x32xf32> to vector<32x32xf32>
    %cst_244 = arith.constant dense<0.000000e+00> : vector<16x32xf32>
    %695 = tpu.matmul %692, %694, %cst_244 {dimension_numbers = #tpu.dot_dimension_numbers<[1], [0], [0], [1], [0, 0, 1, 1], [], []>} : vector<16x32xf32>, vector<32x32xf32>, vector<16x32xf32> -> vector<16x32xf32>
    %c0_245 = arith.constant 0 : index
    %c0_246 = arith.constant 0 : index
    %c0_247 = arith.constant 0 : index
    %696 = vector.load %arg19[%c0_245, %c0_246, %c0_247] : memref<2x1x32xf32, #tpu.memory_space<vmem>>, vector<1x1x32xf32>
    %697 = vector.shape_cast %696 : vector<1x1x32xf32> to vector<1x32xf32>
    %698 = vector.broadcast %697 : vector<1x32xf32> to vector<16x32xf32>
    %699 = arith.addf %695, %698 : vector<16x32xf32>
    %c0_248 = arith.constant 0 : index
    %c0_249 = arith.constant 0 : index
    %c0_250 = arith.constant 0 : index
    %700 = vector.load %arg20[%c0_248, %c0_249, %c0_250] : memref<2x1x32xf32, #tpu.memory_space<vmem>>, vector<1x1x32xf32>
    %701 = vector.shape_cast %700 : vector<1x1x32xf32> to vector<1x32xf32>
    %c0_251 = arith.constant 0 : index
    %c0_252 = arith.constant 0 : index
    %c0_253 = arith.constant 0 : index
    %702 = vector.load %arg21[%c0_251, %c0_252, %c0_253] : memref<2x1x32xf32, #tpu.memory_space<vmem>>, vector<1x1x32xf32>
    %703 = vector.shape_cast %702 : vector<1x1x32xf32> to vector<1x32xf32>
    %704 = arith.addf %511, %699 : vector<16x32xf32>
    %cst_254 = arith.constant dense<0.000000e+00> : vector<16xf32>
    %705 = vector.multi_reduction <add>, %704, %cst_254 [1] : vector<16x32xf32> to vector<16xf32>
    %706 = vector.shape_cast %705 : vector<16xf32> to vector<16x1xf32>
    %cst_255 = arith.constant 3.200000e+01 : f32
    %707 = vector.broadcast %cst_255 : f32 to vector<16x1xf32>
    %708 = arith.divf %706, %707 : vector<16x1xf32>
    %709 = vector.broadcast %708 : vector<16x1xf32> to vector<16x32xf32>
    %710 = arith.subf %704, %709 : vector<16x32xf32>
    %711 = arith.mulf %710, %710 : vector<16x32xf32>
    %cst_256 = arith.constant dense<0.000000e+00> : vector<16xf32>
    %712 = vector.multi_reduction <add>, %711, %cst_256 [1] : vector<16x32xf32> to vector<16xf32>
    %713 = vector.shape_cast %712 : vector<16xf32> to vector<16x1xf32>
    %cst_257 = arith.constant 3.200000e+01 : f32
    %714 = vector.broadcast %cst_257 : f32 to vector<16x1xf32>
    %715 = arith.divf %713, %714 : vector<16x1xf32>
    %cst_258 = arith.constant 9.99999974E-6 : f32
    %716 = vector.broadcast %cst_258 : f32 to vector<16x1xf32>
    %717 = arith.addf %715, %716 : vector<16x1xf32>
    %718 = math.rsqrt %717 : vector<16x1xf32>
    %719 = vector.broadcast %718 : vector<16x1xf32> to vector<16x32xf32>
    %720 = arith.mulf %710, %719 : vector<16x32xf32>
    %721 = vector.broadcast %701 : vector<1x32xf32> to vector<16x32xf32>
    %722 = arith.mulf %720, %721 : vector<16x32xf32>
    %723 = vector.broadcast %703 : vector<1x32xf32> to vector<16x32xf32>
    %724 = arith.addf %722, %723 : vector<16x32xf32>
    %c0_259 = arith.constant 0 : index
    %c0_260 = arith.constant 0 : index
    %c0_261 = arith.constant 0 : index
    %725 = vector.load %arg22[%c0_259, %c0_260, %c0_261] : memref<2x32x32xf32, #tpu.memory_space<vmem>>, vector<1x32x32xf32>
    %726 = vector.shape_cast %725 : vector<1x32x32xf32> to vector<32x32xf32>
    %cst_262 = arith.constant dense<0.000000e+00> : vector<16x32xf32>
    %727 = tpu.matmul %724, %726, %cst_262 {dimension_numbers = #tpu.dot_dimension_numbers<[1], [0], [0], [1], [0, 0, 1, 1], [], []>} : vector<16x32xf32>, vector<32x32xf32>, vector<16x32xf32> -> vector<16x32xf32>
    %c0_263 = arith.constant 0 : index
    %c0_264 = arith.constant 0 : index
    %c0_265 = arith.constant 0 : index
    %728 = vector.load %arg23[%c0_263, %c0_264, %c0_265] : memref<2x1x32xf32, #tpu.memory_space<vmem>>, vector<1x1x32xf32>
    %729 = vector.shape_cast %728 : vector<1x1x32xf32> to vector<1x32xf32>
    %730 = vector.broadcast %729 : vector<1x32xf32> to vector<16x32xf32>
    %731 = arith.addf %727, %730 : vector<16x32xf32>
    %c0_266 = arith.constant 0 : index
    %c0_267 = arith.constant 0 : index
    %c0_268 = arith.constant 0 : index
    %732 = vector.load %arg24[%c0_266, %c0_267, %c0_268] : memref<2x32x64xf32, #tpu.memory_space<vmem>>, vector<1x32x64xf32>
    %733 = vector.shape_cast %732 : vector<1x32x64xf32> to vector<32x64xf32>
    %cst_269 = arith.constant dense<0.000000e+00> : vector<16x64xf32>
    %734 = tpu.matmul %510, %733, %cst_269 {dimension_numbers = #tpu.dot_dimension_numbers<[1], [0], [0], [1], [0, 0, 1, 1], [], []>} : vector<16x32xf32>, vector<32x64xf32>, vector<16x64xf32> -> vector<16x64xf32>
    %c0_270 = arith.constant 0 : index
    %c0_271 = arith.constant 0 : index
    %c0_272 = arith.constant 0 : index
    %735 = vector.load %arg25[%c0_270, %c0_271, %c0_272] : memref<2x1x64xf32, #tpu.memory_space<vmem>>, vector<1x1x64xf32>
    %736 = vector.shape_cast %735 : vector<1x1x64xf32> to vector<1x64xf32>
    %737 = vector.broadcast %736 : vector<1x64xf32> to vector<16x64xf32>
    %738 = arith.addf %734, %737 : vector<16x64xf32>
    %739 = vector.extract_strided_slice %738 {offsets = [0, 0], sizes = [16, 32], strides = [1, 1]} : vector<16x64xf32> to vector<16x32xf32>
    %740 = vector.extract_strided_slice %738 {offsets = [0, 32], sizes = [16, 32], strides = [1, 1]} : vector<16x64xf32> to vector<16x32xf32>
    %741 = vector.extract_strided_slice %731 {offsets = [0, 0], sizes = [8, 32], strides = [1, 1]} : vector<16x32xf32> to vector<8x32xf32>
    %742 = vector.extract_strided_slice %739 {offsets = [0, 0], sizes = [8, 32], strides = [1, 1]} : vector<16x32xf32> to vector<8x32xf32>
    %743 = vector.extract_strided_slice %740 {offsets = [0, 0], sizes = [8, 32], strides = [1, 1]} : vector<16x32xf32> to vector<8x32xf32>
    %744 = vector.extract_strided_slice %5 {offsets = [0, 0], sizes = [1, 8], strides = [1, 1]} : vector<2x8xf32> to vector<1x8xf32>
    %745 = vector.extract_strided_slice %741 {offsets = [0, 0], sizes = [8, 8], strides = [1, 1]} : vector<8x32xf32> to vector<8x8xf32>
    %746 = vector.extract_strided_slice %742 {offsets = [0, 0], sizes = [8, 8], strides = [1, 1]} : vector<8x32xf32> to vector<8x8xf32>
    %cst_273 = arith.constant dense<0.000000e+00> : vector<8x8xf32>
    %747 = tpu.matmul %745, %746, %cst_273 {dimension_numbers = #tpu.dot_dimension_numbers<[1], [1], [0], [0], [0, 0, 1, 0], [], []>} : vector<8x8xf32>, vector<8x8xf32>, vector<8x8xf32> -> vector<8x8xf32>
    %cst_274 = arith.constant 0.353553385 : f32
    %748 = vector.broadcast %cst_274 : f32 to vector<8x8xf32>
    %749 = arith.mulf %747, %748 : vector<8x8xf32>
    %750 = vector.broadcast %744 : vector<1x8xf32> to vector<8x8xf32>
    %751 = arith.addf %749, %750 : vector<8x8xf32>
    %cst_275 = arith.constant dense<0xFF800000> : vector<8xf32>
    %752 = vector.multi_reduction <maximumf>, %751, %cst_275 [1] : vector<8x8xf32> to vector<8xf32>
    %753 = vector.shape_cast %752 : vector<8xf32> to vector<8x1xf32>
    %754 = vector.broadcast %753 : vector<8x1xf32> to vector<8x8xf32>
    %755 = arith.subf %751, %754 : vector<8x8xf32>
    %756 = math.exp %755 : vector<8x8xf32>
    %cst_276 = arith.constant dense<0.000000e+00> : vector<8xf32>
    %757 = vector.multi_reduction <add>, %756, %cst_276 [1] : vector<8x8xf32> to vector<8xf32>
    %758 = vector.shape_cast %757 : vector<8xf32> to vector<8x1xf32>
    %759 = tpu.reciprocal %758 {approx = true} : vector<8x1xf32> -> vector<8x1xf32>
    %760 = vector.broadcast %759 : vector<8x1xf32> to vector<8x8xf32>
    %761 = arith.mulf %756, %760 : vector<8x8xf32>
    %762 = vector.extract_strided_slice %743 {offsets = [0, 0], sizes = [8, 8], strides = [1, 1]} : vector<8x32xf32> to vector<8x8xf32>
    %cst_277 = arith.constant dense<0.000000e+00> : vector<8x8xf32>
    %763 = tpu.matmul %761, %762, %cst_277 {dimension_numbers = #tpu.dot_dimension_numbers<[1], [0], [0], [1], [0, 0, 1, 1], [], []>} : vector<8x8xf32>, vector<8x8xf32>, vector<8x8xf32> -> vector<8x8xf32>
    %764 = vector.extract_strided_slice %741 {offsets = [0, 8], sizes = [8, 8], strides = [1, 1]} : vector<8x32xf32> to vector<8x8xf32>
    %765 = vector.extract_strided_slice %742 {offsets = [0, 8], sizes = [8, 8], strides = [1, 1]} : vector<8x32xf32> to vector<8x8xf32>
    %cst_278 = arith.constant dense<0.000000e+00> : vector<8x8xf32>
    %766 = tpu.matmul %764, %765, %cst_278 {dimension_numbers = #tpu.dot_dimension_numbers<[1], [1], [0], [0], [0, 0, 1, 0], [], []>} : vector<8x8xf32>, vector<8x8xf32>, vector<8x8xf32> -> vector<8x8xf32>
    %cst_279 = arith.constant 0.353553385 : f32
    %767 = vector.broadcast %cst_279 : f32 to vector<8x8xf32>
    %768 = arith.mulf %766, %767 : vector<8x8xf32>
    %769 = vector.broadcast %744 : vector<1x8xf32> to vector<8x8xf32>
    %770 = arith.addf %768, %769 : vector<8x8xf32>
    %cst_280 = arith.constant dense<0xFF800000> : vector<8xf32>
    %771 = vector.multi_reduction <maximumf>, %770, %cst_280 [1] : vector<8x8xf32> to vector<8xf32>
    %772 = vector.shape_cast %771 : vector<8xf32> to vector<8x1xf32>
    %773 = vector.broadcast %772 : vector<8x1xf32> to vector<8x8xf32>
    %774 = arith.subf %770, %773 : vector<8x8xf32>
    %775 = math.exp %774 : vector<8x8xf32>
    %cst_281 = arith.constant dense<0.000000e+00> : vector<8xf32>
    %776 = vector.multi_reduction <add>, %775, %cst_281 [1] : vector<8x8xf32> to vector<8xf32>
    %777 = vector.shape_cast %776 : vector<8xf32> to vector<8x1xf32>
    %778 = tpu.reciprocal %777 {approx = true} : vector<8x1xf32> -> vector<8x1xf32>
    %779 = vector.broadcast %778 : vector<8x1xf32> to vector<8x8xf32>
    %780 = arith.mulf %775, %779 : vector<8x8xf32>
    %781 = vector.extract_strided_slice %743 {offsets = [0, 8], sizes = [8, 8], strides = [1, 1]} : vector<8x32xf32> to vector<8x8xf32>
    %cst_282 = arith.constant dense<0.000000e+00> : vector<8x8xf32>
    %782 = tpu.matmul %780, %781, %cst_282 {dimension_numbers = #tpu.dot_dimension_numbers<[1], [0], [0], [1], [0, 0, 1, 1], [], []>} : vector<8x8xf32>, vector<8x8xf32>, vector<8x8xf32> -> vector<8x8xf32>
    %783 = vector.extract_strided_slice %741 {offsets = [0, 16], sizes = [8, 8], strides = [1, 1]} : vector<8x32xf32> to vector<8x8xf32>
    %784 = vector.extract_strided_slice %742 {offsets = [0, 16], sizes = [8, 8], strides = [1, 1]} : vector<8x32xf32> to vector<8x8xf32>
    %cst_283 = arith.constant dense<0.000000e+00> : vector<8x8xf32>
    %785 = tpu.matmul %783, %784, %cst_283 {dimension_numbers = #tpu.dot_dimension_numbers<[1], [1], [0], [0], [0, 0, 1, 0], [], []>} : vector<8x8xf32>, vector<8x8xf32>, vector<8x8xf32> -> vector<8x8xf32>
    %cst_284 = arith.constant 0.353553385 : f32
    %786 = vector.broadcast %cst_284 : f32 to vector<8x8xf32>
    %787 = arith.mulf %785, %786 : vector<8x8xf32>
    %788 = vector.broadcast %744 : vector<1x8xf32> to vector<8x8xf32>
    %789 = arith.addf %787, %788 : vector<8x8xf32>
    %cst_285 = arith.constant dense<0xFF800000> : vector<8xf32>
    %790 = vector.multi_reduction <maximumf>, %789, %cst_285 [1] : vector<8x8xf32> to vector<8xf32>
    %791 = vector.shape_cast %790 : vector<8xf32> to vector<8x1xf32>
    %792 = vector.broadcast %791 : vector<8x1xf32> to vector<8x8xf32>
    %793 = arith.subf %789, %792 : vector<8x8xf32>
    %794 = math.exp %793 : vector<8x8xf32>
    %cst_286 = arith.constant dense<0.000000e+00> : vector<8xf32>
    %795 = vector.multi_reduction <add>, %794, %cst_286 [1] : vector<8x8xf32> to vector<8xf32>
    %796 = vector.shape_cast %795 : vector<8xf32> to vector<8x1xf32>
    %797 = tpu.reciprocal %796 {approx = true} : vector<8x1xf32> -> vector<8x1xf32>
    %798 = vector.broadcast %797 : vector<8x1xf32> to vector<8x8xf32>
    %799 = arith.mulf %794, %798 : vector<8x8xf32>
    %800 = vector.extract_strided_slice %743 {offsets = [0, 16], sizes = [8, 8], strides = [1, 1]} : vector<8x32xf32> to vector<8x8xf32>
    %cst_287 = arith.constant dense<0.000000e+00> : vector<8x8xf32>
    %801 = tpu.matmul %799, %800, %cst_287 {dimension_numbers = #tpu.dot_dimension_numbers<[1], [0], [0], [1], [0, 0, 1, 1], [], []>} : vector<8x8xf32>, vector<8x8xf32>, vector<8x8xf32> -> vector<8x8xf32>
    %802 = vector.extract_strided_slice %741 {offsets = [0, 24], sizes = [8, 8], strides = [1, 1]} : vector<8x32xf32> to vector<8x8xf32>
    %803 = vector.extract_strided_slice %742 {offsets = [0, 24], sizes = [8, 8], strides = [1, 1]} : vector<8x32xf32> to vector<8x8xf32>
    %cst_288 = arith.constant dense<0.000000e+00> : vector<8x8xf32>
    %804 = tpu.matmul %802, %803, %cst_288 {dimension_numbers = #tpu.dot_dimension_numbers<[1], [1], [0], [0], [0, 0, 1, 0], [], []>} : vector<8x8xf32>, vector<8x8xf32>, vector<8x8xf32> -> vector<8x8xf32>
    %cst_289 = arith.constant 0.353553385 : f32
    %805 = vector.broadcast %cst_289 : f32 to vector<8x8xf32>
    %806 = arith.mulf %804, %805 : vector<8x8xf32>
    %807 = vector.broadcast %744 : vector<1x8xf32> to vector<8x8xf32>
    %808 = arith.addf %806, %807 : vector<8x8xf32>
    %cst_290 = arith.constant dense<0xFF800000> : vector<8xf32>
    %809 = vector.multi_reduction <maximumf>, %808, %cst_290 [1] : vector<8x8xf32> to vector<8xf32>
    %810 = vector.shape_cast %809 : vector<8xf32> to vector<8x1xf32>
    %811 = vector.broadcast %810 : vector<8x1xf32> to vector<8x8xf32>
    %812 = arith.subf %808, %811 : vector<8x8xf32>
    %813 = math.exp %812 : vector<8x8xf32>
    %cst_291 = arith.constant dense<0.000000e+00> : vector<8xf32>
    %814 = vector.multi_reduction <add>, %813, %cst_291 [1] : vector<8x8xf32> to vector<8xf32>
    %815 = vector.shape_cast %814 : vector<8xf32> to vector<8x1xf32>
    %816 = tpu.reciprocal %815 {approx = true} : vector<8x1xf32> -> vector<8x1xf32>
    %817 = vector.broadcast %816 : vector<8x1xf32> to vector<8x8xf32>
    %818 = arith.mulf %813, %817 : vector<8x8xf32>
    %819 = vector.extract_strided_slice %743 {offsets = [0, 24], sizes = [8, 8], strides = [1, 1]} : vector<8x32xf32> to vector<8x8xf32>
    %cst_292 = arith.constant dense<0.000000e+00> : vector<8x8xf32>
    %820 = tpu.matmul %818, %819, %cst_292 {dimension_numbers = #tpu.dot_dimension_numbers<[1], [0], [0], [1], [0, 0, 1, 1], [], []>} : vector<8x8xf32>, vector<8x8xf32>, vector<8x8xf32> -> vector<8x8xf32>
    %821 = tpu.concatenate %763, %782, %801, %820 in 1 : vector<8x8xf32>, vector<8x8xf32>, vector<8x8xf32>, vector<8x8xf32> -> vector<8x32xf32>
    %822 = vector.extract_strided_slice %731 {offsets = [8, 0], sizes = [8, 32], strides = [1, 1]} : vector<16x32xf32> to vector<8x32xf32>
    %823 = vector.extract_strided_slice %739 {offsets = [8, 0], sizes = [8, 32], strides = [1, 1]} : vector<16x32xf32> to vector<8x32xf32>
    %824 = vector.extract_strided_slice %740 {offsets = [8, 0], sizes = [8, 32], strides = [1, 1]} : vector<16x32xf32> to vector<8x32xf32>
    %825 = vector.extract_strided_slice %5 {offsets = [1, 0], sizes = [1, 8], strides = [1, 1]} : vector<2x8xf32> to vector<1x8xf32>
    %826 = vector.extract_strided_slice %822 {offsets = [0, 0], sizes = [8, 8], strides = [1, 1]} : vector<8x32xf32> to vector<8x8xf32>
    %827 = vector.extract_strided_slice %823 {offsets = [0, 0], sizes = [8, 8], strides = [1, 1]} : vector<8x32xf32> to vector<8x8xf32>
    %cst_293 = arith.constant dense<0.000000e+00> : vector<8x8xf32>
    %828 = tpu.matmul %826, %827, %cst_293 {dimension_numbers = #tpu.dot_dimension_numbers<[1], [1], [0], [0], [0, 0, 1, 0], [], []>} : vector<8x8xf32>, vector<8x8xf32>, vector<8x8xf32> -> vector<8x8xf32>
    %cst_294 = arith.constant 0.353553385 : f32
    %829 = vector.broadcast %cst_294 : f32 to vector<8x8xf32>
    %830 = arith.mulf %828, %829 : vector<8x8xf32>
    %831 = vector.broadcast %825 : vector<1x8xf32> to vector<8x8xf32>
    %832 = arith.addf %830, %831 : vector<8x8xf32>
    %cst_295 = arith.constant dense<0xFF800000> : vector<8xf32>
    %833 = vector.multi_reduction <maximumf>, %832, %cst_295 [1] : vector<8x8xf32> to vector<8xf32>
    %834 = vector.shape_cast %833 : vector<8xf32> to vector<8x1xf32>
    %835 = vector.broadcast %834 : vector<8x1xf32> to vector<8x8xf32>
    %836 = arith.subf %832, %835 : vector<8x8xf32>
    %837 = math.exp %836 : vector<8x8xf32>
    %cst_296 = arith.constant dense<0.000000e+00> : vector<8xf32>
    %838 = vector.multi_reduction <add>, %837, %cst_296 [1] : vector<8x8xf32> to vector<8xf32>
    %839 = vector.shape_cast %838 : vector<8xf32> to vector<8x1xf32>
    %840 = tpu.reciprocal %839 {approx = true} : vector<8x1xf32> -> vector<8x1xf32>
    %841 = vector.broadcast %840 : vector<8x1xf32> to vector<8x8xf32>
    %842 = arith.mulf %837, %841 : vector<8x8xf32>
    %843 = vector.extract_strided_slice %824 {offsets = [0, 0], sizes = [8, 8], strides = [1, 1]} : vector<8x32xf32> to vector<8x8xf32>
    %cst_297 = arith.constant dense<0.000000e+00> : vector<8x8xf32>
    %844 = tpu.matmul %842, %843, %cst_297 {dimension_numbers = #tpu.dot_dimension_numbers<[1], [0], [0], [1], [0, 0, 1, 1], [], []>} : vector<8x8xf32>, vector<8x8xf32>, vector<8x8xf32> -> vector<8x8xf32>
    %845 = vector.extract_strided_slice %822 {offsets = [0, 8], sizes = [8, 8], strides = [1, 1]} : vector<8x32xf32> to vector<8x8xf32>
    %846 = vector.extract_strided_slice %823 {offsets = [0, 8], sizes = [8, 8], strides = [1, 1]} : vector<8x32xf32> to vector<8x8xf32>
    %cst_298 = arith.constant dense<0.000000e+00> : vector<8x8xf32>
    %847 = tpu.matmul %845, %846, %cst_298 {dimension_numbers = #tpu.dot_dimension_numbers<[1], [1], [0], [0], [0, 0, 1, 0], [], []>} : vector<8x8xf32>, vector<8x8xf32>, vector<8x8xf32> -> vector<8x8xf32>
    %cst_299 = arith.constant 0.353553385 : f32
    %848 = vector.broadcast %cst_299 : f32 to vector<8x8xf32>
    %849 = arith.mulf %847, %848 : vector<8x8xf32>
    %850 = vector.broadcast %825 : vector<1x8xf32> to vector<8x8xf32>
    %851 = arith.addf %849, %850 : vector<8x8xf32>
    %cst_300 = arith.constant dense<0xFF800000> : vector<8xf32>
    %852 = vector.multi_reduction <maximumf>, %851, %cst_300 [1] : vector<8x8xf32> to vector<8xf32>
    %853 = vector.shape_cast %852 : vector<8xf32> to vector<8x1xf32>
    %854 = vector.broadcast %853 : vector<8x1xf32> to vector<8x8xf32>
    %855 = arith.subf %851, %854 : vector<8x8xf32>
    %856 = math.exp %855 : vector<8x8xf32>
    %cst_301 = arith.constant dense<0.000000e+00> : vector<8xf32>
    %857 = vector.multi_reduction <add>, %856, %cst_301 [1] : vector<8x8xf32> to vector<8xf32>
    %858 = vector.shape_cast %857 : vector<8xf32> to vector<8x1xf32>
    %859 = tpu.reciprocal %858 {approx = true} : vector<8x1xf32> -> vector<8x1xf32>
    %860 = vector.broadcast %859 : vector<8x1xf32> to vector<8x8xf32>
    %861 = arith.mulf %856, %860 : vector<8x8xf32>
    %862 = vector.extract_strided_slice %824 {offsets = [0, 8], sizes = [8, 8], strides = [1, 1]} : vector<8x32xf32> to vector<8x8xf32>
    %cst_302 = arith.constant dense<0.000000e+00> : vector<8x8xf32>
    %863 = tpu.matmul %861, %862, %cst_302 {dimension_numbers = #tpu.dot_dimension_numbers<[1], [0], [0], [1], [0, 0, 1, 1], [], []>} : vector<8x8xf32>, vector<8x8xf32>, vector<8x8xf32> -> vector<8x8xf32>
    %864 = vector.extract_strided_slice %822 {offsets = [0, 16], sizes = [8, 8], strides = [1, 1]} : vector<8x32xf32> to vector<8x8xf32>
    %865 = vector.extract_strided_slice %823 {offsets = [0, 16], sizes = [8, 8], strides = [1, 1]} : vector<8x32xf32> to vector<8x8xf32>
    %cst_303 = arith.constant dense<0.000000e+00> : vector<8x8xf32>
    %866 = tpu.matmul %864, %865, %cst_303 {dimension_numbers = #tpu.dot_dimension_numbers<[1], [1], [0], [0], [0, 0, 1, 0], [], []>} : vector<8x8xf32>, vector<8x8xf32>, vector<8x8xf32> -> vector<8x8xf32>
    %cst_304 = arith.constant 0.353553385 : f32
    %867 = vector.broadcast %cst_304 : f32 to vector<8x8xf32>
    %868 = arith.mulf %866, %867 : vector<8x8xf32>
    %869 = vector.broadcast %825 : vector<1x8xf32> to vector<8x8xf32>
    %870 = arith.addf %868, %869 : vector<8x8xf32>
    %cst_305 = arith.constant dense<0xFF800000> : vector<8xf32>
    %871 = vector.multi_reduction <maximumf>, %870, %cst_305 [1] : vector<8x8xf32> to vector<8xf32>
    %872 = vector.shape_cast %871 : vector<8xf32> to vector<8x1xf32>
    %873 = vector.broadcast %872 : vector<8x1xf32> to vector<8x8xf32>
    %874 = arith.subf %870, %873 : vector<8x8xf32>
    %875 = math.exp %874 : vector<8x8xf32>
    %cst_306 = arith.constant dense<0.000000e+00> : vector<8xf32>
    %876 = vector.multi_reduction <add>, %875, %cst_306 [1] : vector<8x8xf32> to vector<8xf32>
    %877 = vector.shape_cast %876 : vector<8xf32> to vector<8x1xf32>
    %878 = tpu.reciprocal %877 {approx = true} : vector<8x1xf32> -> vector<8x1xf32>
    %879 = vector.broadcast %878 : vector<8x1xf32> to vector<8x8xf32>
    %880 = arith.mulf %875, %879 : vector<8x8xf32>
    %881 = vector.extract_strided_slice %824 {offsets = [0, 16], sizes = [8, 8], strides = [1, 1]} : vector<8x32xf32> to vector<8x8xf32>
    %cst_307 = arith.constant dense<0.000000e+00> : vector<8x8xf32>
    %882 = tpu.matmul %880, %881, %cst_307 {dimension_numbers = #tpu.dot_dimension_numbers<[1], [0], [0], [1], [0, 0, 1, 1], [], []>} : vector<8x8xf32>, vector<8x8xf32>, vector<8x8xf32> -> vector<8x8xf32>
    %883 = vector.extract_strided_slice %822 {offsets = [0, 24], sizes = [8, 8], strides = [1, 1]} : vector<8x32xf32> to vector<8x8xf32>
    %884 = vector.extract_strided_slice %823 {offsets = [0, 24], sizes = [8, 8], strides = [1, 1]} : vector<8x32xf32> to vector<8x8xf32>
    %cst_308 = arith.constant dense<0.000000e+00> : vector<8x8xf32>
    %885 = tpu.matmul %883, %884, %cst_308 {dimension_numbers = #tpu.dot_dimension_numbers<[1], [1], [0], [0], [0, 0, 1, 0], [], []>} : vector<8x8xf32>, vector<8x8xf32>, vector<8x8xf32> -> vector<8x8xf32>
    %cst_309 = arith.constant 0.353553385 : f32
    %886 = vector.broadcast %cst_309 : f32 to vector<8x8xf32>
    %887 = arith.mulf %885, %886 : vector<8x8xf32>
    %888 = vector.broadcast %825 : vector<1x8xf32> to vector<8x8xf32>
    %889 = arith.addf %887, %888 : vector<8x8xf32>
    %cst_310 = arith.constant dense<0xFF800000> : vector<8xf32>
    %890 = vector.multi_reduction <maximumf>, %889, %cst_310 [1] : vector<8x8xf32> to vector<8xf32>
    %891 = vector.shape_cast %890 : vector<8xf32> to vector<8x1xf32>
    %892 = vector.broadcast %891 : vector<8x1xf32> to vector<8x8xf32>
    %893 = arith.subf %889, %892 : vector<8x8xf32>
    %894 = math.exp %893 : vector<8x8xf32>
    %cst_311 = arith.constant dense<0.000000e+00> : vector<8xf32>
    %895 = vector.multi_reduction <add>, %894, %cst_311 [1] : vector<8x8xf32> to vector<8xf32>
    %896 = vector.shape_cast %895 : vector<8xf32> to vector<8x1xf32>
    %897 = tpu.reciprocal %896 {approx = true} : vector<8x1xf32> -> vector<8x1xf32>
    %898 = vector.broadcast %897 : vector<8x1xf32> to vector<8x8xf32>
    %899 = arith.mulf %894, %898 : vector<8x8xf32>
    %900 = vector.extract_strided_slice %824 {offsets = [0, 24], sizes = [8, 8], strides = [1, 1]} : vector<8x32xf32> to vector<8x8xf32>
    %cst_312 = arith.constant dense<0.000000e+00> : vector<8x8xf32>
    %901 = tpu.matmul %899, %900, %cst_312 {dimension_numbers = #tpu.dot_dimension_numbers<[1], [0], [0], [1], [0, 0, 1, 1], [], []>} : vector<8x8xf32>, vector<8x8xf32>, vector<8x8xf32> -> vector<8x8xf32>
    %902 = tpu.concatenate %844, %863, %882, %901 in 1 : vector<8x8xf32>, vector<8x8xf32>, vector<8x8xf32>, vector<8x8xf32> -> vector<8x32xf32>
    %903 = tpu.concatenate %821, %902 in 0 : vector<8x32xf32>, vector<8x32xf32> -> vector<16x32xf32>
    %c0_313 = arith.constant 0 : index
    %c0_314 = arith.constant 0 : index
    %c0_315 = arith.constant 0 : index
    %904 = vector.load %arg26[%c0_313, %c0_314, %c0_315] : memref<2x32x32xf32, #tpu.memory_space<vmem>>, vector<1x32x32xf32>
    %905 = vector.shape_cast %904 : vector<1x32x32xf32> to vector<32x32xf32>
    %cst_316 = arith.constant dense<0.000000e+00> : vector<16x32xf32>
    %906 = tpu.matmul %903, %905, %cst_316 {dimension_numbers = #tpu.dot_dimension_numbers<[1], [0], [0], [1], [0, 0, 1, 1], [], []>} : vector<16x32xf32>, vector<32x32xf32>, vector<16x32xf32> -> vector<16x32xf32>
    %c0_317 = arith.constant 0 : index
    %c0_318 = arith.constant 0 : index
    %c0_319 = arith.constant 0 : index
    %907 = vector.load %arg27[%c0_317, %c0_318, %c0_319] : memref<2x1x32xf32, #tpu.memory_space<vmem>>, vector<1x1x32xf32>
    %908 = vector.shape_cast %907 : vector<1x1x32xf32> to vector<1x32xf32>
    %909 = vector.broadcast %908 : vector<1x32xf32> to vector<16x32xf32>
    %910 = arith.addf %906, %909 : vector<16x32xf32>
    %c0_320 = arith.constant 0 : index
    %c0_321 = arith.constant 0 : index
    %c0_322 = arith.constant 0 : index
    %911 = vector.load %arg28[%c0_320, %c0_321, %c0_322] : memref<2x1x32xf32, #tpu.memory_space<vmem>>, vector<1x1x32xf32>
    %912 = vector.shape_cast %911 : vector<1x1x32xf32> to vector<1x32xf32>
    %c0_323 = arith.constant 0 : index
    %c0_324 = arith.constant 0 : index
    %c0_325 = arith.constant 0 : index
    %913 = vector.load %arg29[%c0_323, %c0_324, %c0_325] : memref<2x1x32xf32, #tpu.memory_space<vmem>>, vector<1x1x32xf32>
    %914 = vector.shape_cast %913 : vector<1x1x32xf32> to vector<1x32xf32>
    %915 = arith.addf %724, %910 : vector<16x32xf32>
    %cst_326 = arith.constant dense<0.000000e+00> : vector<16xf32>
    %916 = vector.multi_reduction <add>, %915, %cst_326 [1] : vector<16x32xf32> to vector<16xf32>
    %917 = vector.shape_cast %916 : vector<16xf32> to vector<16x1xf32>
    %cst_327 = arith.constant 3.200000e+01 : f32
    %918 = vector.broadcast %cst_327 : f32 to vector<16x1xf32>
    %919 = arith.divf %917, %918 : vector<16x1xf32>
    %920 = vector.broadcast %919 : vector<16x1xf32> to vector<16x32xf32>
    %921 = arith.subf %915, %920 : vector<16x32xf32>
    %922 = arith.mulf %921, %921 : vector<16x32xf32>
    %cst_328 = arith.constant dense<0.000000e+00> : vector<16xf32>
    %923 = vector.multi_reduction <add>, %922, %cst_328 [1] : vector<16x32xf32> to vector<16xf32>
    %924 = vector.shape_cast %923 : vector<16xf32> to vector<16x1xf32>
    %cst_329 = arith.constant 3.200000e+01 : f32
    %925 = vector.broadcast %cst_329 : f32 to vector<16x1xf32>
    %926 = arith.divf %924, %925 : vector<16x1xf32>
    %cst_330 = arith.constant 9.99999974E-6 : f32
    %927 = vector.broadcast %cst_330 : f32 to vector<16x1xf32>
    %928 = arith.addf %926, %927 : vector<16x1xf32>
    %929 = math.rsqrt %928 : vector<16x1xf32>
    %930 = vector.broadcast %929 : vector<16x1xf32> to vector<16x32xf32>
    %931 = arith.mulf %921, %930 : vector<16x32xf32>
    %932 = vector.broadcast %912 : vector<1x32xf32> to vector<16x32xf32>
    %933 = arith.mulf %931, %932 : vector<16x32xf32>
    %934 = vector.broadcast %914 : vector<1x32xf32> to vector<16x32xf32>
    %935 = arith.addf %933, %934 : vector<16x32xf32>
    %c0_331 = arith.constant 0 : index
    %c0_332 = arith.constant 0 : index
    %c0_333 = arith.constant 0 : index
    %936 = vector.load %arg30[%c0_331, %c0_332, %c0_333] : memref<2x32x64xf32, #tpu.memory_space<vmem>>, vector<1x32x64xf32>
    %937 = vector.shape_cast %936 : vector<1x32x64xf32> to vector<32x64xf32>
    %cst_334 = arith.constant dense<0.000000e+00> : vector<16x64xf32>
    %938 = tpu.matmul %935, %937, %cst_334 {dimension_numbers = #tpu.dot_dimension_numbers<[1], [0], [0], [1], [0, 0, 1, 1], [], []>} : vector<16x32xf32>, vector<32x64xf32>, vector<16x64xf32> -> vector<16x64xf32>
    %c0_335 = arith.constant 0 : index
    %c0_336 = arith.constant 0 : index
    %c0_337 = arith.constant 0 : index
    %939 = vector.load %arg31[%c0_335, %c0_336, %c0_337] : memref<2x1x64xf32, #tpu.memory_space<vmem>>, vector<1x1x64xf32>
    %940 = vector.shape_cast %939 : vector<1x1x64xf32> to vector<1x64xf32>
    %941 = vector.broadcast %940 : vector<1x64xf32> to vector<16x64xf32>
    %942 = arith.addf %938, %941 : vector<16x64xf32>
    %cst_338 = arith.constant 0.000000e+00 : f32
    %943 = vector.broadcast %cst_338 : f32 to vector<16x64xf32>
    %944 = arith.maximumf %942, %943 : vector<16x64xf32>
    %c0_339 = arith.constant 0 : index
    %c0_340 = arith.constant 0 : index
    %c0_341 = arith.constant 0 : index
    %945 = vector.load %arg32[%c0_339, %c0_340, %c0_341] : memref<2x64x32xf32, #tpu.memory_space<vmem>>, vector<1x64x32xf32>
    %946 = vector.shape_cast %945 : vector<1x64x32xf32> to vector<64x32xf32>
    %cst_342 = arith.constant dense<0.000000e+00> : vector<16x32xf32>
    %947 = tpu.matmul %944, %946, %cst_342 {dimension_numbers = #tpu.dot_dimension_numbers<[1], [0], [0], [1], [0, 0, 1, 1], [], []>} : vector<16x64xf32>, vector<64x32xf32>, vector<16x32xf32> -> vector<16x32xf32>
    %c0_343 = arith.constant 0 : index
    %c0_344 = arith.constant 0 : index
    %c0_345 = arith.constant 0 : index
    %948 = vector.load %arg33[%c0_343, %c0_344, %c0_345] : memref<2x1x32xf32, #tpu.memory_space<vmem>>, vector<1x1x32xf32>
    %949 = vector.shape_cast %948 : vector<1x1x32xf32> to vector<1x32xf32>
    %950 = vector.broadcast %949 : vector<1x32xf32> to vector<16x32xf32>
    %951 = arith.addf %947, %950 : vector<16x32xf32>
    %c0_346 = arith.constant 0 : index
    %c0_347 = arith.constant 0 : index
    %c0_348 = arith.constant 0 : index
    %952 = vector.load %arg34[%c0_346, %c0_347, %c0_348] : memref<2x1x32xf32, #tpu.memory_space<vmem>>, vector<1x1x32xf32>
    %953 = vector.shape_cast %952 : vector<1x1x32xf32> to vector<1x32xf32>
    %c0_349 = arith.constant 0 : index
    %c0_350 = arith.constant 0 : index
    %c0_351 = arith.constant 0 : index
    %954 = vector.load %arg35[%c0_349, %c0_350, %c0_351] : memref<2x1x32xf32, #tpu.memory_space<vmem>>, vector<1x1x32xf32>
    %955 = vector.shape_cast %954 : vector<1x1x32xf32> to vector<1x32xf32>
    %956 = arith.addf %935, %951 : vector<16x32xf32>
    %cst_352 = arith.constant dense<0.000000e+00> : vector<16xf32>
    %957 = vector.multi_reduction <add>, %956, %cst_352 [1] : vector<16x32xf32> to vector<16xf32>
    %958 = vector.shape_cast %957 : vector<16xf32> to vector<16x1xf32>
    %cst_353 = arith.constant 3.200000e+01 : f32
    %959 = vector.broadcast %cst_353 : f32 to vector<16x1xf32>
    %960 = arith.divf %958, %959 : vector<16x1xf32>
    %961 = vector.broadcast %960 : vector<16x1xf32> to vector<16x32xf32>
    %962 = arith.subf %956, %961 : vector<16x32xf32>
    %963 = arith.mulf %962, %962 : vector<16x32xf32>
    %cst_354 = arith.constant dense<0.000000e+00> : vector<16xf32>
    %964 = vector.multi_reduction <add>, %963, %cst_354 [1] : vector<16x32xf32> to vector<16xf32>
    %965 = vector.shape_cast %964 : vector<16xf32> to vector<16x1xf32>
    %cst_355 = arith.constant 3.200000e+01 : f32
    %966 = vector.broadcast %cst_355 : f32 to vector<16x1xf32>
    %967 = arith.divf %965, %966 : vector<16x1xf32>
    %cst_356 = arith.constant 9.99999974E-6 : f32
    %968 = vector.broadcast %cst_356 : f32 to vector<16x1xf32>
    %969 = arith.addf %967, %968 : vector<16x1xf32>
    %970 = math.rsqrt %969 : vector<16x1xf32>
    %971 = vector.broadcast %970 : vector<16x1xf32> to vector<16x32xf32>
    %972 = arith.mulf %962, %971 : vector<16x32xf32>
    %973 = vector.broadcast %953 : vector<1x32xf32> to vector<16x32xf32>
    %974 = arith.mulf %972, %973 : vector<16x32xf32>
    %975 = vector.broadcast %955 : vector<1x32xf32> to vector<16x32xf32>
    %976 = arith.addf %974, %975 : vector<16x32xf32>
    %c1_357 = arith.constant 1 : index
    %c0_358 = arith.constant 0 : index
    %c0_359 = arith.constant 0 : index
    %977 = vector.load %arg16[%c1_357, %c0_358, %c0_359] : memref<2x32x96xf32, #tpu.memory_space<vmem>>, vector<1x32x96xf32>
    %978 = vector.shape_cast %977 : vector<1x32x96xf32> to vector<32x96xf32>
    %cst_360 = arith.constant dense<0.000000e+00> : vector<16x96xf32>
    %979 = tpu.matmul %976, %978, %cst_360 {dimension_numbers = #tpu.dot_dimension_numbers<[1], [0], [0], [1], [0, 0, 1, 1], [], []>} : vector<16x32xf32>, vector<32x96xf32>, vector<16x96xf32> -> vector<16x96xf32>
    %c1_361 = arith.constant 1 : index
    %c0_362 = arith.constant 0 : index
    %c0_363 = arith.constant 0 : index
    %980 = vector.load %arg17[%c1_361, %c0_362, %c0_363] : memref<2x1x96xf32, #tpu.memory_space<vmem>>, vector<1x1x96xf32>
    %981 = vector.shape_cast %980 : vector<1x1x96xf32> to vector<1x96xf32>
    %982 = vector.broadcast %981 : vector<1x96xf32> to vector<16x96xf32>
    %983 = arith.addf %979, %982 : vector<16x96xf32>
    %984 = vector.extract_strided_slice %983 {offsets = [0, 0], sizes = [16, 32], strides = [1, 1]} : vector<16x96xf32> to vector<16x32xf32>
    %985 = vector.extract_strided_slice %983 {offsets = [0, 32], sizes = [16, 32], strides = [1, 1]} : vector<16x96xf32> to vector<16x32xf32>
    %986 = vector.extract_strided_slice %983 {offsets = [0, 64], sizes = [16, 32], strides = [1, 1]} : vector<16x96xf32> to vector<16x32xf32>
    %987 = vector.extract_strided_slice %984 {offsets = [0, 0], sizes = [8, 32], strides = [1, 1]} : vector<16x32xf32> to vector<8x32xf32>
    %988 = vector.extract_strided_slice %985 {offsets = [0, 0], sizes = [8, 32], strides = [1, 1]} : vector<16x32xf32> to vector<8x32xf32>
    %989 = vector.extract_strided_slice %986 {offsets = [0, 0], sizes = [8, 32], strides = [1, 1]} : vector<16x32xf32> to vector<8x32xf32>
    %990 = vector.extract_strided_slice %11 {offsets = [0, 0], sizes = [1, 8], strides = [1, 1]} : vector<2x8xf32> to vector<1x8xf32>
    %991 = vector.extract_strided_slice %987 {offsets = [0, 0], sizes = [8, 8], strides = [1, 1]} : vector<8x32xf32> to vector<8x8xf32>
    %992 = vector.extract_strided_slice %988 {offsets = [0, 0], sizes = [8, 8], strides = [1, 1]} : vector<8x32xf32> to vector<8x8xf32>
    %cst_364 = arith.constant dense<0.000000e+00> : vector<8x8xf32>
    %993 = tpu.matmul %991, %992, %cst_364 {dimension_numbers = #tpu.dot_dimension_numbers<[1], [1], [0], [0], [0, 0, 1, 0], [], []>} : vector<8x8xf32>, vector<8x8xf32>, vector<8x8xf32> -> vector<8x8xf32>
    %cst_365 = arith.constant 0.353553385 : f32
    %994 = vector.broadcast %cst_365 : f32 to vector<8x8xf32>
    %995 = arith.mulf %993, %994 : vector<8x8xf32>
    %996 = vector.broadcast %990 : vector<1x8xf32> to vector<8x8xf32>
    %997 = arith.addf %995, %996 : vector<8x8xf32>
    %998 = arith.addf %997, %17 : vector<8x8xf32>
    %cst_366 = arith.constant dense<0xFF800000> : vector<8xf32>
    %999 = vector.multi_reduction <maximumf>, %998, %cst_366 [1] : vector<8x8xf32> to vector<8xf32>
    %1000 = vector.shape_cast %999 : vector<8xf32> to vector<8x1xf32>
    %1001 = vector.broadcast %1000 : vector<8x1xf32> to vector<8x8xf32>
    %1002 = arith.subf %998, %1001 : vector<8x8xf32>
    %1003 = math.exp %1002 : vector<8x8xf32>
    %cst_367 = arith.constant dense<0.000000e+00> : vector<8xf32>
    %1004 = vector.multi_reduction <add>, %1003, %cst_367 [1] : vector<8x8xf32> to vector<8xf32>
    %1005 = vector.shape_cast %1004 : vector<8xf32> to vector<8x1xf32>
    %1006 = tpu.reciprocal %1005 {approx = true} : vector<8x1xf32> -> vector<8x1xf32>
    %1007 = vector.broadcast %1006 : vector<8x1xf32> to vector<8x8xf32>
    %1008 = arith.mulf %1003, %1007 : vector<8x8xf32>
    %1009 = vector.extract_strided_slice %989 {offsets = [0, 0], sizes = [8, 8], strides = [1, 1]} : vector<8x32xf32> to vector<8x8xf32>
    %cst_368 = arith.constant dense<0.000000e+00> : vector<8x8xf32>
    %1010 = tpu.matmul %1008, %1009, %cst_368 {dimension_numbers = #tpu.dot_dimension_numbers<[1], [0], [0], [1], [0, 0, 1, 1], [], []>} : vector<8x8xf32>, vector<8x8xf32>, vector<8x8xf32> -> vector<8x8xf32>
    %1011 = vector.extract_strided_slice %987 {offsets = [0, 8], sizes = [8, 8], strides = [1, 1]} : vector<8x32xf32> to vector<8x8xf32>
    %1012 = vector.extract_strided_slice %988 {offsets = [0, 8], sizes = [8, 8], strides = [1, 1]} : vector<8x32xf32> to vector<8x8xf32>
    %cst_369 = arith.constant dense<0.000000e+00> : vector<8x8xf32>
    %1013 = tpu.matmul %1011, %1012, %cst_369 {dimension_numbers = #tpu.dot_dimension_numbers<[1], [1], [0], [0], [0, 0, 1, 0], [], []>} : vector<8x8xf32>, vector<8x8xf32>, vector<8x8xf32> -> vector<8x8xf32>
    %cst_370 = arith.constant 0.353553385 : f32
    %1014 = vector.broadcast %cst_370 : f32 to vector<8x8xf32>
    %1015 = arith.mulf %1013, %1014 : vector<8x8xf32>
    %1016 = vector.broadcast %990 : vector<1x8xf32> to vector<8x8xf32>
    %1017 = arith.addf %1015, %1016 : vector<8x8xf32>
    %1018 = arith.addf %1017, %17 : vector<8x8xf32>
    %cst_371 = arith.constant dense<0xFF800000> : vector<8xf32>
    %1019 = vector.multi_reduction <maximumf>, %1018, %cst_371 [1] : vector<8x8xf32> to vector<8xf32>
    %1020 = vector.shape_cast %1019 : vector<8xf32> to vector<8x1xf32>
    %1021 = vector.broadcast %1020 : vector<8x1xf32> to vector<8x8xf32>
    %1022 = arith.subf %1018, %1021 : vector<8x8xf32>
    %1023 = math.exp %1022 : vector<8x8xf32>
    %cst_372 = arith.constant dense<0.000000e+00> : vector<8xf32>
    %1024 = vector.multi_reduction <add>, %1023, %cst_372 [1] : vector<8x8xf32> to vector<8xf32>
    %1025 = vector.shape_cast %1024 : vector<8xf32> to vector<8x1xf32>
    %1026 = tpu.reciprocal %1025 {approx = true} : vector<8x1xf32> -> vector<8x1xf32>
    %1027 = vector.broadcast %1026 : vector<8x1xf32> to vector<8x8xf32>
    %1028 = arith.mulf %1023, %1027 : vector<8x8xf32>
    %1029 = vector.extract_strided_slice %989 {offsets = [0, 8], sizes = [8, 8], strides = [1, 1]} : vector<8x32xf32> to vector<8x8xf32>
    %cst_373 = arith.constant dense<0.000000e+00> : vector<8x8xf32>
    %1030 = tpu.matmul %1028, %1029, %cst_373 {dimension_numbers = #tpu.dot_dimension_numbers<[1], [0], [0], [1], [0, 0, 1, 1], [], []>} : vector<8x8xf32>, vector<8x8xf32>, vector<8x8xf32> -> vector<8x8xf32>
    %1031 = vector.extract_strided_slice %987 {offsets = [0, 16], sizes = [8, 8], strides = [1, 1]} : vector<8x32xf32> to vector<8x8xf32>
    %1032 = vector.extract_strided_slice %988 {offsets = [0, 16], sizes = [8, 8], strides = [1, 1]} : vector<8x32xf32> to vector<8x8xf32>
    %cst_374 = arith.constant dense<0.000000e+00> : vector<8x8xf32>
    %1033 = tpu.matmul %1031, %1032, %cst_374 {dimension_numbers = #tpu.dot_dimension_numbers<[1], [1], [0], [0], [0, 0, 1, 0], [], []>} : vector<8x8xf32>, vector<8x8xf32>, vector<8x8xf32> -> vector<8x8xf32>
    %cst_375 = arith.constant 0.353553385 : f32
    %1034 = vector.broadcast %cst_375 : f32 to vector<8x8xf32>
    %1035 = arith.mulf %1033, %1034 : vector<8x8xf32>
    %1036 = vector.broadcast %990 : vector<1x8xf32> to vector<8x8xf32>
    %1037 = arith.addf %1035, %1036 : vector<8x8xf32>
    %1038 = arith.addf %1037, %17 : vector<8x8xf32>
    %cst_376 = arith.constant dense<0xFF800000> : vector<8xf32>
    %1039 = vector.multi_reduction <maximumf>, %1038, %cst_376 [1] : vector<8x8xf32> to vector<8xf32>
    %1040 = vector.shape_cast %1039 : vector<8xf32> to vector<8x1xf32>
    %1041 = vector.broadcast %1040 : vector<8x1xf32> to vector<8x8xf32>
    %1042 = arith.subf %1038, %1041 : vector<8x8xf32>
    %1043 = math.exp %1042 : vector<8x8xf32>
    %cst_377 = arith.constant dense<0.000000e+00> : vector<8xf32>
    %1044 = vector.multi_reduction <add>, %1043, %cst_377 [1] : vector<8x8xf32> to vector<8xf32>
    %1045 = vector.shape_cast %1044 : vector<8xf32> to vector<8x1xf32>
    %1046 = tpu.reciprocal %1045 {approx = true} : vector<8x1xf32> -> vector<8x1xf32>
    %1047 = vector.broadcast %1046 : vector<8x1xf32> to vector<8x8xf32>
    %1048 = arith.mulf %1043, %1047 : vector<8x8xf32>
    %1049 = vector.extract_strided_slice %989 {offsets = [0, 16], sizes = [8, 8], strides = [1, 1]} : vector<8x32xf32> to vector<8x8xf32>
    %cst_378 = arith.constant dense<0.000000e+00> : vector<8x8xf32>
    %1050 = tpu.matmul %1048, %1049, %cst_378 {dimension_numbers = #tpu.dot_dimension_numbers<[1], [0], [0], [1], [0, 0, 1, 1], [], []>} : vector<8x8xf32>, vector<8x8xf32>, vector<8x8xf32> -> vector<8x8xf32>
    %1051 = vector.extract_strided_slice %987 {offsets = [0, 24], sizes = [8, 8], strides = [1, 1]} : vector<8x32xf32> to vector<8x8xf32>
    %1052 = vector.extract_strided_slice %988 {offsets = [0, 24], sizes = [8, 8], strides = [1, 1]} : vector<8x32xf32> to vector<8x8xf32>
    %cst_379 = arith.constant dense<0.000000e+00> : vector<8x8xf32>
    %1053 = tpu.matmul %1051, %1052, %cst_379 {dimension_numbers = #tpu.dot_dimension_numbers<[1], [1], [0], [0], [0, 0, 1, 0], [], []>} : vector<8x8xf32>, vector<8x8xf32>, vector<8x8xf32> -> vector<8x8xf32>
    %cst_380 = arith.constant 0.353553385 : f32
    %1054 = vector.broadcast %cst_380 : f32 to vector<8x8xf32>
    %1055 = arith.mulf %1053, %1054 : vector<8x8xf32>
    %1056 = vector.broadcast %990 : vector<1x8xf32> to vector<8x8xf32>
    %1057 = arith.addf %1055, %1056 : vector<8x8xf32>
    %1058 = arith.addf %1057, %17 : vector<8x8xf32>
    %cst_381 = arith.constant dense<0xFF800000> : vector<8xf32>
    %1059 = vector.multi_reduction <maximumf>, %1058, %cst_381 [1] : vector<8x8xf32> to vector<8xf32>
    %1060 = vector.shape_cast %1059 : vector<8xf32> to vector<8x1xf32>
    %1061 = vector.broadcast %1060 : vector<8x1xf32> to vector<8x8xf32>
    %1062 = arith.subf %1058, %1061 : vector<8x8xf32>
    %1063 = math.exp %1062 : vector<8x8xf32>
    %cst_382 = arith.constant dense<0.000000e+00> : vector<8xf32>
    %1064 = vector.multi_reduction <add>, %1063, %cst_382 [1] : vector<8x8xf32> to vector<8xf32>
    %1065 = vector.shape_cast %1064 : vector<8xf32> to vector<8x1xf32>
    %1066 = tpu.reciprocal %1065 {approx = true} : vector<8x1xf32> -> vector<8x1xf32>
    %1067 = vector.broadcast %1066 : vector<8x1xf32> to vector<8x8xf32>
    %1068 = arith.mulf %1063, %1067 : vector<8x8xf32>
    %1069 = vector.extract_strided_slice %989 {offsets = [0, 24], sizes = [8, 8], strides = [1, 1]} : vector<8x32xf32> to vector<8x8xf32>
    %cst_383 = arith.constant dense<0.000000e+00> : vector<8x8xf32>
    %1070 = tpu.matmul %1068, %1069, %cst_383 {dimension_numbers = #tpu.dot_dimension_numbers<[1], [0], [0], [1], [0, 0, 1, 1], [], []>} : vector<8x8xf32>, vector<8x8xf32>, vector<8x8xf32> -> vector<8x8xf32>
    %1071 = tpu.concatenate %1010, %1030, %1050, %1070 in 1 : vector<8x8xf32>, vector<8x8xf32>, vector<8x8xf32>, vector<8x8xf32> -> vector<8x32xf32>
    %1072 = vector.extract_strided_slice %984 {offsets = [8, 0], sizes = [8, 32], strides = [1, 1]} : vector<16x32xf32> to vector<8x32xf32>
    %1073 = vector.extract_strided_slice %985 {offsets = [8, 0], sizes = [8, 32], strides = [1, 1]} : vector<16x32xf32> to vector<8x32xf32>
    %1074 = vector.extract_strided_slice %986 {offsets = [8, 0], sizes = [8, 32], strides = [1, 1]} : vector<16x32xf32> to vector<8x32xf32>
    %1075 = vector.extract_strided_slice %11 {offsets = [1, 0], sizes = [1, 8], strides = [1, 1]} : vector<2x8xf32> to vector<1x8xf32>
    %1076 = vector.extract_strided_slice %1072 {offsets = [0, 0], sizes = [8, 8], strides = [1, 1]} : vector<8x32xf32> to vector<8x8xf32>
    %1077 = vector.extract_strided_slice %1073 {offsets = [0, 0], sizes = [8, 8], strides = [1, 1]} : vector<8x32xf32> to vector<8x8xf32>
    %cst_384 = arith.constant dense<0.000000e+00> : vector<8x8xf32>
    %1078 = tpu.matmul %1076, %1077, %cst_384 {dimension_numbers = #tpu.dot_dimension_numbers<[1], [1], [0], [0], [0, 0, 1, 0], [], []>} : vector<8x8xf32>, vector<8x8xf32>, vector<8x8xf32> -> vector<8x8xf32>
    %cst_385 = arith.constant 0.353553385 : f32
    %1079 = vector.broadcast %cst_385 : f32 to vector<8x8xf32>
    %1080 = arith.mulf %1078, %1079 : vector<8x8xf32>
    %1081 = vector.broadcast %1075 : vector<1x8xf32> to vector<8x8xf32>
    %1082 = arith.addf %1080, %1081 : vector<8x8xf32>
    %1083 = arith.addf %1082, %17 : vector<8x8xf32>
    %cst_386 = arith.constant dense<0xFF800000> : vector<8xf32>
    %1084 = vector.multi_reduction <maximumf>, %1083, %cst_386 [1] : vector<8x8xf32> to vector<8xf32>
    %1085 = vector.shape_cast %1084 : vector<8xf32> to vector<8x1xf32>
    %1086 = vector.broadcast %1085 : vector<8x1xf32> to vector<8x8xf32>
    %1087 = arith.subf %1083, %1086 : vector<8x8xf32>
    %1088 = math.exp %1087 : vector<8x8xf32>
    %cst_387 = arith.constant dense<0.000000e+00> : vector<8xf32>
    %1089 = vector.multi_reduction <add>, %1088, %cst_387 [1] : vector<8x8xf32> to vector<8xf32>
    %1090 = vector.shape_cast %1089 : vector<8xf32> to vector<8x1xf32>
    %1091 = tpu.reciprocal %1090 {approx = true} : vector<8x1xf32> -> vector<8x1xf32>
    %1092 = vector.broadcast %1091 : vector<8x1xf32> to vector<8x8xf32>
    %1093 = arith.mulf %1088, %1092 : vector<8x8xf32>
    %1094 = vector.extract_strided_slice %1074 {offsets = [0, 0], sizes = [8, 8], strides = [1, 1]} : vector<8x32xf32> to vector<8x8xf32>
    %cst_388 = arith.constant dense<0.000000e+00> : vector<8x8xf32>
    %1095 = tpu.matmul %1093, %1094, %cst_388 {dimension_numbers = #tpu.dot_dimension_numbers<[1], [0], [0], [1], [0, 0, 1, 1], [], []>} : vector<8x8xf32>, vector<8x8xf32>, vector<8x8xf32> -> vector<8x8xf32>
    %1096 = vector.extract_strided_slice %1072 {offsets = [0, 8], sizes = [8, 8], strides = [1, 1]} : vector<8x32xf32> to vector<8x8xf32>
    %1097 = vector.extract_strided_slice %1073 {offsets = [0, 8], sizes = [8, 8], strides = [1, 1]} : vector<8x32xf32> to vector<8x8xf32>
    %cst_389 = arith.constant dense<0.000000e+00> : vector<8x8xf32>
    %1098 = tpu.matmul %1096, %1097, %cst_389 {dimension_numbers = #tpu.dot_dimension_numbers<[1], [1], [0], [0], [0, 0, 1, 0], [], []>} : vector<8x8xf32>, vector<8x8xf32>, vector<8x8xf32> -> vector<8x8xf32>
    %cst_390 = arith.constant 0.353553385 : f32
    %1099 = vector.broadcast %cst_390 : f32 to vector<8x8xf32>
    %1100 = arith.mulf %1098, %1099 : vector<8x8xf32>
    %1101 = vector.broadcast %1075 : vector<1x8xf32> to vector<8x8xf32>
    %1102 = arith.addf %1100, %1101 : vector<8x8xf32>
    %1103 = arith.addf %1102, %17 : vector<8x8xf32>
    %cst_391 = arith.constant dense<0xFF800000> : vector<8xf32>
    %1104 = vector.multi_reduction <maximumf>, %1103, %cst_391 [1] : vector<8x8xf32> to vector<8xf32>
    %1105 = vector.shape_cast %1104 : vector<8xf32> to vector<8x1xf32>
    %1106 = vector.broadcast %1105 : vector<8x1xf32> to vector<8x8xf32>
    %1107 = arith.subf %1103, %1106 : vector<8x8xf32>
    %1108 = math.exp %1107 : vector<8x8xf32>
    %cst_392 = arith.constant dense<0.000000e+00> : vector<8xf32>
    %1109 = vector.multi_reduction <add>, %1108, %cst_392 [1] : vector<8x8xf32> to vector<8xf32>
    %1110 = vector.shape_cast %1109 : vector<8xf32> to vector<8x1xf32>
    %1111 = tpu.reciprocal %1110 {approx = true} : vector<8x1xf32> -> vector<8x1xf32>
    %1112 = vector.broadcast %1111 : vector<8x1xf32> to vector<8x8xf32>
    %1113 = arith.mulf %1108, %1112 : vector<8x8xf32>
    %1114 = vector.extract_strided_slice %1074 {offsets = [0, 8], sizes = [8, 8], strides = [1, 1]} : vector<8x32xf32> to vector<8x8xf32>
    %cst_393 = arith.constant dense<0.000000e+00> : vector<8x8xf32>
    %1115 = tpu.matmul %1113, %1114, %cst_393 {dimension_numbers = #tpu.dot_dimension_numbers<[1], [0], [0], [1], [0, 0, 1, 1], [], []>} : vector<8x8xf32>, vector<8x8xf32>, vector<8x8xf32> -> vector<8x8xf32>
    %1116 = vector.extract_strided_slice %1072 {offsets = [0, 16], sizes = [8, 8], strides = [1, 1]} : vector<8x32xf32> to vector<8x8xf32>
    %1117 = vector.extract_strided_slice %1073 {offsets = [0, 16], sizes = [8, 8], strides = [1, 1]} : vector<8x32xf32> to vector<8x8xf32>
    %cst_394 = arith.constant dense<0.000000e+00> : vector<8x8xf32>
    %1118 = tpu.matmul %1116, %1117, %cst_394 {dimension_numbers = #tpu.dot_dimension_numbers<[1], [1], [0], [0], [0, 0, 1, 0], [], []>} : vector<8x8xf32>, vector<8x8xf32>, vector<8x8xf32> -> vector<8x8xf32>
    %cst_395 = arith.constant 0.353553385 : f32
    %1119 = vector.broadcast %cst_395 : f32 to vector<8x8xf32>
    %1120 = arith.mulf %1118, %1119 : vector<8x8xf32>
    %1121 = vector.broadcast %1075 : vector<1x8xf32> to vector<8x8xf32>
    %1122 = arith.addf %1120, %1121 : vector<8x8xf32>
    %1123 = arith.addf %1122, %17 : vector<8x8xf32>
    %cst_396 = arith.constant dense<0xFF800000> : vector<8xf32>
    %1124 = vector.multi_reduction <maximumf>, %1123, %cst_396 [1] : vector<8x8xf32> to vector<8xf32>
    %1125 = vector.shape_cast %1124 : vector<8xf32> to vector<8x1xf32>
    %1126 = vector.broadcast %1125 : vector<8x1xf32> to vector<8x8xf32>
    %1127 = arith.subf %1123, %1126 : vector<8x8xf32>
    %1128 = math.exp %1127 : vector<8x8xf32>
    %cst_397 = arith.constant dense<0.000000e+00> : vector<8xf32>
    %1129 = vector.multi_reduction <add>, %1128, %cst_397 [1] : vector<8x8xf32> to vector<8xf32>
    %1130 = vector.shape_cast %1129 : vector<8xf32> to vector<8x1xf32>
    %1131 = tpu.reciprocal %1130 {approx = true} : vector<8x1xf32> -> vector<8x1xf32>
    %1132 = vector.broadcast %1131 : vector<8x1xf32> to vector<8x8xf32>
    %1133 = arith.mulf %1128, %1132 : vector<8x8xf32>
    %1134 = vector.extract_strided_slice %1074 {offsets = [0, 16], sizes = [8, 8], strides = [1, 1]} : vector<8x32xf32> to vector<8x8xf32>
    %cst_398 = arith.constant dense<0.000000e+00> : vector<8x8xf32>
    %1135 = tpu.matmul %1133, %1134, %cst_398 {dimension_numbers = #tpu.dot_dimension_numbers<[1], [0], [0], [1], [0, 0, 1, 1], [], []>} : vector<8x8xf32>, vector<8x8xf32>, vector<8x8xf32> -> vector<8x8xf32>
    %1136 = vector.extract_strided_slice %1072 {offsets = [0, 24], sizes = [8, 8], strides = [1, 1]} : vector<8x32xf32> to vector<8x8xf32>
    %1137 = vector.extract_strided_slice %1073 {offsets = [0, 24], sizes = [8, 8], strides = [1, 1]} : vector<8x32xf32> to vector<8x8xf32>
    %cst_399 = arith.constant dense<0.000000e+00> : vector<8x8xf32>
    %1138 = tpu.matmul %1136, %1137, %cst_399 {dimension_numbers = #tpu.dot_dimension_numbers<[1], [1], [0], [0], [0, 0, 1, 0], [], []>} : vector<8x8xf32>, vector<8x8xf32>, vector<8x8xf32> -> vector<8x8xf32>
    %cst_400 = arith.constant 0.353553385 : f32
    %1139 = vector.broadcast %cst_400 : f32 to vector<8x8xf32>
    %1140 = arith.mulf %1138, %1139 : vector<8x8xf32>
    %1141 = vector.broadcast %1075 : vector<1x8xf32> to vector<8x8xf32>
    %1142 = arith.addf %1140, %1141 : vector<8x8xf32>
    %1143 = arith.addf %1142, %17 : vector<8x8xf32>
    %cst_401 = arith.constant dense<0xFF800000> : vector<8xf32>
    %1144 = vector.multi_reduction <maximumf>, %1143, %cst_401 [1] : vector<8x8xf32> to vector<8xf32>
    %1145 = vector.shape_cast %1144 : vector<8xf32> to vector<8x1xf32>
    %1146 = vector.broadcast %1145 : vector<8x1xf32> to vector<8x8xf32>
    %1147 = arith.subf %1143, %1146 : vector<8x8xf32>
    %1148 = math.exp %1147 : vector<8x8xf32>
    %cst_402 = arith.constant dense<0.000000e+00> : vector<8xf32>
    %1149 = vector.multi_reduction <add>, %1148, %cst_402 [1] : vector<8x8xf32> to vector<8xf32>
    %1150 = vector.shape_cast %1149 : vector<8xf32> to vector<8x1xf32>
    %1151 = tpu.reciprocal %1150 {approx = true} : vector<8x1xf32> -> vector<8x1xf32>
    %1152 = vector.broadcast %1151 : vector<8x1xf32> to vector<8x8xf32>
    %1153 = arith.mulf %1148, %1152 : vector<8x8xf32>
    %1154 = vector.extract_strided_slice %1074 {offsets = [0, 24], sizes = [8, 8], strides = [1, 1]} : vector<8x32xf32> to vector<8x8xf32>
    %cst_403 = arith.constant dense<0.000000e+00> : vector<8x8xf32>
    %1155 = tpu.matmul %1153, %1154, %cst_403 {dimension_numbers = #tpu.dot_dimension_numbers<[1], [0], [0], [1], [0, 0, 1, 1], [], []>} : vector<8x8xf32>, vector<8x8xf32>, vector<8x8xf32> -> vector<8x8xf32>
    %1156 = tpu.concatenate %1095, %1115, %1135, %1155 in 1 : vector<8x8xf32>, vector<8x8xf32>, vector<8x8xf32>, vector<8x8xf32> -> vector<8x32xf32>
    %1157 = tpu.concatenate %1071, %1156 in 0 : vector<8x32xf32>, vector<8x32xf32> -> vector<16x32xf32>
    %c1_404 = arith.constant 1 : index
    %c0_405 = arith.constant 0 : index
    %c0_406 = arith.constant 0 : index
    %1158 = vector.load %arg18[%c1_404, %c0_405, %c0_406] : memref<2x32x32xf32, #tpu.memory_space<vmem>>, vector<1x32x32xf32>
    %1159 = vector.shape_cast %1158 : vector<1x32x32xf32> to vector<32x32xf32>
    %cst_407 = arith.constant dense<0.000000e+00> : vector<16x32xf32>
    %1160 = tpu.matmul %1157, %1159, %cst_407 {dimension_numbers = #tpu.dot_dimension_numbers<[1], [0], [0], [1], [0, 0, 1, 1], [], []>} : vector<16x32xf32>, vector<32x32xf32>, vector<16x32xf32> -> vector<16x32xf32>
    %c1_408 = arith.constant 1 : index
    %c0_409 = arith.constant 0 : index
    %c0_410 = arith.constant 0 : index
    %1161 = vector.load %arg19[%c1_408, %c0_409, %c0_410] : memref<2x1x32xf32, #tpu.memory_space<vmem>>, vector<1x1x32xf32>
    %1162 = vector.shape_cast %1161 : vector<1x1x32xf32> to vector<1x32xf32>
    %1163 = vector.broadcast %1162 : vector<1x32xf32> to vector<16x32xf32>
    %1164 = arith.addf %1160, %1163 : vector<16x32xf32>
    %c1_411 = arith.constant 1 : index
    %c0_412 = arith.constant 0 : index
    %c0_413 = arith.constant 0 : index
    %1165 = vector.load %arg20[%c1_411, %c0_412, %c0_413] : memref<2x1x32xf32, #tpu.memory_space<vmem>>, vector<1x1x32xf32>
    %1166 = vector.shape_cast %1165 : vector<1x1x32xf32> to vector<1x32xf32>
    %c1_414 = arith.constant 1 : index
    %c0_415 = arith.constant 0 : index
    %c0_416 = arith.constant 0 : index
    %1167 = vector.load %arg21[%c1_414, %c0_415, %c0_416] : memref<2x1x32xf32, #tpu.memory_space<vmem>>, vector<1x1x32xf32>
    %1168 = vector.shape_cast %1167 : vector<1x1x32xf32> to vector<1x32xf32>
    %1169 = arith.addf %976, %1164 : vector<16x32xf32>
    %cst_417 = arith.constant dense<0.000000e+00> : vector<16xf32>
    %1170 = vector.multi_reduction <add>, %1169, %cst_417 [1] : vector<16x32xf32> to vector<16xf32>
    %1171 = vector.shape_cast %1170 : vector<16xf32> to vector<16x1xf32>
    %cst_418 = arith.constant 3.200000e+01 : f32
    %1172 = vector.broadcast %cst_418 : f32 to vector<16x1xf32>
    %1173 = arith.divf %1171, %1172 : vector<16x1xf32>
    %1174 = vector.broadcast %1173 : vector<16x1xf32> to vector<16x32xf32>
    %1175 = arith.subf %1169, %1174 : vector<16x32xf32>
    %1176 = arith.mulf %1175, %1175 : vector<16x32xf32>
    %cst_419 = arith.constant dense<0.000000e+00> : vector<16xf32>
    %1177 = vector.multi_reduction <add>, %1176, %cst_419 [1] : vector<16x32xf32> to vector<16xf32>
    %1178 = vector.shape_cast %1177 : vector<16xf32> to vector<16x1xf32>
    %cst_420 = arith.constant 3.200000e+01 : f32
    %1179 = vector.broadcast %cst_420 : f32 to vector<16x1xf32>
    %1180 = arith.divf %1178, %1179 : vector<16x1xf32>
    %cst_421 = arith.constant 9.99999974E-6 : f32
    %1181 = vector.broadcast %cst_421 : f32 to vector<16x1xf32>
    %1182 = arith.addf %1180, %1181 : vector<16x1xf32>
    %1183 = math.rsqrt %1182 : vector<16x1xf32>
    %1184 = vector.broadcast %1183 : vector<16x1xf32> to vector<16x32xf32>
    %1185 = arith.mulf %1175, %1184 : vector<16x32xf32>
    %1186 = vector.broadcast %1166 : vector<1x32xf32> to vector<16x32xf32>
    %1187 = arith.mulf %1185, %1186 : vector<16x32xf32>
    %1188 = vector.broadcast %1168 : vector<1x32xf32> to vector<16x32xf32>
    %1189 = arith.addf %1187, %1188 : vector<16x32xf32>
    %c1_422 = arith.constant 1 : index
    %c0_423 = arith.constant 0 : index
    %c0_424 = arith.constant 0 : index
    %1190 = vector.load %arg22[%c1_422, %c0_423, %c0_424] : memref<2x32x32xf32, #tpu.memory_space<vmem>>, vector<1x32x32xf32>
    %1191 = vector.shape_cast %1190 : vector<1x32x32xf32> to vector<32x32xf32>
    %cst_425 = arith.constant dense<0.000000e+00> : vector<16x32xf32>
    %1192 = tpu.matmul %1189, %1191, %cst_425 {dimension_numbers = #tpu.dot_dimension_numbers<[1], [0], [0], [1], [0, 0, 1, 1], [], []>} : vector<16x32xf32>, vector<32x32xf32>, vector<16x32xf32> -> vector<16x32xf32>
    %c1_426 = arith.constant 1 : index
    %c0_427 = arith.constant 0 : index
    %c0_428 = arith.constant 0 : index
    %1193 = vector.load %arg23[%c1_426, %c0_427, %c0_428] : memref<2x1x32xf32, #tpu.memory_space<vmem>>, vector<1x1x32xf32>
    %1194 = vector.shape_cast %1193 : vector<1x1x32xf32> to vector<1x32xf32>
    %1195 = vector.broadcast %1194 : vector<1x32xf32> to vector<16x32xf32>
    %1196 = arith.addf %1192, %1195 : vector<16x32xf32>
    %c1_429 = arith.constant 1 : index
    %c0_430 = arith.constant 0 : index
    %c0_431 = arith.constant 0 : index
    %1197 = vector.load %arg24[%c1_429, %c0_430, %c0_431] : memref<2x32x64xf32, #tpu.memory_space<vmem>>, vector<1x32x64xf32>
    %1198 = vector.shape_cast %1197 : vector<1x32x64xf32> to vector<32x64xf32>
    %cst_432 = arith.constant dense<0.000000e+00> : vector<16x64xf32>
    %1199 = tpu.matmul %510, %1198, %cst_432 {dimension_numbers = #tpu.dot_dimension_numbers<[1], [0], [0], [1], [0, 0, 1, 1], [], []>} : vector<16x32xf32>, vector<32x64xf32>, vector<16x64xf32> -> vector<16x64xf32>
    %c1_433 = arith.constant 1 : index
    %c0_434 = arith.constant 0 : index
    %c0_435 = arith.constant 0 : index
    %1200 = vector.load %arg25[%c1_433, %c0_434, %c0_435] : memref<2x1x64xf32, #tpu.memory_space<vmem>>, vector<1x1x64xf32>
    %1201 = vector.shape_cast %1200 : vector<1x1x64xf32> to vector<1x64xf32>
    %1202 = vector.broadcast %1201 : vector<1x64xf32> to vector<16x64xf32>
    %1203 = arith.addf %1199, %1202 : vector<16x64xf32>
    %1204 = vector.extract_strided_slice %1203 {offsets = [0, 0], sizes = [16, 32], strides = [1, 1]} : vector<16x64xf32> to vector<16x32xf32>
    %1205 = vector.extract_strided_slice %1203 {offsets = [0, 32], sizes = [16, 32], strides = [1, 1]} : vector<16x64xf32> to vector<16x32xf32>
    %1206 = vector.extract_strided_slice %1196 {offsets = [0, 0], sizes = [8, 32], strides = [1, 1]} : vector<16x32xf32> to vector<8x32xf32>
    %1207 = vector.extract_strided_slice %1204 {offsets = [0, 0], sizes = [8, 32], strides = [1, 1]} : vector<16x32xf32> to vector<8x32xf32>
    %1208 = vector.extract_strided_slice %1205 {offsets = [0, 0], sizes = [8, 32], strides = [1, 1]} : vector<16x32xf32> to vector<8x32xf32>
    %1209 = vector.extract_strided_slice %5 {offsets = [0, 0], sizes = [1, 8], strides = [1, 1]} : vector<2x8xf32> to vector<1x8xf32>
    %1210 = vector.extract_strided_slice %1206 {offsets = [0, 0], sizes = [8, 8], strides = [1, 1]} : vector<8x32xf32> to vector<8x8xf32>
    %1211 = vector.extract_strided_slice %1207 {offsets = [0, 0], sizes = [8, 8], strides = [1, 1]} : vector<8x32xf32> to vector<8x8xf32>
    %cst_436 = arith.constant dense<0.000000e+00> : vector<8x8xf32>
    %1212 = tpu.matmul %1210, %1211, %cst_436 {dimension_numbers = #tpu.dot_dimension_numbers<[1], [1], [0], [0], [0, 0, 1, 0], [], []>} : vector<8x8xf32>, vector<8x8xf32>, vector<8x8xf32> -> vector<8x8xf32>
    %cst_437 = arith.constant 0.353553385 : f32
    %1213 = vector.broadcast %cst_437 : f32 to vector<8x8xf32>
    %1214 = arith.mulf %1212, %1213 : vector<8x8xf32>
    %1215 = vector.broadcast %1209 : vector<1x8xf32> to vector<8x8xf32>
    %1216 = arith.addf %1214, %1215 : vector<8x8xf32>
    %cst_438 = arith.constant dense<0xFF800000> : vector<8xf32>
    %1217 = vector.multi_reduction <maximumf>, %1216, %cst_438 [1] : vector<8x8xf32> to vector<8xf32>
    %1218 = vector.shape_cast %1217 : vector<8xf32> to vector<8x1xf32>
    %1219 = vector.broadcast %1218 : vector<8x1xf32> to vector<8x8xf32>
    %1220 = arith.subf %1216, %1219 : vector<8x8xf32>
    %1221 = math.exp %1220 : vector<8x8xf32>
    %cst_439 = arith.constant dense<0.000000e+00> : vector<8xf32>
    %1222 = vector.multi_reduction <add>, %1221, %cst_439 [1] : vector<8x8xf32> to vector<8xf32>
    %1223 = vector.shape_cast %1222 : vector<8xf32> to vector<8x1xf32>
    %1224 = tpu.reciprocal %1223 {approx = true} : vector<8x1xf32> -> vector<8x1xf32>
    %1225 = vector.broadcast %1224 : vector<8x1xf32> to vector<8x8xf32>
    %1226 = arith.mulf %1221, %1225 : vector<8x8xf32>
    %1227 = vector.extract_strided_slice %1208 {offsets = [0, 0], sizes = [8, 8], strides = [1, 1]} : vector<8x32xf32> to vector<8x8xf32>
    %cst_440 = arith.constant dense<0.000000e+00> : vector<8x8xf32>
    %1228 = tpu.matmul %1226, %1227, %cst_440 {dimension_numbers = #tpu.dot_dimension_numbers<[1], [0], [0], [1], [0, 0, 1, 1], [], []>} : vector<8x8xf32>, vector<8x8xf32>, vector<8x8xf32> -> vector<8x8xf32>
    %1229 = vector.extract_strided_slice %1206 {offsets = [0, 8], sizes = [8, 8], strides = [1, 1]} : vector<8x32xf32> to vector<8x8xf32>
    %1230 = vector.extract_strided_slice %1207 {offsets = [0, 8], sizes = [8, 8], strides = [1, 1]} : vector<8x32xf32> to vector<8x8xf32>
    %cst_441 = arith.constant dense<0.000000e+00> : vector<8x8xf32>
    %1231 = tpu.matmul %1229, %1230, %cst_441 {dimension_numbers = #tpu.dot_dimension_numbers<[1], [1], [0], [0], [0, 0, 1, 0], [], []>} : vector<8x8xf32>, vector<8x8xf32>, vector<8x8xf32> -> vector<8x8xf32>
    %cst_442 = arith.constant 0.353553385 : f32
    %1232 = vector.broadcast %cst_442 : f32 to vector<8x8xf32>
    %1233 = arith.mulf %1231, %1232 : vector<8x8xf32>
    %1234 = vector.broadcast %1209 : vector<1x8xf32> to vector<8x8xf32>
    %1235 = arith.addf %1233, %1234 : vector<8x8xf32>
    %cst_443 = arith.constant dense<0xFF800000> : vector<8xf32>
    %1236 = vector.multi_reduction <maximumf>, %1235, %cst_443 [1] : vector<8x8xf32> to vector<8xf32>
    %1237 = vector.shape_cast %1236 : vector<8xf32> to vector<8x1xf32>
    %1238 = vector.broadcast %1237 : vector<8x1xf32> to vector<8x8xf32>
    %1239 = arith.subf %1235, %1238 : vector<8x8xf32>
    %1240 = math.exp %1239 : vector<8x8xf32>
    %cst_444 = arith.constant dense<0.000000e+00> : vector<8xf32>
    %1241 = vector.multi_reduction <add>, %1240, %cst_444 [1] : vector<8x8xf32> to vector<8xf32>
    %1242 = vector.shape_cast %1241 : vector<8xf32> to vector<8x1xf32>
    %1243 = tpu.reciprocal %1242 {approx = true} : vector<8x1xf32> -> vector<8x1xf32>
    %1244 = vector.broadcast %1243 : vector<8x1xf32> to vector<8x8xf32>
    %1245 = arith.mulf %1240, %1244 : vector<8x8xf32>
    %1246 = vector.extract_strided_slice %1208 {offsets = [0, 8], sizes = [8, 8], strides = [1, 1]} : vector<8x32xf32> to vector<8x8xf32>
    %cst_445 = arith.constant dense<0.000000e+00> : vector<8x8xf32>
    %1247 = tpu.matmul %1245, %1246, %cst_445 {dimension_numbers = #tpu.dot_dimension_numbers<[1], [0], [0], [1], [0, 0, 1, 1], [], []>} : vector<8x8xf32>, vector<8x8xf32>, vector<8x8xf32> -> vector<8x8xf32>
    %1248 = vector.extract_strided_slice %1206 {offsets = [0, 16], sizes = [8, 8], strides = [1, 1]} : vector<8x32xf32> to vector<8x8xf32>
    %1249 = vector.extract_strided_slice %1207 {offsets = [0, 16], sizes = [8, 8], strides = [1, 1]} : vector<8x32xf32> to vector<8x8xf32>
    %cst_446 = arith.constant dense<0.000000e+00> : vector<8x8xf32>
    %1250 = tpu.matmul %1248, %1249, %cst_446 {dimension_numbers = #tpu.dot_dimension_numbers<[1], [1], [0], [0], [0, 0, 1, 0], [], []>} : vector<8x8xf32>, vector<8x8xf32>, vector<8x8xf32> -> vector<8x8xf32>
    %cst_447 = arith.constant 0.353553385 : f32
    %1251 = vector.broadcast %cst_447 : f32 to vector<8x8xf32>
    %1252 = arith.mulf %1250, %1251 : vector<8x8xf32>
    %1253 = vector.broadcast %1209 : vector<1x8xf32> to vector<8x8xf32>
    %1254 = arith.addf %1252, %1253 : vector<8x8xf32>
    %cst_448 = arith.constant dense<0xFF800000> : vector<8xf32>
    %1255 = vector.multi_reduction <maximumf>, %1254, %cst_448 [1] : vector<8x8xf32> to vector<8xf32>
    %1256 = vector.shape_cast %1255 : vector<8xf32> to vector<8x1xf32>
    %1257 = vector.broadcast %1256 : vector<8x1xf32> to vector<8x8xf32>
    %1258 = arith.subf %1254, %1257 : vector<8x8xf32>
    %1259 = math.exp %1258 : vector<8x8xf32>
    %cst_449 = arith.constant dense<0.000000e+00> : vector<8xf32>
    %1260 = vector.multi_reduction <add>, %1259, %cst_449 [1] : vector<8x8xf32> to vector<8xf32>
    %1261 = vector.shape_cast %1260 : vector<8xf32> to vector<8x1xf32>
    %1262 = tpu.reciprocal %1261 {approx = true} : vector<8x1xf32> -> vector<8x1xf32>
    %1263 = vector.broadcast %1262 : vector<8x1xf32> to vector<8x8xf32>
    %1264 = arith.mulf %1259, %1263 : vector<8x8xf32>
    %1265 = vector.extract_strided_slice %1208 {offsets = [0, 16], sizes = [8, 8], strides = [1, 1]} : vector<8x32xf32> to vector<8x8xf32>
    %cst_450 = arith.constant dense<0.000000e+00> : vector<8x8xf32>
    %1266 = tpu.matmul %1264, %1265, %cst_450 {dimension_numbers = #tpu.dot_dimension_numbers<[1], [0], [0], [1], [0, 0, 1, 1], [], []>} : vector<8x8xf32>, vector<8x8xf32>, vector<8x8xf32> -> vector<8x8xf32>
    %1267 = vector.extract_strided_slice %1206 {offsets = [0, 24], sizes = [8, 8], strides = [1, 1]} : vector<8x32xf32> to vector<8x8xf32>
    %1268 = vector.extract_strided_slice %1207 {offsets = [0, 24], sizes = [8, 8], strides = [1, 1]} : vector<8x32xf32> to vector<8x8xf32>
    %cst_451 = arith.constant dense<0.000000e+00> : vector<8x8xf32>
    %1269 = tpu.matmul %1267, %1268, %cst_451 {dimension_numbers = #tpu.dot_dimension_numbers<[1], [1], [0], [0], [0, 0, 1, 0], [], []>} : vector<8x8xf32>, vector<8x8xf32>, vector<8x8xf32> -> vector<8x8xf32>
    %cst_452 = arith.constant 0.353553385 : f32
    %1270 = vector.broadcast %cst_452 : f32 to vector<8x8xf32>
    %1271 = arith.mulf %1269, %1270 : vector<8x8xf32>
    %1272 = vector.broadcast %1209 : vector<1x8xf32> to vector<8x8xf32>
    %1273 = arith.addf %1271, %1272 : vector<8x8xf32>
    %cst_453 = arith.constant dense<0xFF800000> : vector<8xf32>
    %1274 = vector.multi_reduction <maximumf>, %1273, %cst_453 [1] : vector<8x8xf32> to vector<8xf32>
    %1275 = vector.shape_cast %1274 : vector<8xf32> to vector<8x1xf32>
    %1276 = vector.broadcast %1275 : vector<8x1xf32> to vector<8x8xf32>
    %1277 = arith.subf %1273, %1276 : vector<8x8xf32>
    %1278 = math.exp %1277 : vector<8x8xf32>
    %cst_454 = arith.constant dense<0.000000e+00> : vector<8xf32>
    %1279 = vector.multi_reduction <add>, %1278, %cst_454 [1] : vector<8x8xf32> to vector<8xf32>
    %1280 = vector.shape_cast %1279 : vector<8xf32> to vector<8x1xf32>
    %1281 = tpu.reciprocal %1280 {approx = true} : vector<8x1xf32> -> vector<8x1xf32>
    %1282 = vector.broadcast %1281 : vector<8x1xf32> to vector<8x8xf32>
    %1283 = arith.mulf %1278, %1282 : vector<8x8xf32>
    %1284 = vector.extract_strided_slice %1208 {offsets = [0, 24], sizes = [8, 8], strides = [1, 1]} : vector<8x32xf32> to vector<8x8xf32>
    %cst_455 = arith.constant dense<0.000000e+00> : vector<8x8xf32>
    %1285 = tpu.matmul %1283, %1284, %cst_455 {dimension_numbers = #tpu.dot_dimension_numbers<[1], [0], [0], [1], [0, 0, 1, 1], [], []>} : vector<8x8xf32>, vector<8x8xf32>, vector<8x8xf32> -> vector<8x8xf32>
    %1286 = tpu.concatenate %1228, %1247, %1266, %1285 in 1 : vector<8x8xf32>, vector<8x8xf32>, vector<8x8xf32>, vector<8x8xf32> -> vector<8x32xf32>
    %1287 = vector.extract_strided_slice %1196 {offsets = [8, 0], sizes = [8, 32], strides = [1, 1]} : vector<16x32xf32> to vector<8x32xf32>
    %1288 = vector.extract_strided_slice %1204 {offsets = [8, 0], sizes = [8, 32], strides = [1, 1]} : vector<16x32xf32> to vector<8x32xf32>
    %1289 = vector.extract_strided_slice %1205 {offsets = [8, 0], sizes = [8, 32], strides = [1, 1]} : vector<16x32xf32> to vector<8x32xf32>
    %1290 = vector.extract_strided_slice %5 {offsets = [1, 0], sizes = [1, 8], strides = [1, 1]} : vector<2x8xf32> to vector<1x8xf32>
    %1291 = vector.extract_strided_slice %1287 {offsets = [0, 0], sizes = [8, 8], strides = [1, 1]} : vector<8x32xf32> to vector<8x8xf32>
    %1292 = vector.extract_strided_slice %1288 {offsets = [0, 0], sizes = [8, 8], strides = [1, 1]} : vector<8x32xf32> to vector<8x8xf32>
    %cst_456 = arith.constant dense<0.000000e+00> : vector<8x8xf32>
    %1293 = tpu.matmul %1291, %1292, %cst_456 {dimension_numbers = #tpu.dot_dimension_numbers<[1], [1], [0], [0], [0, 0, 1, 0], [], []>} : vector<8x8xf32>, vector<8x8xf32>, vector<8x8xf32> -> vector<8x8xf32>
    %cst_457 = arith.constant 0.353553385 : f32
    %1294 = vector.broadcast %cst_457 : f32 to vector<8x8xf32>
    %1295 = arith.mulf %1293, %1294 : vector<8x8xf32>
    %1296 = vector.broadcast %1290 : vector<1x8xf32> to vector<8x8xf32>
    %1297 = arith.addf %1295, %1296 : vector<8x8xf32>
    %cst_458 = arith.constant dense<0xFF800000> : vector<8xf32>
    %1298 = vector.multi_reduction <maximumf>, %1297, %cst_458 [1] : vector<8x8xf32> to vector<8xf32>
    %1299 = vector.shape_cast %1298 : vector<8xf32> to vector<8x1xf32>
    %1300 = vector.broadcast %1299 : vector<8x1xf32> to vector<8x8xf32>
    %1301 = arith.subf %1297, %1300 : vector<8x8xf32>
    %1302 = math.exp %1301 : vector<8x8xf32>
    %cst_459 = arith.constant dense<0.000000e+00> : vector<8xf32>
    %1303 = vector.multi_reduction <add>, %1302, %cst_459 [1] : vector<8x8xf32> to vector<8xf32>
    %1304 = vector.shape_cast %1303 : vector<8xf32> to vector<8x1xf32>
    %1305 = tpu.reciprocal %1304 {approx = true} : vector<8x1xf32> -> vector<8x1xf32>
    %1306 = vector.broadcast %1305 : vector<8x1xf32> to vector<8x8xf32>
    %1307 = arith.mulf %1302, %1306 : vector<8x8xf32>
    %1308 = vector.extract_strided_slice %1289 {offsets = [0, 0], sizes = [8, 8], strides = [1, 1]} : vector<8x32xf32> to vector<8x8xf32>
    %cst_460 = arith.constant dense<0.000000e+00> : vector<8x8xf32>
    %1309 = tpu.matmul %1307, %1308, %cst_460 {dimension_numbers = #tpu.dot_dimension_numbers<[1], [0], [0], [1], [0, 0, 1, 1], [], []>} : vector<8x8xf32>, vector<8x8xf32>, vector<8x8xf32> -> vector<8x8xf32>
    %1310 = vector.extract_strided_slice %1287 {offsets = [0, 8], sizes = [8, 8], strides = [1, 1]} : vector<8x32xf32> to vector<8x8xf32>
    %1311 = vector.extract_strided_slice %1288 {offsets = [0, 8], sizes = [8, 8], strides = [1, 1]} : vector<8x32xf32> to vector<8x8xf32>
    %cst_461 = arith.constant dense<0.000000e+00> : vector<8x8xf32>
    %1312 = tpu.matmul %1310, %1311, %cst_461 {dimension_numbers = #tpu.dot_dimension_numbers<[1], [1], [0], [0], [0, 0, 1, 0], [], []>} : vector<8x8xf32>, vector<8x8xf32>, vector<8x8xf32> -> vector<8x8xf32>
    %cst_462 = arith.constant 0.353553385 : f32
    %1313 = vector.broadcast %cst_462 : f32 to vector<8x8xf32>
    %1314 = arith.mulf %1312, %1313 : vector<8x8xf32>
    %1315 = vector.broadcast %1290 : vector<1x8xf32> to vector<8x8xf32>
    %1316 = arith.addf %1314, %1315 : vector<8x8xf32>
    %cst_463 = arith.constant dense<0xFF800000> : vector<8xf32>
    %1317 = vector.multi_reduction <maximumf>, %1316, %cst_463 [1] : vector<8x8xf32> to vector<8xf32>
    %1318 = vector.shape_cast %1317 : vector<8xf32> to vector<8x1xf32>
    %1319 = vector.broadcast %1318 : vector<8x1xf32> to vector<8x8xf32>
    %1320 = arith.subf %1316, %1319 : vector<8x8xf32>
    %1321 = math.exp %1320 : vector<8x8xf32>
    %cst_464 = arith.constant dense<0.000000e+00> : vector<8xf32>
    %1322 = vector.multi_reduction <add>, %1321, %cst_464 [1] : vector<8x8xf32> to vector<8xf32>
    %1323 = vector.shape_cast %1322 : vector<8xf32> to vector<8x1xf32>
    %1324 = tpu.reciprocal %1323 {approx = true} : vector<8x1xf32> -> vector<8x1xf32>
    %1325 = vector.broadcast %1324 : vector<8x1xf32> to vector<8x8xf32>
    %1326 = arith.mulf %1321, %1325 : vector<8x8xf32>
    %1327 = vector.extract_strided_slice %1289 {offsets = [0, 8], sizes = [8, 8], strides = [1, 1]} : vector<8x32xf32> to vector<8x8xf32>
    %cst_465 = arith.constant dense<0.000000e+00> : vector<8x8xf32>
    %1328 = tpu.matmul %1326, %1327, %cst_465 {dimension_numbers = #tpu.dot_dimension_numbers<[1], [0], [0], [1], [0, 0, 1, 1], [], []>} : vector<8x8xf32>, vector<8x8xf32>, vector<8x8xf32> -> vector<8x8xf32>
    %1329 = vector.extract_strided_slice %1287 {offsets = [0, 16], sizes = [8, 8], strides = [1, 1]} : vector<8x32xf32> to vector<8x8xf32>
    %1330 = vector.extract_strided_slice %1288 {offsets = [0, 16], sizes = [8, 8], strides = [1, 1]} : vector<8x32xf32> to vector<8x8xf32>
    %cst_466 = arith.constant dense<0.000000e+00> : vector<8x8xf32>
    %1331 = tpu.matmul %1329, %1330, %cst_466 {dimension_numbers = #tpu.dot_dimension_numbers<[1], [1], [0], [0], [0, 0, 1, 0], [], []>} : vector<8x8xf32>, vector<8x8xf32>, vector<8x8xf32> -> vector<8x8xf32>
    %cst_467 = arith.constant 0.353553385 : f32
    %1332 = vector.broadcast %cst_467 : f32 to vector<8x8xf32>
    %1333 = arith.mulf %1331, %1332 : vector<8x8xf32>
    %1334 = vector.broadcast %1290 : vector<1x8xf32> to vector<8x8xf32>
    %1335 = arith.addf %1333, %1334 : vector<8x8xf32>
    %cst_468 = arith.constant dense<0xFF800000> : vector<8xf32>
    %1336 = vector.multi_reduction <maximumf>, %1335, %cst_468 [1] : vector<8x8xf32> to vector<8xf32>
    %1337 = vector.shape_cast %1336 : vector<8xf32> to vector<8x1xf32>
    %1338 = vector.broadcast %1337 : vector<8x1xf32> to vector<8x8xf32>
    %1339 = arith.subf %1335, %1338 : vector<8x8xf32>
    %1340 = math.exp %1339 : vector<8x8xf32>
    %cst_469 = arith.constant dense<0.000000e+00> : vector<8xf32>
    %1341 = vector.multi_reduction <add>, %1340, %cst_469 [1] : vector<8x8xf32> to vector<8xf32>
    %1342 = vector.shape_cast %1341 : vector<8xf32> to vector<8x1xf32>
    %1343 = tpu.reciprocal %1342 {approx = true} : vector<8x1xf32> -> vector<8x1xf32>
    %1344 = vector.broadcast %1343 : vector<8x1xf32> to vector<8x8xf32>
    %1345 = arith.mulf %1340, %1344 : vector<8x8xf32>
    %1346 = vector.extract_strided_slice %1289 {offsets = [0, 16], sizes = [8, 8], strides = [1, 1]} : vector<8x32xf32> to vector<8x8xf32>
    %cst_470 = arith.constant dense<0.000000e+00> : vector<8x8xf32>
    %1347 = tpu.matmul %1345, %1346, %cst_470 {dimension_numbers = #tpu.dot_dimension_numbers<[1], [0], [0], [1], [0, 0, 1, 1], [], []>} : vector<8x8xf32>, vector<8x8xf32>, vector<8x8xf32> -> vector<8x8xf32>
    %1348 = vector.extract_strided_slice %1287 {offsets = [0, 24], sizes = [8, 8], strides = [1, 1]} : vector<8x32xf32> to vector<8x8xf32>
    %1349 = vector.extract_strided_slice %1288 {offsets = [0, 24], sizes = [8, 8], strides = [1, 1]} : vector<8x32xf32> to vector<8x8xf32>
    %cst_471 = arith.constant dense<0.000000e+00> : vector<8x8xf32>
    %1350 = tpu.matmul %1348, %1349, %cst_471 {dimension_numbers = #tpu.dot_dimension_numbers<[1], [1], [0], [0], [0, 0, 1, 0], [], []>} : vector<8x8xf32>, vector<8x8xf32>, vector<8x8xf32> -> vector<8x8xf32>
    %cst_472 = arith.constant 0.353553385 : f32
    %1351 = vector.broadcast %cst_472 : f32 to vector<8x8xf32>
    %1352 = arith.mulf %1350, %1351 : vector<8x8xf32>
    %1353 = vector.broadcast %1290 : vector<1x8xf32> to vector<8x8xf32>
    %1354 = arith.addf %1352, %1353 : vector<8x8xf32>
    %cst_473 = arith.constant dense<0xFF800000> : vector<8xf32>
    %1355 = vector.multi_reduction <maximumf>, %1354, %cst_473 [1] : vector<8x8xf32> to vector<8xf32>
    %1356 = vector.shape_cast %1355 : vector<8xf32> to vector<8x1xf32>
    %1357 = vector.broadcast %1356 : vector<8x1xf32> to vector<8x8xf32>
    %1358 = arith.subf %1354, %1357 : vector<8x8xf32>
    %1359 = math.exp %1358 : vector<8x8xf32>
    %cst_474 = arith.constant dense<0.000000e+00> : vector<8xf32>
    %1360 = vector.multi_reduction <add>, %1359, %cst_474 [1] : vector<8x8xf32> to vector<8xf32>
    %1361 = vector.shape_cast %1360 : vector<8xf32> to vector<8x1xf32>
    %1362 = tpu.reciprocal %1361 {approx = true} : vector<8x1xf32> -> vector<8x1xf32>
    %1363 = vector.broadcast %1362 : vector<8x1xf32> to vector<8x8xf32>
    %1364 = arith.mulf %1359, %1363 : vector<8x8xf32>
    %1365 = vector.extract_strided_slice %1289 {offsets = [0, 24], sizes = [8, 8], strides = [1, 1]} : vector<8x32xf32> to vector<8x8xf32>
    %cst_475 = arith.constant dense<0.000000e+00> : vector<8x8xf32>
    %1366 = tpu.matmul %1364, %1365, %cst_475 {dimension_numbers = #tpu.dot_dimension_numbers<[1], [0], [0], [1], [0, 0, 1, 1], [], []>} : vector<8x8xf32>, vector<8x8xf32>, vector<8x8xf32> -> vector<8x8xf32>
    %1367 = tpu.concatenate %1309, %1328, %1347, %1366 in 1 : vector<8x8xf32>, vector<8x8xf32>, vector<8x8xf32>, vector<8x8xf32> -> vector<8x32xf32>
    %1368 = tpu.concatenate %1286, %1367 in 0 : vector<8x32xf32>, vector<8x32xf32> -> vector<16x32xf32>
    %c1_476 = arith.constant 1 : index
    %c0_477 = arith.constant 0 : index
    %c0_478 = arith.constant 0 : index
    %1369 = vector.load %arg26[%c1_476, %c0_477, %c0_478] : memref<2x32x32xf32, #tpu.memory_space<vmem>>, vector<1x32x32xf32>
    %1370 = vector.shape_cast %1369 : vector<1x32x32xf32> to vector<32x32xf32>
    %cst_479 = arith.constant dense<0.000000e+00> : vector<16x32xf32>
    %1371 = tpu.matmul %1368, %1370, %cst_479 {dimension_numbers = #tpu.dot_dimension_numbers<[1], [0], [0], [1], [0, 0, 1, 1], [], []>} : vector<16x32xf32>, vector<32x32xf32>, vector<16x32xf32> -> vector<16x32xf32>
    %c1_480 = arith.constant 1 : index
    %c0_481 = arith.constant 0 : index
    %c0_482 = arith.constant 0 : index
    %1372 = vector.load %arg27[%c1_480, %c0_481, %c0_482] : memref<2x1x32xf32, #tpu.memory_space<vmem>>, vector<1x1x32xf32>
    %1373 = vector.shape_cast %1372 : vector<1x1x32xf32> to vector<1x32xf32>
    %1374 = vector.broadcast %1373 : vector<1x32xf32> to vector<16x32xf32>
    %1375 = arith.addf %1371, %1374 : vector<16x32xf32>
    %c1_483 = arith.constant 1 : index
    %c0_484 = arith.constant 0 : index
    %c0_485 = arith.constant 0 : index
    %1376 = vector.load %arg28[%c1_483, %c0_484, %c0_485] : memref<2x1x32xf32, #tpu.memory_space<vmem>>, vector<1x1x32xf32>
    %1377 = vector.shape_cast %1376 : vector<1x1x32xf32> to vector<1x32xf32>
    %c1_486 = arith.constant 1 : index
    %c0_487 = arith.constant 0 : index
    %c0_488 = arith.constant 0 : index
    %1378 = vector.load %arg29[%c1_486, %c0_487, %c0_488] : memref<2x1x32xf32, #tpu.memory_space<vmem>>, vector<1x1x32xf32>
    %1379 = vector.shape_cast %1378 : vector<1x1x32xf32> to vector<1x32xf32>
    %1380 = arith.addf %1189, %1375 : vector<16x32xf32>
    %cst_489 = arith.constant dense<0.000000e+00> : vector<16xf32>
    %1381 = vector.multi_reduction <add>, %1380, %cst_489 [1] : vector<16x32xf32> to vector<16xf32>
    %1382 = vector.shape_cast %1381 : vector<16xf32> to vector<16x1xf32>
    %cst_490 = arith.constant 3.200000e+01 : f32
    %1383 = vector.broadcast %cst_490 : f32 to vector<16x1xf32>
    %1384 = arith.divf %1382, %1383 : vector<16x1xf32>
    %1385 = vector.broadcast %1384 : vector<16x1xf32> to vector<16x32xf32>
    %1386 = arith.subf %1380, %1385 : vector<16x32xf32>
    %1387 = arith.mulf %1386, %1386 : vector<16x32xf32>
    %cst_491 = arith.constant dense<0.000000e+00> : vector<16xf32>
    %1388 = vector.multi_reduction <add>, %1387, %cst_491 [1] : vector<16x32xf32> to vector<16xf32>
    %1389 = vector.shape_cast %1388 : vector<16xf32> to vector<16x1xf32>
    %cst_492 = arith.constant 3.200000e+01 : f32
    %1390 = vector.broadcast %cst_492 : f32 to vector<16x1xf32>
    %1391 = arith.divf %1389, %1390 : vector<16x1xf32>
    %cst_493 = arith.constant 9.99999974E-6 : f32
    %1392 = vector.broadcast %cst_493 : f32 to vector<16x1xf32>
    %1393 = arith.addf %1391, %1392 : vector<16x1xf32>
    %1394 = math.rsqrt %1393 : vector<16x1xf32>
    %1395 = vector.broadcast %1394 : vector<16x1xf32> to vector<16x32xf32>
    %1396 = arith.mulf %1386, %1395 : vector<16x32xf32>
    %1397 = vector.broadcast %1377 : vector<1x32xf32> to vector<16x32xf32>
    %1398 = arith.mulf %1396, %1397 : vector<16x32xf32>
    %1399 = vector.broadcast %1379 : vector<1x32xf32> to vector<16x32xf32>
    %1400 = arith.addf %1398, %1399 : vector<16x32xf32>
    %c1_494 = arith.constant 1 : index
    %c0_495 = arith.constant 0 : index
    %c0_496 = arith.constant 0 : index
    %1401 = vector.load %arg30[%c1_494, %c0_495, %c0_496] : memref<2x32x64xf32, #tpu.memory_space<vmem>>, vector<1x32x64xf32>
    %1402 = vector.shape_cast %1401 : vector<1x32x64xf32> to vector<32x64xf32>
    %cst_497 = arith.constant dense<0.000000e+00> : vector<16x64xf32>
    %1403 = tpu.matmul %1400, %1402, %cst_497 {dimension_numbers = #tpu.dot_dimension_numbers<[1], [0], [0], [1], [0, 0, 1, 1], [], []>} : vector<16x32xf32>, vector<32x64xf32>, vector<16x64xf32> -> vector<16x64xf32>
    %c1_498 = arith.constant 1 : index
    %c0_499 = arith.constant 0 : index
    %c0_500 = arith.constant 0 : index
    %1404 = vector.load %arg31[%c1_498, %c0_499, %c0_500] : memref<2x1x64xf32, #tpu.memory_space<vmem>>, vector<1x1x64xf32>
    %1405 = vector.shape_cast %1404 : vector<1x1x64xf32> to vector<1x64xf32>
    %1406 = vector.broadcast %1405 : vector<1x64xf32> to vector<16x64xf32>
    %1407 = arith.addf %1403, %1406 : vector<16x64xf32>
    %cst_501 = arith.constant 0.000000e+00 : f32
    %1408 = vector.broadcast %cst_501 : f32 to vector<16x64xf32>
    %1409 = arith.maximumf %1407, %1408 : vector<16x64xf32>
    %c1_502 = arith.constant 1 : index
    %c0_503 = arith.constant 0 : index
    %c0_504 = arith.constant 0 : index
    %1410 = vector.load %arg32[%c1_502, %c0_503, %c0_504] : memref<2x64x32xf32, #tpu.memory_space<vmem>>, vector<1x64x32xf32>
    %1411 = vector.shape_cast %1410 : vector<1x64x32xf32> to vector<64x32xf32>
    %cst_505 = arith.constant dense<0.000000e+00> : vector<16x32xf32>
    %1412 = tpu.matmul %1409, %1411, %cst_505 {dimension_numbers = #tpu.dot_dimension_numbers<[1], [0], [0], [1], [0, 0, 1, 1], [], []>} : vector<16x64xf32>, vector<64x32xf32>, vector<16x32xf32> -> vector<16x32xf32>
    %c1_506 = arith.constant 1 : index
    %c0_507 = arith.constant 0 : index
    %c0_508 = arith.constant 0 : index
    %1413 = vector.load %arg33[%c1_506, %c0_507, %c0_508] : memref<2x1x32xf32, #tpu.memory_space<vmem>>, vector<1x1x32xf32>
    %1414 = vector.shape_cast %1413 : vector<1x1x32xf32> to vector<1x32xf32>
    %1415 = vector.broadcast %1414 : vector<1x32xf32> to vector<16x32xf32>
    %1416 = arith.addf %1412, %1415 : vector<16x32xf32>
    %c1_509 = arith.constant 1 : index
    %c0_510 = arith.constant 0 : index
    %c0_511 = arith.constant 0 : index
    %1417 = vector.load %arg34[%c1_509, %c0_510, %c0_511] : memref<2x1x32xf32, #tpu.memory_space<vmem>>, vector<1x1x32xf32>
    %1418 = vector.shape_cast %1417 : vector<1x1x32xf32> to vector<1x32xf32>
    %c1_512 = arith.constant 1 : index
    %c0_513 = arith.constant 0 : index
    %c0_514 = arith.constant 0 : index
    %1419 = vector.load %arg35[%c1_512, %c0_513, %c0_514] : memref<2x1x32xf32, #tpu.memory_space<vmem>>, vector<1x1x32xf32>
    %1420 = vector.shape_cast %1419 : vector<1x1x32xf32> to vector<1x32xf32>
    %1421 = arith.addf %1400, %1416 : vector<16x32xf32>
    %cst_515 = arith.constant dense<0.000000e+00> : vector<16xf32>
    %1422 = vector.multi_reduction <add>, %1421, %cst_515 [1] : vector<16x32xf32> to vector<16xf32>
    %1423 = vector.shape_cast %1422 : vector<16xf32> to vector<16x1xf32>
    %cst_516 = arith.constant 3.200000e+01 : f32
    %1424 = vector.broadcast %cst_516 : f32 to vector<16x1xf32>
    %1425 = arith.divf %1423, %1424 : vector<16x1xf32>
    %1426 = vector.broadcast %1425 : vector<16x1xf32> to vector<16x32xf32>
    %1427 = arith.subf %1421, %1426 : vector<16x32xf32>
    %1428 = arith.mulf %1427, %1427 : vector<16x32xf32>
    %cst_517 = arith.constant dense<0.000000e+00> : vector<16xf32>
    %1429 = vector.multi_reduction <add>, %1428, %cst_517 [1] : vector<16x32xf32> to vector<16xf32>
    %1430 = vector.shape_cast %1429 : vector<16xf32> to vector<16x1xf32>
    %cst_518 = arith.constant 3.200000e+01 : f32
    %1431 = vector.broadcast %cst_518 : f32 to vector<16x1xf32>
    %1432 = arith.divf %1430, %1431 : vector<16x1xf32>
    %cst_519 = arith.constant 9.99999974E-6 : f32
    %1433 = vector.broadcast %cst_519 : f32 to vector<16x1xf32>
    %1434 = arith.addf %1432, %1433 : vector<16x1xf32>
    %1435 = math.rsqrt %1434 : vector<16x1xf32>
    %1436 = vector.broadcast %1435 : vector<16x1xf32> to vector<16x32xf32>
    %1437 = arith.mulf %1427, %1436 : vector<16x32xf32>
    %1438 = vector.broadcast %1418 : vector<1x32xf32> to vector<16x32xf32>
    %1439 = arith.mulf %1437, %1438 : vector<16x32xf32>
    %1440 = vector.broadcast %1420 : vector<1x32xf32> to vector<16x32xf32>
    %1441 = arith.addf %1439, %1440 : vector<16x32xf32>
    %c0_520 = arith.constant 0 : index
    %c0_521 = arith.constant 0 : index
    %1442 = vector.load %arg36[%c0_520, %c0_521] : memref<32x128xf32, #tpu.memory_space<vmem>>, vector<32x128xf32>
    %cst_522 = arith.constant dense<0.000000e+00> : vector<16x128xf32>
    %1443 = tpu.matmul %1441, %1442, %cst_522 {dimension_numbers = #tpu.dot_dimension_numbers<[1], [0], [0], [1], [0, 0, 1, 1], [], []>} : vector<16x32xf32>, vector<32x128xf32>, vector<16x128xf32> -> vector<16x128xf32>
    %c0_523 = arith.constant 0 : index
    %c0_524 = arith.constant 0 : index
    %1444 = vector.load %arg37[%c0_523, %c0_524] : memref<1x128xf32, #tpu.memory_space<vmem>>, vector<1x128xf32>
    %1445 = vector.broadcast %1444 : vector<1x128xf32> to vector<16x128xf32>
    %1446 = arith.addf %1443, %1445 : vector<16x128xf32>
    %c0_525 = arith.constant 0 : index
    %c0_526 = arith.constant 0 : index
    %1447 = vector.load %arg38[%c0_525, %c0_526] : memref<16x128xf32, #tpu.memory_space<vmem>>, vector<16x128xf32>
    tpu.vector_store %arg38[%c0_525, %c0_526], %1446 {strides = array<i32>} : memref<16x128xf32, #tpu.memory_space<vmem>>, vector<16x128xf32>,
    return
  }
}

</mosaic_0001>

<llo_original>
// kernel: my_transformer_forward.1
$region0: #{my_transformer_forward.1}
  #allocation0 [shape = 'u32[]', space=smem, size = 0x4, offset = 0x4, fixed_abs, tag = 'smem constant byte address 0x4 - core index']
  #allocation1 [shape = 'u32[72,128]{1,0:T(1,128)}', space=vmem, size = 0x9000, scoped, tag = 'internal scratch']
  %s0 = inlined_call_operand.smem [shape: u32[39], index: -1, kind: input, shape index: {}]
  %s1 = sld [smem:[%s0]]
  %s2 = scalar_lea.smem %s0, 1
  %s3 = sld [smem:[%s2]]
  %s4 = scalar_lea.smem %s0, 2
  %s5 = sld [smem:[%s4]]
  %s6 = scalar_lea.smem %s0, 3
  %s7 = sld [smem:[%s6]]
  %s8 = scalar_lea.smem %s0, 4
  %s9 = sld [smem:[%s8]]
  %s10 = scalar_lea.smem %s0, 5
  %s11 = sld [smem:[%s10]]
  %s12 = scalar_lea.smem %s0, 6
  %s13 = sld [smem:[%s12]]
  %s14 = scalar_lea.smem %s0, 7
  %s15 = sld [smem:[%s14]]
  %s16 = scalar_lea.smem %s0, 8
  %s17 = sld [smem:[%s16]]
  %s18 = scalar_lea.smem %s0, 9
  %s19 = sld [smem:[%s18]]
  %s20 = scalar_lea.smem %s0, 10
  %s21 = sld [smem:[%s20]]
  %s22 = scalar_lea.smem %s0, 11
  %s23 = sld [smem:[%s22]]
  %s24 = scalar_lea.smem %s0, 12
  %s25 = sld [smem:[%s24]]
  %s26 = scalar_lea.smem %s0, 13
  %s27 = sld [smem:[%s26]]
  %s28 = scalar_lea.smem %s0, 14
  %s29 = sld [smem:[%s28]]
  %s30 = scalar_lea.smem %s0, 15
  %s31 = sld [smem:[%s30]]
  %s32 = scalar_lea.smem %s0, 16
  %s33 = sld [smem:[%s32]]
  %s34 = scalar_lea.smem %s0, 17
  %s35 = sld [smem:[%s34]]
  %s36 = scalar_lea.smem %s0, 18
  %s37 = sld [smem:[%s36]]
  %s38 = scalar_lea.smem %s0, 19
  %s39 = sld [smem:[%s38]]
  %s40 = scalar_lea.smem %s0, 20
  %s41 = sld [smem:[%s40]]
  %s42 = scalar_lea.smem %s0, 21
  %s43 = sld [smem:[%s42]]
  %s44 = scalar_lea.smem %s0, 22
  %s45 = sld [smem:[%s44]]
  %s46 = scalar_lea.smem %s0, 23
  %s47 = sld [smem:[%s46]]
  %s48 = scalar_lea.smem %s0, 24
  %s49 = sld [smem:[%s48]]
  %s50 = scalar_lea.smem %s0, 25
  %s51 = sld [smem:[%s50]]
  %s52 = scalar_lea.smem %s0, 26
  %s53 = sld [smem:[%s52]]
  %s54 = scalar_lea.smem %s0, 27
  %s55 = sld [smem:[%s54]]
  %s56 = scalar_lea.smem %s0, 28
  %s57 = sld [smem:[%s56]]
  %s58 = scalar_lea.smem %s0, 29
  %s59 = sld [smem:[%s58]]
  %s60 = scalar_lea.smem %s0, 30
  %s61 = sld [smem:[%s60]]
  %s62 = scalar_lea.smem %s0, 31
  %s63 = sld [smem:[%s62]]
  %s64 = scalar_lea.smem %s0, 32
  %s65 = sld [smem:[%s64]]
  %s66 = scalar_lea.smem %s0, 33
  %s67 = sld [smem:[%s66]]
  %s68 = scalar_lea.smem %s0, 34
  %s69 = sld [smem:[%s68]]
  %s70 = scalar_lea.smem %s0, 35
  %s71 = sld [smem:[%s70]]
  %s72 = scalar_lea.smem %s0, 36
  %s73 = sld [smem:[%s72]]
  %s74 = scalar_lea.smem %s0, 37
  %s75 = sld [smem:[%s74]]
  %s76 = scalar_lea.smem %s0, 38
  %s77 = sld [smem:[%s76]]
  %s78 = sld [smem:[#allocation0]]
  $region162: #{my_transformer_forward.1} parent=0
    _
  %s80 = ssub.s32 1, %s78
  %s81 = scalar_select 0, %s80, %s78
  // Predicated region
  $region2: #{my_transformer_forward.1} parent=0 // pred_check
    _
  $region3: #{my_transformer_forward.1} parent=0 // pred_check_branch
    %83 = sbr.rel (0) target = $region5
  $region4: #{my_transformer_forward.1} parent=0 // pred_region
    _
  $region5: #{my_transformer_forward.1} parent=0 // pred_fallthru
    _
  // Predicated region
  $region6: #{my_transformer_forward.1} parent=0 // pred_check
    _
  $region7: #{my_transformer_forward.1} parent=0 // pred_check_branch
    %85 = sbr.rel (0) target = $region9
  $region8: #{my_transformer_forward.1} parent=0 // pred_region
    _
  $region9: #{my_transformer_forward.1} parent=0 // pred_fallthru
    _
  // Predicated region
  $region10: #{my_transformer_forward.1} parent=0 // pred_check
    _
  $region11: #{my_transformer_forward.1} parent=0 // pred_check_branch
    %87 = sbr.rel (0) target = $region13
  $region12: #{my_transformer_forward.1} parent=0 // pred_region
    _
  $region13: #{my_transformer_forward.1} parent=0 // pred_fallthru
    _
  // Predicated region
  $region14: #{my_transformer_forward.1} parent=0 // pred_check
    _
  $region15: #{my_transformer_forward.1} parent=0 // pred_check_branch
    %89 = sbr.rel (0) target = $region17
  $region16: #{my_transformer_forward.1} parent=0 // pred_region
    _
  $region17: #{my_transformer_forward.1} parent=0 // pred_fallthru
    _
  // Predicated region
  $region18: #{my_transformer_forward.1} parent=0 // pred_check
    _
  $region19: #{my_transformer_forward.1} parent=0 // pred_check_branch
    %91 = sbr.rel (0) target = $region21
  $region20: #{my_transformer_forward.1} parent=0 // pred_region
    _
  $region21: #{my_transformer_forward.1} parent=0 // pred_fallthru
    _
  // Predicated region
  $region22: #{my_transformer_forward.1} parent=0 // pred_check
    _
  $region23: #{my_transformer_forward.1} parent=0 // pred_check_branch
    %93 = sbr.rel (0) target = $region25
  $region24: #{my_transformer_forward.1} parent=0 // pred_region
    _
  $region25: #{my_transformer_forward.1} parent=0 // pred_fallthru
    _
  // Predicated region
  $region26: #{my_transformer_forward.1} parent=0 // pred_check
    _
  $region27: #{my_transformer_forward.1} parent=0 // pred_check_branch
    %95 = sbr.rel (0) target = $region29
  $region28: #{my_transformer_forward.1} parent=0 // pred_region
    _
  $region29: #{my_transformer_forward.1} parent=0 // pred_fallthru
    _
  // Predicated region
  $region30: #{my_transformer_forward.1} parent=0 // pred_check
    _
  $region31: #{my_transformer_forward.1} parent=0 // pred_check_branch
    %97 = sbr.rel (0) target = $region33
  $region32: #{my_transformer_forward.1} parent=0 // pred_region
    _
  $region33: #{my_transformer_forward.1} parent=0 // pred_fallthru
    _
  // Predicated region
  $region34: #{my_transformer_forward.1} parent=0 // pred_check
    _
  $region35: #{my_transformer_forward.1} parent=0 // pred_check_branch
    %99 = sbr.rel (0) target = $region37
  $region36: #{my_transformer_forward.1} parent=0 // pred_region
    _
  $region37: #{my_transformer_forward.1} parent=0 // pred_fallthru
    _
  // Predicated region
  $region38: #{my_transformer_forward.1} parent=0 // pred_check
    _
  $region39: #{my_transformer_forward.1} parent=0 // pred_check_branch
    %101 = sbr.rel (0) target = $region41
  $region40: #{my_transformer_forward.1} parent=0 // pred_region
    _
  $region41: #{my_transformer_forward.1} parent=0 // pred_fallthru
    _
  // Predicated region
  $region42: #{my_transformer_forward.1} parent=0 // pred_check
    _
  $region43: #{my_transformer_forward.1} parent=0 // pred_check_branch
    %103 = sbr.rel (0) target = $region45
  $region44: #{my_transformer_forward.1} parent=0 // pred_region
    _
  $region45: #{my_transformer_forward.1} parent=0 // pred_fallthru
    _
  // Predicated region
  $region46: #{my_transformer_forward.1} parent=0 // pred_check
    _
  $region47: #{my_transformer_forward.1} parent=0 // pred_check_branch
    %105 = sbr.rel (0) target = $region49
  $region48: #{my_transformer_forward.1} parent=0 // pred_region
    _
  $region49: #{my_transformer_forward.1} parent=0 // pred_fallthru
    _
  // Predicated region
  $region50: #{my_transformer_forward.1} parent=0 // pred_check
    _
  $region51: #{my_transformer_forward.1} parent=0 // pred_check_branch
    %107 = sbr.rel (0) target = $region53
  $region52: #{my_transformer_forward.1} parent=0 // pred_region
    _
  $region53: #{my_transformer_forward.1} parent=0 // pred_fallthru
    _
  // Predicated region
  $region54: #{my_transformer_forward.1} parent=0 // pred_check
    _
  $region55: #{my_transformer_forward.1} parent=0 // pred_check_branch
    %109 = sbr.rel (0) target = $region57
  $region56: #{my_transformer_forward.1} parent=0 // pred_region
    _
  $region57: #{my_transformer_forward.1} parent=0 // pred_fallthru
    _
  // Predicated region
  $region58: #{my_transformer_forward.1} parent=0 // pred_check
    _
  $region59: #{my_transformer_forward.1} parent=0 // pred_check_branch
    %111 = sbr.rel (0) target = $region61
  $region60: #{my_transformer_forward.1} parent=0 // pred_region
    _
  $region61: #{my_transformer_forward.1} parent=0 // pred_fallthru
    _
  // Predicated region
  $region62: #{my_transformer_forward.1} parent=0 // pred_check
    _
  $region63: #{my_transformer_forward.1} parent=0 // pred_check_branch
    %113 = sbr.rel (0) target = $region65
  $region64: #{my_transformer_forward.1} parent=0 // pred_region
    _
  $region65: #{my_transformer_forward.1} parent=0 // pred_fallthru
    _
  // Predicated region
  $region66: #{my_transformer_forward.1} parent=0 // pred_check
    _
  $region67: #{my_transformer_forward.1} parent=0 // pred_check_branch
    %115 = sbr.rel (0) target = $region69
  $region68: #{my_transformer_forward.1} parent=0 // pred_region
    _
  $region69: #{my_transformer_forward.1} parent=0 // pred_fallthru
    _
  // Predicated region
  $region70: #{my_transformer_forward.1} parent=0 // pred_check
    _
  $region71: #{my_transformer_forward.1} parent=0 // pred_check_branch
    %117 = sbr.rel (0) target = $region73
  $region72: #{my_transformer_forward.1} parent=0 // pred_region
    _
  $region73: #{my_transformer_forward.1} parent=0 // pred_fallthru
    _
  // Predicated region
  $region74: #{my_transformer_forward.1} parent=0 // pred_check
    _
  $region75: #{my_transformer_forward.1} parent=0 // pred_check_branch
    %119 = sbr.rel (0) target = $region77
  $region76: #{my_transformer_forward.1} parent=0 // pred_region
    _
  $region77: #{my_transformer_forward.1} parent=0 // pred_fallthru
    _
  // Predicated region
  $region78: #{my_transformer_forward.1} parent=0 // pred_check
    _
  $region79: #{my_transformer_forward.1} parent=0 // pred_check_branch
    %121 = sbr.rel (0) target = $region81
  $region80: #{my_transformer_forward.1} parent=0 // pred_region
    _
  $region81: #{my_transformer_forward.1} parent=0 // pred_fallthru
    _
  // Predicated region
  $region82: #{my_transformer_forward.1} parent=0 // pred_check
    _
  $region83: #{my_transformer_forward.1} parent=0 // pred_check_branch
    %123 = sbr.rel (0) target = $region85
  $region84: #{my_transformer_forward.1} parent=0 // pred_region
    _
  $region85: #{my_transformer_forward.1} parent=0 // pred_fallthru
    _
  // Predicated region
  $region86: #{my_transformer_forward.1} parent=0 // pred_check
    _
  $region87: #{my_transformer_forward.1} parent=0 // pred_check_branch
    %125 = sbr.rel (0) target = $region89
  $region88: #{my_transformer_forward.1} parent=0 // pred_region
    _
  $region89: #{my_transformer_forward.1} parent=0 // pred_fallthru
    _
  // Predicated region
  $region90: #{my_transformer_forward.1} parent=0 // pred_check
    _
  $region91: #{my_transformer_forward.1} parent=0 // pred_check_branch
    %127 = sbr.rel (0) target = $region93
  $region92: #{my_transformer_forward.1} parent=0 // pred_region
    _
  $region93: #{my_transformer_forward.1} parent=0 // pred_fallthru
    _
  // Predicated region
  $region94: #{my_transformer_forward.1} parent=0 // pred_check
    _
  $region95: #{my_transformer_forward.1} parent=0 // pred_check_branch
    %129 = sbr.rel (0) target = $region97
  $region96: #{my_transformer_forward.1} parent=0 // pred_region
    _
  $region97: #{my_transformer_forward.1} parent=0 // pred_fallthru
    _
  // Predicated region
  $region98: #{my_transformer_forward.1} parent=0 // pred_check
    _
  $region99: #{my_transformer_forward.1} parent=0 // pred_check_branch
    %131 = sbr.rel (0) target = $region101
  $region100: #{my_transformer_forward.1} parent=0 // pred_region
    _
  $region101: #{my_transformer_forward.1} parent=0 // pred_fallthru
    _
  // Predicated region
  $region102: #{my_transformer_forward.1} parent=0 // pred_check
    _
  $region103: #{my_transformer_forward.1} parent=0 // pred_check_branch
    %133 = sbr.rel (0) target = $region105
  $region104: #{my_transformer_forward.1} parent=0 // pred_region
    _
  $region105: #{my_transformer_forward.1} parent=0 // pred_fallthru
    _
  // Predicated region
  $region106: #{my_transformer_forward.1} parent=0 // pred_check
    _
  $region107: #{my_transformer_forward.1} parent=0 // pred_check_branch
    %135 = sbr.rel (0) target = $region109
  $region108: #{my_transformer_forward.1} parent=0 // pred_region
    _
  $region109: #{my_transformer_forward.1} parent=0 // pred_fallthru
    _
  // Predicated region
  $region110: #{my_transformer_forward.1} parent=0 // pred_check
    _
  $region111: #{my_transformer_forward.1} parent=0 // pred_check_branch
    %137 = sbr.rel (0) target = $region113
  $region112: #{my_transformer_forward.1} parent=0 // pred_region
    _
  $region113: #{my_transformer_forward.1} parent=0 // pred_fallthru
    _
  // Predicated region
  $region114: #{my_transformer_forward.1} parent=0 // pred_check
    _
  $region115: #{my_transformer_forward.1} parent=0 // pred_check_branch
    %139 = sbr.rel (0) target = $region117
  $region116: #{my_transformer_forward.1} parent=0 // pred_region
    _
  $region117: #{my_transformer_forward.1} parent=0 // pred_fallthru
    _
  // Predicated region
  $region118: #{my_transformer_forward.1} parent=0 // pred_check
    _
  $region119: #{my_transformer_forward.1} parent=0 // pred_check_branch
    %141 = sbr.rel (0) target = $region121
  $region120: #{my_transformer_forward.1} parent=0 // pred_region
    _
  $region121: #{my_transformer_forward.1} parent=0 // pred_fallthru
    _
  // Predicated region
  $region122: #{my_transformer_forward.1} parent=0 // pred_check
    _
  $region123: #{my_transformer_forward.1} parent=0 // pred_check_branch
    %143 = sbr.rel (0) target = $region125
  $region124: #{my_transformer_forward.1} parent=0 // pred_region
    _
  $region125: #{my_transformer_forward.1} parent=0 // pred_fallthru
    _
  // Predicated region
  $region126: #{my_transformer_forward.1} parent=0 // pred_check
    _
  $region127: #{my_transformer_forward.1} parent=0 // pred_check_branch
    %145 = sbr.rel (0) target = $region129
  $region128: #{my_transformer_forward.1} parent=0 // pred_region
    _
  $region129: #{my_transformer_forward.1} parent=0 // pred_fallthru
    _
  // Predicated region
  $region130: #{my_transformer_forward.1} parent=0 // pred_check
    _
  $region131: #{my_transformer_forward.1} parent=0 // pred_check_branch
    %147 = sbr.rel (0) target = $region133
  $region132: #{my_transformer_forward.1} parent=0 // pred_region
    _
  $region133: #{my_transformer_forward.1} parent=0 // pred_fallthru
    _
  // Predicated region
  $region134: #{my_transformer_forward.1} parent=0 // pred_check
    _
  $region135: #{my_transformer_forward.1} parent=0 // pred_check_branch
    %149 = sbr.rel (0) target = $region137
  $region136: #{my_transformer_forward.1} parent=0 // pred_region
    _
  $region137: #{my_transformer_forward.1} parent=0 // pred_fallthru
    _
  // Predicated region
  $region138: #{my_transformer_forward.1} parent=0 // pred_check
    _
  $region139: #{my_transformer_forward.1} parent=0 // pred_check_branch
    %151 = sbr.rel (0) target = $region141
  $region140: #{my_transformer_forward.1} parent=0 // pred_region
    _
  $region141: #{my_transformer_forward.1} parent=0 // pred_fallthru
    _
  // Predicated region
  $region142: #{my_transformer_forward.1} parent=0 // pred_check
    _
  $region143: #{my_transformer_forward.1} parent=0 // pred_check_branch
    %153 = sbr.rel (0) target = $region145
  $region144: #{my_transformer_forward.1} parent=0 // pred_region
    _
  $region145: #{my_transformer_forward.1} parent=0 // pred_fallthru
    _
  // Predicated region
  $region146: #{my_transformer_forward.1} parent=0 // pred_check
    _
  $region147: #{my_transformer_forward.1} parent=0 // pred_check_branch
    %155 = sbr.rel (0) target = $region149
  $region148: #{my_transformer_forward.1} parent=0 // pred_region
    _
  $region149: #{my_transformer_forward.1} parent=0 // pred_fallthru
    _
  // Predicated region
  $region150: #{my_transformer_forward.1} parent=0 // pred_check
    _
  $region151: #{my_transformer_forward.1} parent=0 // pred_check_branch
    %157 = sbr.rel (0) target = $region153
  $region152: #{my_transformer_forward.1} parent=0 // pred_region
    _
  $region153: #{my_transformer_forward.1} parent=0 // pred_fallthru
    _
  %v158 = vld [vmem:[%s5] sm:$0x3]
  %vm159 = vcmp.eq.s32.totalorder %v158, 0
  %v160 = vsel %vm159, -1e+30, 0.0
  %v161 = vld [vmem:[%s7] sm:$0x3]
  %vm162 = vcmp.eq.s32.totalorder %v161, 0
  %v163 = vsel %vm162, -1e+30, 0.0
  %v164 = vlaneseq
  %v165 = vshrl.u32 %v164, 7
  %v166 = vlaneseq
  %v167 = vand.u32 %v166, 127
  %vm168 = vcmp.gt.s32.totalorder %v167, %v165
  %v169 = vsel %vm168, -1e+30, 0.0
  %v170 = vld [vmem:[%s1] sm:$0xff]
  %v171 = vld [vmem:[%s1 + $0x8] sm:$0xff]
  %v172 = vld [vmem:[%s9] sm:$0xff]
  %v173 = vld [vmem:[%s9 + $0x8] sm:$0xff]
  %v174 = vld [vmem:[%s9 + $0x10] sm:$0xff]
  %v175 = vld [vmem:[%s9 + $0x18] sm:$0xff]
  %v176 = vld [vmem:[%s11] sm:$0x1]
  %v178 = vperm.slane %v176, 0
  %vm180 = vcmask 261120
  %v182 = vsel %vm180, %v170, 0
  %v185 = vsel %vm180, %v171, 0
  %187 = vmatpush.msra.mxu0 0.0
  %188 = vmatpush.msra.mxu0 0.0
  %189 = vmatpush.msra.mxu0 0.0
  %190 = vmatpush.msra.mxu0 0.0
  %191 = vmatpush.msra.mxu0 0.0
  %192 = vmatpush.msra.mxu0 0.0
  %193 = vmatpush.msra.mxu0 0.0
  %194 = vmatpush.msra.mxu0 0.0
  %195 = vmatpush.msra.mxu0 0.0
  %196 = vmatpush.msra.mxu0 0.0
  %197 = vmatpush.msra.mxu0 0.0
  %198 = vmatpush.msra.mxu0 0.0
  %199 = vmatpush.msra.mxu0 %v175
  %200 = vmatpush.msra.mxu0 %v174
  %201 = vmatpush.msra.mxu0 %v173
  %202 = vmatpush.msra.mxu0 %v172
  %203 = vmatmul.f32.gmra.mxu0 %v182
  %v204 = vpop.f32.mrf.mxu0
  %v205 = vadd.f32 %v178, %v204
  %206 = vmatmul.f32.gmra.mxu0 %v185
  %v207 = vpop.f32.mrf.mxu0
  %v208 = vadd.f32 %v178, %v207
  %209 = vdwg.mxu0
  %211 = vrot.lane.b32.xlu0 %v205, 96
  %v212 = vpop.permute.xlu0 %211
  %vm213 = vcmask 64512
  %v214 = vsel %vm213, %v205, 0
  %v216 = vsel %vm213, %v212, 0
  %218 = vmatpush.xpose.msra.mxu0 0.0
  %219 = vmatpush.xpose.msra.mxu0 0.0
  %220 = vmatpush.xpose.msra.mxu0 0.0
  %221 = vmatpush.xpose.msra.mxu0 0.0
  %222 = vmatpush.xpose.msra.mxu0 0.0
  %223 = vmatpush.xpose.msra.mxu0 0.0
  %224 = vmatpush.xpose.msra.mxu0 0.0
  %225 = vmatpush.xpose.msra.mxu0 0.0
  %226 = vmatpush.xpose.msra.mxu0 0.0
  %227 = vmatpush.xpose.msra.mxu0 0.0
  %228 = vmatpush.xpose.msra.mxu0 0.0
  %229 = vmatpush.xpose.msra.mxu0 0.0
  %230 = vmatpush.xpose.msra.mxu0 0.0
  %231 = vmatpush.xpose.msra.mxu0 0.0
  %232 = vmatpush.xpose.msra.mxu0 0.0
  %233 = vmatpush.xpose.msra.mxu0 %v216
  %234 = vmatmul.f32.gmra.mxu0 %v214
  %v235 = vpop.f32.mrf.mxu0
  %v236 = vadd.f32 0.0, %v235
  %237 = vdwg.mxu0
  %v238 = vmul.f32 %v236, 0.35355338
  %v239 = vperm.slane %v160, 0
  %v240 = vadd.f32 %v238, %v239
  %v241 = vsel %vm213, %v240, -inf
  %242 = vmax.xlane.f32.xlu0 %v241
  %v243 = vpop.xlane.xlu0 %242
  %v244 = vsub.f32 %v240, %v243
  %v245 = vmul.f32 %v244, 1.442695
  %v246 = vpow.pop %v245
  %v247 = vsel %vm213, %v246, 0.0
  %248 = vadd.xlane.f32.xlu0 %v247
  %v249 = vpop.xlane.xlu0 %248
  %v250 = vrcp.pop %v249
  %v251 = vmul.f32 %v246, %v250
  %252 = vrot.lane.b32.xlu0 %v205, 64
  %v253 = vpop.permute.xlu0 %252
  %v256 = vsel %vm213, %v251, 0
  %258 = vmatpush.msra.mxu0 0.0
  %259 = vmatpush.msra.mxu0 0.0
  %260 = vmatpush.msra.mxu0 0.0
  %261 = vmatpush.msra.mxu0 0.0
  %262 = vmatpush.msra.mxu0 0.0
  %263 = vmatpush.msra.mxu0 0.0
  %264 = vmatpush.msra.mxu0 0.0
  %265 = vmatpush.msra.mxu0 0.0
  %266 = vmatpush.msra.mxu0 0.0
  %267 = vmatpush.msra.mxu0 0.0
  %268 = vmatpush.msra.mxu0 0.0
  %269 = vmatpush.msra.mxu0 0.0
  %270 = vmatpush.msra.mxu0 0.0
  %271 = vmatpush.msra.mxu0 0.0
  %272 = vmatpush.msra.mxu0 0.0
  %273 = vmatpush.msra.mxu0 %v253
  %274 = vmatmul.f32.gmra.mxu0 %v256
  %v275 = vpop.f32.mrf.mxu0
  %v276 = vadd.f32 0.0, %v275
  %277 = vdwg.mxu0
  %278 = vrot.lane.b32.xlu0 %v205, 120
  %v279 = vpop.permute.xlu0 %278
  %280 = vrot.lane.b32.xlu0 %v205, 88
  %v281 = vpop.permute.xlu0 %280
  %v282 = vsel %vm213, %v279, 0
  %v284 = vsel %vm213, %v281, 0
  %286 = vmatpush.xpose.msra.mxu0 0.0
  %287 = vmatpush.xpose.msra.mxu0 0.0
  %288 = vmatpush.xpose.msra.mxu0 0.0
  %289 = vmatpush.xpose.msra.mxu0 0.0
  %290 = vmatpush.xpose.msra.mxu0 0.0
  %291 = vmatpush.xpose.msra.mxu0 0.0
  %292 = vmatpush.xpose.msra.mxu0 0.0
  %293 = vmatpush.xpose.msra.mxu0 0.0
  %294 = vmatpush.xpose.msra.mxu0 0.0
  %295 = vmatpush.xpose.msra.mxu0 0.0
  %296 = vmatpush.xpose.msra.mxu0 0.0
  %297 = vmatpush.xpose.msra.mxu0 0.0
  %298 = vmatpush.xpose.msra.mxu0 0.0
  %299 = vmatpush.xpose.msra.mxu0 0.0
  %300 = vmatpush.xpose.msra.mxu0 0.0
  %301 = vmatpush.xpose.msra.mxu0 %v284
  %302 = vmatmul.f32.gmra.mxu0 %v282
  %v303 = vpop.f32.mrf.mxu0
  %v304 = vadd.f32 0.0, %v303
  %305 = vdwg.mxu0
  %v306 = vmul.f32 %v304, 0.35355338
  %v307 = vadd.f32 %v306, %v239
  %v308 = vsel %vm213, %v307, -inf
  %309 = vmax.xlane.f32.xlu0 %v308
  %v310 = vpop.xlane.xlu0 %309
  %v311 = vsub.f32 %v307, %v310
  %v312 = vmul.f32 %v311, 1.442695
  %v313 = vpow.pop %v312
  %v314 = vsel %vm213, %v313, 0.0
  %315 = vadd.xlane.f32.xlu0 %v314
  %v316 = vpop.xlane.xlu0 %315
  %v317 = vrcp.pop %v316
  %v318 = vmul.f32 %v313, %v317
  %319 = vrot.lane.b32.xlu0 %v205, 56
  %v320 = vpop.permute.xlu0 %319
  %v323 = vsel %vm213, %v318, 0
  %325 = vmatpush.msra.mxu0 0.0
  %326 = vmatpush.msra.mxu0 0.0
  %327 = vmatpush.msra.mxu0 0.0
  %328 = vmatpush.msra.mxu0 0.0
  %329 = vmatpush.msra.mxu0 0.0
  %330 = vmatpush.msra.mxu0 0.0
  %331 = vmatpush.msra.mxu0 0.0
  %332 = vmatpush.msra.mxu0 0.0
  %333 = vmatpush.msra.mxu0 0.0
  %334 = vmatpush.msra.mxu0 0.0
  %335 = vmatpush.msra.mxu0 0.0
  %336 = vmatpush.msra.mxu0 0.0
  %337 = vmatpush.msra.mxu0 0.0
  %338 = vmatpush.msra.mxu0 0.0
  %339 = vmatpush.msra.mxu0 0.0
  %340 = vmatpush.msra.mxu0 %v320
  %341 = vmatmul.f32.gmra.mxu0 %v323
  %v342 = vpop.f32.mrf.mxu0
  %v343 = vadd.f32 0.0, %v342
  %344 = vdwg.mxu0
  %345 = vrot.lane.b32.xlu0 %v205, 112
  %v346 = vpop.permute.xlu0 %345
  %347 = vrot.lane.b32.xlu0 %v205, 80
  %v348 = vpop.permute.xlu0 %347
  %v349 = vsel %vm213, %v346, 0
  %v351 = vsel %vm213, %v348, 0
  %353 = vmatpush.xpose.msra.mxu0 0.0
  %354 = vmatpush.xpose.msra.mxu0 0.0
  %355 = vmatpush.xpose.msra.mxu0 0.0
  %356 = vmatpush.xpose.msra.mxu0 0.0
  %357 = vmatpush.xpose.msra.mxu0 0.0
  %358 = vmatpush.xpose.msra.mxu0 0.0
  %359 = vmatpush.xpose.msra.mxu0 0.0
  %360 = vmatpush.xpose.msra.mxu0 0.0
  %361 = vmatpush.xpose.msra.mxu0 0.0
  %362 = vmatpush.xpose.msra.mxu0 0.0
  %363 = vmatpush.xpose.msra.mxu0 0.0
  %364 = vmatpush.xpose.msra.mxu0 0.0
  %365 = vmatpush.xpose.msra.mxu0 0.0
  %366 = vmatpush.xpose.msra.mxu0 0.0
  %367 = vmatpush.xpose.msra.mxu0 0.0
  %368 = vmatpush.xpose.msra.mxu0 %v351
  %369 = vmatmul.f32.gmra.mxu0 %v349
  %v370 = vpop.f32.mrf.mxu0
  %v371 = vadd.f32 0.0, %v370
  %372 = vdwg.mxu0
  %v373 = vmul.f32 %v371, 0.35355338
  %v374 = vadd.f32 %v373, %v239
  %v375 = vsel %vm213, %v374, -inf
  %376 = vmax.xlane.f32.xlu0 %v375
  %v377 = vpop.xlane.xlu0 %376
  %v378 = vsub.f32 %v374, %v377
  %v379 = vmul.f32 %v378, 1.442695
  %v380 = vpow.pop %v379
  %v381 = vsel %vm213, %v380, 0.0
  %382 = vadd.xlane.f32.xlu0 %v381
  %v383 = vpop.xlane.xlu0 %382
  %v384 = vrcp.pop %v383
  %v385 = vmul.f32 %v380, %v384
  %386 = vrot.lane.b32.xlu0 %v205, 48
  %v387 = vpop.permute.xlu0 %386
  %v390 = vsel %vm213, %v385, 0
  %392 = vmatpush.msra.mxu0 0.0
  %393 = vmatpush.msra.mxu0 0.0
  %394 = vmatpush.msra.mxu0 0.0
  %395 = vmatpush.msra.mxu0 0.0
  %396 = vmatpush.msra.mxu0 0.0
  %397 = vmatpush.msra.mxu0 0.0
  %398 = vmatpush.msra.mxu0 0.0
  %399 = vmatpush.msra.mxu0 0.0
  %400 = vmatpush.msra.mxu0 0.0
  %401 = vmatpush.msra.mxu0 0.0
  %402 = vmatpush.msra.mxu0 0.0
  %403 = vmatpush.msra.mxu0 0.0
  %404 = vmatpush.msra.mxu0 0.0
  %405 = vmatpush.msra.mxu0 0.0
  %406 = vmatpush.msra.mxu0 0.0
  %407 = vmatpush.msra.mxu0 %v387
  %408 = vmatmul.f32.gmra.mxu0 %v390
  %v409 = vpop.f32.mrf.mxu0
  %v410 = vadd.f32 0.0, %v409
  %411 = vdwg.mxu0
  %412 = vrot.lane.b32.xlu0 %v205, 104
  %v413 = vpop.permute.xlu0 %412
  %414 = vrot.lane.b32.xlu0 %v205, 72
  %v415 = vpop.permute.xlu0 %414
  %v416 = vsel %vm213, %v413, 0
  %v418 = vsel %vm213, %v415, 0
  %420 = vmatpush.xpose.msra.mxu0 0.0
  %421 = vmatpush.xpose.msra.mxu0 0.0
  %422 = vmatpush.xpose.msra.mxu0 0.0
  %423 = vmatpush.xpose.msra.mxu0 0.0
  %424 = vmatpush.xpose.msra.mxu0 0.0
  %425 = vmatpush.xpose.msra.mxu0 0.0
  %426 = vmatpush.xpose.msra.mxu0 0.0
  %427 = vmatpush.xpose.msra.mxu0 0.0
  %428 = vmatpush.xpose.msra.mxu0 0.0
  %429 = vmatpush.xpose.msra.mxu0 0.0
  %430 = vmatpush.xpose.msra.mxu0 0.0
  %431 = vmatpush.xpose.msra.mxu0 0.0
  %432 = vmatpush.xpose.msra.mxu0 0.0
  %433 = vmatpush.xpose.msra.mxu0 0.0
  %434 = vmatpush.xpose.msra.mxu0 0.0
  %435 = vmatpush.xpose.msra.mxu0 %v418
  %436 = vmatmul.f32.gmra.mxu0 %v416
  %v437 = vpop.f32.mrf.mxu0
  %v438 = vadd.f32 0.0, %v437
  %439 = vdwg.mxu0
  %v440 = vmul.f32 %v438, 0.35355338
  %v441 = vadd.f32 %v440, %v239
  %v442 = vsel %vm213, %v441, -inf
  %443 = vmax.xlane.f32.xlu0 %v442
  %v444 = vpop.xlane.xlu0 %443
  %v445 = vsub.f32 %v441, %v444
  %v446 = vmul.f32 %v445, 1.442695
  %v447 = vpow.pop %v446
  %v448 = vsel %vm213, %v447, 0.0
  %449 = vadd.xlane.f32.xlu0 %v448
  %v450 = vpop.xlane.xlu0 %449
  %v451 = vrcp.pop %v450
  %v452 = vmul.f32 %v447, %v451
  %453 = vrot.lane.b32.xlu0 %v205, 40
  %v454 = vpop.permute.xlu0 %453
  %v457 = vsel %vm213, %v452, 0
  %459 = vmatpush.msra.mxu0 0.0
  %460 = vmatpush.msra.mxu0 0.0
  %461 = vmatpush.msra.mxu0 0.0
  %462 = vmatpush.msra.mxu0 0.0
  %463 = vmatpush.msra.mxu0 0.0
  %464 = vmatpush.msra.mxu0 0.0
  %465 = vmatpush.msra.mxu0 0.0
  %466 = vmatpush.msra.mxu0 0.0
  %467 = vmatpush.msra.mxu0 0.0
  %468 = vmatpush.msra.mxu0 0.0
  %469 = vmatpush.msra.mxu0 0.0
  %470 = vmatpush.msra.mxu0 0.0
  %471 = vmatpush.msra.mxu0 0.0
  %472 = vmatpush.msra.mxu0 0.0
  %473 = vmatpush.msra.mxu0 0.0
  %474 = vmatpush.msra.mxu0 %v454
  %475 = vmatmul.f32.gmra.mxu0 %v457
  %v476 = vpop.f32.mrf.mxu0
  %v477 = vadd.f32 0.0, %v476
  %478 = vdwg.mxu0
  %480 = vrot.lane.b32.xlu0 %v343, 8
  %v481 = vpop.permute.xlu0 %480
  %484 = vrot.lane.b32.xlu0 %v410, 16
  %v485 = vpop.permute.xlu0 %484
  %488 = vrot.lane.b32.xlu0 %v477, 24
  %v489 = vpop.permute.xlu0 %488
  %v491 = vsel %vm213, %v276, %v481
  %vm492 = vcmask 130048
  %v493 = vsel %vm492, %v491, %v485
  %vm494 = vcmask 195584
  %v495 = vsel %vm494, %v493, %v489
  %497 = vrot.lane.b32.xlu0 %v208, 96
  %v498 = vpop.permute.xlu0 %497
  %v499 = vsel %vm213, %v208, 0
  %v501 = vsel %vm213, %v498, 0
  %503 = vmatpush.xpose.msra.mxu0 0.0
  %504 = vmatpush.xpose.msra.mxu0 0.0
  %505 = vmatpush.xpose.msra.mxu0 0.0
  %506 = vmatpush.xpose.msra.mxu0 0.0
  %507 = vmatpush.xpose.msra.mxu0 0.0
  %508 = vmatpush.xpose.msra.mxu0 0.0
  %509 = vmatpush.xpose.msra.mxu0 0.0
  %510 = vmatpush.xpose.msra.mxu0 0.0
  %511 = vmatpush.xpose.msra.mxu0 0.0
  %512 = vmatpush.xpose.msra.mxu0 0.0
  %513 = vmatpush.xpose.msra.mxu0 0.0
  %514 = vmatpush.xpose.msra.mxu0 0.0
  %515 = vmatpush.xpose.msra.mxu0 0.0
  %516 = vmatpush.xpose.msra.mxu0 0.0
  %517 = vmatpush.xpose.msra.mxu0 0.0
  %518 = vmatpush.xpose.msra.mxu0 %v501
  %519 = vmatmul.f32.gmra.mxu0 %v499
  %v520 = vpop.f32.mrf.mxu0
  %v521 = vadd.f32 0.0, %v520
  %522 = vdwg.mxu0
  %v523 = vmul.f32 %v521, 0.35355338
  %v524 = vperm.slane %v160, 1
  %v525 = vadd.f32 %v523, %v524
  %v526 = vsel %vm213, %v525, -inf
  %527 = vmax.xlane.f32.xlu0 %v526
  %v528 = vpop.xlane.xlu0 %527
  %v529 = vsub.f32 %v525, %v528
  %v530 = vmul.f32 %v529, 1.442695
  %v531 = vpow.pop %v530
  %v532 = vsel %vm213, %v531, 0.0
  %533 = vadd.xlane.f32.xlu0 %v532
  %v534 = vpop.xlane.xlu0 %533
  %v535 = vrcp.pop %v534
  %v536 = vmul.f32 %v531, %v535
  %537 = vrot.lane.b32.xlu0 %v208, 64
  %v538 = vpop.permute.xlu0 %537
  %v541 = vsel %vm213, %v536, 0
  %543 = vmatpush.msra.mxu0 0.0
  %544 = vmatpush.msra.mxu0 0.0
  %545 = vmatpush.msra.mxu0 0.0
  %546 = vmatpush.msra.mxu0 0.0
  %547 = vmatpush.msra.mxu0 0.0
  %548 = vmatpush.msra.mxu0 0.0
  %549 = vmatpush.msra.mxu0 0.0
  %550 = vmatpush.msra.mxu0 0.0
  %551 = vmatpush.msra.mxu0 0.0
  %552 = vmatpush.msra.mxu0 0.0
  %553 = vmatpush.msra.mxu0 0.0
  %554 = vmatpush.msra.mxu0 0.0
  %555 = vmatpush.msra.mxu0 0.0
  %556 = vmatpush.msra.mxu0 0.0
  %557 = vmatpush.msra.mxu0 0.0
  %558 = vmatpush.msra.mxu0 %v538
  %559 = vmatmul.f32.gmra.mxu0 %v541
  %v560 = vpop.f32.mrf.mxu0
  %v561 = vadd.f32 0.0, %v560
  %562 = vdwg.mxu0
  %563 = vrot.lane.b32.xlu0 %v208, 120
  %v564 = vpop.permute.xlu0 %563
  %565 = vrot.lane.b32.xlu0 %v208, 88
  %v566 = vpop.permute.xlu0 %565
  %v567 = vsel %vm213, %v564, 0
  %v569 = vsel %vm213, %v566, 0
  %571 = vmatpush.xpose.msra.mxu0 0.0
  %572 = vmatpush.xpose.msra.mxu0 0.0
  %573 = vmatpush.xpose.msra.mxu0 0.0
  %574 = vmatpush.xpose.msra.mxu0 0.0
  %575 = vmatpush.xpose.msra.mxu0 0.0
  %576 = vmatpush.xpose.msra.mxu0 0.0
  %577 = vmatpush.xpose.msra.mxu0 0.0
  %578 = vmatpush.xpose.msra.mxu0 0.0
  %579 = vmatpush.xpose.msra.mxu0 0.0
  %580 = vmatpush.xpose.msra.mxu0 0.0
  %581 = vmatpush.xpose.msra.mxu0 0.0
  %582 = vmatpush.xpose.msra.mxu0 0.0
  %583 = vmatpush.xpose.msra.mxu0 0.0
  %584 = vmatpush.xpose.msra.mxu0 0.0
  %585 = vmatpush.xpose.msra.mxu0 0.0
  %586 = vmatpush.xpose.msra.mxu0 %v569
  %587 = vmatmul.f32.gmra.mxu0 %v567
  %v588 = vpop.f32.mrf.mxu0
  %v589 = vadd.f32 0.0, %v588
  %590 = vdwg.mxu0
  %v591 = vmul.f32 %v589, 0.35355338
  %v592 = vadd.f32 %v591, %v524
  %v593 = vsel %vm213, %v592, -inf
  %594 = vmax.xlane.f32.xlu0 %v593
  %v595 = vpop.xlane.xlu0 %594
  %v596 = vsub.f32 %v592, %v595
  %v597 = vmul.f32 %v596, 1.442695
  %v598 = vpow.pop %v597
  %v599 = vsel %vm213, %v598, 0.0
  %600 = vadd.xlane.f32.xlu0 %v599
  %v601 = vpop.xlane.xlu0 %600
  %v602 = vrcp.pop %v601
  %v603 = vmul.f32 %v598, %v602
  %604 = vrot.lane.b32.xlu0 %v208, 56
  %v605 = vpop.permute.xlu0 %604
  %v608 = vsel %vm213, %v603, 0
  %610 = vmatpush.msra.mxu0 0.0
  %611 = vmatpush.msra.mxu0 0.0
  %612 = vmatpush.msra.mxu0 0.0
  %613 = vmatpush.msra.mxu0 0.0
  %614 = vmatpush.msra.mxu0 0.0
  %615 = vmatpush.msra.mxu0 0.0
  %616 = vmatpush.msra.mxu0 0.0
  %617 = vmatpush.msra.mxu0 0.0
  %618 = vmatpush.msra.mxu0 0.0
  %619 = vmatpush.msra.mxu0 0.0
  %620 = vmatpush.msra.mxu0 0.0
  %621 = vmatpush.msra.mxu0 0.0
  %622 = vmatpush.msra.mxu0 0.0
  %623 = vmatpush.msra.mxu0 0.0
  %624 = vmatpush.msra.mxu0 0.0
  %625 = vmatpush.msra.mxu0 %v605
  %626 = vmatmul.f32.gmra.mxu0 %v608
  %v627 = vpop.f32.mrf.mxu0
  %v628 = vadd.f32 0.0, %v627
  %629 = vdwg.mxu0
  %630 = vrot.lane.b32.xlu0 %v208, 112
  %v631 = vpop.permute.xlu0 %630
  %632 = vrot.lane.b32.xlu0 %v208, 80
  %v633 = vpop.permute.xlu0 %632
  %v634 = vsel %vm213, %v631, 0
  %v636 = vsel %vm213, %v633, 0
  %638 = vmatpush.xpose.msra.mxu0 0.0
  %639 = vmatpush.xpose.msra.mxu0 0.0
  %640 = vmatpush.xpose.msra.mxu0 0.0
  %641 = vmatpush.xpose.msra.mxu0 0.0
  %642 = vmatpush.xpose.msra.mxu0 0.0
  %643 = vmatpush.xpose.msra.mxu0 0.0
  %644 = vmatpush.xpose.msra.mxu0 0.0
  %645 = vmatpush.xpose.msra.mxu0 0.0
  %646 = vmatpush.xpose.msra.mxu0 0.0
  %647 = vmatpush.xpose.msra.mxu0 0.0
  %648 = vmatpush.xpose.msra.mxu0 0.0
  %649 = vmatpush.xpose.msra.mxu0 0.0
  %650 = vmatpush.xpose.msra.mxu0 0.0
  %651 = vmatpush.xpose.msra.mxu0 0.0
  %652 = vmatpush.xpose.msra.mxu0 0.0
  %653 = vmatpush.xpose.msra.mxu0 %v636
  %654 = vmatmul.f32.gmra.mxu0 %v634
  %v655 = vpop.f32.mrf.mxu0
  %v656 = vadd.f32 0.0, %v655
  %657 = vdwg.mxu0
  %v658 = vmul.f32 %v656, 0.35355338
  %v659 = vadd.f32 %v658, %v524
  %v660 = vsel %vm213, %v659, -inf
  %661 = vmax.xlane.f32.xlu0 %v660
  %v662 = vpop.xlane.xlu0 %661
  %v663 = vsub.f32 %v659, %v662
  %v664 = vmul.f32 %v663, 1.442695
  %v665 = vpow.pop %v664
  %v666 = vsel %vm213, %v665, 0.0
  %667 = vadd.xlane.f32.xlu0 %v666
  %v668 = vpop.xlane.xlu0 %667
  %v669 = vrcp.pop %v668
  %v670 = vmul.f32 %v665, %v669
  %671 = vrot.lane.b32.xlu0 %v208, 48
  %v672 = vpop.permute.xlu0 %671
  %v675 = vsel %vm213, %v670, 0
  %677 = vmatpush.msra.mxu0 0.0
  %678 = vmatpush.msra.mxu0 0.0
  %679 = vmatpush.msra.mxu0 0.0
  %680 = vmatpush.msra.mxu0 0.0
  %681 = vmatpush.msra.mxu0 0.0
  %682 = vmatpush.msra.mxu0 0.0
  %683 = vmatpush.msra.mxu0 0.0
  %684 = vmatpush.msra.mxu0 0.0
  %685 = vmatpush.msra.mxu0 0.0
  %686 = vmatpush.msra.mxu0 0.0
  %687 = vmatpush.msra.mxu0 0.0
  %688 = vmatpush.msra.mxu0 0.0
  %689 = vmatpush.msra.mxu0 0.0
  %690 = vmatpush.msra.mxu0 0.0
  %691 = vmatpush.msra.mxu0 0.0
  %692 = vmatpush.msra.mxu0 %v672
  %693 = vmatmul.f32.gmra.mxu0 %v675
  %v694 = vpop.f32.mrf.mxu0
  %v695 = vadd.f32 0.0, %v694
  %696 = vdwg.mxu0
  %697 = vrot.lane.b32.xlu0 %v208, 104
  %v698 = vpop.permute.xlu0 %697
  %699 = vrot.lane.b32.xlu0 %v208, 72
  %v700 = vpop.permute.xlu0 %699
  %v701 = vsel %vm213, %v698, 0
  %v703 = vsel %vm213, %v700, 0
  %705 = vmatpush.xpose.msra.mxu0 0.0
  %706 = vmatpush.xpose.msra.mxu0 0.0
  %707 = vmatpush.xpose.msra.mxu0 0.0
  %708 = vmatpush.xpose.msra.mxu0 0.0
  %709 = vmatpush.xpose.msra.mxu0 0.0
  %710 = vmatpush.xpose.msra.mxu0 0.0
  %711 = vmatpush.xpose.msra.mxu0 0.0
  %712 = vmatpush.xpose.msra.mxu0 0.0
  %713 = vmatpush.xpose.msra.mxu0 0.0
  %714 = vmatpush.xpose.msra.mxu0 0.0
  %715 = vmatpush.xpose.msra.mxu0 0.0
  %716 = vmatpush.xpose.msra.mxu0 0.0
  %717 = vmatpush.xpose.msra.mxu0 0.0
  %718 = vmatpush.xpose.msra.mxu0 0.0
  %719 = vmatpush.xpose.msra.mxu0 0.0
  %720 = vmatpush.xpose.msra.mxu0 %v703
  %721 = vmatmul.f32.gmra.mxu0 %v701
  %v722 = vpop.f32.mrf.mxu0
  %v723 = vadd.f32 0.0, %v722
  %724 = vdwg.mxu0
  %v725 = vmul.f32 %v723, 0.35355338
  %v726 = vadd.f32 %v725, %v524
  %v727 = vsel %vm213, %v726, -inf
  %728 = vmax.xlane.f32.xlu0 %v727
  %v729 = vpop.xlane.xlu0 %728
  %v730 = vsub.f32 %v726, %v729
  %v731 = vmul.f32 %v730, 1.442695
  %v732 = vpow.pop %v731
  %v733 = vsel %vm213, %v732, 0.0
  %734 = vadd.xlane.f32.xlu0 %v733
  %v735 = vpop.xlane.xlu0 %734
  %v736 = vrcp.pop %v735
  %v737 = vmul.f32 %v732, %v736
  %738 = vrot.lane.b32.xlu0 %v208, 40
  %v739 = vpop.permute.xlu0 %738
  %v742 = vsel %vm213, %v737, 0
  %744 = vmatpush.msra.mxu0 0.0
  %745 = vmatpush.msra.mxu0 0.0
  %746 = vmatpush.msra.mxu0 0.0
  %747 = vmatpush.msra.mxu0 0.0
  %748 = vmatpush.msra.mxu0 0.0
  %749 = vmatpush.msra.mxu0 0.0
  %750 = vmatpush.msra.mxu0 0.0
  %751 = vmatpush.msra.mxu0 0.0
  %752 = vmatpush.msra.mxu0 0.0
  %753 = vmatpush.msra.mxu0 0.0
  %754 = vmatpush.msra.mxu0 0.0
  %755 = vmatpush.msra.mxu0 0.0
  %756 = vmatpush.msra.mxu0 0.0
  %757 = vmatpush.msra.mxu0 0.0
  %758 = vmatpush.msra.mxu0 0.0
  %759 = vmatpush.msra.mxu0 %v739
  %760 = vmatmul.f32.gmra.mxu0 %v742
  %v761 = vpop.f32.mrf.mxu0
  %v762 = vadd.f32 0.0, %v761
  %763 = vdwg.mxu0
  %765 = vrot.lane.b32.xlu0 %v628, 8
  %v766 = vpop.permute.xlu0 %765
  %769 = vrot.lane.b32.xlu0 %v695, 16
  %v770 = vpop.permute.xlu0 %769
  %773 = vrot.lane.b32.xlu0 %v762, 24
  %v774 = vpop.permute.xlu0 %773
  %v776 = vsel %vm213, %v561, %v766
  %v777 = vsel %vm492, %v776, %v770
  %v778 = vsel %vm494, %v777, %v774
  %v779 = vld [vmem:[%s13] sm:$0xff]
  %v780 = vld [vmem:[%s13 + $0x8] sm:$0xff]
  %v781 = vld [vmem:[%s13 + $0x10] sm:$0xff]
  %v782 = vld [vmem:[%s13 + $0x18] sm:$0xff]
  %v783 = vld [vmem:[%s15] sm:$0x1]
  %v785 = vperm.slane %v783, 0
  %v788 = vsel %vm180, %v495, 0
  %v791 = vsel %vm180, %v778, 0
  %793 = vmatpush.msra.mxu0 0.0
  %794 = vmatpush.msra.mxu0 0.0
  %795 = vmatpush.msra.mxu0 0.0
  %796 = vmatpush.msra.mxu0 0.0
  %797 = vmatpush.msra.mxu0 0.0
  %798 = vmatpush.msra.mxu0 0.0
  %799 = vmatpush.msra.mxu0 0.0
  %800 = vmatpush.msra.mxu0 0.0
  %801 = vmatpush.msra.mxu0 0.0
  %802 = vmatpush.msra.mxu0 0.0
  %803 = vmatpush.msra.mxu0 0.0
  %804 = vmatpush.msra.mxu0 0.0
  %805 = vmatpush.msra.mxu0 %v782
  %806 = vmatpush.msra.mxu0 %v781
  %807 = vmatpush.msra.mxu0 %v780
  %808 = vmatpush.msra.mxu0 %v779
  %809 = vmatmul.f32.gmra.mxu0 %v788
  %v810 = vpop.f32.mrf.mxu0
  %v811 = vadd.f32 %v785, %v810
  %812 = vmatmul.f32.gmra.mxu0 %v791
  %v813 = vpop.f32.mrf.mxu0
  %v814 = vadd.f32 %v785, %v813
  %815 = vdwg.mxu0
  %v816 = vld [vmem:[%s17] sm:$0x1]
  %v817 = vld [vmem:[%s19] sm:$0x1]
  %v818 = vadd.f32 %v170, %v811
  %v819 = vadd.f32 %v171, %v814
  %v820 = vsel %vm180, %v818, 0.0
  %821 = vadd.xlane.f32.xlu0 %v820
  %v822 = vpop.xlane.xlu0 %821
  %v823 = vsel %vm180, %v819, 0.0
  %824 = vadd.xlane.f32.xlu0 %v823
  %v825 = vpop.xlane.xlu0 %824
  %v826 = vrcp.pop 32.0
  %v827 = vmul.f32 32.0, %v826
  %v828 = vsub.f32 1.0, %v827
  %v829 = vmul.f32 %v826, %v828
  %v830 = vadd.f32 %v826, %v829
  %vm831 = vweird.f32 %v826
  %v832 = vsel %vm831, %v826, %v830
  %v833 = vmul.f32 %v822, %v832
  %v834 = vmul.f32 %v825, %v832
  %v835 = vsub.f32 %v818, %v833
  %v836 = vsub.f32 %v819, %v834
  %v837 = vmul.f32 %v835, %v835
  %v838 = vmul.f32 %v836, %v836
  %v839 = vsel %vm180, %v837, 0.0
  %840 = vadd.xlane.f32.xlu0 %v839
  %v841 = vpop.xlane.xlu0 %840
  %v842 = vsel %vm180, %v838, 0.0
  %843 = vadd.xlane.f32.xlu0 %v842
  %v844 = vpop.xlane.xlu0 %843
  %v845 = vmul.f32 %v841, %v832
  %v846 = vmul.f32 %v844, %v832
  %v847 = vadd.f32 %v845, 1e-05
  %v848 = vadd.f32 %v846, 1e-05
  %v849 = vrsqrt.pop %v847
  %v850 = vmul.f32 %v849, %v847
  %v851 = vmul.f32 %v850, %v849
  %v852 = vmul.f32 0.5, %v851
  %v853 = vsub.f32 1.5, %v852
  %v854 = vmul.f32 %v849, %v853
  %vm855 = vweird.f32 %v847
  %vm856 = vweird.f32 %v849
  %vm857 = vmor %vm855, %vm856
  %v858 = vsel %vm857, %v849, %v854
  %v859 = vrsqrt.pop %v848
  %v860 = vmul.f32 %v859, %v848
  %v861 = vmul.f32 %v860, %v859
  %v862 = vmul.f32 0.5, %v861
  %v863 = vsub.f32 1.5, %v862
  %v864 = vmul.f32 %v859, %v863
  %vm865 = vweird.f32 %v848
  %vm866 = vweird.f32 %v859
  %vm867 = vmor %vm865, %vm866
  %v868 = vsel %vm867, %v859, %v864
  %v869 = vmul.f32 %v835, %v858
  %v870 = vmul.f32 %v836, %v868
  %v872 = vperm.slane %v816, 0
  %v874 = vmul.f32 %v869, %v872
  %v875 = vmul.f32 %v870, %v872
  %v877 = vperm.slane %v817, 0
  %v879 = vadd.f32 %v874, %v877
  %v880 = vadd.f32 %v875, %v877
  %v881 = vld [vmem:[%s21] sm:$0xff]
  %v882 = vld [vmem:[%s21 + $0x8] sm:$0xff]
  %v883 = vld [vmem:[%s21 + $0x10] sm:$0xff]
  %v884 = vld [vmem:[%s21 + $0x18] sm:$0xff]
  %v885 = vld [vmem:[%s23] sm:$0x1]
  %v887 = vperm.slane %v885, 0
  %v890 = vsel %vm180, %v879, 0
  %v893 = vsel %vm180, %v880, 0
  %895 = vmatpush.msra.mxu0 0.0
  %896 = vmatpush.msra.mxu0 0.0
  %897 = vmatpush.msra.mxu0 0.0
  %898 = vmatpush.msra.mxu0 0.0
  %899 = vmatpush.msra.mxu0 0.0
  %900 = vmatpush.msra.mxu0 0.0
  %901 = vmatpush.msra.mxu0 0.0
  %902 = vmatpush.msra.mxu0 0.0
  %903 = vmatpush.msra.mxu0 0.0
  %904 = vmatpush.msra.mxu0 0.0
  %905 = vmatpush.msra.mxu0 0.0
  %906 = vmatpush.msra.mxu0 0.0
  %907 = vmatpush.msra.mxu0 %v884
  %908 = vmatpush.msra.mxu0 %v883
  %909 = vmatpush.msra.mxu0 %v882
  %910 = vmatpush.msra.mxu0 %v881
  %911 = vmatmul.f32.gmra.mxu0 %v890
  %v912 = vpop.f32.mrf.mxu0
  %v913 = vadd.f32 %v887, %v912
  %914 = vmatmul.f32.gmra.mxu0 %v893
  %v915 = vpop.f32.mrf.mxu0
  %v916 = vadd.f32 %v887, %v915
  %917 = vdwg.mxu0
  %v918 = vmax.f32 %v913, 0.0
  %v919 = vmax.f32 %v916, 0.0
  %v920 = vld [vmem:[%s25] sm:$0xff]
  %v921 = vld [vmem:[%s25 + $0x8] sm:$0xff]
  %v922 = vld [vmem:[%s25 + $0x10] sm:$0xff]
  %v923 = vld [vmem:[%s25 + $0x18] sm:$0xff]
  %v924 = vld [vmem:[%s25 + $0x20] sm:$0xff]
  %v925 = vld [vmem:[%s25 + $0x28] sm:$0xff]
  %v926 = vld [vmem:[%s25 + $0x30] sm:$0xff]
  %v927 = vld [vmem:[%s25 + $0x38] sm:$0xff]
  %v928 = vld [vmem:[%s27] sm:$0x1]
  %v930 = vperm.slane %v928, 0
  %vm932 = vcmask 523264
  %v934 = vsel %vm932, %v918, 0
  %v937 = vsel %vm932, %v919, 0
  %939 = vmatpush.msra.mxu0 0.0
  %940 = vmatpush.msra.mxu0 0.0
  %941 = vmatpush.msra.mxu0 0.0
  %942 = vmatpush.msra.mxu0 0.0
  %943 = vmatpush.msra.mxu0 0.0
  %944 = vmatpush.msra.mxu0 0.0
  %945 = vmatpush.msra.mxu0 0.0
  %946 = vmatpush.msra.mxu0 0.0
  %947 = vmatpush.msra.mxu0 %v927
  %948 = vmatpush.msra.mxu0 %v926
  %949 = vmatpush.msra.mxu0 %v925
  %950 = vmatpush.msra.mxu0 %v924
  %951 = vmatpush.msra.mxu0 %v923
  %952 = vmatpush.msra.mxu0 %v922
  %953 = vmatpush.msra.mxu0 %v921
  %954 = vmatpush.msra.mxu0 %v920
  %955 = vmatmul.f32.gmra.mxu0 %v934
  %v956 = vpop.f32.mrf.mxu0
  %v957 = vadd.f32 %v930, %v956
  %958 = vmatmul.f32.gmra.mxu0 %v937
  %v959 = vpop.f32.mrf.mxu0
  %v960 = vadd.f32 %v930, %v959
  %961 = vdwg.mxu0
  %v962 = vld [vmem:[%s29] sm:$0x1]
  %v963 = vld [vmem:[%s31] sm:$0x1]
  %v964 = vadd.f32 %v879, %v957
  %v965 = vadd.f32 %v880, %v960
  %v966 = vsel %vm180, %v964, 0.0
  %967 = vadd.xlane.f32.xlu0 %v966
  %v968 = vpop.xlane.xlu0 %967
  %v969 = vsel %vm180, %v965, 0.0
  %970 = vadd.xlane.f32.xlu0 %v969
  %v971 = vpop.xlane.xlu0 %970
  %v972 = vmul.f32 %v968, %v832
  %v973 = vmul.f32 %v971, %v832
  %v974 = vsub.f32 %v964, %v972
  %v975 = vsub.f32 %v965, %v973
  %v976 = vmul.f32 %v974, %v974
  %v977 = vmul.f32 %v975, %v975
  %v978 = vsel %vm180, %v976, 0.0
  %979 = vadd.xlane.f32.xlu0 %v978
  %v980 = vpop.xlane.xlu0 %979
  %v981 = vsel %vm180, %v977, 0.0
  %982 = vadd.xlane.f32.xlu0 %v981
  %v983 = vpop.xlane.xlu0 %982
  %v984 = vmul.f32 %v980, %v832
  %v985 = vmul.f32 %v983, %v832
  %v986 = vadd.f32 %v984, 1e-05
  %v987 = vadd.f32 %v985, 1e-05
  %v988 = vrsqrt.pop %v986
  %v989 = vmul.f32 %v988, %v986
  %v990 = vmul.f32 %v989, %v988
  %v991 = vmul.f32 0.5, %v990
  %v992 = vsub.f32 1.5, %v991
  %v993 = vmul.f32 %v988, %v992
  %vm994 = vweird.f32 %v986
  %vm995 = vweird.f32 %v988
  %vm996 = vmor %vm994, %vm995
  %v997 = vsel %vm996, %v988, %v993
  %v998 = vrsqrt.pop %v987
  %v999 = vmul.f32 %v998, %v987
  %v1000 = vmul.f32 %v999, %v998
  %v1001 = vmul.f32 0.5, %v1000
  %v1002 = vsub.f32 1.5, %v1001
  %v1003 = vmul.f32 %v998, %v1002
  %vm1004 = vweird.f32 %v987
  %vm1005 = vweird.f32 %v998
  %vm1006 = vmor %vm1004, %vm1005
  %v1007 = vsel %vm1006, %v998, %v1003
  %v1008 = vmul.f32 %v974, %v997
  %v1009 = vmul.f32 %v975, %v1007
  %v1011 = vperm.slane %v962, 0
  %v1013 = vmul.f32 %v1008, %v1011
  %v1014 = vmul.f32 %v1009, %v1011
  %v1016 = vperm.slane %v963, 0
  %v1018 = vadd.f32 %v1013, %v1016
  %v1019 = vadd.f32 %v1014, %v1016
  %s1020 = scalar_lea.vmem %s9, 32
  %v1021 = vld [vmem:[%s1020] sm:$0xff]
  %v1022 = vld [vmem:[%s1020 + $0x8] sm:$0xff]
  %v1023 = vld [vmem:[%s1020 + $0x10] sm:$0xff]
  %v1024 = vld [vmem:[%s1020 + $0x18] sm:$0xff]
  %s1025 = scalar_lea.vmem %s11, 1
  %v1026 = vld [vmem:[%s1025] sm:$0x1]
  %v1028 = vperm.slane %v1026, 0
  %v1031 = vsel %vm180, %v1018, 0
  %v1034 = vsel %vm180, %v1019, 0
  %1036 = vmatpush.msra.mxu0 0.0
  %1037 = vmatpush.msra.mxu0 0.0
  %1038 = vmatpush.msra.mxu0 0.0
  %1039 = vmatpush.msra.mxu0 0.0
  %1040 = vmatpush.msra.mxu0 0.0
  %1041 = vmatpush.msra.mxu0 0.0
  %1042 = vmatpush.msra.mxu0 0.0
  %1043 = vmatpush.msra.mxu0 0.0
  %1044 = vmatpush.msra.mxu0 0.0
  %1045 = vmatpush.msra.mxu0 0.0
  %1046 = vmatpush.msra.mxu0 0.0
  %1047 = vmatpush.msra.mxu0 0.0
  %1048 = vmatpush.msra.mxu0 %v1024
  %1049 = vmatpush.msra.mxu0 %v1023
  %1050 = vmatpush.msra.mxu0 %v1022
  %1051 = vmatpush.msra.mxu0 %v1021
  %1052 = vmatmul.f32.gmra.mxu0 %v1031
  %v1053 = vpop.f32.mrf.mxu0
  %v1054 = vadd.f32 %v1028, %v1053
  %1055 = vmatmul.f32.gmra.mxu0 %v1034
  %v1056 = vpop.f32.mrf.mxu0
  %v1057 = vadd.f32 %v1028, %v1056
  %1058 = vdwg.mxu0
  %1060 = vrot.lane.b32.xlu0 %v1054, 96
  %v1061 = vpop.permute.xlu0 %1060
  %v1062 = vsel %vm213, %v1054, 0
  %v1064 = vsel %vm213, %v1061, 0
  %1066 = vmatpush.xpose.msra.mxu0 0.0
  %1067 = vmatpush.xpose.msra.mxu0 0.0
  %1068 = vmatpush.xpose.msra.mxu0 0.0
  %1069 = vmatpush.xpose.msra.mxu0 0.0
  %1070 = vmatpush.xpose.msra.mxu0 0.0
  %1071 = vmatpush.xpose.msra.mxu0 0.0
  %1072 = vmatpush.xpose.msra.mxu0 0.0
  %1073 = vmatpush.xpose.msra.mxu0 0.0
  %1074 = vmatpush.xpose.msra.mxu0 0.0
  %1075 = vmatpush.xpose.msra.mxu0 0.0
  %1076 = vmatpush.xpose.msra.mxu0 0.0
  %1077 = vmatpush.xpose.msra.mxu0 0.0
  %1078 = vmatpush.xpose.msra.mxu0 0.0
  %1079 = vmatpush.xpose.msra.mxu0 0.0
  %1080 = vmatpush.xpose.msra.mxu0 0.0
  %1081 = vmatpush.xpose.msra.mxu0 %v1064
  %1082 = vmatmul.f32.gmra.mxu0 %v1062
  %v1083 = vpop.f32.mrf.mxu0
  %v1084 = vadd.f32 0.0, %v1083
  %1085 = vdwg.mxu0
  %v1086 = vmul.f32 %v1084, 0.35355338
  %v1087 = vadd.f32 %v1086, %v239
  %v1088 = vsel %vm213, %v1087, -inf
  %1089 = vmax.xlane.f32.xlu0 %v1088
  %v1090 = vpop.xlane.xlu0 %1089
  %v1091 = vsub.f32 %v1087, %v1090
  %v1092 = vmul.f32 %v1091, 1.442695
  %v1093 = vpow.pop %v1092
  %v1094 = vsel %vm213, %v1093, 0.0
  %1095 = vadd.xlane.f32.xlu0 %v1094
  %v1096 = vpop.xlane.xlu0 %1095
  %v1097 = vrcp.pop %v1096
  %v1098 = vmul.f32 %v1093, %v1097
  %1099 = vrot.lane.b32.xlu0 %v1054, 64
  %v1100 = vpop.permute.xlu0 %1099
  %v1103 = vsel %vm213, %v1098, 0
  %1105 = vmatpush.msra.mxu0 0.0
  %1106 = vmatpush.msra.mxu0 0.0
  %1107 = vmatpush.msra.mxu0 0.0
  %1108 = vmatpush.msra.mxu0 0.0
  %1109 = vmatpush.msra.mxu0 0.0
  %1110 = vmatpush.msra.mxu0 0.0
  %1111 = vmatpush.msra.mxu0 0.0
  %1112 = vmatpush.msra.mxu0 0.0
  %1113 = vmatpush.msra.mxu0 0.0
  %1114 = vmatpush.msra.mxu0 0.0
  %1115 = vmatpush.msra.mxu0 0.0
  %1116 = vmatpush.msra.mxu0 0.0
  %1117 = vmatpush.msra.mxu0 0.0
  %1118 = vmatpush.msra.mxu0 0.0
  %1119 = vmatpush.msra.mxu0 0.0
  %1120 = vmatpush.msra.mxu0 %v1100
  %1121 = vmatmul.f32.gmra.mxu0 %v1103
  %v1122 = vpop.f32.mrf.mxu0
  %v1123 = vadd.f32 0.0, %v1122
  %1124 = vdwg.mxu0
  %1125 = vrot.lane.b32.xlu0 %v1054, 120
  %v1126 = vpop.permute.xlu0 %1125
  %1127 = vrot.lane.b32.xlu0 %v1054, 88
  %v1128 = vpop.permute.xlu0 %1127
  %v1129 = vsel %vm213, %v1126, 0
  %v1131 = vsel %vm213, %v1128, 0
  %1133 = vmatpush.xpose.msra.mxu0 0.0
  %1134 = vmatpush.xpose.msra.mxu0 0.0
  %1135 = vmatpush.xpose.msra.mxu0 0.0
  %1136 = vmatpush.xpose.msra.mxu0 0.0
  %1137 = vmatpush.xpose.msra.mxu0 0.0
  %1138 = vmatpush.xpose.msra.mxu0 0.0
  %1139 = vmatpush.xpose.msra.mxu0 0.0
  %1140 = vmatpush.xpose.msra.mxu0 0.0
  %1141 = vmatpush.xpose.msra.mxu0 0.0
  %1142 = vmatpush.xpose.msra.mxu0 0.0
  %1143 = vmatpush.xpose.msra.mxu0 0.0
  %1144 = vmatpush.xpose.msra.mxu0 0.0
  %1145 = vmatpush.xpose.msra.mxu0 0.0
  %1146 = vmatpush.xpose.msra.mxu0 0.0
  %1147 = vmatpush.xpose.msra.mxu0 0.0
  %1148 = vmatpush.xpose.msra.mxu0 %v1131
  %1149 = vmatmul.f32.gmra.mxu0 %v1129
  %v1150 = vpop.f32.mrf.mxu0
  %v1151 = vadd.f32 0.0, %v1150
  %1152 = vdwg.mxu0
  %v1153 = vmul.f32 %v1151, 0.35355338
  %v1154 = vadd.f32 %v1153, %v239
  %v1155 = vsel %vm213, %v1154, -inf
  %1156 = vmax.xlane.f32.xlu0 %v1155
  %v1157 = vpop.xlane.xlu0 %1156
  %v1158 = vsub.f32 %v1154, %v1157
  %v1159 = vmul.f32 %v1158, 1.442695
  %v1160 = vpow.pop %v1159
  %v1161 = vsel %vm213, %v1160, 0.0
  %1162 = vadd.xlane.f32.xlu0 %v1161
  %v1163 = vpop.xlane.xlu0 %1162
  %v1164 = vrcp.pop %v1163
  %v1165 = vmul.f32 %v1160, %v1164
  %1166 = vrot.lane.b32.xlu0 %v1054, 56
  %v1167 = vpop.permute.xlu0 %1166
  %v1170 = vsel %vm213, %v1165, 0
  %1172 = vmatpush.msra.mxu0 0.0
  %1173 = vmatpush.msra.mxu0 0.0
  %1174 = vmatpush.msra.mxu0 0.0
  %1175 = vmatpush.msra.mxu0 0.0
  %1176 = vmatpush.msra.mxu0 0.0
  %1177 = vmatpush.msra.mxu0 0.0
  %1178 = vmatpush.msra.mxu0 0.0
  %1179 = vmatpush.msra.mxu0 0.0
  %1180 = vmatpush.msra.mxu0 0.0
  %1181 = vmatpush.msra.mxu0 0.0
  %1182 = vmatpush.msra.mxu0 0.0
  %1183 = vmatpush.msra.mxu0 0.0
  %1184 = vmatpush.msra.mxu0 0.0
  %1185 = vmatpush.msra.mxu0 0.0
  %1186 = vmatpush.msra.mxu0 0.0
  %1187 = vmatpush.msra.mxu0 %v1167
  %1188 = vmatmul.f32.gmra.mxu0 %v1170
  %v1189 = vpop.f32.mrf.mxu0
  %v1190 = vadd.f32 0.0, %v1189
  %1191 = vdwg.mxu0
  %1192 = vrot.lane.b32.xlu0 %v1054, 112
  %v1193 = vpop.permute.xlu0 %1192
  %1194 = vrot.lane.b32.xlu0 %v1054, 80
  %v1195 = vpop.permute.xlu0 %1194
  %v1196 = vsel %vm213, %v1193, 0
  %v1198 = vsel %vm213, %v1195, 0
  %1200 = vmatpush.xpose.msra.mxu0 0.0
  %1201 = vmatpush.xpose.msra.mxu0 0.0
  %1202 = vmatpush.xpose.msra.mxu0 0.0
  %1203 = vmatpush.xpose.msra.mxu0 0.0
  %1204 = vmatpush.xpose.msra.mxu0 0.0
  %1205 = vmatpush.xpose.msra.mxu0 0.0
  %1206 = vmatpush.xpose.msra.mxu0 0.0
  %1207 = vmatpush.xpose.msra.mxu0 0.0
  %1208 = vmatpush.xpose.msra.mxu0 0.0
  %1209 = vmatpush.xpose.msra.mxu0 0.0
  %1210 = vmatpush.xpose.msra.mxu0 0.0
  %1211 = vmatpush.xpose.msra.mxu0 0.0
  %1212 = vmatpush.xpose.msra.mxu0 0.0
  %1213 = vmatpush.xpose.msra.mxu0 0.0
  %1214 = vmatpush.xpose.msra.mxu0 0.0
  %1215 = vmatpush.xpose.msra.mxu0 %v1198
  %1216 = vmatmul.f32.gmra.mxu0 %v1196
  %v1217 = vpop.f32.mrf.mxu0
  %v1218 = vadd.f32 0.0, %v1217
  %1219 = vdwg.mxu0
  %v1220 = vmul.f32 %v1218, 0.35355338
  %v1221 = vadd.f32 %v1220, %v239
  %v1222 = vsel %vm213, %v1221, -inf
  %1223 = vmax.xlane.f32.xlu0 %v1222
  %v1224 = vpop.xlane.xlu0 %1223
  %v1225 = vsub.f32 %v1221, %v1224
  %v1226 = vmul.f32 %v1225, 1.442695
  %v1227 = vpow.pop %v1226
  %v1228 = vsel %vm213, %v1227, 0.0
  %1229 = vadd.xlane.f32.xlu0 %v1228
  %v1230 = vpop.xlane.xlu0 %1229
  %v1231 = vrcp.pop %v1230
  %v1232 = vmul.f32 %v1227, %v1231
  %1233 = vrot.lane.b32.xlu0 %v1054, 48
  %v1234 = vpop.permute.xlu0 %1233
  %v1237 = vsel %vm213, %v1232, 0
  %1239 = vmatpush.msra.mxu0 0.0
  %1240 = vmatpush.msra.mxu0 0.0
  %1241 = vmatpush.msra.mxu0 0.0
  %1242 = vmatpush.msra.mxu0 0.0
  %1243 = vmatpush.msra.mxu0 0.0
  %1244 = vmatpush.msra.mxu0 0.0
  %1245 = vmatpush.msra.mxu0 0.0
  %1246 = vmatpush.msra.mxu0 0.0
  %1247 = vmatpush.msra.mxu0 0.0
  %1248 = vmatpush.msra.mxu0 0.0
  %1249 = vmatpush.msra.mxu0 0.0
  %1250 = vmatpush.msra.mxu0 0.0
  %1251 = vmatpush.msra.mxu0 0.0
  %1252 = vmatpush.msra.mxu0 0.0
  %1253 = vmatpush.msra.mxu0 0.0
  %1254 = vmatpush.msra.mxu0 %v1234
  %1255 = vmatmul.f32.gmra.mxu0 %v1237
  %v1256 = vpop.f32.mrf.mxu0
  %v1257 = vadd.f32 0.0, %v1256
  %1258 = vdwg.mxu0
  %1259 = vrot.lane.b32.xlu0 %v1054, 104
  %v1260 = vpop.permute.xlu0 %1259
  %1261 = vrot.lane.b32.xlu0 %v1054, 72
  %v1262 = vpop.permute.xlu0 %1261
  %v1263 = vsel %vm213, %v1260, 0
  %v1265 = vsel %vm213, %v1262, 0
  %1267 = vmatpush.xpose.msra.mxu0 0.0
  %1268 = vmatpush.xpose.msra.mxu0 0.0
  %1269 = vmatpush.xpose.msra.mxu0 0.0
  %1270 = vmatpush.xpose.msra.mxu0 0.0
  %1271 = vmatpush.xpose.msra.mxu0 0.0
  %1272 = vmatpush.xpose.msra.mxu0 0.0
  %1273 = vmatpush.xpose.msra.mxu0 0.0
  %1274 = vmatpush.xpose.msra.mxu0 0.0
  %1275 = vmatpush.xpose.msra.mxu0 0.0
  %1276 = vmatpush.xpose.msra.mxu0 0.0
  %1277 = vmatpush.xpose.msra.mxu0 0.0
  %1278 = vmatpush.xpose.msra.mxu0 0.0
  %1279 = vmatpush.xpose.msra.mxu0 0.0
  %1280 = vmatpush.xpose.msra.mxu0 0.0
  %1281 = vmatpush.xpose.msra.mxu0 0.0
  %1282 = vmatpush.xpose.msra.mxu0 %v1265
  %1283 = vmatmul.f32.gmra.mxu0 %v1263
  %v1284 = vpop.f32.mrf.mxu0
  %v1285 = vadd.f32 0.0, %v1284
  %1286 = vdwg.mxu0
  %v1287 = vmul.f32 %v1285, 0.35355338
  %v1288 = vadd.f32 %v1287, %v239
  %v1289 = vsel %vm213, %v1288, -inf
  %1290 = vmax.xlane.f32.xlu0 %v1289
  %v1291 = vpop.xlane.xlu0 %1290
  %v1292 = vsub.f32 %v1288, %v1291
  %v1293 = vmul.f32 %v1292, 1.442695
  %v1294 = vpow.pop %v1293
  %v1295 = vsel %vm213, %v1294, 0.0
  %1296 = vadd.xlane.f32.xlu0 %v1295
  %v1297 = vpop.xlane.xlu0 %1296
  %v1298 = vrcp.pop %v1297
  %v1299 = vmul.f32 %v1294, %v1298
  %1300 = vrot.lane.b32.xlu0 %v1054, 40
  %v1301 = vpop.permute.xlu0 %1300
  %v1304 = vsel %vm213, %v1299, 0
  %1306 = vmatpush.msra.mxu0 0.0
  %1307 = vmatpush.msra.mxu0 0.0
  %1308 = vmatpush.msra.mxu0 0.0
  %1309 = vmatpush.msra.mxu0 0.0
  %1310 = vmatpush.msra.mxu0 0.0
  %1311 = vmatpush.msra.mxu0 0.0
  %1312 = vmatpush.msra.mxu0 0.0
  %1313 = vmatpush.msra.mxu0 0.0
  %1314 = vmatpush.msra.mxu0 0.0
  %1315 = vmatpush.msra.mxu0 0.0
  %1316 = vmatpush.msra.mxu0 0.0
  %1317 = vmatpush.msra.mxu0 0.0
  %1318 = vmatpush.msra.mxu0 0.0
  %1319 = vmatpush.msra.mxu0 0.0
  %1320 = vmatpush.msra.mxu0 0.0
  %1321 = vmatpush.msra.mxu0 %v1301
  %1322 = vmatmul.f32.gmra.mxu0 %v1304
  %v1323 = vpop.f32.mrf.mxu0
  %v1324 = vadd.f32 0.0, %v1323
  %1325 = vdwg.mxu0
  %1327 = vrot.lane.b32.xlu0 %v1190, 8
  %v1328 = vpop.permute.xlu0 %1327
  %1331 = vrot.lane.b32.xlu0 %v1257, 16
  %v1332 = vpop.permute.xlu0 %1331
  %1335 = vrot.lane.b32.xlu0 %v1324, 24
  %v1336 = vpop.permute.xlu0 %1335
  %v1338 = vsel %vm213, %v1123, %v1328
  %v1339 = vsel %vm492, %v1338, %v1332
  %v1340 = vsel %vm494, %v1339, %v1336
  %1342 = vrot.lane.b32.xlu0 %v1057, 96
  %v1343 = vpop.permute.xlu0 %1342
  %v1344 = vsel %vm213, %v1057, 0
  %v1346 = vsel %vm213, %v1343, 0
  %1348 = vmatpush.xpose.msra.mxu0 0.0
  %1349 = vmatpush.xpose.msra.mxu0 0.0
  %1350 = vmatpush.xpose.msra.mxu0 0.0
  %1351 = vmatpush.xpose.msra.mxu0 0.0
  %1352 = vmatpush.xpose.msra.mxu0 0.0
  %1353 = vmatpush.xpose.msra.mxu0 0.0
  %1354 = vmatpush.xpose.msra.mxu0 0.0
  %1355 = vmatpush.xpose.msra.mxu0 0.0
  %1356 = vmatpush.xpose.msra.mxu0 0.0
  %1357 = vmatpush.xpose.msra.mxu0 0.0
  %1358 = vmatpush.xpose.msra.mxu0 0.0
  %1359 = vmatpush.xpose.msra.mxu0 0.0
  %1360 = vmatpush.xpose.msra.mxu0 0.0
  %1361 = vmatpush.xpose.msra.mxu0 0.0
  %1362 = vmatpush.xpose.msra.mxu0 0.0
  %1363 = vmatpush.xpose.msra.mxu0 %v1346
  %1364 = vmatmul.f32.gmra.mxu0 %v1344
  %v1365 = vpop.f32.mrf.mxu0
  %v1366 = vadd.f32 0.0, %v1365
  %1367 = vdwg.mxu0
  %v1368 = vmul.f32 %v1366, 0.35355338
  %v1369 = vadd.f32 %v1368, %v524
  %v1370 = vsel %vm213, %v1369, -inf
  %1371 = vmax.xlane.f32.xlu0 %v1370
  %v1372 = vpop.xlane.xlu0 %1371
  %v1373 = vsub.f32 %v1369, %v1372
  %v1374 = vmul.f32 %v1373, 1.442695
  %v1375 = vpow.pop %v1374
  %v1376 = vsel %vm213, %v1375, 0.0
  %1377 = vadd.xlane.f32.xlu0 %v1376
  %v1378 = vpop.xlane.xlu0 %1377
  %v1379 = vrcp.pop %v1378
  %v1380 = vmul.f32 %v1375, %v1379
  %1381 = vrot.lane.b32.xlu0 %v1057, 64
  %v1382 = vpop.permute.xlu0 %1381
  %v1385 = vsel %vm213, %v1380, 0
  %1387 = vmatpush.msra.mxu0 0.0
  %1388 = vmatpush.msra.mxu0 0.0
  %1389 = vmatpush.msra.mxu0 0.0
  %1390 = vmatpush.msra.mxu0 0.0
  %1391 = vmatpush.msra.mxu0 0.0
  %1392 = vmatpush.msra.mxu0 0.0
  %1393 = vmatpush.msra.mxu0 0.0
  %1394 = vmatpush.msra.mxu0 0.0
  %1395 = vmatpush.msra.mxu0 0.0
  %1396 = vmatpush.msra.mxu0 0.0
  %1397 = vmatpush.msra.mxu0 0.0
  %1398 = vmatpush.msra.mxu0 0.0
  %1399 = vmatpush.msra.mxu0 0.0
  %1400 = vmatpush.msra.mxu0 0.0
  %1401 = vmatpush.msra.mxu0 0.0
  %1402 = vmatpush.msra.mxu0 %v1382
  %1403 = vmatmul.f32.gmra.mxu0 %v1385
  %v1404 = vpop.f32.mrf.mxu0
  %v1405 = vadd.f32 0.0, %v1404
  %1406 = vdwg.mxu0
  %1407 = vrot.lane.b32.xlu0 %v1057, 120
  %v1408 = vpop.permute.xlu0 %1407
  %1409 = vrot.lane.b32.xlu0 %v1057, 88
  %v1410 = vpop.permute.xlu0 %1409
  %v1411 = vsel %vm213, %v1408, 0
  %v1413 = vsel %vm213, %v1410, 0
  %1415 = vmatpush.xpose.msra.mxu0 0.0
  %1416 = vmatpush.xpose.msra.mxu0 0.0
  %1417 = vmatpush.xpose.msra.mxu0 0.0
  %1418 = vmatpush.xpose.msra.mxu0 0.0
  %1419 = vmatpush.xpose.msra.mxu0 0.0
  %1420 = vmatpush.xpose.msra.mxu0 0.0
  %1421 = vmatpush.xpose.msra.mxu0 0.0
  %1422 = vmatpush.xpose.msra.mxu0 0.0
  %1423 = vmatpush.xpose.msra.mxu0 0.0
  %1424 = vmatpush.xpose.msra.mxu0 0.0
  %1425 = vmatpush.xpose.msra.mxu0 0.0
  %1426 = vmatpush.xpose.msra.mxu0 0.0
  %1427 = vmatpush.xpose.msra.mxu0 0.0
  %1428 = vmatpush.xpose.msra.mxu0 0.0
  %1429 = vmatpush.xpose.msra.mxu0 0.0
  %1430 = vmatpush.xpose.msra.mxu0 %v1413
  %1431 = vmatmul.f32.gmra.mxu0 %v1411
  %v1432 = vpop.f32.mrf.mxu0
  %v1433 = vadd.f32 0.0, %v1432
  %1434 = vdwg.mxu0
  %v1435 = vmul.f32 %v1433, 0.35355338
  %v1436 = vadd.f32 %v1435, %v524
  %v1437 = vsel %vm213, %v1436, -inf
  %1438 = vmax.xlane.f32.xlu0 %v1437
  %v1439 = vpop.xlane.xlu0 %1438
  %v1440 = vsub.f32 %v1436, %v1439
  %v1441 = vmul.f32 %v1440, 1.442695
  %v1442 = vpow.pop %v1441
  %v1443 = vsel %vm213, %v1442, 0.0
  %1444 = vadd.xlane.f32.xlu0 %v1443
  %v1445 = vpop.xlane.xlu0 %1444
  %v1446 = vrcp.pop %v1445
  %v1447 = vmul.f32 %v1442, %v1446
  %1448 = vrot.lane.b32.xlu0 %v1057, 56
  %v1449 = vpop.permute.xlu0 %1448
  %v1452 = vsel %vm213, %v1447, 0
  %1454 = vmatpush.msra.mxu0 0.0
  %1455 = vmatpush.msra.mxu0 0.0
  %1456 = vmatpush.msra.mxu0 0.0
  %1457 = vmatpush.msra.mxu0 0.0
  %1458 = vmatpush.msra.mxu0 0.0
  %1459 = vmatpush.msra.mxu0 0.0
  %1460 = vmatpush.msra.mxu0 0.0
  %1461 = vmatpush.msra.mxu0 0.0
  %1462 = vmatpush.msra.mxu0 0.0
  %1463 = vmatpush.msra.mxu0 0.0
  %1464 = vmatpush.msra.mxu0 0.0
  %1465 = vmatpush.msra.mxu0 0.0
  %1466 = vmatpush.msra.mxu0 0.0
  %1467 = vmatpush.msra.mxu0 0.0
  %1468 = vmatpush.msra.mxu0 0.0
  %1469 = vmatpush.msra.mxu0 %v1449
  %1470 = vmatmul.f32.gmra.mxu0 %v1452
  %v1471 = vpop.f32.mrf.mxu0
  %v1472 = vadd.f32 0.0, %v1471
  %1473 = vdwg.mxu0
  %1474 = vrot.lane.b32.xlu0 %v1057, 112
  %v1475 = vpop.permute.xlu0 %1474
  %1476 = vrot.lane.b32.xlu0 %v1057, 80
  %v1477 = vpop.permute.xlu0 %1476
  %v1478 = vsel %vm213, %v1475, 0
  %v1480 = vsel %vm213, %v1477, 0
  %1482 = vmatpush.xpose.msra.mxu0 0.0
  %1483 = vmatpush.xpose.msra.mxu0 0.0
  %1484 = vmatpush.xpose.msra.mxu0 0.0
  %1485 = vmatpush.xpose.msra.mxu0 0.0
  %1486 = vmatpush.xpose.msra.mxu0 0.0
  %1487 = vmatpush.xpose.msra.mxu0 0.0
  %1488 = vmatpush.xpose.msra.mxu0 0.0
  %1489 = vmatpush.xpose.msra.mxu0 0.0
  %1490 = vmatpush.xpose.msra.mxu0 0.0
  %1491 = vmatpush.xpose.msra.mxu0 0.0
  %1492 = vmatpush.xpose.msra.mxu0 0.0
  %1493 = vmatpush.xpose.msra.mxu0 0.0
  %1494 = vmatpush.xpose.msra.mxu0 0.0
  %1495 = vmatpush.xpose.msra.mxu0 0.0
  %1496 = vmatpush.xpose.msra.mxu0 0.0
  %1497 = vmatpush.xpose.msra.mxu0 %v1480
  %1498 = vmatmul.f32.gmra.mxu0 %v1478
  %v1499 = vpop.f32.mrf.mxu0
  %v1500 = vadd.f32 0.0, %v1499
  %1501 = vdwg.mxu0
  %v1502 = vmul.f32 %v1500, 0.35355338
  %v1503 = vadd.f32 %v1502, %v524
  %v1504 = vsel %vm213, %v1503, -inf
  %1505 = vmax.xlane.f32.xlu0 %v1504
  %v1506 = vpop.xlane.xlu0 %1505
  %v1507 = vsub.f32 %v1503, %v1506
  %v1508 = vmul.f32 %v1507, 1.442695
  %v1509 = vpow.pop %v1508
  %v1510 = vsel %vm213, %v1509, 0.0
  %1511 = vadd.xlane.f32.xlu0 %v1510
  %v1512 = vpop.xlane.xlu0 %1511
  %v1513 = vrcp.pop %v1512
  %v1514 = vmul.f32 %v1509, %v1513
  %1515 = vrot.lane.b32.xlu0 %v1057, 48
  %v1516 = vpop.permute.xlu0 %1515
  %v1519 = vsel %vm213, %v1514, 0
  %1521 = vmatpush.msra.mxu0 0.0
  %1522 = vmatpush.msra.mxu0 0.0
  %1523 = vmatpush.msra.mxu0 0.0
  %1524 = vmatpush.msra.mxu0 0.0
  %1525 = vmatpush.msra.mxu0 0.0
  %1526 = vmatpush.msra.mxu0 0.0
  %1527 = vmatpush.msra.mxu0 0.0
  %1528 = vmatpush.msra.mxu0 0.0
  %1529 = vmatpush.msra.mxu0 0.0
  %1530 = vmatpush.msra.mxu0 0.0
  %1531 = vmatpush.msra.mxu0 0.0
  %1532 = vmatpush.msra.mxu0 0.0
  %1533 = vmatpush.msra.mxu0 0.0
  %1534 = vmatpush.msra.mxu0 0.0
  %1535 = vmatpush.msra.mxu0 0.0
  %1536 = vmatpush.msra.mxu0 %v1516
  %1537 = vmatmul.f32.gmra.mxu0 %v1519
  %v1538 = vpop.f32.mrf.mxu0
  %v1539 = vadd.f32 0.0, %v1538
  %1540 = vdwg.mxu0
  %1541 = vrot.lane.b32.xlu0 %v1057, 104
  %v1542 = vpop.permute.xlu0 %1541
  %1543 = vrot.lane.b32.xlu0 %v1057, 72
  %v1544 = vpop.permute.xlu0 %1543
  %v1545 = vsel %vm213, %v1542, 0
  %v1547 = vsel %vm213, %v1544, 0
  %1549 = vmatpush.xpose.msra.mxu0 0.0
  %1550 = vmatpush.xpose.msra.mxu0 0.0
  %1551 = vmatpush.xpose.msra.mxu0 0.0
  %1552 = vmatpush.xpose.msra.mxu0 0.0
  %1553 = vmatpush.xpose.msra.mxu0 0.0
  %1554 = vmatpush.xpose.msra.mxu0 0.0
  %1555 = vmatpush.xpose.msra.mxu0 0.0
  %1556 = vmatpush.xpose.msra.mxu0 0.0
  %1557 = vmatpush.xpose.msra.mxu0 0.0
  %1558 = vmatpush.xpose.msra.mxu0 0.0
  %1559 = vmatpush.xpose.msra.mxu0 0.0
  %1560 = vmatpush.xpose.msra.mxu0 0.0
  %1561 = vmatpush.xpose.msra.mxu0 0.0
  %1562 = vmatpush.xpose.msra.mxu0 0.0
  %1563 = vmatpush.xpose.msra.mxu0 0.0
  %1564 = vmatpush.xpose.msra.mxu0 %v1547
  %1565 = vmatmul.f32.gmra.mxu0 %v1545
  %v1566 = vpop.f32.mrf.mxu0
  %v1567 = vadd.f32 0.0, %v1566
  %1568 = vdwg.mxu0
  %v1569 = vmul.f32 %v1567, 0.35355338
  %v1570 = vadd.f32 %v1569, %v524
  %v1571 = vsel %vm213, %v1570, -inf
  %1572 = vmax.xlane.f32.xlu0 %v1571
  %v1573 = vpop.xlane.xlu0 %1572
  %v1574 = vsub.f32 %v1570, %v1573
  %v1575 = vmul.f32 %v1574, 1.442695
  %v1576 = vpow.pop %v1575
  %v1577 = vsel %vm213, %v1576, 0.0
  %1578 = vadd.xlane.f32.xlu0 %v1577
  %v1579 = vpop.xlane.xlu0 %1578
  %v1580 = vrcp.pop %v1579
  %v1581 = vmul.f32 %v1576, %v1580
  %1582 = vrot.lane.b32.xlu0 %v1057, 40
  %v1583 = vpop.permute.xlu0 %1582
  %v1586 = vsel %vm213, %v1581, 0
  %1588 = vmatpush.msra.mxu0 0.0
  %1589 = vmatpush.msra.mxu0 0.0
  %1590 = vmatpush.msra.mxu0 0.0
  %1591 = vmatpush.msra.mxu0 0.0
  %1592 = vmatpush.msra.mxu0 0.0
  %1593 = vmatpush.msra.mxu0 0.0
  %1594 = vmatpush.msra.mxu0 0.0
  %1595 = vmatpush.msra.mxu0 0.0
  %1596 = vmatpush.msra.mxu0 0.0
  %1597 = vmatpush.msra.mxu0 0.0
  %1598 = vmatpush.msra.mxu0 0.0
  %1599 = vmatpush.msra.mxu0 0.0
  %1600 = vmatpush.msra.mxu0 0.0
  %1601 = vmatpush.msra.mxu0 0.0
  %1602 = vmatpush.msra.mxu0 0.0
  %1603 = vmatpush.msra.mxu0 %v1583
  %1604 = vmatmul.f32.gmra.mxu0 %v1586
  %v1605 = vpop.f32.mrf.mxu0
  %v1606 = vadd.f32 0.0, %v1605
  %1607 = vdwg.mxu0
  %1609 = vrot.lane.b32.xlu0 %v1472, 8
  %v1610 = vpop.permute.xlu0 %1609
  %1613 = vrot.lane.b32.xlu0 %v1539, 16
  %v1614 = vpop.permute.xlu0 %1613
  %1617 = vrot.lane.b32.xlu0 %v1606, 24
  %v1618 = vpop.permute.xlu0 %1617
  %v1620 = vsel %vm213, %v1405, %v1610
  %v1621 = vsel %vm492, %v1620, %v1614
  %v1622 = vsel %vm494, %v1621, %v1618
  %s1623 = scalar_lea.vmem %s13, 32
  %v1624 = vld [vmem:[%s1623] sm:$0xff]
  %v1625 = vld [vmem:[%s1623 + $0x8] sm:$0xff]
  %v1626 = vld [vmem:[%s1623 + $0x10] sm:$0xff]
  %v1627 = vld [vmem:[%s1623 + $0x18] sm:$0xff]
  %s1628 = scalar_lea.vmem %s15, 1
  %v1629 = vld [vmem:[%s1628] sm:$0x1]
  %v1631 = vperm.slane %v1629, 0
  %v1634 = vsel %vm180, %v1340, 0
  %v1637 = vsel %vm180, %v1622, 0
  %1639 = vmatpush.msra.mxu0 0.0
  %1640 = vmatpush.msra.mxu0 0.0
  %1641 = vmatpush.msra.mxu0 0.0
  %1642 = vmatpush.msra.mxu0 0.0
  %1643 = vmatpush.msra.mxu0 0.0
  %1644 = vmatpush.msra.mxu0 0.0
  %1645 = vmatpush.msra.mxu0 0.0
  %1646 = vmatpush.msra.mxu0 0.0
  %1647 = vmatpush.msra.mxu0 0.0
  %1648 = vmatpush.msra.mxu0 0.0
  %1649 = vmatpush.msra.mxu0 0.0
  %1650 = vmatpush.msra.mxu0 0.0
  %1651 = vmatpush.msra.mxu0 %v1627
  %1652 = vmatpush.msra.mxu0 %v1626
  %1653 = vmatpush.msra.mxu0 %v1625
  %1654 = vmatpush.msra.mxu0 %v1624
  %1655 = vmatmul.f32.gmra.mxu0 %v1634
  %v1656 = vpop.f32.mrf.mxu0
  %v1657 = vadd.f32 %v1631, %v1656
  %1658 = vmatmul.f32.gmra.mxu0 %v1637
  %v1659 = vpop.f32.mrf.mxu0
  %v1660 = vadd.f32 %v1631, %v1659
  %1661 = vdwg.mxu0
  %s1662 = scalar_lea.vmem %s17, 1
  %v1663 = vld [vmem:[%s1662] sm:$0x1]
  %s1664 = scalar_lea.vmem %s19, 1
  %v1665 = vld [vmem:[%s1664] sm:$0x1]
  %v1666 = vadd.f32 %v1018, %v1657
  %v1667 = vadd.f32 %v1019, %v1660
  %v1668 = vsel %vm180, %v1666, 0.0
  %1669 = vadd.xlane.f32.xlu0 %v1668
  %v1670 = vpop.xlane.xlu0 %1669
  %v1671 = vsel %vm180, %v1667, 0.0
  %1672 = vadd.xlane.f32.xlu0 %v1671
  %v1673 = vpop.xlane.xlu0 %1672
  %v1674 = vmul.f32 %v1670, %v832
  %v1675 = vmul.f32 %v1673, %v832
  %v1676 = vsub.f32 %v1666, %v1674
  %v1677 = vsub.f32 %v1667, %v1675
  %v1678 = vmul.f32 %v1676, %v1676
  %v1679 = vmul.f32 %v1677, %v1677
  %v1680 = vsel %vm180, %v1678, 0.0
  %1681 = vadd.xlane.f32.xlu0 %v1680
  %v1682 = vpop.xlane.xlu0 %1681
  %v1683 = vsel %vm180, %v1679, 0.0
  %1684 = vadd.xlane.f32.xlu0 %v1683
  %v1685 = vpop.xlane.xlu0 %1684
  %v1686 = vmul.f32 %v1682, %v832
  %v1687 = vmul.f32 %v1685, %v832
  %v1688 = vadd.f32 %v1686, 1e-05
  %v1689 = vadd.f32 %v1687, 1e-05
  %v1690 = vrsqrt.pop %v1688
  %v1691 = vmul.f32 %v1690, %v1688
  %v1692 = vmul.f32 %v1691, %v1690
  %v1693 = vmul.f32 0.5, %v1692
  %v1694 = vsub.f32 1.5, %v1693
  %v1695 = vmul.f32 %v1690, %v1694
  %vm1696 = vweird.f32 %v1688
  %vm1697 = vweird.f32 %v1690
  %vm1698 = vmor %vm1696, %vm1697
  %v1699 = vsel %vm1698, %v1690, %v1695
  %v1700 = vrsqrt.pop %v1689
  %v1701 = vmul.f32 %v1700, %v1689
  %v1702 = vmul.f32 %v1701, %v1700
  %v1703 = vmul.f32 0.5, %v1702
  %v1704 = vsub.f32 1.5, %v1703
  %v1705 = vmul.f32 %v1700, %v1704
  %vm1706 = vweird.f32 %v1689
  %vm1707 = vweird.f32 %v1700
  %vm1708 = vmor %vm1706, %vm1707
  %v1709 = vsel %vm1708, %v1700, %v1705
  %v1710 = vmul.f32 %v1676, %v1699
  %v1711 = vmul.f32 %v1677, %v1709
  %v1713 = vperm.slane %v1663, 0
  %v1715 = vmul.f32 %v1710, %v1713
  %v1716 = vmul.f32 %v1711, %v1713
  %v1718 = vperm.slane %v1665, 0
  %v1720 = vadd.f32 %v1715, %v1718
  %v1721 = vadd.f32 %v1716, %v1718
  %s1722 = scalar_lea.vmem %s21, 32
  %v1723 = vld [vmem:[%s1722] sm:$0xff]
  %v1724 = vld [vmem:[%s1722 + $0x8] sm:$0xff]
  %v1725 = vld [vmem:[%s1722 + $0x10] sm:$0xff]
  %v1726 = vld [vmem:[%s1722 + $0x18] sm:$0xff]
  %s1727 = scalar_lea.vmem %s23, 1
  %v1728 = vld [vmem:[%s1727] sm:$0x1]
  %v1730 = vperm.slane %v1728, 0
  %v1733 = vsel %vm180, %v1720, 0
  %v1736 = vsel %vm180, %v1721, 0
  %1738 = vmatpush.msra.mxu0 0.0
  %1739 = vmatpush.msra.mxu0 0.0
  %1740 = vmatpush.msra.mxu0 0.0
  %1741 = vmatpush.msra.mxu0 0.0
  %1742 = vmatpush.msra.mxu0 0.0
  %1743 = vmatpush.msra.mxu0 0.0
  %1744 = vmatpush.msra.mxu0 0.0
  %1745 = vmatpush.msra.mxu0 0.0
  %1746 = vmatpush.msra.mxu0 0.0
  %1747 = vmatpush.msra.mxu0 0.0
  %1748 = vmatpush.msra.mxu0 0.0
  %1749 = vmatpush.msra.mxu0 0.0
  %1750 = vmatpush.msra.mxu0 %v1726
  %1751 = vmatpush.msra.mxu0 %v1725
  %1752 = vmatpush.msra.mxu0 %v1724
  %1753 = vmatpush.msra.mxu0 %v1723
  %1754 = vmatmul.f32.gmra.mxu0 %v1733
  %v1755 = vpop.f32.mrf.mxu0
  %v1756 = vadd.f32 %v1730, %v1755
  %1757 = vmatmul.f32.gmra.mxu0 %v1736
  %v1758 = vpop.f32.mrf.mxu0
  %v1759 = vadd.f32 %v1730, %v1758
  %1760 = vdwg.mxu0
  %v1761 = vmax.f32 %v1756, 0.0
  %v1762 = vmax.f32 %v1759, 0.0
  %s1763 = scalar_lea.vmem %s25, 64
  %v1764 = vld [vmem:[%s1763] sm:$0xff]
  %v1765 = vld [vmem:[%s1763 + $0x8] sm:$0xff]
  %v1766 = vld [vmem:[%s1763 + $0x10] sm:$0xff]
  %v1767 = vld [vmem:[%s1763 + $0x18] sm:$0xff]
  %v1768 = vld [vmem:[%s1763 + $0x20] sm:$0xff]
  %v1769 = vld [vmem:[%s1763 + $0x28] sm:$0xff]
  %v1770 = vld [vmem:[%s1763 + $0x30] sm:$0xff]
  %v1771 = vld [vmem:[%s1763 + $0x38] sm:$0xff]
  %s1772 = scalar_lea.vmem %s27, 1
  %v1773 = vld [vmem:[%s1772] sm:$0x1]
  %v1775 = vperm.slane %v1773, 0
  %v1778 = vsel %vm932, %v1761, 0
  %v1781 = vsel %vm932, %v1762, 0
  %1783 = vmatpush.msra.mxu0 0.0
  %1784 = vmatpush.msra.mxu0 0.0
  %1785 = vmatpush.msra.mxu0 0.0
  %1786 = vmatpush.msra.mxu0 0.0
  %1787 = vmatpush.msra.mxu0 0.0
  %1788 = vmatpush.msra.mxu0 0.0
  %1789 = vmatpush.msra.mxu0 0.0
  %1790 = vmatpush.msra.mxu0 0.0
  %1791 = vmatpush.msra.mxu0 %v1771
  %1792 = vmatpush.msra.mxu0 %v1770
  %1793 = vmatpush.msra.mxu0 %v1769
  %1794 = vmatpush.msra.mxu0 %v1768
  %1795 = vmatpush.msra.mxu0 %v1767
  %1796 = vmatpush.msra.mxu0 %v1766
  %1797 = vmatpush.msra.mxu0 %v1765
  %1798 = vmatpush.msra.mxu0 %v1764
  %1799 = vmatmul.f32.gmra.mxu0 %v1778
  %v1800 = vpop.f32.mrf.mxu0
  %v1801 = vadd.f32 %v1775, %v1800
  %1802 = vmatmul.f32.gmra.mxu0 %v1781
  %v1803 = vpop.f32.mrf.mxu0
  %v1804 = vadd.f32 %v1775, %v1803
  %1805 = vdwg.mxu0
  %s1806 = scalar_lea.vmem %s29, 1
  %v1807 = vld [vmem:[%s1806] sm:$0x1]
  %s1808 = scalar_lea.vmem %s31, 1
  %v1809 = vld [vmem:[%s1808] sm:$0x1]
  %v1810 = vadd.f32 %v1720, %v1801
  %v1811 = vadd.f32 %v1721, %v1804
  %v1812 = vsel %vm180, %v1810, 0.0
  %1813 = vadd.xlane.f32.xlu0 %v1812
  %v1814 = vpop.xlane.xlu0 %1813
  %v1815 = vsel %vm180, %v1811, 0.0
  %1816 = vadd.xlane.f32.xlu0 %v1815
  %v1817 = vpop.xlane.xlu0 %1816
  %v1818 = vmul.f32 %v1814, %v832
  %v1819 = vmul.f32 %v1817, %v832
  %v1820 = vsub.f32 %v1810, %v1818
  %v1821 = vsub.f32 %v1811, %v1819
  %v1822 = vmul.f32 %v1820, %v1820
  %v1823 = vmul.f32 %v1821, %v1821
  %v1824 = vsel %vm180, %v1822, 0.0
  %1825 = vadd.xlane.f32.xlu0 %v1824
  %v1826 = vpop.xlane.xlu0 %1825
  %v1827 = vsel %vm180, %v1823, 0.0
  %1828 = vadd.xlane.f32.xlu0 %v1827
  %v1829 = vpop.xlane.xlu0 %1828
  %v1830 = vmul.f32 %v1826, %v832
  %v1831 = vmul.f32 %v1829, %v832
  %v1832 = vadd.f32 %v1830, 1e-05
  %v1833 = vadd.f32 %v1831, 1e-05
  %v1834 = vrsqrt.pop %v1832
  %v1835 = vmul.f32 %v1834, %v1832
  %v1836 = vmul.f32 %v1835, %v1834
  %v1837 = vmul.f32 0.5, %v1836
  %v1838 = vsub.f32 1.5, %v1837
  %v1839 = vmul.f32 %v1834, %v1838
  %vm1840 = vweird.f32 %v1832
  %vm1841 = vweird.f32 %v1834
  %vm1842 = vmor %vm1840, %vm1841
  %v1843 = vsel %vm1842, %v1834, %v1839
  %v1844 = vrsqrt.pop %v1833
  %v1845 = vmul.f32 %v1844, %v1833
  %v1846 = vmul.f32 %v1845, %v1844
  %v1847 = vmul.f32 0.5, %v1846
  %v1848 = vsub.f32 1.5, %v1847
  %v1849 = vmul.f32 %v1844, %v1848
  %vm1850 = vweird.f32 %v1833
  %vm1851 = vweird.f32 %v1844
  %vm1852 = vmor %vm1850, %vm1851
  %v1853 = vsel %vm1852, %v1844, %v1849
  %v1854 = vmul.f32 %v1820, %v1843
  %v1855 = vmul.f32 %v1821, %v1853
  %v1857 = vperm.slane %v1807, 0
  %v1859 = vmul.f32 %v1854, %v1857
  %v1860 = vmul.f32 %v1855, %v1857
  %v1862 = vperm.slane %v1809, 0
  %v1864 = vadd.f32 %v1859, %v1862
  %v1865 = vadd.f32 %v1860, %v1862
  %v1866 = vld [vmem:[%s3] sm:$0xff]
  %v1867 = vld [vmem:[%s3 + $0x8] sm:$0xff]
  %v1868 = vld [vmem:[%s33] sm:$0xff]
  %v1869 = vld [vmem:[%s33 + $0x8] sm:$0xff]
  %v1870 = vld [vmem:[%s33 + $0x10] sm:$0xff]
  %v1871 = vld [vmem:[%s33 + $0x18] sm:$0xff]
  %v1872 = vld [vmem:[%s35] sm:$0x1]
  %v1874 = vperm.slane %v1872, 0
  %v1877 = vsel %vm180, %v1866, 0
  %v1880 = vsel %vm180, %v1867, 0
  %1882 = vmatpush.msra.mxu0 0.0
  %1883 = vmatpush.msra.mxu0 0.0
  %1884 = vmatpush.msra.mxu0 0.0
  %1885 = vmatpush.msra.mxu0 0.0
  %1886 = vmatpush.msra.mxu0 0.0
  %1887 = vmatpush.msra.mxu0 0.0
  %1888 = vmatpush.msra.mxu0 0.0
  %1889 = vmatpush.msra.mxu0 0.0
  %1890 = vmatpush.msra.mxu0 0.0
  %1891 = vmatpush.msra.mxu0 0.0
  %1892 = vmatpush.msra.mxu0 0.0
  %1893 = vmatpush.msra.mxu0 0.0
  %1894 = vmatpush.msra.mxu0 %v1871
  %1895 = vmatpush.msra.mxu0 %v1870
  %1896 = vmatpush.msra.mxu0 %v1869
  %1897 = vmatpush.msra.mxu0 %v1868
  %1898 = vmatmul.f32.gmra.mxu0 %v1877
  %v1899 = vpop.f32.mrf.mxu0
  %v1900 = vadd.f32 %v1874, %v1899
  %1901 = vmatmul.f32.gmra.mxu0 %v1880
  %v1902 = vpop.f32.mrf.mxu0
  %v1903 = vadd.f32 %v1874, %v1902
  %1904 = vdwg.mxu0
  %1906 = vrot.lane.b32.xlu0 %v1900, 96
  %v1907 = vpop.permute.xlu0 %1906
  %v1908 = vsel %vm213, %v1900, 0
  %v1910 = vsel %vm213, %v1907, 0
  %1912 = vmatpush.xpose.msra.mxu0 0.0
  %1913 = vmatpush.xpose.msra.mxu0 0.0
  %1914 = vmatpush.xpose.msra.mxu0 0.0
  %1915 = vmatpush.xpose.msra.mxu0 0.0
  %1916 = vmatpush.xpose.msra.mxu0 0.0
  %1917 = vmatpush.xpose.msra.mxu0 0.0
  %1918 = vmatpush.xpose.msra.mxu0 0.0
  %1919 = vmatpush.xpose.msra.mxu0 0.0
  %1920 = vmatpush.xpose.msra.mxu0 0.0
  %1921 = vmatpush.xpose.msra.mxu0 0.0
  %1922 = vmatpush.xpose.msra.mxu0 0.0
  %1923 = vmatpush.xpose.msra.mxu0 0.0
  %1924 = vmatpush.xpose.msra.mxu0 0.0
  %1925 = vmatpush.xpose.msra.mxu0 0.0
  %1926 = vmatpush.xpose.msra.mxu0 0.0
  %1927 = vmatpush.xpose.msra.mxu0 %v1910
  %1928 = vmatmul.f32.gmra.mxu0 %v1908
  %v1929 = vpop.f32.mrf.mxu0
  %v1930 = vadd.f32 0.0, %v1929
  %1931 = vdwg.mxu0
  %v1932 = vmul.f32 %v1930, 0.35355338
  %v1933 = vperm.slane %v163, 0
  %v1934 = vadd.f32 %v1932, %v1933
  %v1935 = vadd.f32 %v1934, %v169
  %v1936 = vsel %vm213, %v1935, -inf
  %1937 = vmax.xlane.f32.xlu0 %v1936
  %v1938 = vpop.xlane.xlu0 %1937
  %v1939 = vsub.f32 %v1935, %v1938
  %v1940 = vmul.f32 %v1939, 1.442695
  %v1941 = vpow.pop %v1940
  %v1942 = vsel %vm213, %v1941, 0.0
  %1943 = vadd.xlane.f32.xlu0 %v1942
  %v1944 = vpop.xlane.xlu0 %1943
  %v1945 = vrcp.pop %v1944
  %v1946 = vmul.f32 %v1941, %v1945
  %1947 = vrot.lane.b32.xlu0 %v1900, 64
  %v1948 = vpop.permute.xlu0 %1947
  %v1951 = vsel %vm213, %v1946, 0
  %1953 = vmatpush.msra.mxu0 0.0
  %1954 = vmatpush.msra.mxu0 0.0
  %1955 = vmatpush.msra.mxu0 0.0
  %1956 = vmatpush.msra.mxu0 0.0
  %1957 = vmatpush.msra.mxu0 0.0
  %1958 = vmatpush.msra.mxu0 0.0
  %1959 = vmatpush.msra.mxu0 0.0
  %1960 = vmatpush.msra.mxu0 0.0
  %1961 = vmatpush.msra.mxu0 0.0
  %1962 = vmatpush.msra.mxu0 0.0
  %1963 = vmatpush.msra.mxu0 0.0
  %1964 = vmatpush.msra.mxu0 0.0
  %1965 = vmatpush.msra.mxu0 0.0
  %1966 = vmatpush.msra.mxu0 0.0
  %1967 = vmatpush.msra.mxu0 0.0
  %1968 = vmatpush.msra.mxu0 %v1948
  %1969 = vmatmul.f32.gmra.mxu0 %v1951
  %v1970 = vpop.f32.mrf.mxu0
  %v1971 = vadd.f32 0.0, %v1970
  %1972 = vdwg.mxu0
  %1973 = vrot.lane.b32.xlu0 %v1900, 120
  %v1974 = vpop.permute.xlu0 %1973
  %1975 = vrot.lane.b32.xlu0 %v1900, 88
  %v1976 = vpop.permute.xlu0 %1975
  %v1977 = vsel %vm213, %v1974, 0
  %v1979 = vsel %vm213, %v1976, 0
  %1981 = vmatpush.xpose.msra.mxu0 0.0
  %1982 = vmatpush.xpose.msra.mxu0 0.0
  %1983 = vmatpush.xpose.msra.mxu0 0.0
  %1984 = vmatpush.xpose.msra.mxu0 0.0
  %1985 = vmatpush.xpose.msra.mxu0 0.0
  %1986 = vmatpush.xpose.msra.mxu0 0.0
  %1987 = vmatpush.xpose.msra.mxu0 0.0
  %1988 = vmatpush.xpose.msra.mxu0 0.0
  %1989 = vmatpush.xpose.msra.mxu0 0.0
  %1990 = vmatpush.xpose.msra.mxu0 0.0
  %1991 = vmatpush.xpose.msra.mxu0 0.0
  %1992 = vmatpush.xpose.msra.mxu0 0.0
  %1993 = vmatpush.xpose.msra.mxu0 0.0
  %1994 = vmatpush.xpose.msra.mxu0 0.0
  %1995 = vmatpush.xpose.msra.mxu0 0.0
  %1996 = vmatpush.xpose.msra.mxu0 %v1979
  %1997 = vmatmul.f32.gmra.mxu0 %v1977
  %v1998 = vpop.f32.mrf.mxu0
  %v1999 = vadd.f32 0.0, %v1998
  %2000 = vdwg.mxu0
  %v2001 = vmul.f32 %v1999, 0.35355338
  %v2002 = vadd.f32 %v2001, %v1933
  %v2003 = vadd.f32 %v2002, %v169
  %v2004 = vsel %vm213, %v2003, -inf
  %2005 = vmax.xlane.f32.xlu0 %v2004
  %v2006 = vpop.xlane.xlu0 %2005
  %v2007 = vsub.f32 %v2003, %v2006
  %v2008 = vmul.f32 %v2007, 1.442695
  %v2009 = vpow.pop %v2008
  %v2010 = vsel %vm213, %v2009, 0.0
  %2011 = vadd.xlane.f32.xlu0 %v2010
  %v2012 = vpop.xlane.xlu0 %2011
  %v2013 = vrcp.pop %v2012
  %v2014 = vmul.f32 %v2009, %v2013
  %2015 = vrot.lane.b32.xlu0 %v1900, 56
  %v2016 = vpop.permute.xlu0 %2015
  %v2019 = vsel %vm213, %v2014, 0
  %2021 = vmatpush.msra.mxu0 0.0
  %2022 = vmatpush.msra.mxu0 0.0
  %2023 = vmatpush.msra.mxu0 0.0
  %2024 = vmatpush.msra.mxu0 0.0
  %2025 = vmatpush.msra.mxu0 0.0
  %2026 = vmatpush.msra.mxu0 0.0
  %2027 = vmatpush.msra.mxu0 0.0
  %2028 = vmatpush.msra.mxu0 0.0
  %2029 = vmatpush.msra.mxu0 0.0
  %2030 = vmatpush.msra.mxu0 0.0
  %2031 = vmatpush.msra.mxu0 0.0
  %2032 = vmatpush.msra.mxu0 0.0
  %2033 = vmatpush.msra.mxu0 0.0
  %2034 = vmatpush.msra.mxu0 0.0
  %2035 = vmatpush.msra.mxu0 0.0
  %2036 = vmatpush.msra.mxu0 %v2016
  %2037 = vmatmul.f32.gmra.mxu0 %v2019
  %v2038 = vpop.f32.mrf.mxu0
  %v2039 = vadd.f32 0.0, %v2038
  %2040 = vdwg.mxu0
  %2041 = vrot.lane.b32.xlu0 %v1900, 112
  %v2042 = vpop.permute.xlu0 %2041
  %2043 = vrot.lane.b32.xlu0 %v1900, 80
  %v2044 = vpop.permute.xlu0 %2043
  %v2045 = vsel %vm213, %v2042, 0
  %v2047 = vsel %vm213, %v2044, 0
  %2049 = vmatpush.xpose.msra.mxu0 0.0
  %2050 = vmatpush.xpose.msra.mxu0 0.0
  %2051 = vmatpush.xpose.msra.mxu0 0.0
  %2052 = vmatpush.xpose.msra.mxu0 0.0
  %2053 = vmatpush.xpose.msra.mxu0 0.0
  %2054 = vmatpush.xpose.msra.mxu0 0.0
  %2055 = vmatpush.xpose.msra.mxu0 0.0
  %2056 = vmatpush.xpose.msra.mxu0 0.0
  %2057 = vmatpush.xpose.msra.mxu0 0.0
  %2058 = vmatpush.xpose.msra.mxu0 0.0
  %2059 = vmatpush.xpose.msra.mxu0 0.0
  %2060 = vmatpush.xpose.msra.mxu0 0.0
  %2061 = vmatpush.xpose.msra.mxu0 0.0
  %2062 = vmatpush.xpose.msra.mxu0 0.0
  %2063 = vmatpush.xpose.msra.mxu0 0.0
  %2064 = vmatpush.xpose.msra.mxu0 %v2047
  %2065 = vmatmul.f32.gmra.mxu0 %v2045
  %v2066 = vpop.f32.mrf.mxu0
  %v2067 = vadd.f32 0.0, %v2066
  %2068 = vdwg.mxu0
  %v2069 = vmul.f32 %v2067, 0.35355338
  %v2070 = vadd.f32 %v2069, %v1933
  %v2071 = vadd.f32 %v2070, %v169
  %v2072 = vsel %vm213, %v2071, -inf
  %2073 = vmax.xlane.f32.xlu0 %v2072
  %v2074 = vpop.xlane.xlu0 %2073
  %v2075 = vsub.f32 %v2071, %v2074
  %v2076 = vmul.f32 %v2075, 1.442695
  %v2077 = vpow.pop %v2076
  %v2078 = vsel %vm213, %v2077, 0.0
  %2079 = vadd.xlane.f32.xlu0 %v2078
  %v2080 = vpop.xlane.xlu0 %2079
  %v2081 = vrcp.pop %v2080
  %v2082 = vmul.f32 %v2077, %v2081
  %2083 = vrot.lane.b32.xlu0 %v1900, 48
  %v2084 = vpop.permute.xlu0 %2083
  %v2087 = vsel %vm213, %v2082, 0
  %2089 = vmatpush.msra.mxu0 0.0
  %2090 = vmatpush.msra.mxu0 0.0
  %2091 = vmatpush.msra.mxu0 0.0
  %2092 = vmatpush.msra.mxu0 0.0
  %2093 = vmatpush.msra.mxu0 0.0
  %2094 = vmatpush.msra.mxu0 0.0
  %2095 = vmatpush.msra.mxu0 0.0
  %2096 = vmatpush.msra.mxu0 0.0
  %2097 = vmatpush.msra.mxu0 0.0
  %2098 = vmatpush.msra.mxu0 0.0
  %2099 = vmatpush.msra.mxu0 0.0
  %2100 = vmatpush.msra.mxu0 0.0
  %2101 = vmatpush.msra.mxu0 0.0
  %2102 = vmatpush.msra.mxu0 0.0
  %2103 = vmatpush.msra.mxu0 0.0
  %2104 = vmatpush.msra.mxu0 %v2084
  %2105 = vmatmul.f32.gmra.mxu0 %v2087
  %v2106 = vpop.f32.mrf.mxu0
  %v2107 = vadd.f32 0.0, %v2106
  %2108 = vdwg.mxu0
  %2109 = vrot.lane.b32.xlu0 %v1900, 104
  %v2110 = vpop.permute.xlu0 %2109
  %2111 = vrot.lane.b32.xlu0 %v1900, 72
  %v2112 = vpop.permute.xlu0 %2111
  %v2113 = vsel %vm213, %v2110, 0
  %v2115 = vsel %vm213, %v2112, 0
  %2117 = vmatpush.xpose.msra.mxu0 0.0
  %2118 = vmatpush.xpose.msra.mxu0 0.0
  %2119 = vmatpush.xpose.msra.mxu0 0.0
  %2120 = vmatpush.xpose.msra.mxu0 0.0
  %2121 = vmatpush.xpose.msra.mxu0 0.0
  %2122 = vmatpush.xpose.msra.mxu0 0.0
  %2123 = vmatpush.xpose.msra.mxu0 0.0
  %2124 = vmatpush.xpose.msra.mxu0 0.0
  %2125 = vmatpush.xpose.msra.mxu0 0.0
  %2126 = vmatpush.xpose.msra.mxu0 0.0
  %2127 = vmatpush.xpose.msra.mxu0 0.0
  %2128 = vmatpush.xpose.msra.mxu0 0.0
  %2129 = vmatpush.xpose.msra.mxu0 0.0
  %2130 = vmatpush.xpose.msra.mxu0 0.0
  %2131 = vmatpush.xpose.msra.mxu0 0.0
  %2132 = vmatpush.xpose.msra.mxu0 %v2115
  %2133 = vmatmul.f32.gmra.mxu0 %v2113
  %v2134 = vpop.f32.mrf.mxu0
  %v2135 = vadd.f32 0.0, %v2134
  %2136 = vdwg.mxu0
  %v2137 = vmul.f32 %v2135, 0.35355338
  %v2138 = vadd.f32 %v2137, %v1933
  %v2139 = vadd.f32 %v2138, %v169
  %v2140 = vsel %vm213, %v2139, -inf
  %2141 = vmax.xlane.f32.xlu0 %v2140
  %v2142 = vpop.xlane.xlu0 %2141
  %v2143 = vsub.f32 %v2139, %v2142
  %v2144 = vmul.f32 %v2143, 1.442695
  %v2145 = vpow.pop %v2144
  %v2146 = vsel %vm213, %v2145, 0.0
  %2147 = vadd.xlane.f32.xlu0 %v2146
  %v2148 = vpop.xlane.xlu0 %2147
  %v2149 = vrcp.pop %v2148
  %v2150 = vmul.f32 %v2145, %v2149
  %2151 = vrot.lane.b32.xlu0 %v1900, 40
  %v2152 = vpop.permute.xlu0 %2151
  %v2155 = vsel %vm213, %v2150, 0
  %2157 = vmatpush.msra.mxu0 0.0
  %2158 = vmatpush.msra.mxu0 0.0
  %2159 = vmatpush.msra.mxu0 0.0
  %2160 = vmatpush.msra.mxu0 0.0
  %2161 = vmatpush.msra.mxu0 0.0
  %2162 = vmatpush.msra.mxu0 0.0
  %2163 = vmatpush.msra.mxu0 0.0
  %2164 = vmatpush.msra.mxu0 0.0
  %2165 = vmatpush.msra.mxu0 0.0
  %2166 = vmatpush.msra.mxu0 0.0
  %2167 = vmatpush.msra.mxu0 0.0
  %2168 = vmatpush.msra.mxu0 0.0
  %2169 = vmatpush.msra.mxu0 0.0
  %2170 = vmatpush.msra.mxu0 0.0
  %2171 = vmatpush.msra.mxu0 0.0
  %2172 = vmatpush.msra.mxu0 %v2152
  %2173 = vmatmul.f32.gmra.mxu0 %v2155
  %v2174 = vpop.f32.mrf.mxu0
  %v2175 = vadd.f32 0.0, %v2174
  %2176 = vdwg.mxu0
  %2178 = vrot.lane.b32.xlu0 %v2039, 8
  %v2179 = vpop.permute.xlu0 %2178
  %2182 = vrot.lane.b32.xlu0 %v2107, 16
  %v2183 = vpop.permute.xlu0 %2182
  %2186 = vrot.lane.b32.xlu0 %v2175, 24
  %v2187 = vpop.permute.xlu0 %2186
  %v2189 = vsel %vm213, %v1971, %v2179
  %v2190 = vsel %vm492, %v2189, %v2183
  %v2191 = vsel %vm494, %v2190, %v2187
  %2193 = vrot.lane.b32.xlu0 %v1903, 96
  %v2194 = vpop.permute.xlu0 %2193
  %v2195 = vsel %vm213, %v1903, 0
  %v2197 = vsel %vm213, %v2194, 0
  %2199 = vmatpush.xpose.msra.mxu0 0.0
  %2200 = vmatpush.xpose.msra.mxu0 0.0
  %2201 = vmatpush.xpose.msra.mxu0 0.0
  %2202 = vmatpush.xpose.msra.mxu0 0.0
  %2203 = vmatpush.xpose.msra.mxu0 0.0
  %2204 = vmatpush.xpose.msra.mxu0 0.0
  %2205 = vmatpush.xpose.msra.mxu0 0.0
  %2206 = vmatpush.xpose.msra.mxu0 0.0
  %2207 = vmatpush.xpose.msra.mxu0 0.0
  %2208 = vmatpush.xpose.msra.mxu0 0.0
  %2209 = vmatpush.xpose.msra.mxu0 0.0
  %2210 = vmatpush.xpose.msra.mxu0 0.0
  %2211 = vmatpush.xpose.msra.mxu0 0.0
  %2212 = vmatpush.xpose.msra.mxu0 0.0
  %2213 = vmatpush.xpose.msra.mxu0 0.0
  %2214 = vmatpush.xpose.msra.mxu0 %v2197
  %2215 = vmatmul.f32.gmra.mxu0 %v2195
  %v2216 = vpop.f32.mrf.mxu0
  %v2217 = vadd.f32 0.0, %v2216
  %2218 = vdwg.mxu0
  %v2219 = vmul.f32 %v2217, 0.35355338
  %v2220 = vperm.slane %v163, 1
  %v2221 = vadd.f32 %v2219, %v2220
  %v2222 = vadd.f32 %v2221, %v169
  %v2223 = vsel %vm213, %v2222, -inf
  %2224 = vmax.xlane.f32.xlu0 %v2223
  %v2225 = vpop.xlane.xlu0 %2224
  %v2226 = vsub.f32 %v2222, %v2225
  %v2227 = vmul.f32 %v2226, 1.442695
  %v2228 = vpow.pop %v2227
  %v2229 = vsel %vm213, %v2228, 0.0
  %2230 = vadd.xlane.f32.xlu0 %v2229
  %v2231 = vpop.xlane.xlu0 %2230
  %v2232 = vrcp.pop %v2231
  %v2233 = vmul.f32 %v2228, %v2232
  %2234 = vrot.lane.b32.xlu0 %v1903, 64
  %v2235 = vpop.permute.xlu0 %2234
  %v2238 = vsel %vm213, %v2233, 0
  %2240 = vmatpush.msra.mxu0 0.0
  %2241 = vmatpush.msra.mxu0 0.0
  %2242 = vmatpush.msra.mxu0 0.0
  %2243 = vmatpush.msra.mxu0 0.0
  %2244 = vmatpush.msra.mxu0 0.0
  %2245 = vmatpush.msra.mxu0 0.0
  %2246 = vmatpush.msra.mxu0 0.0
  %2247 = vmatpush.msra.mxu0 0.0
  %2248 = vmatpush.msra.mxu0 0.0
  %2249 = vmatpush.msra.mxu0 0.0
  %2250 = vmatpush.msra.mxu0 0.0
  %2251 = vmatpush.msra.mxu0 0.0
  %2252 = vmatpush.msra.mxu0 0.0
  %2253 = vmatpush.msra.mxu0 0.0
  %2254 = vmatpush.msra.mxu0 0.0
  %2255 = vmatpush.msra.mxu0 %v2235
  %2256 = vmatmul.f32.gmra.mxu0 %v2238
  %v2257 = vpop.f32.mrf.mxu0
  %v2258 = vadd.f32 0.0, %v2257
  %2259 = vdwg.mxu0
  %2260 = vrot.lane.b32.xlu0 %v1903, 120
  %v2261 = vpop.permute.xlu0 %2260
  %2262 = vrot.lane.b32.xlu0 %v1903, 88
  %v2263 = vpop.permute.xlu0 %2262
  %v2264 = vsel %vm213, %v2261, 0
  %v2266 = vsel %vm213, %v2263, 0
  %2268 = vmatpush.xpose.msra.mxu0 0.0
  %2269 = vmatpush.xpose.msra.mxu0 0.0
  %2270 = vmatpush.xpose.msra.mxu0 0.0
  %2271 = vmatpush.xpose.msra.mxu0 0.0
  %2272 = vmatpush.xpose.msra.mxu0 0.0
  %2273 = vmatpush.xpose.msra.mxu0 0.0
  %2274 = vmatpush.xpose.msra.mxu0 0.0
  %2275 = vmatpush.xpose.msra.mxu0 0.0
  %2276 = vmatpush.xpose.msra.mxu0 0.0
  %2277 = vmatpush.xpose.msra.mxu0 0.0
  %2278 = vmatpush.xpose.msra.mxu0 0.0
  %2279 = vmatpush.xpose.msra.mxu0 0.0
  %2280 = vmatpush.xpose.msra.mxu0 0.0
  %2281 = vmatpush.xpose.msra.mxu0 0.0
  %2282 = vmatpush.xpose.msra.mxu0 0.0
  %2283 = vmatpush.xpose.msra.mxu0 %v2266
  %2284 = vmatmul.f32.gmra.mxu0 %v2264
  %v2285 = vpop.f32.mrf.mxu0
  %v2286 = vadd.f32 0.0, %v2285
  %2287 = vdwg.mxu0
  %v2288 = vmul.f32 %v2286, 0.35355338
  %v2289 = vadd.f32 %v2288, %v2220
  %v2290 = vadd.f32 %v2289, %v169
  %v2291 = vsel %vm213, %v2290, -inf
  %2292 = vmax.xlane.f32.xlu0 %v2291
  %v2293 = vpop.xlane.xlu0 %2292
  %v2294 = vsub.f32 %v2290, %v2293
  %v2295 = vmul.f32 %v2294, 1.442695
  %v2296 = vpow.pop %v2295
  %v2297 = vsel %vm213, %v2296, 0.0
  %2298 = vadd.xlane.f32.xlu0 %v2297
  %v2299 = vpop.xlane.xlu0 %2298
  %v2300 = vrcp.pop %v2299
  %v2301 = vmul.f32 %v2296, %v2300
  %2302 = vrot.lane.b32.xlu0 %v1903, 56
  %v2303 = vpop.permute.xlu0 %2302
  %v2306 = vsel %vm213, %v2301, 0
  %2308 = vmatpush.msra.mxu0 0.0
  %2309 = vmatpush.msra.mxu0 0.0
  %2310 = vmatpush.msra.mxu0 0.0
  %2311 = vmatpush.msra.mxu0 0.0
  %2312 = vmatpush.msra.mxu0 0.0
  %2313 = vmatpush.msra.mxu0 0.0
  %2314 = vmatpush.msra.mxu0 0.0
  %2315 = vmatpush.msra.mxu0 0.0
  %2316 = vmatpush.msra.mxu0 0.0
  %2317 = vmatpush.msra.mxu0 0.0
  %2318 = vmatpush.msra.mxu0 0.0
  %2319 = vmatpush.msra.mxu0 0.0
  %2320 = vmatpush.msra.mxu0 0.0
  %2321 = vmatpush.msra.mxu0 0.0
  %2322 = vmatpush.msra.mxu0 0.0
  %2323 = vmatpush.msra.mxu0 %v2303
  %2324 = vmatmul.f32.gmra.mxu0 %v2306
  %v2325 = vpop.f32.mrf.mxu0
  %v2326 = vadd.f32 0.0, %v2325
  %2327 = vdwg.mxu0
  %2328 = vrot.lane.b32.xlu0 %v1903, 112
  %v2329 = vpop.permute.xlu0 %2328
  %2330 = vrot.lane.b32.xlu0 %v1903, 80
  %v2331 = vpop.permute.xlu0 %2330
  %v2332 = vsel %vm213, %v2329, 0
  %v2334 = vsel %vm213, %v2331, 0
  %2336 = vmatpush.xpose.msra.mxu0 0.0
  %2337 = vmatpush.xpose.msra.mxu0 0.0
  %2338 = vmatpush.xpose.msra.mxu0 0.0
  %2339 = vmatpush.xpose.msra.mxu0 0.0
  %2340 = vmatpush.xpose.msra.mxu0 0.0
  %2341 = vmatpush.xpose.msra.mxu0 0.0
  %2342 = vmatpush.xpose.msra.mxu0 0.0
  %2343 = vmatpush.xpose.msra.mxu0 0.0
  %2344 = vmatpush.xpose.msra.mxu0 0.0
  %2345 = vmatpush.xpose.msra.mxu0 0.0
  %2346 = vmatpush.xpose.msra.mxu0 0.0
  %2347 = vmatpush.xpose.msra.mxu0 0.0
  %2348 = vmatpush.xpose.msra.mxu0 0.0
  %2349 = vmatpush.xpose.msra.mxu0 0.0
  %2350 = vmatpush.xpose.msra.mxu0 0.0
  %2351 = vmatpush.xpose.msra.mxu0 %v2334
  %2352 = vmatmul.f32.gmra.mxu0 %v2332
  %v2353 = vpop.f32.mrf.mxu0
  %v2354 = vadd.f32 0.0, %v2353
  %2355 = vdwg.mxu0
  %v2356 = vmul.f32 %v2354, 0.35355338
  %v2357 = vadd.f32 %v2356, %v2220
  %v2358 = vadd.f32 %v2357, %v169
  %v2359 = vsel %vm213, %v2358, -inf
  %2360 = vmax.xlane.f32.xlu0 %v2359
  %v2361 = vpop.xlane.xlu0 %2360
  %v2362 = vsub.f32 %v2358, %v2361
  %v2363 = vmul.f32 %v2362, 1.442695
  %v2364 = vpow.pop %v2363
  %v2365 = vsel %vm213, %v2364, 0.0
  %2366 = vadd.xlane.f32.xlu0 %v2365
  %v2367 = vpop.xlane.xlu0 %2366
  %v2368 = vrcp.pop %v2367
  %v2369 = vmul.f32 %v2364, %v2368
  %2370 = vrot.lane.b32.xlu0 %v1903, 48
  %v2371 = vpop.permute.xlu0 %2370
  %v2374 = vsel %vm213, %v2369, 0
  %2376 = vmatpush.msra.mxu0 0.0
  %2377 = vmatpush.msra.mxu0 0.0
  %2378 = vmatpush.msra.mxu0 0.0
  %2379 = vmatpush.msra.mxu0 0.0
  %2380 = vmatpush.msra.mxu0 0.0
  %2381 = vmatpush.msra.mxu0 0.0
  %2382 = vmatpush.msra.mxu0 0.0
  %2383 = vmatpush.msra.mxu0 0.0
  %2384 = vmatpush.msra.mxu0 0.0
  %2385 = vmatpush.msra.mxu0 0.0
  %2386 = vmatpush.msra.mxu0 0.0
  %2387 = vmatpush.msra.mxu0 0.0
  %2388 = vmatpush.msra.mxu0 0.0
  %2389 = vmatpush.msra.mxu0 0.0
  %2390 = vmatpush.msra.mxu0 0.0
  %2391 = vmatpush.msra.mxu0 %v2371
  %2392 = vmatmul.f32.gmra.mxu0 %v2374
  %v2393 = vpop.f32.mrf.mxu0
  %v2394 = vadd.f32 0.0, %v2393
  %2395 = vdwg.mxu0
  %2396 = vrot.lane.b32.xlu0 %v1903, 104
  %v2397 = vpop.permute.xlu0 %2396
  %2398 = vrot.lane.b32.xlu0 %v1903, 72
  %v2399 = vpop.permute.xlu0 %2398
  %v2400 = vsel %vm213, %v2397, 0
  %v2402 = vsel %vm213, %v2399, 0
  %2404 = vmatpush.xpose.msra.mxu0 0.0
  %2405 = vmatpush.xpose.msra.mxu0 0.0
  %2406 = vmatpush.xpose.msra.mxu0 0.0
  %2407 = vmatpush.xpose.msra.mxu0 0.0
  %2408 = vmatpush.xpose.msra.mxu0 0.0
  %2409 = vmatpush.xpose.msra.mxu0 0.0
  %2410 = vmatpush.xpose.msra.mxu0 0.0
  %2411 = vmatpush.xpose.msra.mxu0 0.0
  %2412 = vmatpush.xpose.msra.mxu0 0.0
  %2413 = vmatpush.xpose.msra.mxu0 0.0
  %2414 = vmatpush.xpose.msra.mxu0 0.0
  %2415 = vmatpush.xpose.msra.mxu0 0.0
  %2416 = vmatpush.xpose.msra.mxu0 0.0
  %2417 = vmatpush.xpose.msra.mxu0 0.0
  %2418 = vmatpush.xpose.msra.mxu0 0.0
  %2419 = vmatpush.xpose.msra.mxu0 %v2402
  %2420 = vmatmul.f32.gmra.mxu0 %v2400
  %v2421 = vpop.f32.mrf.mxu0
  %v2422 = vadd.f32 0.0, %v2421
  %2423 = vdwg.mxu0
  %v2424 = vmul.f32 %v2422, 0.35355338
  %v2425 = vadd.f32 %v2424, %v2220
  %v2426 = vadd.f32 %v2425, %v169
  %v2427 = vsel %vm213, %v2426, -inf
  %2428 = vmax.xlane.f32.xlu0 %v2427
  %v2429 = vpop.xlane.xlu0 %2428
  %v2430 = vsub.f32 %v2426, %v2429
  %v2431 = vmul.f32 %v2430, 1.442695
  %v2432 = vpow.pop %v2431
  %v2433 = vsel %vm213, %v2432, 0.0
  %2434 = vadd.xlane.f32.xlu0 %v2433
  %v2435 = vpop.xlane.xlu0 %2434
  %v2436 = vrcp.pop %v2435
  %v2437 = vmul.f32 %v2432, %v2436
  %2438 = vrot.lane.b32.xlu0 %v1903, 40
  %v2439 = vpop.permute.xlu0 %2438
  %v2442 = vsel %vm213, %v2437, 0
  %2444 = vmatpush.msra.mxu0 0.0
  %2445 = vmatpush.msra.mxu0 0.0
  %2446 = vmatpush.msra.mxu0 0.0
  %2447 = vmatpush.msra.mxu0 0.0
  %2448 = vmatpush.msra.mxu0 0.0
  %2449 = vmatpush.msra.mxu0 0.0
  %2450 = vmatpush.msra.mxu0 0.0
  %2451 = vmatpush.msra.mxu0 0.0
  %2452 = vmatpush.msra.mxu0 0.0
  %2453 = vmatpush.msra.mxu0 0.0
  %2454 = vmatpush.msra.mxu0 0.0
  %2455 = vmatpush.msra.mxu0 0.0
  %2456 = vmatpush.msra.mxu0 0.0
  %2457 = vmatpush.msra.mxu0 0.0
  %2458 = vmatpush.msra.mxu0 0.0
  %2459 = vmatpush.msra.mxu0 %v2439
  %2460 = vmatmul.f32.gmra.mxu0 %v2442
  %v2461 = vpop.f32.mrf.mxu0
  %v2462 = vadd.f32 0.0, %v2461
  %2463 = vdwg.mxu0
  %2465 = vrot.lane.b32.xlu0 %v2326, 8
  %v2466 = vpop.permute.xlu0 %2465
  %2469 = vrot.lane.b32.xlu0 %v2394, 16
  %v2470 = vpop.permute.xlu0 %2469
  %2473 = vrot.lane.b32.xlu0 %v2462, 24
  %v2474 = vpop.permute.xlu0 %2473
  %v2476 = vsel %vm213, %v2258, %v2466
  %v2477 = vsel %vm492, %v2476, %v2470
  %v2478 = vsel %vm494, %v2477, %v2474
  %v2479 = vld [vmem:[%s37] sm:$0xff]
  %v2480 = vld [vmem:[%s37 + $0x8] sm:$0xff]
  %v2481 = vld [vmem:[%s37 + $0x10] sm:$0xff]
  %v2482 = vld [vmem:[%s37 + $0x18] sm:$0xff]
  %v2483 = vld [vmem:[%s39] sm:$0x1]
  %v2485 = vperm.slane %v2483, 0
  %v2488 = vsel %vm180, %v2191, 0
  %v2491 = vsel %vm180, %v2478, 0
  %2493 = vmatpush.msra.mxu0 0.0
  %2494 = vmatpush.msra.mxu0 0.0
  %2495 = vmatpush.msra.mxu0 0.0
  %2496 = vmatpush.msra.mxu0 0.0
  %2497 = vmatpush.msra.mxu0 0.0
  %2498 = vmatpush.msra.mxu0 0.0
  %2499 = vmatpush.msra.mxu0 0.0
  %2500 = vmatpush.msra.mxu0 0.0
  %2501 = vmatpush.msra.mxu0 0.0
  %2502 = vmatpush.msra.mxu0 0.0
  %2503 = vmatpush.msra.mxu0 0.0
  %2504 = vmatpush.msra.mxu0 0.0
  %2505 = vmatpush.msra.mxu0 %v2482
  %2506 = vmatpush.msra.mxu0 %v2481
  %2507 = vmatpush.msra.mxu0 %v2480
  %2508 = vmatpush.msra.mxu0 %v2479
  %2509 = vmatmul.f32.gmra.mxu0 %v2488
  %v2510 = vpop.f32.mrf.mxu0
  %v2511 = vadd.f32 %v2485, %v2510
  %2512 = vmatmul.f32.gmra.mxu0 %v2491
  %v2513 = vpop.f32.mrf.mxu0
  %v2514 = vadd.f32 %v2485, %v2513
  %2515 = vdwg.mxu0
  %v2516 = vld [vmem:[%s41] sm:$0x1]
  %v2517 = vld [vmem:[%s43] sm:$0x1]
  %v2518 = vadd.f32 %v1866, %v2511
  %v2519 = vadd.f32 %v1867, %v2514
  %v2520 = vsel %vm180, %v2518, 0.0
  %2521 = vadd.xlane.f32.xlu0 %v2520
  %v2522 = vpop.xlane.xlu0 %2521
  %v2523 = vsel %vm180, %v2519, 0.0
  %2524 = vadd.xlane.f32.xlu0 %v2523
  %v2525 = vpop.xlane.xlu0 %2524
  %v2526 = vmul.f32 %v2522, %v832
  %v2527 = vmul.f32 %v2525, %v832
  %v2528 = vsub.f32 %v2518, %v2526
  %v2529 = vsub.f32 %v2519, %v2527
  %v2530 = vmul.f32 %v2528, %v2528
  %v2531 = vmul.f32 %v2529, %v2529
  %v2532 = vsel %vm180, %v2530, 0.0
  %2533 = vadd.xlane.f32.xlu0 %v2532
  %v2534 = vpop.xlane.xlu0 %2533
  %v2535 = vsel %vm180, %v2531, 0.0
  %2536 = vadd.xlane.f32.xlu0 %v2535
  %v2537 = vpop.xlane.xlu0 %2536
  %v2538 = vmul.f32 %v2534, %v832
  %v2539 = vmul.f32 %v2537, %v832
  %v2540 = vadd.f32 %v2538, 1e-05
  %v2541 = vadd.f32 %v2539, 1e-05
  %v2542 = vrsqrt.pop %v2540
  %v2543 = vmul.f32 %v2542, %v2540
  %v2544 = vmul.f32 %v2543, %v2542
  %v2545 = vmul.f32 0.5, %v2544
  %v2546 = vsub.f32 1.5, %v2545
  %v2547 = vmul.f32 %v2542, %v2546
  %vm2548 = vweird.f32 %v2540
  %vm2549 = vweird.f32 %v2542
  %vm2550 = vmor %vm2548, %vm2549
  %v2551 = vsel %vm2550, %v2542, %v2547
  %v2552 = vrsqrt.pop %v2541
  %v2553 = vmul.f32 %v2552, %v2541
  %v2554 = vmul.f32 %v2553, %v2552
  %v2555 = vmul.f32 0.5, %v2554
  %v2556 = vsub.f32 1.5, %v2555
  %v2557 = vmul.f32 %v2552, %v2556
  %vm2558 = vweird.f32 %v2541
  %vm2559 = vweird.f32 %v2552
  %vm2560 = vmor %vm2558, %vm2559
  %v2561 = vsel %vm2560, %v2552, %v2557
  %v2562 = vmul.f32 %v2528, %v2551
  %v2563 = vmul.f32 %v2529, %v2561
  %v2565 = vperm.slane %v2516, 0
  %v2567 = vmul.f32 %v2562, %v2565
  %v2568 = vmul.f32 %v2563, %v2565
  %v2570 = vperm.slane %v2517, 0
  %v2572 = vadd.f32 %v2567, %v2570
  %v2573 = vadd.f32 %v2568, %v2570
  %v2574 = vld [vmem:[%s45] sm:$0xff]
  %v2575 = vld [vmem:[%s45 + $0x8] sm:$0xff]
  %v2576 = vld [vmem:[%s45 + $0x10] sm:$0xff]
  %v2577 = vld [vmem:[%s45 + $0x18] sm:$0xff]
  %v2578 = vld [vmem:[%s47] sm:$0x1]
  %v2580 = vperm.slane %v2578, 0
  %v2583 = vsel %vm180, %v2572, 0
  %v2586 = vsel %vm180, %v2573, 0
  %2588 = vmatpush.msra.mxu0 0.0
  %2589 = vmatpush.msra.mxu0 0.0
  %2590 = vmatpush.msra.mxu0 0.0
  %2591 = vmatpush.msra.mxu0 0.0
  %2592 = vmatpush.msra.mxu0 0.0
  %2593 = vmatpush.msra.mxu0 0.0
  %2594 = vmatpush.msra.mxu0 0.0
  %2595 = vmatpush.msra.mxu0 0.0
  %2596 = vmatpush.msra.mxu0 0.0
  %2597 = vmatpush.msra.mxu0 0.0
  %2598 = vmatpush.msra.mxu0 0.0
  %2599 = vmatpush.msra.mxu0 0.0
  %2600 = vmatpush.msra.mxu0 %v2577
  %2601 = vmatpush.msra.mxu0 %v2576
  %2602 = vmatpush.msra.mxu0 %v2575
  %2603 = vmatpush.msra.mxu0 %v2574
  %2604 = vmatmul.f32.gmra.mxu0 %v2583
  %v2605 = vpop.f32.mrf.mxu0
  %v2606 = vadd.f32 %v2580, %v2605
  %2607 = vmatmul.f32.gmra.mxu0 %v2586
  %v2608 = vpop.f32.mrf.mxu0
  %v2609 = vadd.f32 %v2580, %v2608
  %2610 = vdwg.mxu0
  %v2611 = vld [vmem:[%s49] sm:$0xff]
  %v2612 = vld [vmem:[%s49 + $0x8] sm:$0xff]
  %v2613 = vld [vmem:[%s49 + $0x10] sm:$0xff]
  %v2614 = vld [vmem:[%s49 + $0x18] sm:$0xff]
  %v2615 = vld [vmem:[%s51] sm:$0x1]
  %v2617 = vperm.slane %v2615, 0
  %v2620 = vsel %vm180, %v1864, 0
  %v2623 = vsel %vm180, %v1865, 0
  %2625 = vmatpush.msra.mxu0 0.0
  %2626 = vmatpush.msra.mxu0 0.0
  %2627 = vmatpush.msra.mxu0 0.0
  %2628 = vmatpush.msra.mxu0 0.0
  %2629 = vmatpush.msra.mxu0 0.0
  %2630 = vmatpush.msra.mxu0 0.0
  %2631 = vmatpush.msra.mxu0 0.0
  %2632 = vmatpush.msra.mxu0 0.0
  %2633 = vmatpush.msra.mxu0 0.0
  %2634 = vmatpush.msra.mxu0 0.0
  %2635 = vmatpush.msra.mxu0 0.0
  %2636 = vmatpush.msra.mxu0 0.0
  %2637 = vmatpush.msra.mxu0 %v2614
  %2638 = vmatpush.msra.mxu0 %v2613
  %2639 = vmatpush.msra.mxu0 %v2612
  %2640 = vmatpush.msra.mxu0 %v2611
  %2641 = vmatmul.f32.gmra.mxu0 %v2620
  %v2642 = vpop.f32.mrf.mxu0
  %v2643 = vadd.f32 %v2617, %v2642
  %2644 = vmatmul.f32.gmra.mxu0 %v2623
  %v2645 = vpop.f32.mrf.mxu0
  %v2646 = vadd.f32 %v2617, %v2645
  %2647 = vdwg.mxu0
  %v2649 = vsel %vm213, %v2606, 0
  %v2652 = vsel %vm213, %v2643, 0
  %2654 = vmatpush.xpose.msra.mxu0 0.0
  %2655 = vmatpush.xpose.msra.mxu0 0.0
  %2656 = vmatpush.xpose.msra.mxu0 0.0
  %2657 = vmatpush.xpose.msra.mxu0 0.0
  %2658 = vmatpush.xpose.msra.mxu0 0.0
  %2659 = vmatpush.xpose.msra.mxu0 0.0
  %2660 = vmatpush.xpose.msra.mxu0 0.0
  %2661 = vmatpush.xpose.msra.mxu0 0.0
  %2662 = vmatpush.xpose.msra.mxu0 0.0
  %2663 = vmatpush.xpose.msra.mxu0 0.0
  %2664 = vmatpush.xpose.msra.mxu0 0.0
  %2665 = vmatpush.xpose.msra.mxu0 0.0
  %2666 = vmatpush.xpose.msra.mxu0 0.0
  %2667 = vmatpush.xpose.msra.mxu0 0.0
  %2668 = vmatpush.xpose.msra.mxu0 0.0
  %2669 = vmatpush.xpose.msra.mxu0 %v2652
  %2670 = vmatmul.f32.gmra.mxu0 %v2649
  %v2671 = vpop.f32.mrf.mxu0
  %v2672 = vadd.f32 0.0, %v2671
  %2673 = vdwg.mxu0
  %v2674 = vmul.f32 %v2672, 0.35355338
  %v2675 = vadd.f32 %v2674, %v239
  %v2676 = vsel %vm213, %v2675, -inf
  %2677 = vmax.xlane.f32.xlu0 %v2676
  %v2678 = vpop.xlane.xlu0 %2677
  %v2679 = vsub.f32 %v2675, %v2678
  %v2680 = vmul.f32 %v2679, 1.442695
  %v2681 = vpow.pop %v2680
  %v2682 = vsel %vm213, %v2681, 0.0
  %2683 = vadd.xlane.f32.xlu0 %v2682
  %v2684 = vpop.xlane.xlu0 %2683
  %v2685 = vrcp.pop %v2684
  %v2686 = vmul.f32 %v2681, %v2685
  %2687 = vrot.lane.b32.xlu0 %v2643, 96
  %v2688 = vpop.permute.xlu0 %2687
  %v2691 = vsel %vm213, %v2686, 0
  %2693 = vmatpush.msra.mxu0 0.0
  %2694 = vmatpush.msra.mxu0 0.0
  %2695 = vmatpush.msra.mxu0 0.0
  %2696 = vmatpush.msra.mxu0 0.0
  %2697 = vmatpush.msra.mxu0 0.0
  %2698 = vmatpush.msra.mxu0 0.0
  %2699 = vmatpush.msra.mxu0 0.0
  %2700 = vmatpush.msra.mxu0 0.0
  %2701 = vmatpush.msra.mxu0 0.0
  %2702 = vmatpush.msra.mxu0 0.0
  %2703 = vmatpush.msra.mxu0 0.0
  %2704 = vmatpush.msra.mxu0 0.0
  %2705 = vmatpush.msra.mxu0 0.0
  %2706 = vmatpush.msra.mxu0 0.0
  %2707 = vmatpush.msra.mxu0 0.0
  %2708 = vmatpush.msra.mxu0 %v2688
  %2709 = vmatmul.f32.gmra.mxu0 %v2691
  %v2710 = vpop.f32.mrf.mxu0
  %v2711 = vadd.f32 0.0, %v2710
  %2712 = vdwg.mxu0
  %2713 = vrot.lane.b32.xlu0 %v2606, 120
  %v2714 = vpop.permute.xlu0 %2713
  %2715 = vrot.lane.b32.xlu0 %v2643, 120
  %v2716 = vpop.permute.xlu0 %2715
  %v2717 = vsel %vm213, %v2714, 0
  %v2719 = vsel %vm213, %v2716, 0
  %2721 = vmatpush.xpose.msra.mxu0 0.0
  %2722 = vmatpush.xpose.msra.mxu0 0.0
  %2723 = vmatpush.xpose.msra.mxu0 0.0
  %2724 = vmatpush.xpose.msra.mxu0 0.0
  %2725 = vmatpush.xpose.msra.mxu0 0.0
  %2726 = vmatpush.xpose.msra.mxu0 0.0
  %2727 = vmatpush.xpose.msra.mxu0 0.0
  %2728 = vmatpush.xpose.msra.mxu0 0.0
  %2729 = vmatpush.xpose.msra.mxu0 0.0
  %2730 = vmatpush.xpose.msra.mxu0 0.0
  %2731 = vmatpush.xpose.msra.mxu0 0.0
  %2732 = vmatpush.xpose.msra.mxu0 0.0
  %2733 = vmatpush.xpose.msra.mxu0 0.0
  %2734 = vmatpush.xpose.msra.mxu0 0.0
  %2735 = vmatpush.xpose.msra.mxu0 0.0
  %2736 = vmatpush.xpose.msra.mxu0 %v2719
  %2737 = vmatmul.f32.gmra.mxu0 %v2717
  %v2738 = vpop.f32.mrf.mxu0
  %v2739 = vadd.f32 0.0, %v2738
  %2740 = vdwg.mxu0
  %v2741 = vmul.f32 %v2739, 0.35355338
  %v2742 = vadd.f32 %v2741, %v239
  %v2743 = vsel %vm213, %v2742, -inf
  %2744 = vmax.xlane.f32.xlu0 %v2743
  %v2745 = vpop.xlane.xlu0 %2744
  %v2746 = vsub.f32 %v2742, %v2745
  %v2747 = vmul.f32 %v2746, 1.442695
  %v2748 = vpow.pop %v2747
  %v2749 = vsel %vm213, %v2748, 0.0
  %2750 = vadd.xlane.f32.xlu0 %v2749
  %v2751 = vpop.xlane.xlu0 %2750
  %v2752 = vrcp.pop %v2751
  %v2753 = vmul.f32 %v2748, %v2752
  %2754 = vrot.lane.b32.xlu0 %v2643, 88
  %v2755 = vpop.permute.xlu0 %2754
  %v2758 = vsel %vm213, %v2753, 0
  %2760 = vmatpush.msra.mxu0 0.0
  %2761 = vmatpush.msra.mxu0 0.0
  %2762 = vmatpush.msra.mxu0 0.0
  %2763 = vmatpush.msra.mxu0 0.0
  %2764 = vmatpush.msra.mxu0 0.0
  %2765 = vmatpush.msra.mxu0 0.0
  %2766 = vmatpush.msra.mxu0 0.0
  %2767 = vmatpush.msra.mxu0 0.0
  %2768 = vmatpush.msra.mxu0 0.0
  %2769 = vmatpush.msra.mxu0 0.0
  %2770 = vmatpush.msra.mxu0 0.0
  %2771 = vmatpush.msra.mxu0 0.0
  %2772 = vmatpush.msra.mxu0 0.0
  %2773 = vmatpush.msra.mxu0 0.0
  %2774 = vmatpush.msra.mxu0 0.0
  %2775 = vmatpush.msra.mxu0 %v2755
  %2776 = vmatmul.f32.gmra.mxu0 %v2758
  %v2777 = vpop.f32.mrf.mxu0
  %v2778 = vadd.f32 0.0, %v2777
  %2779 = vdwg.mxu0
  %2780 = vrot.lane.b32.xlu0 %v2606, 112
  %v2781 = vpop.permute.xlu0 %2780
  %2782 = vrot.lane.b32.xlu0 %v2643, 112
  %v2783 = vpop.permute.xlu0 %2782
  %v2784 = vsel %vm213, %v2781, 0
  %v2786 = vsel %vm213, %v2783, 0
  %2788 = vmatpush.xpose.msra.mxu0 0.0
  %2789 = vmatpush.xpose.msra.mxu0 0.0
  %2790 = vmatpush.xpose.msra.mxu0 0.0
  %2791 = vmatpush.xpose.msra.mxu0 0.0
  %2792 = vmatpush.xpose.msra.mxu0 0.0
  %2793 = vmatpush.xpose.msra.mxu0 0.0
  %2794 = vmatpush.xpose.msra.mxu0 0.0
  %2795 = vmatpush.xpose.msra.mxu0 0.0
  %2796 = vmatpush.xpose.msra.mxu0 0.0
  %2797 = vmatpush.xpose.msra.mxu0 0.0
  %2798 = vmatpush.xpose.msra.mxu0 0.0
  %2799 = vmatpush.xpose.msra.mxu0 0.0
  %2800 = vmatpush.xpose.msra.mxu0 0.0
  %2801 = vmatpush.xpose.msra.mxu0 0.0
  %2802 = vmatpush.xpose.msra.mxu0 0.0
  %2803 = vmatpush.xpose.msra.mxu0 %v2786
  %2804 = vmatmul.f32.gmra.mxu0 %v2784
  %v2805 = vpop.f32.mrf.mxu0
  %v2806 = vadd.f32 0.0, %v2805
  %2807 = vdwg.mxu0
  %v2808 = vmul.f32 %v2806, 0.35355338
  %v2809 = vadd.f32 %v2808, %v239
  %v2810 = vsel %vm213, %v2809, -inf
  %2811 = vmax.xlane.f32.xlu0 %v2810
  %v2812 = vpop.xlane.xlu0 %2811
  %v2813 = vsub.f32 %v2809, %v2812
  %v2814 = vmul.f32 %v2813, 1.442695
  %v2815 = vpow.pop %v2814
  %v2816 = vsel %vm213, %v2815, 0.0
  %2817 = vadd.xlane.f32.xlu0 %v2816
  %v2818 = vpop.xlane.xlu0 %2817
  %v2819 = vrcp.pop %v2818
  %v2820 = vmul.f32 %v2815, %v2819
  %2821 = vrot.lane.b32.xlu0 %v2643, 80
  %v2822 = vpop.permute.xlu0 %2821
  %v2825 = vsel %vm213, %v2820, 0
  %2827 = vmatpush.msra.mxu0 0.0
  %2828 = vmatpush.msra.mxu0 0.0
  %2829 = vmatpush.msra.mxu0 0.0
  %2830 = vmatpush.msra.mxu0 0.0
  %2831 = vmatpush.msra.mxu0 0.0
  %2832 = vmatpush.msra.mxu0 0.0
  %2833 = vmatpush.msra.mxu0 0.0
  %2834 = vmatpush.msra.mxu0 0.0
  %2835 = vmatpush.msra.mxu0 0.0
  %2836 = vmatpush.msra.mxu0 0.0
  %2837 = vmatpush.msra.mxu0 0.0
  %2838 = vmatpush.msra.mxu0 0.0
  %2839 = vmatpush.msra.mxu0 0.0
  %2840 = vmatpush.msra.mxu0 0.0
  %2841 = vmatpush.msra.mxu0 0.0
  %2842 = vmatpush.msra.mxu0 %v2822
  %2843 = vmatmul.f32.gmra.mxu0 %v2825
  %v2844 = vpop.f32.mrf.mxu0
  %v2845 = vadd.f32 0.0, %v2844
  %2846 = vdwg.mxu0
  %2847 = vrot.lane.b32.xlu0 %v2606, 104
  %v2848 = vpop.permute.xlu0 %2847
  %2849 = vrot.lane.b32.xlu0 %v2643, 104
  %v2850 = vpop.permute.xlu0 %2849
  %v2851 = vsel %vm213, %v2848, 0
  %v2853 = vsel %vm213, %v2850, 0
  %2855 = vmatpush.xpose.msra.mxu0 0.0
  %2856 = vmatpush.xpose.msra.mxu0 0.0
  %2857 = vmatpush.xpose.msra.mxu0 0.0
  %2858 = vmatpush.xpose.msra.mxu0 0.0
  %2859 = vmatpush.xpose.msra.mxu0 0.0
  %2860 = vmatpush.xpose.msra.mxu0 0.0
  %2861 = vmatpush.xpose.msra.mxu0 0.0
  %2862 = vmatpush.xpose.msra.mxu0 0.0
  %2863 = vmatpush.xpose.msra.mxu0 0.0
  %2864 = vmatpush.xpose.msra.mxu0 0.0
  %2865 = vmatpush.xpose.msra.mxu0 0.0
  %2866 = vmatpush.xpose.msra.mxu0 0.0
  %2867 = vmatpush.xpose.msra.mxu0 0.0
  %2868 = vmatpush.xpose.msra.mxu0 0.0
  %2869 = vmatpush.xpose.msra.mxu0 0.0
  %2870 = vmatpush.xpose.msra.mxu0 %v2853
  %2871 = vmatmul.f32.gmra.mxu0 %v2851
  %v2872 = vpop.f32.mrf.mxu0
  %v2873 = vadd.f32 0.0, %v2872
  %2874 = vdwg.mxu0
  %v2875 = vmul.f32 %v2873, 0.35355338
  %v2876 = vadd.f32 %v2875, %v239
  %v2877 = vsel %vm213, %v2876, -inf
  %2878 = vmax.xlane.f32.xlu0 %v2877
  %v2879 = vpop.xlane.xlu0 %2878
  %v2880 = vsub.f32 %v2876, %v2879
  %v2881 = vmul.f32 %v2880, 1.442695
  %v2882 = vpow.pop %v2881
  %v2883 = vsel %vm213, %v2882, 0.0
  %2884 = vadd.xlane.f32.xlu0 %v2883
  %v2885 = vpop.xlane.xlu0 %2884
  %v2886 = vrcp.pop %v2885
  %v2887 = vmul.f32 %v2882, %v2886
  %2888 = vrot.lane.b32.xlu0 %v2643, 72
  %v2889 = vpop.permute.xlu0 %2888
  %v2892 = vsel %vm213, %v2887, 0
  %2894 = vmatpush.msra.mxu0 0.0
  %2895 = vmatpush.msra.mxu0 0.0
  %2896 = vmatpush.msra.mxu0 0.0
  %2897 = vmatpush.msra.mxu0 0.0
  %2898 = vmatpush.msra.mxu0 0.0
  %2899 = vmatpush.msra.mxu0 0.0
  %2900 = vmatpush.msra.mxu0 0.0
  %2901 = vmatpush.msra.mxu0 0.0
  %2902 = vmatpush.msra.mxu0 0.0
  %2903 = vmatpush.msra.mxu0 0.0
  %2904 = vmatpush.msra.mxu0 0.0
  %2905 = vmatpush.msra.mxu0 0.0
  %2906 = vmatpush.msra.mxu0 0.0
  %2907 = vmatpush.msra.mxu0 0.0
  %2908 = vmatpush.msra.mxu0 0.0
  %2909 = vmatpush.msra.mxu0 %v2889
  %2910 = vmatmul.f32.gmra.mxu0 %v2892
  %v2911 = vpop.f32.mrf.mxu0
  %v2912 = vadd.f32 0.0, %v2911
  %2913 = vdwg.mxu0
  %2915 = vrot.lane.b32.xlu0 %v2778, 8
  %v2916 = vpop.permute.xlu0 %2915
  %2919 = vrot.lane.b32.xlu0 %v2845, 16
  %v2920 = vpop.permute.xlu0 %2919
  %2923 = vrot.lane.b32.xlu0 %v2912, 24
  %v2924 = vpop.permute.xlu0 %2923
  %v2926 = vsel %vm213, %v2711, %v2916
  %v2927 = vsel %vm492, %v2926, %v2920
  %v2928 = vsel %vm494, %v2927, %v2924
  %v2930 = vsel %vm213, %v2609, 0
  %v2933 = vsel %vm213, %v2646, 0
  %2935 = vmatpush.xpose.msra.mxu0 0.0
  %2936 = vmatpush.xpose.msra.mxu0 0.0
  %2937 = vmatpush.xpose.msra.mxu0 0.0
  %2938 = vmatpush.xpose.msra.mxu0 0.0
  %2939 = vmatpush.xpose.msra.mxu0 0.0
  %2940 = vmatpush.xpose.msra.mxu0 0.0
  %2941 = vmatpush.xpose.msra.mxu0 0.0
  %2942 = vmatpush.xpose.msra.mxu0 0.0
  %2943 = vmatpush.xpose.msra.mxu0 0.0
  %2944 = vmatpush.xpose.msra.mxu0 0.0
  %2945 = vmatpush.xpose.msra.mxu0 0.0
  %2946 = vmatpush.xpose.msra.mxu0 0.0
  %2947 = vmatpush.xpose.msra.mxu0 0.0
  %2948 = vmatpush.xpose.msra.mxu0 0.0
  %2949 = vmatpush.xpose.msra.mxu0 0.0
  %2950 = vmatpush.xpose.msra.mxu0 %v2933
  %2951 = vmatmul.f32.gmra.mxu0 %v2930
  %v2952 = vpop.f32.mrf.mxu0
  %v2953 = vadd.f32 0.0, %v2952
  %2954 = vdwg.mxu0
  %v2955 = vmul.f32 %v2953, 0.35355338
  %v2956 = vadd.f32 %v2955, %v524
  %v2957 = vsel %vm213, %v2956, -inf
  %2958 = vmax.xlane.f32.xlu0 %v2957
  %v2959 = vpop.xlane.xlu0 %2958
  %v2960 = vsub.f32 %v2956, %v2959
  %v2961 = vmul.f32 %v2960, 1.442695
  %v2962 = vpow.pop %v2961
  %v2963 = vsel %vm213, %v2962, 0.0
  %2964 = vadd.xlane.f32.xlu0 %v2963
  %v2965 = vpop.xlane.xlu0 %2964
  %v2966 = vrcp.pop %v2965
  %v2967 = vmul.f32 %v2962, %v2966
  %2968 = vrot.lane.b32.xlu0 %v2646, 96
  %v2969 = vpop.permute.xlu0 %2968
  %v2972 = vsel %vm213, %v2967, 0
  %2974 = vmatpush.msra.mxu0 0.0
  %2975 = vmatpush.msra.mxu0 0.0
  %2976 = vmatpush.msra.mxu0 0.0
  %2977 = vmatpush.msra.mxu0 0.0
  %2978 = vmatpush.msra.mxu0 0.0
  %2979 = vmatpush.msra.mxu0 0.0
  %2980 = vmatpush.msra.mxu0 0.0
  %2981 = vmatpush.msra.mxu0 0.0
  %2982 = vmatpush.msra.mxu0 0.0
  %2983 = vmatpush.msra.mxu0 0.0
  %2984 = vmatpush.msra.mxu0 0.0
  %2985 = vmatpush.msra.mxu0 0.0
  %2986 = vmatpush.msra.mxu0 0.0
  %2987 = vmatpush.msra.mxu0 0.0
  %2988 = vmatpush.msra.mxu0 0.0
  %2989 = vmatpush.msra.mxu0 %v2969
  %2990 = vmatmul.f32.gmra.mxu0 %v2972
  %v2991 = vpop.f32.mrf.mxu0
  %v2992 = vadd.f32 0.0, %v2991
  %2993 = vdwg.mxu0
  %2994 = vrot.lane.b32.xlu0 %v2609, 120
  %v2995 = vpop.permute.xlu0 %2994
  %2996 = vrot.lane.b32.xlu0 %v2646, 120
  %v2997 = vpop.permute.xlu0 %2996
  %v2998 = vsel %vm213, %v2995, 0
  %v3000 = vsel %vm213, %v2997, 0
  %3002 = vmatpush.xpose.msra.mxu0 0.0
  %3003 = vmatpush.xpose.msra.mxu0 0.0
  %3004 = vmatpush.xpose.msra.mxu0 0.0
  %3005 = vmatpush.xpose.msra.mxu0 0.0
  %3006 = vmatpush.xpose.msra.mxu0 0.0
  %3007 = vmatpush.xpose.msra.mxu0 0.0
  %3008 = vmatpush.xpose.msra.mxu0 0.0
  %3009 = vmatpush.xpose.msra.mxu0 0.0
  %3010 = vmatpush.xpose.msra.mxu0 0.0
  %3011 = vmatpush.xpose.msra.mxu0 0.0
  %3012 = vmatpush.xpose.msra.mxu0 0.0
  %3013 = vmatpush.xpose.msra.mxu0 0.0
  %3014 = vmatpush.xpose.msra.mxu0 0.0
  %3015 = vmatpush.xpose.msra.mxu0 0.0
  %3016 = vmatpush.xpose.msra.mxu0 0.0
  %3017 = vmatpush.xpose.msra.mxu0 %v3000
  %3018 = vmatmul.f32.gmra.mxu0 %v2998
  %v3019 = vpop.f32.mrf.mxu0
  %v3020 = vadd.f32 0.0, %v3019
  %3021 = vdwg.mxu0
  %v3022 = vmul.f32 %v3020, 0.35355338
  %v3023 = vadd.f32 %v3022, %v524
  %v3024 = vsel %vm213, %v3023, -inf
  %3025 = vmax.xlane.f32.xlu0 %v3024
  %v3026 = vpop.xlane.xlu0 %3025
  %v3027 = vsub.f32 %v3023, %v3026
  %v3028 = vmul.f32 %v3027, 1.442695
  %v3029 = vpow.pop %v3028
  %v3030 = vsel %vm213, %v3029, 0.0
  %3031 = vadd.xlane.f32.xlu0 %v3030
  %v3032 = vpop.xlane.xlu0 %3031
  %v3033 = vrcp.pop %v3032
  %v3034 = vmul.f32 %v3029, %v3033
  %3035 = vrot.lane.b32.xlu0 %v2646, 88
  %v3036 = vpop.permute.xlu0 %3035
  %v3039 = vsel %vm213, %v3034, 0
  %3041 = vmatpush.msra.mxu0 0.0
  %3042 = vmatpush.msra.mxu0 0.0
  %3043 = vmatpush.msra.mxu0 0.0
  %3044 = vmatpush.msra.mxu0 0.0
  %3045 = vmatpush.msra.mxu0 0.0
  %3046 = vmatpush.msra.mxu0 0.0
  %3047 = vmatpush.msra.mxu0 0.0
  %3048 = vmatpush.msra.mxu0 0.0
  %3049 = vmatpush.msra.mxu0 0.0
  %3050 = vmatpush.msra.mxu0 0.0
  %3051 = vmatpush.msra.mxu0 0.0
  %3052 = vmatpush.msra.mxu0 0.0
  %3053 = vmatpush.msra.mxu0 0.0
  %3054 = vmatpush.msra.mxu0 0.0
  %3055 = vmatpush.msra.mxu0 0.0
  %3056 = vmatpush.msra.mxu0 %v3036
  %3057 = vmatmul.f32.gmra.mxu0 %v3039
  %v3058 = vpop.f32.mrf.mxu0
  %v3059 = vadd.f32 0.0, %v3058
  %3060 = vdwg.mxu0
  %3061 = vrot.lane.b32.xlu0 %v2609, 112
  %v3062 = vpop.permute.xlu0 %3061
  %3063 = vrot.lane.b32.xlu0 %v2646, 112
  %v3064 = vpop.permute.xlu0 %3063
  %v3065 = vsel %vm213, %v3062, 0
  %v3067 = vsel %vm213, %v3064, 0
  %3069 = vmatpush.xpose.msra.mxu0 0.0
  %3070 = vmatpush.xpose.msra.mxu0 0.0
  %3071 = vmatpush.xpose.msra.mxu0 0.0
  %3072 = vmatpush.xpose.msra.mxu0 0.0
  %3073 = vmatpush.xpose.msra.mxu0 0.0
  %3074 = vmatpush.xpose.msra.mxu0 0.0
  %3075 = vmatpush.xpose.msra.mxu0 0.0
  %3076 = vmatpush.xpose.msra.mxu0 0.0
  %3077 = vmatpush.xpose.msra.mxu0 0.0
  %3078 = vmatpush.xpose.msra.mxu0 0.0
  %3079 = vmatpush.xpose.msra.mxu0 0.0
  %3080 = vmatpush.xpose.msra.mxu0 0.0
  %3081 = vmatpush.xpose.msra.mxu0 0.0
  %3082 = vmatpush.xpose.msra.mxu0 0.0
  %3083 = vmatpush.xpose.msra.mxu0 0.0
  %3084 = vmatpush.xpose.msra.mxu0 %v3067
  %3085 = vmatmul.f32.gmra.mxu0 %v3065
  %v3086 = vpop.f32.mrf.mxu0
  %v3087 = vadd.f32 0.0, %v3086
  %3088 = vdwg.mxu0
  %v3089 = vmul.f32 %v3087, 0.35355338
  %v3090 = vadd.f32 %v3089, %v524
  %v3091 = vsel %vm213, %v3090, -inf
  %3092 = vmax.xlane.f32.xlu0 %v3091
  %v3093 = vpop.xlane.xlu0 %3092
  %v3094 = vsub.f32 %v3090, %v3093
  %v3095 = vmul.f32 %v3094, 1.442695
  %v3096 = vpow.pop %v3095
  %v3097 = vsel %vm213, %v3096, 0.0
  %3098 = vadd.xlane.f32.xlu0 %v3097
  %v3099 = vpop.xlane.xlu0 %3098
  %v3100 = vrcp.pop %v3099
  %v3101 = vmul.f32 %v3096, %v3100
  %3102 = vrot.lane.b32.xlu0 %v2646, 80
  %v3103 = vpop.permute.xlu0 %3102
  %v3106 = vsel %vm213, %v3101, 0
  %3108 = vmatpush.msra.mxu0 0.0
  %3109 = vmatpush.msra.mxu0 0.0
  %3110 = vmatpush.msra.mxu0 0.0
  %3111 = vmatpush.msra.mxu0 0.0
  %3112 = vmatpush.msra.mxu0 0.0
  %3113 = vmatpush.msra.mxu0 0.0
  %3114 = vmatpush.msra.mxu0 0.0
  %3115 = vmatpush.msra.mxu0 0.0
  %3116 = vmatpush.msra.mxu0 0.0
  %3117 = vmatpush.msra.mxu0 0.0
  %3118 = vmatpush.msra.mxu0 0.0
  %3119 = vmatpush.msra.mxu0 0.0
  %3120 = vmatpush.msra.mxu0 0.0
  %3121 = vmatpush.msra.mxu0 0.0
  %3122 = vmatpush.msra.mxu0 0.0
  %3123 = vmatpush.msra.mxu0 %v3103
  %3124 = vmatmul.f32.gmra.mxu0 %v3106
  %v3125 = vpop.f32.mrf.mxu0
  %v3126 = vadd.f32 0.0, %v3125
  %3127 = vdwg.mxu0
  %3128 = vrot.lane.b32.xlu0 %v2609, 104
  %v3129 = vpop.permute.xlu0 %3128
  %3130 = vrot.lane.b32.xlu0 %v2646, 104
  %v3131 = vpop.permute.xlu0 %3130
  %v3132 = vsel %vm213, %v3129, 0
  %v3134 = vsel %vm213, %v3131, 0
  %3136 = vmatpush.xpose.msra.mxu0 0.0
  %3137 = vmatpush.xpose.msra.mxu0 0.0
  %3138 = vmatpush.xpose.msra.mxu0 0.0
  %3139 = vmatpush.xpose.msra.mxu0 0.0
  %3140 = vmatpush.xpose.msra.mxu0 0.0
  %3141 = vmatpush.xpose.msra.mxu0 0.0
  %3142 = vmatpush.xpose.msra.mxu0 0.0
  %3143 = vmatpush.xpose.msra.mxu0 0.0
  %3144 = vmatpush.xpose.msra.mxu0 0.0
  %3145 = vmatpush.xpose.msra.mxu0 0.0
  %3146 = vmatpush.xpose.msra.mxu0 0.0
  %3147 = vmatpush.xpose.msra.mxu0 0.0
  %3148 = vmatpush.xpose.msra.mxu0 0.0
  %3149 = vmatpush.xpose.msra.mxu0 0.0
  %3150 = vmatpush.xpose.msra.mxu0 0.0
  %3151 = vmatpush.xpose.msra.mxu0 %v3134
  %3152 = vmatmul.f32.gmra.mxu0 %v3132
  %v3153 = vpop.f32.mrf.mxu0
  %v3154 = vadd.f32 0.0, %v3153
  %3155 = vdwg.mxu0
  %v3156 = vmul.f32 %v3154, 0.35355338
  %v3157 = vadd.f32 %v3156, %v524
  %v3158 = vsel %vm213, %v3157, -inf
  %3159 = vmax.xlane.f32.xlu0 %v3158
  %v3160 = vpop.xlane.xlu0 %3159
  %v3161 = vsub.f32 %v3157, %v3160
  %v3162 = vmul.f32 %v3161, 1.442695
  %v3163 = vpow.pop %v3162
  %v3164 = vsel %vm213, %v3163, 0.0
  %3165 = vadd.xlane.f32.xlu0 %v3164
  %v3166 = vpop.xlane.xlu0 %3165
  %v3167 = vrcp.pop %v3166
  %v3168 = vmul.f32 %v3163, %v3167
  %3169 = vrot.lane.b32.xlu0 %v2646, 72
  %v3170 = vpop.permute.xlu0 %3169
  %v3173 = vsel %vm213, %v3168, 0
  %3175 = vmatpush.msra.mxu0 0.0
  %3176 = vmatpush.msra.mxu0 0.0
  %3177 = vmatpush.msra.mxu0 0.0
  %3178 = vmatpush.msra.mxu0 0.0
  %3179 = vmatpush.msra.mxu0 0.0
  %3180 = vmatpush.msra.mxu0 0.0
  %3181 = vmatpush.msra.mxu0 0.0
  %3182 = vmatpush.msra.mxu0 0.0
  %3183 = vmatpush.msra.mxu0 0.0
  %3184 = vmatpush.msra.mxu0 0.0
  %3185 = vmatpush.msra.mxu0 0.0
  %3186 = vmatpush.msra.mxu0 0.0
  %3187 = vmatpush.msra.mxu0 0.0
  %3188 = vmatpush.msra.mxu0 0.0
  %3189 = vmatpush.msra.mxu0 0.0
  %3190 = vmatpush.msra.mxu0 %v3170
  %3191 = vmatmul.f32.gmra.mxu0 %v3173
  %v3192 = vpop.f32.mrf.mxu0
  %v3193 = vadd.f32 0.0, %v3192
  %3194 = vdwg.mxu0
  %3196 = vrot.lane.b32.xlu0 %v3059, 8
  %v3197 = vpop.permute.xlu0 %3196
  %3200 = vrot.lane.b32.xlu0 %v3126, 16
  %v3201 = vpop.permute.xlu0 %3200
  %3204 = vrot.lane.b32.xlu0 %v3193, 24
  %v3205 = vpop.permute.xlu0 %3204
  %v3207 = vsel %vm213, %v2992, %v3197
  %v3208 = vsel %vm492, %v3207, %v3201
  %v3209 = vsel %vm494, %v3208, %v3205
  %v3210 = vld [vmem:[%s53] sm:$0xff]
  %v3211 = vld [vmem:[%s53 + $0x8] sm:$0xff]
  %v3212 = vld [vmem:[%s53 + $0x10] sm:$0xff]
  %v3213 = vld [vmem:[%s53 + $0x18] sm:$0xff]
  %v3214 = vld [vmem:[%s55] sm:$0x1]
  %v3216 = vperm.slane %v3214, 0
  %v3219 = vsel %vm180, %v2928, 0
  %v3222 = vsel %vm180, %v3209, 0
  %3224 = vmatpush.msra.mxu0 0.0
  %3225 = vmatpush.msra.mxu0 0.0
  %3226 = vmatpush.msra.mxu0 0.0
  %3227 = vmatpush.msra.mxu0 0.0
  %3228 = vmatpush.msra.mxu0 0.0
  %3229 = vmatpush.msra.mxu0 0.0
  %3230 = vmatpush.msra.mxu0 0.0
  %3231 = vmatpush.msra.mxu0 0.0
  %3232 = vmatpush.msra.mxu0 0.0
  %3233 = vmatpush.msra.mxu0 0.0
  %3234 = vmatpush.msra.mxu0 0.0
  %3235 = vmatpush.msra.mxu0 0.0
  %3236 = vmatpush.msra.mxu0 %v3213
  %3237 = vmatpush.msra.mxu0 %v3212
  %3238 = vmatpush.msra.mxu0 %v3211
  %3239 = vmatpush.msra.mxu0 %v3210
  %3240 = vmatmul.f32.gmra.mxu0 %v3219
  %v3241 = vpop.f32.mrf.mxu0
  %v3242 = vadd.f32 %v3216, %v3241
  %3243 = vmatmul.f32.gmra.mxu0 %v3222
  %v3244 = vpop.f32.mrf.mxu0
  %v3245 = vadd.f32 %v3216, %v3244
  %3246 = vdwg.mxu0
  %v3247 = vld [vmem:[%s57] sm:$0x1]
  %v3248 = vld [vmem:[%s59] sm:$0x1]
  %v3249 = vadd.f32 %v2572, %v3242
  %v3250 = vadd.f32 %v2573, %v3245
  %v3251 = vsel %vm180, %v3249, 0.0
  %3252 = vadd.xlane.f32.xlu0 %v3251
  %v3253 = vpop.xlane.xlu0 %3252
  %v3254 = vsel %vm180, %v3250, 0.0
  %3255 = vadd.xlane.f32.xlu0 %v3254
  %v3256 = vpop.xlane.xlu0 %3255
  %v3257 = vmul.f32 %v3253, %v832
  %v3258 = vmul.f32 %v3256, %v832
  %v3259 = vsub.f32 %v3249, %v3257
  %v3260 = vsub.f32 %v3250, %v3258
  %v3261 = vmul.f32 %v3259, %v3259
  %v3262 = vmul.f32 %v3260, %v3260
  %v3263 = vsel %vm180, %v3261, 0.0
  %3264 = vadd.xlane.f32.xlu0 %v3263
  %v3265 = vpop.xlane.xlu0 %3264
  %v3266 = vsel %vm180, %v3262, 0.0
  %3267 = vadd.xlane.f32.xlu0 %v3266
  %v3268 = vpop.xlane.xlu0 %3267
  %v3269 = vmul.f32 %v3265, %v832
  %v3270 = vmul.f32 %v3268, %v832
  %v3271 = vadd.f32 %v3269, 1e-05
  %v3272 = vadd.f32 %v3270, 1e-05
  %v3273 = vrsqrt.pop %v3271
  %v3274 = vmul.f32 %v3273, %v3271
  %v3275 = vmul.f32 %v3274, %v3273
  %v3276 = vmul.f32 0.5, %v3275
  %v3277 = vsub.f32 1.5, %v3276
  %v3278 = vmul.f32 %v3273, %v3277
  %vm3279 = vweird.f32 %v3271
  %vm3280 = vweird.f32 %v3273
  %vm3281 = vmor %vm3279, %vm3280
  %v3282 = vsel %vm3281, %v3273, %v3278
  %v3283 = vrsqrt.pop %v3272
  %v3284 = vmul.f32 %v3283, %v3272
  %v3285 = vmul.f32 %v3284, %v3283
  %v3286 = vmul.f32 0.5, %v3285
  %v3287 = vsub.f32 1.5, %v3286
  %v3288 = vmul.f32 %v3283, %v3287
  %vm3289 = vweird.f32 %v3272
  %vm3290 = vweird.f32 %v3283
  %vm3291 = vmor %vm3289, %vm3290
  %v3292 = vsel %vm3291, %v3283, %v3288
  %v3293 = vmul.f32 %v3259, %v3282
  %v3294 = vmul.f32 %v3260, %v3292
  %v3296 = vperm.slane %v3247, 0
  %v3298 = vmul.f32 %v3293, %v3296
  %v3299 = vmul.f32 %v3294, %v3296
  %v3301 = vperm.slane %v3248, 0
  %v3303 = vadd.f32 %v3298, %v3301
  %v3304 = vadd.f32 %v3299, %v3301
  %v3305 = vld [vmem:[%s61] sm:$0xff]
  %v3306 = vld [vmem:[%s61 + $0x8] sm:$0xff]
  %v3307 = vld [vmem:[%s61 + $0x10] sm:$0xff]
  %v3308 = vld [vmem:[%s61 + $0x18] sm:$0xff]
  %v3309 = vld [vmem:[%s63] sm:$0x1]
  %v3311 = vperm.slane %v3309, 0
  %v3314 = vsel %vm180, %v3303, 0
  %v3317 = vsel %vm180, %v3304, 0
  %3319 = vmatpush.msra.mxu0 0.0
  %3320 = vmatpush.msra.mxu0 0.0
  %3321 = vmatpush.msra.mxu0 0.0
  %3322 = vmatpush.msra.mxu0 0.0
  %3323 = vmatpush.msra.mxu0 0.0
  %3324 = vmatpush.msra.mxu0 0.0
  %3325 = vmatpush.msra.mxu0 0.0
  %3326 = vmatpush.msra.mxu0 0.0
  %3327 = vmatpush.msra.mxu0 0.0
  %3328 = vmatpush.msra.mxu0 0.0
  %3329 = vmatpush.msra.mxu0 0.0
  %3330 = vmatpush.msra.mxu0 0.0
  %3331 = vmatpush.msra.mxu0 %v3308
  %3332 = vmatpush.msra.mxu0 %v3307
  %3333 = vmatpush.msra.mxu0 %v3306
  %3334 = vmatpush.msra.mxu0 %v3305
  %3335 = vmatmul.f32.gmra.mxu0 %v3314
  %v3336 = vpop.f32.mrf.mxu0
  %v3337 = vadd.f32 %v3311, %v3336
  %3338 = vmatmul.f32.gmra.mxu0 %v3317
  %v3339 = vpop.f32.mrf.mxu0
  %v3340 = vadd.f32 %v3311, %v3339
  %3341 = vdwg.mxu0
  %v3342 = vmax.f32 %v3337, 0.0
  %v3343 = vmax.f32 %v3340, 0.0
  %v3344 = vld [vmem:[%s65] sm:$0xff]
  %v3345 = vld [vmem:[%s65 + $0x8] sm:$0xff]
  %v3346 = vld [vmem:[%s65 + $0x10] sm:$0xff]
  %v3347 = vld [vmem:[%s65 + $0x18] sm:$0xff]
  %v3348 = vld [vmem:[%s65 + $0x20] sm:$0xff]
  %v3349 = vld [vmem:[%s65 + $0x28] sm:$0xff]
  %v3350 = vld [vmem:[%s65 + $0x30] sm:$0xff]
  %v3351 = vld [vmem:[%s65 + $0x38] sm:$0xff]
  %v3352 = vld [vmem:[%s67] sm:$0x1]
  %v3354 = vperm.slane %v3352, 0
  %v3357 = vsel %vm932, %v3342, 0
  %v3360 = vsel %vm932, %v3343, 0
  %3362 = vmatpush.msra.mxu0 0.0
  %3363 = vmatpush.msra.mxu0 0.0
  %3364 = vmatpush.msra.mxu0 0.0
  %3365 = vmatpush.msra.mxu0 0.0
  %3366 = vmatpush.msra.mxu0 0.0
  %3367 = vmatpush.msra.mxu0 0.0
  %3368 = vmatpush.msra.mxu0 0.0
  %3369 = vmatpush.msra.mxu0 0.0
  %3370 = vmatpush.msra.mxu0 %v3351
  %3371 = vmatpush.msra.mxu0 %v3350
  %3372 = vmatpush.msra.mxu0 %v3349
  %3373 = vmatpush.msra.mxu0 %v3348
  %3374 = vmatpush.msra.mxu0 %v3347
  %3375 = vmatpush.msra.mxu0 %v3346
  %3376 = vmatpush.msra.mxu0 %v3345
  %3377 = vmatpush.msra.mxu0 %v3344
  %3378 = vmatmul.f32.gmra.mxu0 %v3357
  %v3379 = vpop.f32.mrf.mxu0
  %v3380 = vadd.f32 %v3354, %v3379
  %3381 = vmatmul.f32.gmra.mxu0 %v3360
  %v3382 = vpop.f32.mrf.mxu0
  %v3383 = vadd.f32 %v3354, %v3382
  %3384 = vdwg.mxu0
  %v3385 = vld [vmem:[%s69] sm:$0x1]
  %v3386 = vld [vmem:[%s71] sm:$0x1]
  %v3387 = vadd.f32 %v3303, %v3380
  %v3388 = vadd.f32 %v3304, %v3383
  %v3389 = vsel %vm180, %v3387, 0.0
  %3390 = vadd.xlane.f32.xlu0 %v3389
  %v3391 = vpop.xlane.xlu0 %3390
  %v3392 = vsel %vm180, %v3388, 0.0
  %3393 = vadd.xlane.f32.xlu0 %v3392
  %v3394 = vpop.xlane.xlu0 %3393
  %v3395 = vmul.f32 %v3391, %v832
  %v3396 = vmul.f32 %v3394, %v832
  %v3397 = vsub.f32 %v3387, %v3395
  %v3398 = vsub.f32 %v3388, %v3396
  %v3399 = vmul.f32 %v3397, %v3397
  %v3400 = vmul.f32 %v3398, %v3398
  %v3401 = vsel %vm180, %v3399, 0.0
  %3402 = vadd.xlane.f32.xlu0 %v3401
  %v3403 = vpop.xlane.xlu0 %3402
  %v3404 = vsel %vm180, %v3400, 0.0
  %3405 = vadd.xlane.f32.xlu0 %v3404
  %v3406 = vpop.xlane.xlu0 %3405
  %v3407 = vmul.f32 %v3403, %v832
  %v3408 = vmul.f32 %v3406, %v832
  %v3409 = vadd.f32 %v3407, 1e-05
  %v3410 = vadd.f32 %v3408, 1e-05
  %v3411 = vrsqrt.pop %v3409
  %v3412 = vmul.f32 %v3411, %v3409
  %v3413 = vmul.f32 %v3412, %v3411
  %v3414 = vmul.f32 0.5, %v3413
  %v3415 = vsub.f32 1.5, %v3414
  %v3416 = vmul.f32 %v3411, %v3415
  %vm3417 = vweird.f32 %v3409
  %vm3418 = vweird.f32 %v3411
  %vm3419 = vmor %vm3417, %vm3418
  %v3420 = vsel %vm3419, %v3411, %v3416
  %v3421 = vrsqrt.pop %v3410
  %v3422 = vmul.f32 %v3421, %v3410
  %v3423 = vmul.f32 %v3422, %v3421
  %v3424 = vmul.f32 0.5, %v3423
  %v3425 = vsub.f32 1.5, %v3424
  %v3426 = vmul.f32 %v3421, %v3425
  %vm3427 = vweird.f32 %v3410
  %vm3428 = vweird.f32 %v3421
  %vm3429 = vmor %vm3427, %vm3428
  %v3430 = vsel %vm3429, %v3421, %v3426
  %v3431 = vmul.f32 %v3397, %v3420
  %v3432 = vmul.f32 %v3398, %v3430
  %v3434 = vperm.slane %v3385, 0
  %v3436 = vmul.f32 %v3431, %v3434
  %v3437 = vmul.f32 %v3432, %v3434
  %v3439 = vperm.slane %v3386, 0
  %v3441 = vadd.f32 %v3436, %v3439
  %v3442 = vadd.f32 %v3437, %v3439
  %s3443 = scalar_lea.vmem %s33, 32
  %v3444 = vld [vmem:[%s3443] sm:$0xff]
  %v3445 = vld [vmem:[%s3443 + $0x8] sm:$0xff]
  %v3446 = vld [vmem:[%s3443 + $0x10] sm:$0xff]
  %v3447 = vld [vmem:[%s3443 + $0x18] sm:$0xff]
  %s3448 = scalar_lea.vmem %s35, 1
  %v3449 = vld [vmem:[%s3448] sm:$0x1]
  %v3451 = vperm.slane %v3449, 0
  %v3454 = vsel %vm180, %v3441, 0
  %v3457 = vsel %vm180, %v3442, 0
  %3459 = vmatpush.msra.mxu0 0.0
  %3460 = vmatpush.msra.mxu0 0.0
  %3461 = vmatpush.msra.mxu0 0.0
  %3462 = vmatpush.msra.mxu0 0.0
  %3463 = vmatpush.msra.mxu0 0.0
  %3464 = vmatpush.msra.mxu0 0.0
  %3465 = vmatpush.msra.mxu0 0.0
  %3466 = vmatpush.msra.mxu0 0.0
  %3467 = vmatpush.msra.mxu0 0.0
  %3468 = vmatpush.msra.mxu0 0.0
  %3469 = vmatpush.msra.mxu0 0.0
  %3470 = vmatpush.msra.mxu0 0.0
  %3471 = vmatpush.msra.mxu0 %v3447
  %3472 = vmatpush.msra.mxu0 %v3446
  %3473 = vmatpush.msra.mxu0 %v3445
  %3474 = vmatpush.msra.mxu0 %v3444
  %3475 = vmatmul.f32.gmra.mxu0 %v3454
  %v3476 = vpop.f32.mrf.mxu0
  %v3477 = vadd.f32 %v3451, %v3476
  %3478 = vmatmul.f32.gmra.mxu0 %v3457
  %v3479 = vpop.f32.mrf.mxu0
  %v3480 = vadd.f32 %v3451, %v3479
  %3481 = vdwg.mxu0
  %3483 = vrot.lane.b32.xlu0 %v3477, 96
  %v3484 = vpop.permute.xlu0 %3483
  %v3485 = vsel %vm213, %v3477, 0
  %v3487 = vsel %vm213, %v3484, 0
  %3489 = vmatpush.xpose.msra.mxu0 0.0
  %3490 = vmatpush.xpose.msra.mxu0 0.0
  %3491 = vmatpush.xpose.msra.mxu0 0.0
  %3492 = vmatpush.xpose.msra.mxu0 0.0
  %3493 = vmatpush.xpose.msra.mxu0 0.0
  %3494 = vmatpush.xpose.msra.mxu0 0.0
  %3495 = vmatpush.xpose.msra.mxu0 0.0
  %3496 = vmatpush.xpose.msra.mxu0 0.0
  %3497 = vmatpush.xpose.msra.mxu0 0.0
  %3498 = vmatpush.xpose.msra.mxu0 0.0
  %3499 = vmatpush.xpose.msra.mxu0 0.0
  %3500 = vmatpush.xpose.msra.mxu0 0.0
  %3501 = vmatpush.xpose.msra.mxu0 0.0
  %3502 = vmatpush.xpose.msra.mxu0 0.0
  %3503 = vmatpush.xpose.msra.mxu0 0.0
  %3504 = vmatpush.xpose.msra.mxu0 %v3487
  %3505 = vmatmul.f32.gmra.mxu0 %v3485
  %v3506 = vpop.f32.mrf.mxu0
  %v3507 = vadd.f32 0.0, %v3506
  %3508 = vdwg.mxu0
  %v3509 = vmul.f32 %v3507, 0.35355338
  %v3510 = vadd.f32 %v3509, %v1933
  %v3511 = vadd.f32 %v3510, %v169
  %v3512 = vsel %vm213, %v3511, -inf
  %3513 = vmax.xlane.f32.xlu0 %v3512
  %v3514 = vpop.xlane.xlu0 %3513
  %v3515 = vsub.f32 %v3511, %v3514
  %v3516 = vmul.f32 %v3515, 1.442695
  %v3517 = vpow.pop %v3516
  %v3518 = vsel %vm213, %v3517, 0.0
  %3519 = vadd.xlane.f32.xlu0 %v3518
  %v3520 = vpop.xlane.xlu0 %3519
  %v3521 = vrcp.pop %v3520
  %v3522 = vmul.f32 %v3517, %v3521
  %3523 = vrot.lane.b32.xlu0 %v3477, 64
  %v3524 = vpop.permute.xlu0 %3523
  %v3527 = vsel %vm213, %v3522, 0
  %3529 = vmatpush.msra.mxu0 0.0
  %3530 = vmatpush.msra.mxu0 0.0
  %3531 = vmatpush.msra.mxu0 0.0
  %3532 = vmatpush.msra.mxu0 0.0
  %3533 = vmatpush.msra.mxu0 0.0
  %3534 = vmatpush.msra.mxu0 0.0
  %3535 = vmatpush.msra.mxu0 0.0
  %3536 = vmatpush.msra.mxu0 0.0
  %3537 = vmatpush.msra.mxu0 0.0
  %3538 = vmatpush.msra.mxu0 0.0
  %3539 = vmatpush.msra.mxu0 0.0
  %3540 = vmatpush.msra.mxu0 0.0
  %3541 = vmatpush.msra.mxu0 0.0
  %3542 = vmatpush.msra.mxu0 0.0
  %3543 = vmatpush.msra.mxu0 0.0
  %3544 = vmatpush.msra.mxu0 %v3524
  %3545 = vmatmul.f32.gmra.mxu0 %v3527
  %v3546 = vpop.f32.mrf.mxu0
  %v3547 = vadd.f32 0.0, %v3546
  %3548 = vdwg.mxu0
  %3549 = vrot.lane.b32.xlu0 %v3477, 120
  %v3550 = vpop.permute.xlu0 %3549
  %3551 = vrot.lane.b32.xlu0 %v3477, 88
  %v3552 = vpop.permute.xlu0 %3551
  %v3553 = vsel %vm213, %v3550, 0
  %v3555 = vsel %vm213, %v3552, 0
  %3557 = vmatpush.xpose.msra.mxu0 0.0
  %3558 = vmatpush.xpose.msra.mxu0 0.0
  %3559 = vmatpush.xpose.msra.mxu0 0.0
  %3560 = vmatpush.xpose.msra.mxu0 0.0
  %3561 = vmatpush.xpose.msra.mxu0 0.0
  %3562 = vmatpush.xpose.msra.mxu0 0.0
  %3563 = vmatpush.xpose.msra.mxu0 0.0
  %3564 = vmatpush.xpose.msra.mxu0 0.0
  %3565 = vmatpush.xpose.msra.mxu0 0.0
  %3566 = vmatpush.xpose.msra.mxu0 0.0
  %3567 = vmatpush.xpose.msra.mxu0 0.0
  %3568 = vmatpush.xpose.msra.mxu0 0.0
  %3569 = vmatpush.xpose.msra.mxu0 0.0
  %3570 = vmatpush.xpose.msra.mxu0 0.0
  %3571 = vmatpush.xpose.msra.mxu0 0.0
  %3572 = vmatpush.xpose.msra.mxu0 %v3555
  %3573 = vmatmul.f32.gmra.mxu0 %v3553
  %v3574 = vpop.f32.mrf.mxu0
  %v3575 = vadd.f32 0.0, %v3574
  %3576 = vdwg.mxu0
  %v3577 = vmul.f32 %v3575, 0.35355338
  %v3578 = vadd.f32 %v3577, %v1933
  %v3579 = vadd.f32 %v3578, %v169
  %v3580 = vsel %vm213, %v3579, -inf
  %3581 = vmax.xlane.f32.xlu0 %v3580
  %v3582 = vpop.xlane.xlu0 %3581
  %v3583 = vsub.f32 %v3579, %v3582
  %v3584 = vmul.f32 %v3583, 1.442695
  %v3585 = vpow.pop %v3584
  %v3586 = vsel %vm213, %v3585, 0.0
  %3587 = vadd.xlane.f32.xlu0 %v3586
  %v3588 = vpop.xlane.xlu0 %3587
  %v3589 = vrcp.pop %v3588
  %v3590 = vmul.f32 %v3585, %v3589
  %3591 = vrot.lane.b32.xlu0 %v3477, 56
  %v3592 = vpop.permute.xlu0 %3591
  %v3595 = vsel %vm213, %v3590, 0
  %3597 = vmatpush.msra.mxu0 0.0
  %3598 = vmatpush.msra.mxu0 0.0
  %3599 = vmatpush.msra.mxu0 0.0
  %3600 = vmatpush.msra.mxu0 0.0
  %3601 = vmatpush.msra.mxu0 0.0
  %3602 = vmatpush.msra.mxu0 0.0
  %3603 = vmatpush.msra.mxu0 0.0
  %3604 = vmatpush.msra.mxu0 0.0
  %3605 = vmatpush.msra.mxu0 0.0
  %3606 = vmatpush.msra.mxu0 0.0
  %3607 = vmatpush.msra.mxu0 0.0
  %3608 = vmatpush.msra.mxu0 0.0
  %3609 = vmatpush.msra.mxu0 0.0
  %3610 = vmatpush.msra.mxu0 0.0
  %3611 = vmatpush.msra.mxu0 0.0
  %3612 = vmatpush.msra.mxu0 %v3592
  %3613 = vmatmul.f32.gmra.mxu0 %v3595
  %v3614 = vpop.f32.mrf.mxu0
  %v3615 = vadd.f32 0.0, %v3614
  %3616 = vdwg.mxu0
  %3617 = vrot.lane.b32.xlu0 %v3477, 112
  %v3618 = vpop.permute.xlu0 %3617
  %3619 = vrot.lane.b32.xlu0 %v3477, 80
  %v3620 = vpop.permute.xlu0 %3619
  %v3621 = vsel %vm213, %v3618, 0
  %v3623 = vsel %vm213, %v3620, 0
  %3625 = vmatpush.xpose.msra.mxu0 0.0
  %3626 = vmatpush.xpose.msra.mxu0 0.0
  %3627 = vmatpush.xpose.msra.mxu0 0.0
  %3628 = vmatpush.xpose.msra.mxu0 0.0
  %3629 = vmatpush.xpose.msra.mxu0 0.0
  %3630 = vmatpush.xpose.msra.mxu0 0.0
  %3631 = vmatpush.xpose.msra.mxu0 0.0
  %3632 = vmatpush.xpose.msra.mxu0 0.0
  %3633 = vmatpush.xpose.msra.mxu0 0.0
  %3634 = vmatpush.xpose.msra.mxu0 0.0
  %3635 = vmatpush.xpose.msra.mxu0 0.0
  %3636 = vmatpush.xpose.msra.mxu0 0.0
  %3637 = vmatpush.xpose.msra.mxu0 0.0
  %3638 = vmatpush.xpose.msra.mxu0 0.0
  %3639 = vmatpush.xpose.msra.mxu0 0.0
  %3640 = vmatpush.xpose.msra.mxu0 %v3623
  %3641 = vmatmul.f32.gmra.mxu0 %v3621
  %v3642 = vpop.f32.mrf.mxu0
  %v3643 = vadd.f32 0.0, %v3642
  %3644 = vdwg.mxu0
  %v3645 = vmul.f32 %v3643, 0.35355338
  %v3646 = vadd.f32 %v3645, %v1933
  %v3647 = vadd.f32 %v3646, %v169
  %v3648 = vsel %vm213, %v3647, -inf
  %3649 = vmax.xlane.f32.xlu0 %v3648
  %v3650 = vpop.xlane.xlu0 %3649
  %v3651 = vsub.f32 %v3647, %v3650
  %v3652 = vmul.f32 %v3651, 1.442695
  %v3653 = vpow.pop %v3652
  %v3654 = vsel %vm213, %v3653, 0.0
  %3655 = vadd.xlane.f32.xlu0 %v3654
  %v3656 = vpop.xlane.xlu0 %3655
  %v3657 = vrcp.pop %v3656
  %v3658 = vmul.f32 %v3653, %v3657
  %3659 = vrot.lane.b32.xlu0 %v3477, 48
  %v3660 = vpop.permute.xlu0 %3659
  %v3663 = vsel %vm213, %v3658, 0
  %3665 = vmatpush.msra.mxu0 0.0
  %3666 = vmatpush.msra.mxu0 0.0
  %3667 = vmatpush.msra.mxu0 0.0
  %3668 = vmatpush.msra.mxu0 0.0
  %3669 = vmatpush.msra.mxu0 0.0
  %3670 = vmatpush.msra.mxu0 0.0
  %3671 = vmatpush.msra.mxu0 0.0
  %3672 = vmatpush.msra.mxu0 0.0
  %3673 = vmatpush.msra.mxu0 0.0
  %3674 = vmatpush.msra.mxu0 0.0
  %3675 = vmatpush.msra.mxu0 0.0
  %3676 = vmatpush.msra.mxu0 0.0
  %3677 = vmatpush.msra.mxu0 0.0
  %3678 = vmatpush.msra.mxu0 0.0
  %3679 = vmatpush.msra.mxu0 0.0
  %3680 = vmatpush.msra.mxu0 %v3660
  %3681 = vmatmul.f32.gmra.mxu0 %v3663
  %v3682 = vpop.f32.mrf.mxu0
  %v3683 = vadd.f32 0.0, %v3682
  %3684 = vdwg.mxu0
  %3685 = vrot.lane.b32.xlu0 %v3477, 104
  %v3686 = vpop.permute.xlu0 %3685
  %3687 = vrot.lane.b32.xlu0 %v3477, 72
  %v3688 = vpop.permute.xlu0 %3687
  %v3689 = vsel %vm213, %v3686, 0
  %v3691 = vsel %vm213, %v3688, 0
  %3693 = vmatpush.xpose.msra.mxu0 0.0
  %3694 = vmatpush.xpose.msra.mxu0 0.0
  %3695 = vmatpush.xpose.msra.mxu0 0.0
  %3696 = vmatpush.xpose.msra.mxu0 0.0
  %3697 = vmatpush.xpose.msra.mxu0 0.0
  %3698 = vmatpush.xpose.msra.mxu0 0.0
  %3699 = vmatpush.xpose.msra.mxu0 0.0
  %3700 = vmatpush.xpose.msra.mxu0 0.0
  %3701 = vmatpush.xpose.msra.mxu0 0.0
  %3702 = vmatpush.xpose.msra.mxu0 0.0
  %3703 = vmatpush.xpose.msra.mxu0 0.0
  %3704 = vmatpush.xpose.msra.mxu0 0.0
  %3705 = vmatpush.xpose.msra.mxu0 0.0
  %3706 = vmatpush.xpose.msra.mxu0 0.0
  %3707 = vmatpush.xpose.msra.mxu0 0.0
  %3708 = vmatpush.xpose.msra.mxu0 %v3691
  %3709 = vmatmul.f32.gmra.mxu0 %v3689
  %v3710 = vpop.f32.mrf.mxu0
  %v3711 = vadd.f32 0.0, %v3710
  %3712 = vdwg.mxu0
  %v3713 = vmul.f32 %v3711, 0.35355338
  %v3714 = vadd.f32 %v3713, %v1933
  %v3715 = vadd.f32 %v3714, %v169
  %v3716 = vsel %vm213, %v3715, -inf
  %3717 = vmax.xlane.f32.xlu0 %v3716
  %v3718 = vpop.xlane.xlu0 %3717
  %v3719 = vsub.f32 %v3715, %v3718
  %v3720 = vmul.f32 %v3719, 1.442695
  %v3721 = vpow.pop %v3720
  %v3722 = vsel %vm213, %v3721, 0.0
  %3723 = vadd.xlane.f32.xlu0 %v3722
  %v3724 = vpop.xlane.xlu0 %3723
  %v3725 = vrcp.pop %v3724
  %v3726 = vmul.f32 %v3721, %v3725
  %3727 = vrot.lane.b32.xlu0 %v3477, 40
  %v3728 = vpop.permute.xlu0 %3727
  %v3731 = vsel %vm213, %v3726, 0
  %3733 = vmatpush.msra.mxu0 0.0
  %3734 = vmatpush.msra.mxu0 0.0
  %3735 = vmatpush.msra.mxu0 0.0
  %3736 = vmatpush.msra.mxu0 0.0
  %3737 = vmatpush.msra.mxu0 0.0
  %3738 = vmatpush.msra.mxu0 0.0
  %3739 = vmatpush.msra.mxu0 0.0
  %3740 = vmatpush.msra.mxu0 0.0
  %3741 = vmatpush.msra.mxu0 0.0
  %3742 = vmatpush.msra.mxu0 0.0
  %3743 = vmatpush.msra.mxu0 0.0
  %3744 = vmatpush.msra.mxu0 0.0
  %3745 = vmatpush.msra.mxu0 0.0
  %3746 = vmatpush.msra.mxu0 0.0
  %3747 = vmatpush.msra.mxu0 0.0
  %3748 = vmatpush.msra.mxu0 %v3728
  %3749 = vmatmul.f32.gmra.mxu0 %v3731
  %v3750 = vpop.f32.mrf.mxu0
  %v3751 = vadd.f32 0.0, %v3750
  %3752 = vdwg.mxu0
  %3754 = vrot.lane.b32.xlu0 %v3615, 8
  %v3755 = vpop.permute.xlu0 %3754
  %3758 = vrot.lane.b32.xlu0 %v3683, 16
  %v3759 = vpop.permute.xlu0 %3758
  %3762 = vrot.lane.b32.xlu0 %v3751, 24
  %v3763 = vpop.permute.xlu0 %3762
  %v3765 = vsel %vm213, %v3547, %v3755
  %v3766 = vsel %vm492, %v3765, %v3759
  %v3767 = vsel %vm494, %v3766, %v3763
  %3769 = vrot.lane.b32.xlu0 %v3480, 96
  %v3770 = vpop.permute.xlu0 %3769
  %v3771 = vsel %vm213, %v3480, 0
  %v3773 = vsel %vm213, %v3770, 0
  %3775 = vmatpush.xpose.msra.mxu0 0.0
  %3776 = vmatpush.xpose.msra.mxu0 0.0
  %3777 = vmatpush.xpose.msra.mxu0 0.0
  %3778 = vmatpush.xpose.msra.mxu0 0.0
  %3779 = vmatpush.xpose.msra.mxu0 0.0
  %3780 = vmatpush.xpose.msra.mxu0 0.0
  %3781 = vmatpush.xpose.msra.mxu0 0.0
  %3782 = vmatpush.xpose.msra.mxu0 0.0
  %3783 = vmatpush.xpose.msra.mxu0 0.0
  %3784 = vmatpush.xpose.msra.mxu0 0.0
  %3785 = vmatpush.xpose.msra.mxu0 0.0
  %3786 = vmatpush.xpose.msra.mxu0 0.0
  %3787 = vmatpush.xpose.msra.mxu0 0.0
  %3788 = vmatpush.xpose.msra.mxu0 0.0
  %3789 = vmatpush.xpose.msra.mxu0 0.0
  %3790 = vmatpush.xpose.msra.mxu0 %v3773
  %3791 = vmatmul.f32.gmra.mxu0 %v3771
  %v3792 = vpop.f32.mrf.mxu0
  %v3793 = vadd.f32 0.0, %v3792
  %3794 = vdwg.mxu0
  %v3795 = vmul.f32 %v3793, 0.35355338
  %v3796 = vadd.f32 %v3795, %v2220
  %v3797 = vadd.f32 %v3796, %v169
  %v3798 = vsel %vm213, %v3797, -inf
  %3799 = vmax.xlane.f32.xlu0 %v3798
  %v3800 = vpop.xlane.xlu0 %3799
  %v3801 = vsub.f32 %v3797, %v3800
  %v3802 = vmul.f32 %v3801, 1.442695
  %v3803 = vpow.pop %v3802
  %v3804 = vsel %vm213, %v3803, 0.0
  %3805 = vadd.xlane.f32.xlu0 %v3804
  %v3806 = vpop.xlane.xlu0 %3805
  %v3807 = vrcp.pop %v3806
  %v3808 = vmul.f32 %v3803, %v3807
  %3809 = vrot.lane.b32.xlu0 %v3480, 64
  %v3810 = vpop.permute.xlu0 %3809
  %v3813 = vsel %vm213, %v3808, 0
  %3815 = vmatpush.msra.mxu0 0.0
  %3816 = vmatpush.msra.mxu0 0.0
  %3817 = vmatpush.msra.mxu0 0.0
  %3818 = vmatpush.msra.mxu0 0.0
  %3819 = vmatpush.msra.mxu0 0.0
  %3820 = vmatpush.msra.mxu0 0.0
  %3821 = vmatpush.msra.mxu0 0.0
  %3822 = vmatpush.msra.mxu0 0.0
  %3823 = vmatpush.msra.mxu0 0.0
  %3824 = vmatpush.msra.mxu0 0.0
  %3825 = vmatpush.msra.mxu0 0.0
  %3826 = vmatpush.msra.mxu0 0.0
  %3827 = vmatpush.msra.mxu0 0.0
  %3828 = vmatpush.msra.mxu0 0.0
  %3829 = vmatpush.msra.mxu0 0.0
  %3830 = vmatpush.msra.mxu0 %v3810
  %3831 = vmatmul.f32.gmra.mxu0 %v3813
  %v3832 = vpop.f32.mrf.mxu0
  %v3833 = vadd.f32 0.0, %v3832
  %3834 = vdwg.mxu0
  %3835 = vrot.lane.b32.xlu0 %v3480, 120
  %v3836 = vpop.permute.xlu0 %3835
  %3837 = vrot.lane.b32.xlu0 %v3480, 88
  %v3838 = vpop.permute.xlu0 %3837
  %v3839 = vsel %vm213, %v3836, 0
  %v3841 = vsel %vm213, %v3838, 0
  %3843 = vmatpush.xpose.msra.mxu0 0.0
  %3844 = vmatpush.xpose.msra.mxu0 0.0
  %3845 = vmatpush.xpose.msra.mxu0 0.0
  %3846 = vmatpush.xpose.msra.mxu0 0.0
  %3847 = vmatpush.xpose.msra.mxu0 0.0
  %3848 = vmatpush.xpose.msra.mxu0 0.0
  %3849 = vmatpush.xpose.msra.mxu0 0.0
  %3850 = vmatpush.xpose.msra.mxu0 0.0
  %3851 = vmatpush.xpose.msra.mxu0 0.0
  %3852 = vmatpush.xpose.msra.mxu0 0.0
  %3853 = vmatpush.xpose.msra.mxu0 0.0
  %3854 = vmatpush.xpose.msra.mxu0 0.0
  %3855 = vmatpush.xpose.msra.mxu0 0.0
  %3856 = vmatpush.xpose.msra.mxu0 0.0
  %3857 = vmatpush.xpose.msra.mxu0 0.0
  %3858 = vmatpush.xpose.msra.mxu0 %v3841
  %3859 = vmatmul.f32.gmra.mxu0 %v3839
  %v3860 = vpop.f32.mrf.mxu0
  %v3861 = vadd.f32 0.0, %v3860
  %3862 = vdwg.mxu0
  %v3863 = vmul.f32 %v3861, 0.35355338
  %v3864 = vadd.f32 %v3863, %v2220
  %v3865 = vadd.f32 %v3864, %v169
  %v3866 = vsel %vm213, %v3865, -inf
  %3867 = vmax.xlane.f32.xlu0 %v3866
  %v3868 = vpop.xlane.xlu0 %3867
  %v3869 = vsub.f32 %v3865, %v3868
  %v3870 = vmul.f32 %v3869, 1.442695
  %v3871 = vpow.pop %v3870
  %v3872 = vsel %vm213, %v3871, 0.0
  %3873 = vadd.xlane.f32.xlu0 %v3872
  %v3874 = vpop.xlane.xlu0 %3873
  %v3875 = vrcp.pop %v3874
  %v3876 = vmul.f32 %v3871, %v3875
  %3877 = vrot.lane.b32.xlu0 %v3480, 56
  %v3878 = vpop.permute.xlu0 %3877
  %v3881 = vsel %vm213, %v3876, 0
  %3883 = vmatpush.msra.mxu0 0.0
  %3884 = vmatpush.msra.mxu0 0.0
  %3885 = vmatpush.msra.mxu0 0.0
  %3886 = vmatpush.msra.mxu0 0.0
  %3887 = vmatpush.msra.mxu0 0.0
  %3888 = vmatpush.msra.mxu0 0.0
  %3889 = vmatpush.msra.mxu0 0.0
  %3890 = vmatpush.msra.mxu0 0.0
  %3891 = vmatpush.msra.mxu0 0.0
  %3892 = vmatpush.msra.mxu0 0.0
  %3893 = vmatpush.msra.mxu0 0.0
  %3894 = vmatpush.msra.mxu0 0.0
  %3895 = vmatpush.msra.mxu0 0.0
  %3896 = vmatpush.msra.mxu0 0.0
  %3897 = vmatpush.msra.mxu0 0.0
  %3898 = vmatpush.msra.mxu0 %v3878
  %3899 = vmatmul.f32.gmra.mxu0 %v3881
  %v3900 = vpop.f32.mrf.mxu0
  %v3901 = vadd.f32 0.0, %v3900
  %3902 = vdwg.mxu0
  %3903 = vrot.lane.b32.xlu0 %v3480, 112
  %v3904 = vpop.permute.xlu0 %3903
  %3905 = vrot.lane.b32.xlu0 %v3480, 80
  %v3906 = vpop.permute.xlu0 %3905
  %v3907 = vsel %vm213, %v3904, 0
  %v3909 = vsel %vm213, %v3906, 0
  %3911 = vmatpush.xpose.msra.mxu0 0.0
  %3912 = vmatpush.xpose.msra.mxu0 0.0
  %3913 = vmatpush.xpose.msra.mxu0 0.0
  %3914 = vmatpush.xpose.msra.mxu0 0.0
  %3915 = vmatpush.xpose.msra.mxu0 0.0
  %3916 = vmatpush.xpose.msra.mxu0 0.0
  %3917 = vmatpush.xpose.msra.mxu0 0.0
  %3918 = vmatpush.xpose.msra.mxu0 0.0
  %3919 = vmatpush.xpose.msra.mxu0 0.0
  %3920 = vmatpush.xpose.msra.mxu0 0.0
  %3921 = vmatpush.xpose.msra.mxu0 0.0
  %3922 = vmatpush.xpose.msra.mxu0 0.0
  %3923 = vmatpush.xpose.msra.mxu0 0.0
  %3924 = vmatpush.xpose.msra.mxu0 0.0
  %3925 = vmatpush.xpose.msra.mxu0 0.0
  %3926 = vmatpush.xpose.msra.mxu0 %v3909
  %3927 = vmatmul.f32.gmra.mxu0 %v3907
  %v3928 = vpop.f32.mrf.mxu0
  %v3929 = vadd.f32 0.0, %v3928
  %3930 = vdwg.mxu0
  %v3931 = vmul.f32 %v3929, 0.35355338
  %v3932 = vadd.f32 %v3931, %v2220
  %v3933 = vadd.f32 %v3932, %v169
  %v3934 = vsel %vm213, %v3933, -inf
  %3935 = vmax.xlane.f32.xlu0 %v3934
  %v3936 = vpop.xlane.xlu0 %3935
  %v3937 = vsub.f32 %v3933, %v3936
  %v3938 = vmul.f32 %v3937, 1.442695
  %v3939 = vpow.pop %v3938
  %v3940 = vsel %vm213, %v3939, 0.0
  %3941 = vadd.xlane.f32.xlu0 %v3940
  %v3942 = vpop.xlane.xlu0 %3941
  %v3943 = vrcp.pop %v3942
  %v3944 = vmul.f32 %v3939, %v3943
  %3945 = vrot.lane.b32.xlu0 %v3480, 48
  %v3946 = vpop.permute.xlu0 %3945
  %v3949 = vsel %vm213, %v3944, 0
  %3951 = vmatpush.msra.mxu0 0.0
  %3952 = vmatpush.msra.mxu0 0.0
  %3953 = vmatpush.msra.mxu0 0.0
  %3954 = vmatpush.msra.mxu0 0.0
  %3955 = vmatpush.msra.mxu0 0.0
  %3956 = vmatpush.msra.mxu0 0.0
  %3957 = vmatpush.msra.mxu0 0.0
  %3958 = vmatpush.msra.mxu0 0.0
  %3959 = vmatpush.msra.mxu0 0.0
  %3960 = vmatpush.msra.mxu0 0.0
  %3961 = vmatpush.msra.mxu0 0.0
  %3962 = vmatpush.msra.mxu0 0.0
  %3963 = vmatpush.msra.mxu0 0.0
  %3964 = vmatpush.msra.mxu0 0.0
  %3965 = vmatpush.msra.mxu0 0.0
  %3966 = vmatpush.msra.mxu0 %v3946
  %3967 = vmatmul.f32.gmra.mxu0 %v3949
  %v3968 = vpop.f32.mrf.mxu0
  %v3969 = vadd.f32 0.0, %v3968
  %3970 = vdwg.mxu0
  %3971 = vrot.lane.b32.xlu0 %v3480, 104
  %v3972 = vpop.permute.xlu0 %3971
  %3973 = vrot.lane.b32.xlu0 %v3480, 72
  %v3974 = vpop.permute.xlu0 %3973
  %v3975 = vsel %vm213, %v3972, 0
  %v3977 = vsel %vm213, %v3974, 0
  %3979 = vmatpush.xpose.msra.mxu0 0.0
  %3980 = vmatpush.xpose.msra.mxu0 0.0
  %3981 = vmatpush.xpose.msra.mxu0 0.0
  %3982 = vmatpush.xpose.msra.mxu0 0.0
  %3983 = vmatpush.xpose.msra.mxu0 0.0
  %3984 = vmatpush.xpose.msra.mxu0 0.0
  %3985 = vmatpush.xpose.msra.mxu0 0.0
  %3986 = vmatpush.xpose.msra.mxu0 0.0
  %3987 = vmatpush.xpose.msra.mxu0 0.0
  %3988 = vmatpush.xpose.msra.mxu0 0.0
  %3989 = vmatpush.xpose.msra.mxu0 0.0
  %3990 = vmatpush.xpose.msra.mxu0 0.0
  %3991 = vmatpush.xpose.msra.mxu0 0.0
  %3992 = vmatpush.xpose.msra.mxu0 0.0
  %3993 = vmatpush.xpose.msra.mxu0 0.0
  %3994 = vmatpush.xpose.msra.mxu0 %v3977
  %3995 = vmatmul.f32.gmra.mxu0 %v3975
  %v3996 = vpop.f32.mrf.mxu0
  %v3997 = vadd.f32 0.0, %v3996
  %3998 = vdwg.mxu0
  %v3999 = vmul.f32 %v3997, 0.35355338
  %v4000 = vadd.f32 %v3999, %v2220
  %v4001 = vadd.f32 %v4000, %v169
  %v4002 = vsel %vm213, %v4001, -inf
  %4003 = vmax.xlane.f32.xlu0 %v4002
  %v4004 = vpop.xlane.xlu0 %4003
  %v4005 = vsub.f32 %v4001, %v4004
  %v4006 = vmul.f32 %v4005, 1.442695
  %v4007 = vpow.pop %v4006
  %v4008 = vsel %vm213, %v4007, 0.0
  %4009 = vadd.xlane.f32.xlu0 %v4008
  %v4010 = vpop.xlane.xlu0 %4009
  %v4011 = vrcp.pop %v4010
  %v4012 = vmul.f32 %v4007, %v4011
  %4013 = vrot.lane.b32.xlu0 %v3480, 40
  %v4014 = vpop.permute.xlu0 %4013
  %v4017 = vsel %vm213, %v4012, 0
  %4019 = vmatpush.msra.mxu0 0.0
  %4020 = vmatpush.msra.mxu0 0.0
  %4021 = vmatpush.msra.mxu0 0.0
  %4022 = vmatpush.msra.mxu0 0.0
  %4023 = vmatpush.msra.mxu0 0.0
  %4024 = vmatpush.msra.mxu0 0.0
  %4025 = vmatpush.msra.mxu0 0.0
  %4026 = vmatpush.msra.mxu0 0.0
  %4027 = vmatpush.msra.mxu0 0.0
  %4028 = vmatpush.msra.mxu0 0.0
  %4029 = vmatpush.msra.mxu0 0.0
  %4030 = vmatpush.msra.mxu0 0.0
  %4031 = vmatpush.msra.mxu0 0.0
  %4032 = vmatpush.msra.mxu0 0.0
  %4033 = vmatpush.msra.mxu0 0.0
  %4034 = vmatpush.msra.mxu0 %v4014
  %4035 = vmatmul.f32.gmra.mxu0 %v4017
  %v4036 = vpop.f32.mrf.mxu0
  %v4037 = vadd.f32 0.0, %v4036
  %4038 = vdwg.mxu0
  %4040 = vrot.lane.b32.xlu0 %v3901, 8
  %v4041 = vpop.permute.xlu0 %4040
  %4044 = vrot.lane.b32.xlu0 %v3969, 16
  %v4045 = vpop.permute.xlu0 %4044
  %4048 = vrot.lane.b32.xlu0 %v4037, 24
  %v4049 = vpop.permute.xlu0 %4048
  %v4051 = vsel %vm213, %v3833, %v4041
  %v4052 = vsel %vm492, %v4051, %v4045
  %v4053 = vsel %vm494, %v4052, %v4049
  %s4054 = scalar_lea.vmem %s37, 32
  %v4055 = vld [vmem:[%s4054] sm:$0xff]
  %v4056 = vld [vmem:[%s4054 + $0x8] sm:$0xff]
  %v4057 = vld [vmem:[%s4054 + $0x10] sm:$0xff]
  %v4058 = vld [vmem:[%s4054 + $0x18] sm:$0xff]
  %s4059 = scalar_lea.vmem %s39, 1
  %v4060 = vld [vmem:[%s4059] sm:$0x1]
  %v4062 = vperm.slane %v4060, 0
  %v4065 = vsel %vm180, %v3767, 0
  %v4068 = vsel %vm180, %v4053, 0
  %4070 = vmatpush.msra.mxu0 0.0
  %4071 = vmatpush.msra.mxu0 0.0
  %4072 = vmatpush.msra.mxu0 0.0
  %4073 = vmatpush.msra.mxu0 0.0
  %4074 = vmatpush.msra.mxu0 0.0
  %4075 = vmatpush.msra.mxu0 0.0
  %4076 = vmatpush.msra.mxu0 0.0
  %4077 = vmatpush.msra.mxu0 0.0
  %4078 = vmatpush.msra.mxu0 0.0
  %4079 = vmatpush.msra.mxu0 0.0
  %4080 = vmatpush.msra.mxu0 0.0
  %4081 = vmatpush.msra.mxu0 0.0
  %4082 = vmatpush.msra.mxu0 %v4058
  %4083 = vmatpush.msra.mxu0 %v4057
  %4084 = vmatpush.msra.mxu0 %v4056
  %4085 = vmatpush.msra.mxu0 %v4055
  %4086 = vmatmul.f32.gmra.mxu0 %v4065
  %v4087 = vpop.f32.mrf.mxu0
  %v4088 = vadd.f32 %v4062, %v4087
  %4089 = vmatmul.f32.gmra.mxu0 %v4068
  %v4090 = vpop.f32.mrf.mxu0
  %v4091 = vadd.f32 %v4062, %v4090
  %4092 = vdwg.mxu0
  %s4093 = scalar_lea.vmem %s41, 1
  %v4094 = vld [vmem:[%s4093] sm:$0x1]
  %s4095 = scalar_lea.vmem %s43, 1
  %v4096 = vld [vmem:[%s4095] sm:$0x1]
  %v4097 = vadd.f32 %v3441, %v4088
  %v4098 = vadd.f32 %v3442, %v4091
  %v4099 = vsel %vm180, %v4097, 0.0
  %4100 = vadd.xlane.f32.xlu0 %v4099
  %v4101 = vpop.xlane.xlu0 %4100
  %v4102 = vsel %vm180, %v4098, 0.0
  %4103 = vadd.xlane.f32.xlu0 %v4102
  %v4104 = vpop.xlane.xlu0 %4103
  %v4105 = vmul.f32 %v4101, %v832
  %v4106 = vmul.f32 %v4104, %v832
  %v4107 = vsub.f32 %v4097, %v4105
  %v4108 = vsub.f32 %v4098, %v4106
  %v4109 = vmul.f32 %v4107, %v4107
  %v4110 = vmul.f32 %v4108, %v4108
  %v4111 = vsel %vm180, %v4109, 0.0
  %4112 = vadd.xlane.f32.xlu0 %v4111
  %v4113 = vpop.xlane.xlu0 %4112
  %v4114 = vsel %vm180, %v4110, 0.0
  %4115 = vadd.xlane.f32.xlu0 %v4114
  %v4116 = vpop.xlane.xlu0 %4115
  %v4117 = vmul.f32 %v4113, %v832
  %v4118 = vmul.f32 %v4116, %v832
  %v4119 = vadd.f32 %v4117, 1e-05
  %v4120 = vadd.f32 %v4118, 1e-05
  %v4121 = vrsqrt.pop %v4119
  %v4122 = vmul.f32 %v4121, %v4119
  %v4123 = vmul.f32 %v4122, %v4121
  %v4124 = vmul.f32 0.5, %v4123
  %v4125 = vsub.f32 1.5, %v4124
  %v4126 = vmul.f32 %v4121, %v4125
  %vm4127 = vweird.f32 %v4119
  %vm4128 = vweird.f32 %v4121
  %vm4129 = vmor %vm4127, %vm4128
  %v4130 = vsel %vm4129, %v4121, %v4126
  %v4131 = vrsqrt.pop %v4120
  %v4132 = vmul.f32 %v4131, %v4120
  %v4133 = vmul.f32 %v4132, %v4131
  %v4134 = vmul.f32 0.5, %v4133
  %v4135 = vsub.f32 1.5, %v4134
  %v4136 = vmul.f32 %v4131, %v4135
  %vm4137 = vweird.f32 %v4120
  %vm4138 = vweird.f32 %v4131
  %vm4139 = vmor %vm4137, %vm4138
  %v4140 = vsel %vm4139, %v4131, %v4136
  %v4141 = vmul.f32 %v4107, %v4130
  %v4142 = vmul.f32 %v4108, %v4140
  %v4144 = vperm.slane %v4094, 0
  %v4146 = vmul.f32 %v4141, %v4144
  %v4147 = vmul.f32 %v4142, %v4144
  %v4149 = vperm.slane %v4096, 0
  %v4151 = vadd.f32 %v4146, %v4149
  %v4152 = vadd.f32 %v4147, %v4149
  %s4153 = scalar_lea.vmem %s45, 32
  %v4154 = vld [vmem:[%s4153] sm:$0xff]
  %v4155 = vld [vmem:[%s4153 + $0x8] sm:$0xff]
  %v4156 = vld [vmem:[%s4153 + $0x10] sm:$0xff]
  %v4157 = vld [vmem:[%s4153 + $0x18] sm:$0xff]
  %s4158 = scalar_lea.vmem %s47, 1
  %v4159 = vld [vmem:[%s4158] sm:$0x1]
  %v4161 = vperm.slane %v4159, 0
  %v4164 = vsel %vm180, %v4151, 0
  %v4167 = vsel %vm180, %v4152, 0
  %4169 = vmatpush.msra.mxu0 0.0
  %4170 = vmatpush.msra.mxu0 0.0
  %4171 = vmatpush.msra.mxu0 0.0
  %4172 = vmatpush.msra.mxu0 0.0
  %4173 = vmatpush.msra.mxu0 0.0
  %4174 = vmatpush.msra.mxu0 0.0
  %4175 = vmatpush.msra.mxu0 0.0
  %4176 = vmatpush.msra.mxu0 0.0
  %4177 = vmatpush.msra.mxu0 0.0
  %4178 = vmatpush.msra.mxu0 0.0
  %4179 = vmatpush.msra.mxu0 0.0
  %4180 = vmatpush.msra.mxu0 0.0
  %4181 = vmatpush.msra.mxu0 %v4157
  %4182 = vmatpush.msra.mxu0 %v4156
  %4183 = vmatpush.msra.mxu0 %v4155
  %4184 = vmatpush.msra.mxu0 %v4154
  %4185 = vmatmul.f32.gmra.mxu0 %v4164
  %v4186 = vpop.f32.mrf.mxu0
  %v4187 = vadd.f32 %v4161, %v4186
  %4188 = vmatmul.f32.gmra.mxu0 %v4167
  %v4189 = vpop.f32.mrf.mxu0
  %v4190 = vadd.f32 %v4161, %v4189
  %4191 = vdwg.mxu0
  %s4192 = scalar_lea.vmem %s49, 32
  %v4193 = vld [vmem:[%s4192] sm:$0xff]
  %v4194 = vld [vmem:[%s4192 + $0x8] sm:$0xff]
  %v4195 = vld [vmem:[%s4192 + $0x10] sm:$0xff]
  %v4196 = vld [vmem:[%s4192 + $0x18] sm:$0xff]
  %s4197 = scalar_lea.vmem %s51, 1
  %v4198 = vld [vmem:[%s4197] sm:$0x1]
  %v4200 = vperm.slane %v4198, 0
  %4202 = vmatpush.msra.mxu0 0.0
  %4203 = vmatpush.msra.mxu0 0.0
  %4204 = vmatpush.msra.mxu0 0.0
  %4205 = vmatpush.msra.mxu0 0.0
  %4206 = vmatpush.msra.mxu0 0.0
  %4207 = vmatpush.msra.mxu0 0.0
  %4208 = vmatpush.msra.mxu0 0.0
  %4209 = vmatpush.msra.mxu0 0.0
  %4210 = vmatpush.msra.mxu0 0.0
  %4211 = vmatpush.msra.mxu0 0.0
  %4212 = vmatpush.msra.mxu0 0.0
  %4213 = vmatpush.msra.mxu0 0.0
  %4214 = vmatpush.msra.mxu0 %v4196
  %4215 = vmatpush.msra.mxu0 %v4195
  %4216 = vmatpush.msra.mxu0 %v4194
  %4217 = vmatpush.msra.mxu0 %v4193
  %4218 = vmatmul.f32.gmra.mxu0 %v2620
  %v4219 = vpop.f32.mrf.mxu0
  %v4220 = vadd.f32 %v4200, %v4219
  %4221 = vmatmul.f32.gmra.mxu0 %v2623
  %v4222 = vpop.f32.mrf.mxu0
  %v4223 = vadd.f32 %v4200, %v4222
  %4224 = vdwg.mxu0
  %v4226 = vsel %vm213, %v4187, 0
  %v4229 = vsel %vm213, %v4220, 0
  %4231 = vmatpush.xpose.msra.mxu0 0.0
  %4232 = vmatpush.xpose.msra.mxu0 0.0
  %4233 = vmatpush.xpose.msra.mxu0 0.0
  %4234 = vmatpush.xpose.msra.mxu0 0.0
  %4235 = vmatpush.xpose.msra.mxu0 0.0
  %4236 = vmatpush.xpose.msra.mxu0 0.0
  %4237 = vmatpush.xpose.msra.mxu0 0.0
  %4238 = vmatpush.xpose.msra.mxu0 0.0
  %4239 = vmatpush.xpose.msra.mxu0 0.0
  %4240 = vmatpush.xpose.msra.mxu0 0.0
  %4241 = vmatpush.xpose.msra.mxu0 0.0
  %4242 = vmatpush.xpose.msra.mxu0 0.0
  %4243 = vmatpush.xpose.msra.mxu0 0.0
  %4244 = vmatpush.xpose.msra.mxu0 0.0
  %4245 = vmatpush.xpose.msra.mxu0 0.0
  %4246 = vmatpush.xpose.msra.mxu0 %v4229
  %4247 = vmatmul.f32.gmra.mxu0 %v4226
  %v4248 = vpop.f32.mrf.mxu0
  %v4249 = vadd.f32 0.0, %v4248
  %4250 = vdwg.mxu0
  %v4251 = vmul.f32 %v4249, 0.35355338
  %v4252 = vadd.f32 %v4251, %v239
  %v4253 = vsel %vm213, %v4252, -inf
  %4254 = vmax.xlane.f32.xlu0 %v4253
  %v4255 = vpop.xlane.xlu0 %4254
  %v4256 = vsub.f32 %v4252, %v4255
  %v4257 = vmul.f32 %v4256, 1.442695
  %v4258 = vpow.pop %v4257
  %v4259 = vsel %vm213, %v4258, 0.0
  %4260 = vadd.xlane.f32.xlu0 %v4259
  %v4261 = vpop.xlane.xlu0 %4260
  %v4262 = vrcp.pop %v4261
  %v4263 = vmul.f32 %v4258, %v4262
  %4264 = vrot.lane.b32.xlu0 %v4220, 96
  %v4265 = vpop.permute.xlu0 %4264
  %v4268 = vsel %vm213, %v4263, 0
  %4270 = vmatpush.msra.mxu0 0.0
  %4271 = vmatpush.msra.mxu0 0.0
  %4272 = vmatpush.msra.mxu0 0.0
  %4273 = vmatpush.msra.mxu0 0.0
  %4274 = vmatpush.msra.mxu0 0.0
  %4275 = vmatpush.msra.mxu0 0.0
  %4276 = vmatpush.msra.mxu0 0.0
  %4277 = vmatpush.msra.mxu0 0.0
  %4278 = vmatpush.msra.mxu0 0.0
  %4279 = vmatpush.msra.mxu0 0.0
  %4280 = vmatpush.msra.mxu0 0.0
  %4281 = vmatpush.msra.mxu0 0.0
  %4282 = vmatpush.msra.mxu0 0.0
  %4283 = vmatpush.msra.mxu0 0.0
  %4284 = vmatpush.msra.mxu0 0.0
  %4285 = vmatpush.msra.mxu0 %v4265
  %4286 = vmatmul.f32.gmra.mxu0 %v4268
  %v4287 = vpop.f32.mrf.mxu0
  %v4288 = vadd.f32 0.0, %v4287
  %4289 = vdwg.mxu0
  %4290 = vrot.lane.b32.xlu0 %v4187, 120
  %v4291 = vpop.permute.xlu0 %4290
  %4292 = vrot.lane.b32.xlu0 %v4220, 120
  %v4293 = vpop.permute.xlu0 %4292
  %v4294 = vsel %vm213, %v4291, 0
  %v4296 = vsel %vm213, %v4293, 0
  %4298 = vmatpush.xpose.msra.mxu0 0.0
  %4299 = vmatpush.xpose.msra.mxu0 0.0
  %4300 = vmatpush.xpose.msra.mxu0 0.0
  %4301 = vmatpush.xpose.msra.mxu0 0.0
  %4302 = vmatpush.xpose.msra.mxu0 0.0
  %4303 = vmatpush.xpose.msra.mxu0 0.0
  %4304 = vmatpush.xpose.msra.mxu0 0.0
  %4305 = vmatpush.xpose.msra.mxu0 0.0
  %4306 = vmatpush.xpose.msra.mxu0 0.0
  %4307 = vmatpush.xpose.msra.mxu0 0.0
  %4308 = vmatpush.xpose.msra.mxu0 0.0
  %4309 = vmatpush.xpose.msra.mxu0 0.0
  %4310 = vmatpush.xpose.msra.mxu0 0.0
  %4311 = vmatpush.xpose.msra.mxu0 0.0
  %4312 = vmatpush.xpose.msra.mxu0 0.0
  %4313 = vmatpush.xpose.msra.mxu0 %v4296
  %4314 = vmatmul.f32.gmra.mxu0 %v4294
  %v4315 = vpop.f32.mrf.mxu0
  %v4316 = vadd.f32 0.0, %v4315
  %4317 = vdwg.mxu0
  %v4318 = vmul.f32 %v4316, 0.35355338
  %v4319 = vadd.f32 %v4318, %v239
  %v4320 = vsel %vm213, %v4319, -inf
  %4321 = vmax.xlane.f32.xlu0 %v4320
  %v4322 = vpop.xlane.xlu0 %4321
  %v4323 = vsub.f32 %v4319, %v4322
  %v4324 = vmul.f32 %v4323, 1.442695
  %v4325 = vpow.pop %v4324
  %v4326 = vsel %vm213, %v4325, 0.0
  %4327 = vadd.xlane.f32.xlu0 %v4326
  %v4328 = vpop.xlane.xlu0 %4327
  %v4329 = vrcp.pop %v4328
  %v4330 = vmul.f32 %v4325, %v4329
  %4331 = vrot.lane.b32.xlu0 %v4220, 88
  %v4332 = vpop.permute.xlu0 %4331
  %v4335 = vsel %vm213, %v4330, 0
  %4337 = vmatpush.msra.mxu0 0.0
  %4338 = vmatpush.msra.mxu0 0.0
  %4339 = vmatpush.msra.mxu0 0.0
  %4340 = vmatpush.msra.mxu0 0.0
  %4341 = vmatpush.msra.mxu0 0.0
  %4342 = vmatpush.msra.mxu0 0.0
  %4343 = vmatpush.msra.mxu0 0.0
  %4344 = vmatpush.msra.mxu0 0.0
  %4345 = vmatpush.msra.mxu0 0.0
  %4346 = vmatpush.msra.mxu0 0.0
  %4347 = vmatpush.msra.mxu0 0.0
  %4348 = vmatpush.msra.mxu0 0.0
  %4349 = vmatpush.msra.mxu0 0.0
  %4350 = vmatpush.msra.mxu0 0.0
  %4351 = vmatpush.msra.mxu0 0.0
  %4352 = vmatpush.msra.mxu0 %v4332
  %4353 = vmatmul.f32.gmra.mxu0 %v4335
  %v4354 = vpop.f32.mrf.mxu0
  %v4355 = vadd.f32 0.0, %v4354
  %4356 = vdwg.mxu0
  %4357 = vrot.lane.b32.xlu0 %v4187, 112
  %v4358 = vpop.permute.xlu0 %4357
  %4359 = vrot.lane.b32.xlu0 %v4220, 112
  %v4360 = vpop.permute.xlu0 %4359
  %v4361 = vsel %vm213, %v4358, 0
  %v4363 = vsel %vm213, %v4360, 0
  %4365 = vmatpush.xpose.msra.mxu0 0.0
  %4366 = vmatpush.xpose.msra.mxu0 0.0
  %4367 = vmatpush.xpose.msra.mxu0 0.0
  %4368 = vmatpush.xpose.msra.mxu0 0.0
  %4369 = vmatpush.xpose.msra.mxu0 0.0
  %4370 = vmatpush.xpose.msra.mxu0 0.0
  %4371 = vmatpush.xpose.msra.mxu0 0.0
  %4372 = vmatpush.xpose.msra.mxu0 0.0
  %4373 = vmatpush.xpose.msra.mxu0 0.0
  %4374 = vmatpush.xpose.msra.mxu0 0.0
  %4375 = vmatpush.xpose.msra.mxu0 0.0
  %4376 = vmatpush.xpose.msra.mxu0 0.0
  %4377 = vmatpush.xpose.msra.mxu0 0.0
  %4378 = vmatpush.xpose.msra.mxu0 0.0
  %4379 = vmatpush.xpose.msra.mxu0 0.0
  %4380 = vmatpush.xpose.msra.mxu0 %v4363
  %4381 = vmatmul.f32.gmra.mxu0 %v4361
  %v4382 = vpop.f32.mrf.mxu0
  %v4383 = vadd.f32 0.0, %v4382
  %4384 = vdwg.mxu0
  %v4385 = vmul.f32 %v4383, 0.35355338
  %v4386 = vadd.f32 %v4385, %v239
  %v4387 = vsel %vm213, %v4386, -inf
  %4388 = vmax.xlane.f32.xlu0 %v4387
  %v4389 = vpop.xlane.xlu0 %4388
  %v4390 = vsub.f32 %v4386, %v4389
  %v4391 = vmul.f32 %v4390, 1.442695
  %v4392 = vpow.pop %v4391
  %v4393 = vsel %vm213, %v4392, 0.0
  %4394 = vadd.xlane.f32.xlu0 %v4393
  %v4395 = vpop.xlane.xlu0 %4394
  %v4396 = vrcp.pop %v4395
  %v4397 = vmul.f32 %v4392, %v4396
  %4398 = vrot.lane.b32.xlu0 %v4220, 80
  %v4399 = vpop.permute.xlu0 %4398
  %v4402 = vsel %vm213, %v4397, 0
  %4404 = vmatpush.msra.mxu0 0.0
  %4405 = vmatpush.msra.mxu0 0.0
  %4406 = vmatpush.msra.mxu0 0.0
  %4407 = vmatpush.msra.mxu0 0.0
  %4408 = vmatpush.msra.mxu0 0.0
  %4409 = vmatpush.msra.mxu0 0.0
  %4410 = vmatpush.msra.mxu0 0.0
  %4411 = vmatpush.msra.mxu0 0.0
  %4412 = vmatpush.msra.mxu0 0.0
  %4413 = vmatpush.msra.mxu0 0.0
  %4414 = vmatpush.msra.mxu0 0.0
  %4415 = vmatpush.msra.mxu0 0.0
  %4416 = vmatpush.msra.mxu0 0.0
  %4417 = vmatpush.msra.mxu0 0.0
  %4418 = vmatpush.msra.mxu0 0.0
  %4419 = vmatpush.msra.mxu0 %v4399
  %4420 = vmatmul.f32.gmra.mxu0 %v4402
  %v4421 = vpop.f32.mrf.mxu0
  %v4422 = vadd.f32 0.0, %v4421
  %4423 = vdwg.mxu0
  %4424 = vrot.lane.b32.xlu0 %v4187, 104
  %v4425 = vpop.permute.xlu0 %4424
  %4426 = vrot.lane.b32.xlu0 %v4220, 104
  %v4427 = vpop.permute.xlu0 %4426
  %v4428 = vsel %vm213, %v4425, 0
  %v4430 = vsel %vm213, %v4427, 0
  %4432 = vmatpush.xpose.msra.mxu0 0.0
  %4433 = vmatpush.xpose.msra.mxu0 0.0
  %4434 = vmatpush.xpose.msra.mxu0 0.0
  %4435 = vmatpush.xpose.msra.mxu0 0.0
  %4436 = vmatpush.xpose.msra.mxu0 0.0
  %4437 = vmatpush.xpose.msra.mxu0 0.0
  %4438 = vmatpush.xpose.msra.mxu0 0.0
  %4439 = vmatpush.xpose.msra.mxu0 0.0
  %4440 = vmatpush.xpose.msra.mxu0 0.0
  %4441 = vmatpush.xpose.msra.mxu0 0.0
  %4442 = vmatpush.xpose.msra.mxu0 0.0
  %4443 = vmatpush.xpose.msra.mxu0 0.0
  %4444 = vmatpush.xpose.msra.mxu0 0.0
  %4445 = vmatpush.xpose.msra.mxu0 0.0
  %4446 = vmatpush.xpose.msra.mxu0 0.0
  %4447 = vmatpush.xpose.msra.mxu0 %v4430
  %4448 = vmatmul.f32.gmra.mxu0 %v4428
  %v4449 = vpop.f32.mrf.mxu0
  %v4450 = vadd.f32 0.0, %v4449
  %4451 = vdwg.mxu0
  %v4452 = vmul.f32 %v4450, 0.35355338
  %v4453 = vadd.f32 %v4452, %v239
  %v4454 = vsel %vm213, %v4453, -inf
  %4455 = vmax.xlane.f32.xlu0 %v4454
  %v4456 = vpop.xlane.xlu0 %4455
  %v4457 = vsub.f32 %v4453, %v4456
  %v4458 = vmul.f32 %v4457, 1.442695
  %v4459 = vpow.pop %v4458
  %v4460 = vsel %vm213, %v4459, 0.0
  %4461 = vadd.xlane.f32.xlu0 %v4460
  %v4462 = vpop.xlane.xlu0 %4461
  %v4463 = vrcp.pop %v4462
  %v4464 = vmul.f32 %v4459, %v4463
  %4465 = vrot.lane.b32.xlu0 %v4220, 72
  %v4466 = vpop.permute.xlu0 %4465
  %v4469 = vsel %vm213, %v4464, 0
  %4471 = vmatpush.msra.mxu0 0.0
  %4472 = vmatpush.msra.mxu0 0.0
  %4473 = vmatpush.msra.mxu0 0.0
  %4474 = vmatpush.msra.mxu0 0.0
  %4475 = vmatpush.msra.mxu0 0.0
  %4476 = vmatpush.msra.mxu0 0.0
  %4477 = vmatpush.msra.mxu0 0.0
  %4478 = vmatpush.msra.mxu0 0.0
  %4479 = vmatpush.msra.mxu0 0.0
  %4480 = vmatpush.msra.mxu0 0.0
  %4481 = vmatpush.msra.mxu0 0.0
  %4482 = vmatpush.msra.mxu0 0.0
  %4483 = vmatpush.msra.mxu0 0.0
  %4484 = vmatpush.msra.mxu0 0.0
  %4485 = vmatpush.msra.mxu0 0.0
  %4486 = vmatpush.msra.mxu0 %v4466
  %4487 = vmatmul.f32.gmra.mxu0 %v4469
  %v4488 = vpop.f32.mrf.mxu0
  %v4489 = vadd.f32 0.0, %v4488
  %4490 = vdwg.mxu0
  %4492 = vrot.lane.b32.xlu0 %v4355, 8
  %v4493 = vpop.permute.xlu0 %4492
  %4496 = vrot.lane.b32.xlu0 %v4422, 16
  %v4497 = vpop.permute.xlu0 %4496
  %4500 = vrot.lane.b32.xlu0 %v4489, 24
  %v4501 = vpop.permute.xlu0 %4500
  %v4503 = vsel %vm213, %v4288, %v4493
  %v4504 = vsel %vm492, %v4503, %v4497
  %v4505 = vsel %vm494, %v4504, %v4501
  %v4507 = vsel %vm213, %v4190, 0
  %v4510 = vsel %vm213, %v4223, 0
  %4512 = vmatpush.xpose.msra.mxu0 0.0
  %4513 = vmatpush.xpose.msra.mxu0 0.0
  %4514 = vmatpush.xpose.msra.mxu0 0.0
  %4515 = vmatpush.xpose.msra.mxu0 0.0
  %4516 = vmatpush.xpose.msra.mxu0 0.0
  %4517 = vmatpush.xpose.msra.mxu0 0.0
  %4518 = vmatpush.xpose.msra.mxu0 0.0
  %4519 = vmatpush.xpose.msra.mxu0 0.0
  %4520 = vmatpush.xpose.msra.mxu0 0.0
  %4521 = vmatpush.xpose.msra.mxu0 0.0
  %4522 = vmatpush.xpose.msra.mxu0 0.0
  %4523 = vmatpush.xpose.msra.mxu0 0.0
  %4524 = vmatpush.xpose.msra.mxu0 0.0
  %4525 = vmatpush.xpose.msra.mxu0 0.0
  %4526 = vmatpush.xpose.msra.mxu0 0.0
  %4527 = vmatpush.xpose.msra.mxu0 %v4510
  %4528 = vmatmul.f32.gmra.mxu0 %v4507
  %v4529 = vpop.f32.mrf.mxu0
  %v4530 = vadd.f32 0.0, %v4529
  %4531 = vdwg.mxu0
  %v4532 = vmul.f32 %v4530, 0.35355338
  %v4533 = vadd.f32 %v4532, %v524
  %v4534 = vsel %vm213, %v4533, -inf
  %4535 = vmax.xlane.f32.xlu0 %v4534
  %v4536 = vpop.xlane.xlu0 %4535
  %v4537 = vsub.f32 %v4533, %v4536
  %v4538 = vmul.f32 %v4537, 1.442695
  %v4539 = vpow.pop %v4538
  %v4540 = vsel %vm213, %v4539, 0.0
  %4541 = vadd.xlane.f32.xlu0 %v4540
  %v4542 = vpop.xlane.xlu0 %4541
  %v4543 = vrcp.pop %v4542
  %v4544 = vmul.f32 %v4539, %v4543
  %4545 = vrot.lane.b32.xlu0 %v4223, 96
  %v4546 = vpop.permute.xlu0 %4545
  %v4549 = vsel %vm213, %v4544, 0
  %4551 = vmatpush.msra.mxu0 0.0
  %4552 = vmatpush.msra.mxu0 0.0
  %4553 = vmatpush.msra.mxu0 0.0
  %4554 = vmatpush.msra.mxu0 0.0
  %4555 = vmatpush.msra.mxu0 0.0
  %4556 = vmatpush.msra.mxu0 0.0
  %4557 = vmatpush.msra.mxu0 0.0
  %4558 = vmatpush.msra.mxu0 0.0
  %4559 = vmatpush.msra.mxu0 0.0
  %4560 = vmatpush.msra.mxu0 0.0
  %4561 = vmatpush.msra.mxu0 0.0
  %4562 = vmatpush.msra.mxu0 0.0
  %4563 = vmatpush.msra.mxu0 0.0
  %4564 = vmatpush.msra.mxu0 0.0
  %4565 = vmatpush.msra.mxu0 0.0
  %4566 = vmatpush.msra.mxu0 %v4546
  %4567 = vmatmul.f32.gmra.mxu0 %v4549
  %v4568 = vpop.f32.mrf.mxu0
  %v4569 = vadd.f32 0.0, %v4568
  %4570 = vdwg.mxu0
  %4571 = vrot.lane.b32.xlu0 %v4190, 120
  %v4572 = vpop.permute.xlu0 %4571
  %4573 = vrot.lane.b32.xlu0 %v4223, 120
  %v4574 = vpop.permute.xlu0 %4573
  %v4575 = vsel %vm213, %v4572, 0
  %v4577 = vsel %vm213, %v4574, 0
  %4579 = vmatpush.xpose.msra.mxu0 0.0
  %4580 = vmatpush.xpose.msra.mxu0 0.0
  %4581 = vmatpush.xpose.msra.mxu0 0.0
  %4582 = vmatpush.xpose.msra.mxu0 0.0
  %4583 = vmatpush.xpose.msra.mxu0 0.0
  %4584 = vmatpush.xpose.msra.mxu0 0.0
  %4585 = vmatpush.xpose.msra.mxu0 0.0
  %4586 = vmatpush.xpose.msra.mxu0 0.0
  %4587 = vmatpush.xpose.msra.mxu0 0.0
  %4588 = vmatpush.xpose.msra.mxu0 0.0
  %4589 = vmatpush.xpose.msra.mxu0 0.0
  %4590 = vmatpush.xpose.msra.mxu0 0.0
  %4591 = vmatpush.xpose.msra.mxu0 0.0
  %4592 = vmatpush.xpose.msra.mxu0 0.0
  %4593 = vmatpush.xpose.msra.mxu0 0.0
  %4594 = vmatpush.xpose.msra.mxu0 %v4577
  %4595 = vmatmul.f32.gmra.mxu0 %v4575
  %v4596 = vpop.f32.mrf.mxu0
  %v4597 = vadd.f32 0.0, %v4596
  %4598 = vdwg.mxu0
  %v4599 = vmul.f32 %v4597, 0.35355338
  %v4600 = vadd.f32 %v4599, %v524
  %v4601 = vsel %vm213, %v4600, -inf
  %4602 = vmax.xlane.f32.xlu0 %v4601
  %v4603 = vpop.xlane.xlu0 %4602
  %v4604 = vsub.f32 %v4600, %v4603
  %v4605 = vmul.f32 %v4604, 1.442695
  %v4606 = vpow.pop %v4605
  %v4607 = vsel %vm213, %v4606, 0.0
  %4608 = vadd.xlane.f32.xlu0 %v4607
  %v4609 = vpop.xlane.xlu0 %4608
  %v4610 = vrcp.pop %v4609
  %v4611 = vmul.f32 %v4606, %v4610
  %4612 = vrot.lane.b32.xlu0 %v4223, 88
  %v4613 = vpop.permute.xlu0 %4612
  %v4616 = vsel %vm213, %v4611, 0
  %4618 = vmatpush.msra.mxu0 0.0
  %4619 = vmatpush.msra.mxu0 0.0
  %4620 = vmatpush.msra.mxu0 0.0
  %4621 = vmatpush.msra.mxu0 0.0
  %4622 = vmatpush.msra.mxu0 0.0
  %4623 = vmatpush.msra.mxu0 0.0
  %4624 = vmatpush.msra.mxu0 0.0
  %4625 = vmatpush.msra.mxu0 0.0
  %4626 = vmatpush.msra.mxu0 0.0
  %4627 = vmatpush.msra.mxu0 0.0
  %4628 = vmatpush.msra.mxu0 0.0
  %4629 = vmatpush.msra.mxu0 0.0
  %4630 = vmatpush.msra.mxu0 0.0
  %4631 = vmatpush.msra.mxu0 0.0
  %4632 = vmatpush.msra.mxu0 0.0
  %4633 = vmatpush.msra.mxu0 %v4613
  %4634 = vmatmul.f32.gmra.mxu0 %v4616
  %v4635 = vpop.f32.mrf.mxu0
  %v4636 = vadd.f32 0.0, %v4635
  %4637 = vdwg.mxu0
  %4638 = vrot.lane.b32.xlu0 %v4190, 112
  %v4639 = vpop.permute.xlu0 %4638
  %4640 = vrot.lane.b32.xlu0 %v4223, 112
  %v4641 = vpop.permute.xlu0 %4640
  %v4642 = vsel %vm213, %v4639, 0
  %v4644 = vsel %vm213, %v4641, 0
  %4646 = vmatpush.xpose.msra.mxu0 0.0
  %4647 = vmatpush.xpose.msra.mxu0 0.0
  %4648 = vmatpush.xpose.msra.mxu0 0.0
  %4649 = vmatpush.xpose.msra.mxu0 0.0
  %4650 = vmatpush.xpose.msra.mxu0 0.0
  %4651 = vmatpush.xpose.msra.mxu0 0.0
  %4652 = vmatpush.xpose.msra.mxu0 0.0
  %4653 = vmatpush.xpose.msra.mxu0 0.0
  %4654 = vmatpush.xpose.msra.mxu0 0.0
  %4655 = vmatpush.xpose.msra.mxu0 0.0
  %4656 = vmatpush.xpose.msra.mxu0 0.0
  %4657 = vmatpush.xpose.msra.mxu0 0.0
  %4658 = vmatpush.xpose.msra.mxu0 0.0
  %4659 = vmatpush.xpose.msra.mxu0 0.0
  %4660 = vmatpush.xpose.msra.mxu0 0.0
  %4661 = vmatpush.xpose.msra.mxu0 %v4644
  %4662 = vmatmul.f32.gmra.mxu0 %v4642
  %v4663 = vpop.f32.mrf.mxu0
  %v4664 = vadd.f32 0.0, %v4663
  %4665 = vdwg.mxu0
  %v4666 = vmul.f32 %v4664, 0.35355338
  %v4667 = vadd.f32 %v4666, %v524
  %v4668 = vsel %vm213, %v4667, -inf
  %4669 = vmax.xlane.f32.xlu0 %v4668
  %v4670 = vpop.xlane.xlu0 %4669
  %v4671 = vsub.f32 %v4667, %v4670
  %v4672 = vmul.f32 %v4671, 1.442695
  %v4673 = vpow.pop %v4672
  %v4674 = vsel %vm213, %v4673, 0.0
  %4675 = vadd.xlane.f32.xlu0 %v4674
  %v4676 = vpop.xlane.xlu0 %4675
  %v4677 = vrcp.pop %v4676
  %v4678 = vmul.f32 %v4673, %v4677
  %4679 = vrot.lane.b32.xlu0 %v4223, 80
  %v4680 = vpop.permute.xlu0 %4679
  %v4683 = vsel %vm213, %v4678, 0
  %4685 = vmatpush.msra.mxu0 0.0
  %4686 = vmatpush.msra.mxu0 0.0
  %4687 = vmatpush.msra.mxu0 0.0
  %4688 = vmatpush.msra.mxu0 0.0
  %4689 = vmatpush.msra.mxu0 0.0
  %4690 = vmatpush.msra.mxu0 0.0
  %4691 = vmatpush.msra.mxu0 0.0
  %4692 = vmatpush.msra.mxu0 0.0
  %4693 = vmatpush.msra.mxu0 0.0
  %4694 = vmatpush.msra.mxu0 0.0
  %4695 = vmatpush.msra.mxu0 0.0
  %4696 = vmatpush.msra.mxu0 0.0
  %4697 = vmatpush.msra.mxu0 0.0
  %4698 = vmatpush.msra.mxu0 0.0
  %4699 = vmatpush.msra.mxu0 0.0
  %4700 = vmatpush.msra.mxu0 %v4680
  %4701 = vmatmul.f32.gmra.mxu0 %v4683
  %v4702 = vpop.f32.mrf.mxu0
  %v4703 = vadd.f32 0.0, %v4702
  %4704 = vdwg.mxu0
  %4705 = vrot.lane.b32.xlu0 %v4190, 104
  %v4706 = vpop.permute.xlu0 %4705
  %4707 = vrot.lane.b32.xlu0 %v4223, 104
  %v4708 = vpop.permute.xlu0 %4707
  %v4709 = vsel %vm213, %v4706, 0
  %v4711 = vsel %vm213, %v4708, 0
  %4713 = vmatpush.xpose.msra.mxu0 0.0
  %4714 = vmatpush.xpose.msra.mxu0 0.0
  %4715 = vmatpush.xpose.msra.mxu0 0.0
  %4716 = vmatpush.xpose.msra.mxu0 0.0
  %4717 = vmatpush.xpose.msra.mxu0 0.0
  %4718 = vmatpush.xpose.msra.mxu0 0.0
  %4719 = vmatpush.xpose.msra.mxu0 0.0
  %4720 = vmatpush.xpose.msra.mxu0 0.0
  %4721 = vmatpush.xpose.msra.mxu0 0.0
  %4722 = vmatpush.xpose.msra.mxu0 0.0
  %4723 = vmatpush.xpose.msra.mxu0 0.0
  %4724 = vmatpush.xpose.msra.mxu0 0.0
  %4725 = vmatpush.xpose.msra.mxu0 0.0
  %4726 = vmatpush.xpose.msra.mxu0 0.0
  %4727 = vmatpush.xpose.msra.mxu0 0.0
  %4728 = vmatpush.xpose.msra.mxu0 %v4711
  %4729 = vmatmul.f32.gmra.mxu0 %v4709
  %v4730 = vpop.f32.mrf.mxu0
  %v4731 = vadd.f32 0.0, %v4730
  %4732 = vdwg.mxu0
  %v4733 = vmul.f32 %v4731, 0.35355338
  %v4734 = vadd.f32 %v4733, %v524
  %v4735 = vsel %vm213, %v4734, -inf
  %4736 = vmax.xlane.f32.xlu0 %v4735
  %v4737 = vpop.xlane.xlu0 %4736
  %v4738 = vsub.f32 %v4734, %v4737
  %v4739 = vmul.f32 %v4738, 1.442695
  %v4740 = vpow.pop %v4739
  %v4741 = vsel %vm213, %v4740, 0.0
  %4742 = vadd.xlane.f32.xlu0 %v4741
  %v4743 = vpop.xlane.xlu0 %4742
  %v4744 = vrcp.pop %v4743
  %v4745 = vmul.f32 %v4740, %v4744
  %4746 = vrot.lane.b32.xlu0 %v4223, 72
  %v4747 = vpop.permute.xlu0 %4746
  %v4750 = vsel %vm213, %v4745, 0
  %4752 = vmatpush.msra.mxu0 0.0
  %4753 = vmatpush.msra.mxu0 0.0
  %4754 = vmatpush.msra.mxu0 0.0
  %4755 = vmatpush.msra.mxu0 0.0
  %4756 = vmatpush.msra.mxu0 0.0
  %4757 = vmatpush.msra.mxu0 0.0
  %4758 = vmatpush.msra.mxu0 0.0
  %4759 = vmatpush.msra.mxu0 0.0
  %4760 = vmatpush.msra.mxu0 0.0
  %4761 = vmatpush.msra.mxu0 0.0
  %4762 = vmatpush.msra.mxu0 0.0
  %4763 = vmatpush.msra.mxu0 0.0
  %4764 = vmatpush.msra.mxu0 0.0
  %4765 = vmatpush.msra.mxu0 0.0
  %4766 = vmatpush.msra.mxu0 0.0
  %4767 = vmatpush.msra.mxu0 %v4747
  %4768 = vmatmul.f32.gmra.mxu0 %v4750
  %v4769 = vpop.f32.mrf.mxu0
  %v4770 = vadd.f32 0.0, %v4769
  %4771 = vdwg.mxu0
  %4773 = vrot.lane.b32.xlu0 %v4636, 8
  %v4774 = vpop.permute.xlu0 %4773
  %4777 = vrot.lane.b32.xlu0 %v4703, 16
  %v4778 = vpop.permute.xlu0 %4777
  %4781 = vrot.lane.b32.xlu0 %v4770, 24
  %v4782 = vpop.permute.xlu0 %4781
  %v4784 = vsel %vm213, %v4569, %v4774
  %v4785 = vsel %vm492, %v4784, %v4778
  %v4786 = vsel %vm494, %v4785, %v4782
  %s4787 = scalar_lea.vmem %s53, 32
  %v4788 = vld [vmem:[%s4787] sm:$0xff]
  %v4789 = vld [vmem:[%s4787 + $0x8] sm:$0xff]
  %v4790 = vld [vmem:[%s4787 + $0x10] sm:$0xff]
  %v4791 = vld [vmem:[%s4787 + $0x18] sm:$0xff]
  %s4792 = scalar_lea.vmem %s55, 1
  %v4793 = vld [vmem:[%s4792] sm:$0x1]
  %v4795 = vperm.slane %v4793, 0
  %v4798 = vsel %vm180, %v4505, 0
  %v4801 = vsel %vm180, %v4786, 0
  %4803 = vmatpush.msra.mxu0 0.0
  %4804 = vmatpush.msra.mxu0 0.0
  %4805 = vmatpush.msra.mxu0 0.0
  %4806 = vmatpush.msra.mxu0 0.0
  %4807 = vmatpush.msra.mxu0 0.0
  %4808 = vmatpush.msra.mxu0 0.0
  %4809 = vmatpush.msra.mxu0 0.0
  %4810 = vmatpush.msra.mxu0 0.0
  %4811 = vmatpush.msra.mxu0 0.0
  %4812 = vmatpush.msra.mxu0 0.0
  %4813 = vmatpush.msra.mxu0 0.0
  %4814 = vmatpush.msra.mxu0 0.0
  %4815 = vmatpush.msra.mxu0 %v4791
  %4816 = vmatpush.msra.mxu0 %v4790
  %4817 = vmatpush.msra.mxu0 %v4789
  %4818 = vmatpush.msra.mxu0 %v4788
  %4819 = vmatmul.f32.gmra.mxu0 %v4798
  %v4820 = vpop.f32.mrf.mxu0
  %v4821 = vadd.f32 %v4795, %v4820
  %4822 = vmatmul.f32.gmra.mxu0 %v4801
  %v4823 = vpop.f32.mrf.mxu0
  %v4824 = vadd.f32 %v4795, %v4823
  %4825 = vdwg.mxu0
  %s4826 = scalar_lea.vmem %s57, 1
  %v4827 = vld [vmem:[%s4826] sm:$0x1]
  %s4828 = scalar_lea.vmem %s59, 1
  %v4829 = vld [vmem:[%s4828] sm:$0x1]
  %v4830 = vadd.f32 %v4151, %v4821
  %v4831 = vadd.f32 %v4152, %v4824
  %v4832 = vsel %vm180, %v4830, 0.0
  %4833 = vadd.xlane.f32.xlu0 %v4832
  %v4834 = vpop.xlane.xlu0 %4833
  %v4835 = vsel %vm180, %v4831, 0.0
  %4836 = vadd.xlane.f32.xlu0 %v4835
  %v4837 = vpop.xlane.xlu0 %4836
  %v4838 = vmul.f32 %v4834, %v832
  %v4839 = vmul.f32 %v4837, %v832
  %v4840 = vsub.f32 %v4830, %v4838
  %v4841 = vsub.f32 %v4831, %v4839
  %v4842 = vmul.f32 %v4840, %v4840
  %v4843 = vmul.f32 %v4841, %v4841
  %v4844 = vsel %vm180, %v4842, 0.0
  %4845 = vadd.xlane.f32.xlu0 %v4844
  %v4846 = vpop.xlane.xlu0 %4845
  %v4847 = vsel %vm180, %v4843, 0.0
  %4848 = vadd.xlane.f32.xlu0 %v4847
  %v4849 = vpop.xlane.xlu0 %4848
  %v4850 = vmul.f32 %v4846, %v832
  %v4851 = vmul.f32 %v4849, %v832
  %v4852 = vadd.f32 %v4850, 1e-05
  %v4853 = vadd.f32 %v4851, 1e-05
  %v4854 = vrsqrt.pop %v4852
  %v4855 = vmul.f32 %v4854, %v4852
  %v4856 = vmul.f32 %v4855, %v4854
  %v4857 = vmul.f32 0.5, %v4856
  %v4858 = vsub.f32 1.5, %v4857
  %v4859 = vmul.f32 %v4854, %v4858
  %vm4860 = vweird.f32 %v4852
  %vm4861 = vweird.f32 %v4854
  %vm4862 = vmor %vm4860, %vm4861
  %v4863 = vsel %vm4862, %v4854, %v4859
  %v4864 = vrsqrt.pop %v4853
  %v4865 = vmul.f32 %v4864, %v4853
  %v4866 = vmul.f32 %v4865, %v4864
  %v4867 = vmul.f32 0.5, %v4866
  %v4868 = vsub.f32 1.5, %v4867
  %v4869 = vmul.f32 %v4864, %v4868
  %vm4870 = vweird.f32 %v4853
  %vm4871 = vweird.f32 %v4864
  %vm4872 = vmor %vm4870, %vm4871
  %v4873 = vsel %vm4872, %v4864, %v4869
  %v4874 = vmul.f32 %v4840, %v4863
  %v4875 = vmul.f32 %v4841, %v4873
  %v4877 = vperm.slane %v4827, 0
  %v4879 = vmul.f32 %v4874, %v4877
  %v4880 = vmul.f32 %v4875, %v4877
  %v4882 = vperm.slane %v4829, 0
  %v4884 = vadd.f32 %v4879, %v4882
  %v4885 = vadd.f32 %v4880, %v4882
  %s4886 = scalar_lea.vmem %s61, 32
  %v4887 = vld [vmem:[%s4886] sm:$0xff]
  %v4888 = vld [vmem:[%s4886 + $0x8] sm:$0xff]
  %v4889 = vld [vmem:[%s4886 + $0x10] sm:$0xff]
  %v4890 = vld [vmem:[%s4886 + $0x18] sm:$0xff]
  %s4891 = scalar_lea.vmem %s63, 1
  %v4892 = vld [vmem:[%s4891] sm:$0x1]
  %v4894 = vperm.slane %v4892, 0
  %v4897 = vsel %vm180, %v4884, 0
  %v4900 = vsel %vm180, %v4885, 0
  %4902 = vmatpush.msra.mxu0 0.0
  %4903 = vmatpush.msra.mxu0 0.0
  %4904 = vmatpush.msra.mxu0 0.0
  %4905 = vmatpush.msra.mxu0 0.0
  %4906 = vmatpush.msra.mxu0 0.0
  %4907 = vmatpush.msra.mxu0 0.0
  %4908 = vmatpush.msra.mxu0 0.0
  %4909 = vmatpush.msra.mxu0 0.0
  %4910 = vmatpush.msra.mxu0 0.0
  %4911 = vmatpush.msra.mxu0 0.0
  %4912 = vmatpush.msra.mxu0 0.0
  %4913 = vmatpush.msra.mxu0 0.0
  %4914 = vmatpush.msra.mxu0 %v4890
  %4915 = vmatpush.msra.mxu0 %v4889
  %4916 = vmatpush.msra.mxu0 %v4888
  %4917 = vmatpush.msra.mxu0 %v4887
  %4918 = vmatmul.f32.gmra.mxu0 %v4897
  %v4919 = vpop.f32.mrf.mxu0
  %v4920 = vadd.f32 %v4894, %v4919
  %4921 = vmatmul.f32.gmra.mxu0 %v4900
  %v4922 = vpop.f32.mrf.mxu0
  %v4923 = vadd.f32 %v4894, %v4922
  %4924 = vdwg.mxu0
  %v4925 = vmax.f32 %v4920, 0.0
  %v4926 = vmax.f32 %v4923, 0.0
  %s4927 = scalar_lea.vmem %s65, 64
  %v4928 = vld [vmem:[%s4927] sm:$0xff]
  %v4929 = vld [vmem:[%s4927 + $0x8] sm:$0xff]
  %v4930 = vld [vmem:[%s4927 + $0x10] sm:$0xff]
  %v4931 = vld [vmem:[%s4927 + $0x18] sm:$0xff]
  %v4932 = vld [vmem:[%s4927 + $0x20] sm:$0xff]
  %v4933 = vld [vmem:[%s4927 + $0x28] sm:$0xff]
  %v4934 = vld [vmem:[%s4927 + $0x30] sm:$0xff]
  %v4935 = vld [vmem:[%s4927 + $0x38] sm:$0xff]
  %s4936 = scalar_lea.vmem %s67, 1
  %v4937 = vld [vmem:[%s4936] sm:$0x1]
  %v4939 = vperm.slane %v4937, 0
  %v4942 = vsel %vm932, %v4925, 0
  %v4945 = vsel %vm932, %v4926, 0
  %4947 = vmatpush.msra.mxu0 0.0
  %4948 = vmatpush.msra.mxu0 0.0
  %4949 = vmatpush.msra.mxu0 0.0
  %4950 = vmatpush.msra.mxu0 0.0
  %4951 = vmatpush.msra.mxu0 0.0
  %4952 = vmatpush.msra.mxu0 0.0
  %4953 = vmatpush.msra.mxu0 0.0
  %4954 = vmatpush.msra.mxu0 0.0
  %4955 = vmatpush.msra.mxu0 %v4935
  %4956 = vmatpush.msra.mxu0 %v4934
  %4957 = vmatpush.msra.mxu0 %v4933
  %4958 = vmatpush.msra.mxu0 %v4932
  %4959 = vmatpush.msra.mxu0 %v4931
  %4960 = vmatpush.msra.mxu0 %v4930
  %4961 = vmatpush.msra.mxu0 %v4929
  %4962 = vmatpush.msra.mxu0 %v4928
  %4963 = vmatmul.f32.gmra.mxu0 %v4942
  %v4964 = vpop.f32.mrf.mxu0
  %v4965 = vadd.f32 %v4939, %v4964
  %4966 = vmatmul.f32.gmra.mxu0 %v4945
  %v4967 = vpop.f32.mrf.mxu0
  %v4968 = vadd.f32 %v4939, %v4967
  %4969 = vdwg.mxu0
  %s4970 = scalar_lea.vmem %s69, 1
  %v4971 = vld [vmem:[%s4970] sm:$0x1]
  %s4972 = scalar_lea.vmem %s71, 1
  %v4973 = vld [vmem:[%s4972] sm:$0x1]
  %v4974 = vadd.f32 %v4884, %v4965
  %v4975 = vadd.f32 %v4885, %v4968
  %v4976 = vsel %vm180, %v4974, 0.0
  %4977 = vadd.xlane.f32.xlu0 %v4976
  %v4978 = vpop.xlane.xlu0 %4977
  %v4979 = vsel %vm180, %v4975, 0.0
  %4980 = vadd.xlane.f32.xlu0 %v4979
  %v4981 = vpop.xlane.xlu0 %4980
  %v4982 = vmul.f32 %v4978, %v832
  %v4983 = vmul.f32 %v4981, %v832
  %v4984 = vsub.f32 %v4974, %v4982
  %v4985 = vsub.f32 %v4975, %v4983
  %v4986 = vmul.f32 %v4984, %v4984
  %v4987 = vmul.f32 %v4985, %v4985
  %v4988 = vsel %vm180, %v4986, 0.0
  %4989 = vadd.xlane.f32.xlu0 %v4988
  %v4990 = vpop.xlane.xlu0 %4989
  %v4991 = vsel %vm180, %v4987, 0.0
  %4992 = vadd.xlane.f32.xlu0 %v4991
  %v4993 = vpop.xlane.xlu0 %4992
  %v4994 = vmul.f32 %v4990, %v832
  %v4995 = vmul.f32 %v4993, %v832
  %v4996 = vadd.f32 %v4994, 1e-05
  %v4997 = vadd.f32 %v4995, 1e-05
  %v4998 = vrsqrt.pop %v4996
  %v4999 = vmul.f32 %v4998, %v4996
  %v5000 = vmul.f32 %v4999, %v4998
  %v5001 = vmul.f32 0.5, %v5000
  %v5002 = vsub.f32 1.5, %v5001
  %v5003 = vmul.f32 %v4998, %v5002
  %vm5004 = vweird.f32 %v4996
  %vm5005 = vweird.f32 %v4998
  %vm5006 = vmor %vm5004, %vm5005
  %v5007 = vsel %vm5006, %v4998, %v5003
  %v5008 = vrsqrt.pop %v4997
  %v5009 = vmul.f32 %v5008, %v4997
  %v5010 = vmul.f32 %v5009, %v5008
  %v5011 = vmul.f32 0.5, %v5010
  %v5012 = vsub.f32 1.5, %v5011
  %v5013 = vmul.f32 %v5008, %v5012
  %vm5014 = vweird.f32 %v4997
  %vm5015 = vweird.f32 %v5008
  %vm5016 = vmor %vm5014, %vm5015
  %v5017 = vsel %vm5016, %v5008, %v5013
  %v5018 = vmul.f32 %v4984, %v5007
  %v5019 = vmul.f32 %v4985, %v5017
  %v5021 = vperm.slane %v4971, 0
  %v5023 = vmul.f32 %v5018, %v5021
  %v5024 = vmul.f32 %v5019, %v5021
  %v5026 = vperm.slane %v4973, 0
  %v5028 = vadd.f32 %v5023, %v5026
  %v5029 = vadd.f32 %v5024, %v5026
  %v5030 = vld [vmem:[%s73] sm:$0xff]
  %v5031 = vld [vmem:[%s73 + $0x8] sm:$0xff]
  %v5032 = vld [vmem:[%s73 + $0x10] sm:$0xff]
  %v5033 = vld [vmem:[%s73 + $0x18] sm:$0xff]
  %v5034 = vld [vmem:[%s75] sm:$0x1]
  %v5036 = vperm.slane %v5034, 0
  %v5039 = vsel %vm180, %v5028, 0
  %v5042 = vsel %vm180, %v5029, 0
  %5044 = vmatpush.msra.mxu0 0.0
  %5045 = vmatpush.msra.mxu0 0.0
  %5046 = vmatpush.msra.mxu0 0.0
  %5047 = vmatpush.msra.mxu0 0.0
  %5048 = vmatpush.msra.mxu0 0.0
  %5049 = vmatpush.msra.mxu0 0.0
  %5050 = vmatpush.msra.mxu0 0.0
  %5051 = vmatpush.msra.mxu0 0.0
  %5052 = vmatpush.msra.mxu0 0.0
  %5053 = vmatpush.msra.mxu0 0.0
  %5054 = vmatpush.msra.mxu0 0.0
  %5055 = vmatpush.msra.mxu0 0.0
  %5056 = vmatpush.msra.mxu0 %v5033
  %5057 = vmatpush.msra.mxu0 %v5032
  %5058 = vmatpush.msra.mxu0 %v5031
  %5059 = vmatpush.msra.mxu0 %v5030
  %5060 = vmatmul.f32.gmra.mxu0 %v5039
  %v5061 = vpop.f32.mrf.mxu0
  %v5062 = vadd.f32 %v5036, %v5061
  %5063 = vmatmul.f32.gmra.mxu0 %v5042
  %v5064 = vpop.f32.mrf.mxu0
  %v5065 = vadd.f32 %v5036, %v5064
  %5066 = vdwg.mxu0
  %5067 = vst [vmem:[%s77] sm:$0xff] %v5062
  %5068 = vst [vmem:[%s77 + $0x8] sm:$0xff] %v5065
  // Predicated region
  $region154: #{my_transformer_forward.1} parent=0 // pred_check
    _
  $region155: #{my_transformer_forward.1} parent=0 // pred_check_branch
    %5070 = sbr.rel (0) target = $region157
  $region156: #{my_transformer_forward.1} parent=0 // pred_region
    _
  $region157: #{my_transformer_forward.1} parent=0 // pred_fallthru
    _
  // Predicated region
  $region158: #{my_transformer_forward.1} parent=0 // pred_check
    _
  $region159: #{my_transformer_forward.1} parent=0 // pred_check_branch
    %5072 = sbr.rel (0) target = $region161
  $region160: #{my_transformer_forward.1} parent=0 // pred_region
    _
  $region161: #{my_transformer_forward.1} parent=0 // pred_fallthru
    _

</llo_original>
